<compile_context>
chip_gen: v5e
topology: v5e:2x2
jax: 0.10.0
libtpu: 0.0.40
codegen_flags: <defaults>
</compile_context>

<pallas_src>
import functools

import jax
import jax.numpy as jnp
from jax.experimental import pallas as pl
from jax.experimental.pallas import tpu as pltpu

FEATURE_DIM = 128          # embed_dim of nn.MultiheadAttention
NUM_HEADS = 8
HEAD_DIM = FEATURE_DIM // NUM_HEADS
SEQ = 144                  # fixed by fc2 = nn.Linear(144, 1)


def _attention_classifier_kernel(
    x_ref,        # (bt, S, D)  features block
    wcat_ref,     # (D, 3D)     [scale*Wq^T | Wk^T | Wv^T]
    bcat_ref,     # (1, 3D)     [scale*bq   | bk   | bv  ]
    g_ref,        # (1, D)      fused readout g = Wo^T @ W1^T (row layout)
    w2_ref,       # (S, 1)      fc2 weight (column)
    consts_ref,   # SMEM (2,)   [bo @ W1^T + b1,  b2]
    out_ref,      # (1, 1, bt)  bag probabilities
    y_scr,        # VMEM (S, 3D) scratch: current bag's fused q|k|v
):
    bt = out_ref.shape[-1]
    b_fused = consts_ref[0]
    b2 = consts_ref[1]

    def batch_body(b, probs):
        # Fused in-projection for one bag: (S, D) @ (D, 3D) -> q|k|v.
        y_scr[...] = (
            jnp.dot(x_ref[b], wcat_ref[...], preferred_element_type=jnp.float32)
            + bcat_ref[...]
        )

        acc = jnp.zeros((SEQ, 1), jnp.float32)
        # Unrolled head loop; heads are serialized through `acc`, and the
        # (S,S) score/prob temporaries die inside each head iteration.
        for h in range(NUM_HEADS):
            lo = h * HEAD_DIM
            hi = lo + HEAD_DIM
            q_h = y_scr[:, lo:hi]                                   # scaled q
            k_h = y_scr[:, FEATURE_DIM + lo:FEATURE_DIM + hi]
            v_h = y_scr[:, 2 * FEATURE_DIM + lo:2 * FEATURE_DIM + hi]

            s = jnp.einsum("qd,kd->qk", q_h, k_h,
                           preferred_element_type=jnp.float32)      # (S, S)
            m = jnp.max(s, axis=-1, keepdims=True)
            p = jnp.exp(s - m)                                      # unnormalized
            denom = jnp.sum(p, axis=-1, keepdims=True)

            pv = jnp.dot(p, v_h, preferred_element_type=jnp.float32)  # (S, hd)
            # Rank-1 readout of this head's context (out-proj + fc1 fused);
            # softmax normalization applied on the small (S,1) result.
            c = jnp.sum(pv * g_ref[:, lo:hi], axis=-1, keepdims=True)  # (S, 1)
            acc = acc + c / denom

        logits = jax.nn.sigmoid(acc + b_fused)                       # (S, 1)
        prob = jax.nn.sigmoid(jnp.sum(logits * w2_ref[...]) + b2)    # scalar

        lane = jax.lax.broadcasted_iota(jnp.int32, (1, 1, bt), 2)
        return jnp.where(lane == b, prob, probs)

    out_ref[...] = jax.lax.fori_loop(
        0, bt, batch_body, jnp.zeros((1, 1, bt), jnp.float32))


@functools.partial(jax.jit, static_argnames=("block_batch",))
def attention_classifier(x, params, block_batch=8):
    wcat, bcat, g_row, w2col, consts = params
    B, S, D = x.shape
    assert S == SEQ and D == FEATURE_DIM

    bt = max(1, min(block_batch, B))
    nb = pl.cdiv(B, bt)
    b_pad = nb * bt
    if b_pad != B:
        x = jnp.concatenate([x, jnp.zeros((b_pad - B, S, D), x.dtype)], axis=0)

    grid_spec = pltpu.PrefetchScalarGridSpec(
        num_scalar_prefetch=0,
        grid=(nb,),
        in_specs=[
            pl.BlockSpec((bt, S, D), lambda i: (i, 0, 0)),       # features
            pl.BlockSpec((D, 3 * D), lambda i: (0, 0)),          # fused qkv W
            pl.BlockSpec((1, 3 * D), lambda i: (0, 0)),          # fused qkv b
            pl.BlockSpec((1, D), lambda i: (0, 0)),              # g
            pl.BlockSpec((S, 1), lambda i: (0, 0)),              # fc2 weight
            pl.BlockSpec(memory_space=pltpu.MemorySpace.SMEM),   # [b_fused, b2]
        ],
        out_specs=pl.BlockSpec((1, 1, bt), lambda i: (i, 0, 0)),
        scratch_shapes=[pltpu.VMEM((S, 3 * D), jnp.float32)],
    )

    out = pl.pallas_call(
        _attention_classifier_kernel,
        out_shape=jax.ShapeDtypeStruct((nb, 1, bt), jnp.float32),
        grid_spec=grid_spec,
        compiler_params=pltpu.CompilerParams(
            dimension_semantics=("parallel",)),
    )(x, wcat, bcat, g_row, w2col, consts)
    return out.reshape(nb * bt)[:B]


def init_raw_params(key):
    """Synthetic parameters with the PyTorch module's native shapes."""
    D, S = FEATURE_DIM, SEQ
    ks = jax.random.split(key, 8)
    in_w = jax.random.normal(ks[0], (3 * D, D), jnp.float32) * 0.05
    in_b = jax.random.normal(ks[1], (3 * D,), jnp.float32) * 0.05
    out_w = jax.random.normal(ks[2], (D, D), jnp.float32) * 0.05
    out_b = jax.random.normal(ks[3], (D,), jnp.float32) * 0.05
    fc1_w = jax.random.normal(ks[4], (1, D), jnp.float32) * 0.05
    fc1_b = jax.random.normal(ks[5], (1,), jnp.float32) * 0.05
    fc2_w = jax.random.normal(ks[6], (1, S), jnp.float32) * 0.05
    fc2_b = jax.random.normal(ks[7], (1,), jnp.float32) * 0.05
    return (in_w, in_b, out_w, out_b, fc1_w, fc1_b, fc2_w, fc2_b)


def prepare_params(raw):
    """Fold/fuse the PyTorch-shaped parameters for the kernel (exact math)."""
    in_w, in_b, out_w, out_b, fc1_w, fc1_b, fc2_w, fc2_b = raw
    D = FEATURE_DIM
    scale = 1.0 / float(HEAD_DIM) ** 0.5
    wq, wk, wv = in_w[:D], in_w[D:2 * D], in_w[2 * D:]
    bq, bk, bv = in_b[:D], in_b[D:2 * D], in_b[2 * D:]

    wcat = jnp.concatenate([wq.T * scale, wk.T, wv.T], axis=1)          # (D, 3D)
    bcat = jnp.concatenate([bq * scale, bk, bv]).reshape(1, 3 * D)      # (1, 3D)
    g = out_w.T @ fc1_w.T                                               # (D, 1)
    g_row = g.reshape(1, D)                                             # (1, D)
    b_fused = (out_b @ fc1_w.T)[0] + fc1_b[0]
    w2col = fc2_w.T                                                     # (S, 1)
    consts = jnp.array([b_fused, fc2_b[0]], dtype=jnp.float32)          # SMEM
    return (wcat, bcat, g_row, w2col, consts)


def reference(x, raw):
    """Pure-JAX reference matching PyTorch MultiheadAttention + fc1/fc2."""
    in_w, in_b, out_w, out_b, fc1_w, fc1_b, fc2_w, fc2_b = raw
    D, H, hd = FEATURE_DIM, NUM_HEADS, HEAD_DIM
    B, S, _ = x.shape
    wq, wk, wv = in_w[:D], in_w[D:2 * D], in_w[2 * D:]
    bq, bk, bv = in_b[:D], in_b[D:2 * D], in_b[2 * D:]
    q = x @ wq.T + bq
    k = x @ wk.T + bk
    v = x @ wv.T + bv
    qh = q.reshape(B, S, H, hd).transpose(0, 2, 1, 3)
    kh = k.reshape(B, S, H, hd).transpose(0, 2, 1, 3)
    vh = v.reshape(B, S, H, hd).transpose(0, 2, 1, 3)
    scores = jnp.einsum("bhqd,bhkd->bhqk", qh, kh) / jnp.sqrt(float(hd))
    attn = jax.nn.softmax(scores, axis=-1)
    ctx = jnp.einsum("bhqk,bhkd->bhqd", attn, vh)
    ctx = ctx.transpose(0, 2, 1, 3).reshape(B, S, D)
    attn_out = ctx @ out_w.T + out_b
    logits = jax.nn.sigmoid(attn_out @ fc1_w.T + fc1_b)[..., 0]         # (B, S)
    return jax.nn.sigmoid(logits @ fc2_w[0] + fc2_b[0])                 # (B,)


if __name__ == "__main__":
    key = jax.random.PRNGKey(0)
    kx, kp = jax.random.split(key)
    # Input implied by the module: (batch, num_patches=144, feature_dim=128).
    B = 11                                     # exercises batch blocking + padding
    x = jax.random.normal(kx, (B, SEQ, FEATURE_DIM), jnp.float32)
    raw = init_raw_params(kp)
    params = prepare_params(raw)

    prob = attention_classifier(x, params)
    prob = jax.block_until_ready(prob)

    ref = reference(x, raw)
    assert prob.shape == (B,)
    assert jnp.allclose(prob, ref, rtol=1e-5, atol=1e-5), (prob, ref)
    print("KERNEL_OK")
</pallas_src>

<mosaic_0001>
module attributes {stable_mosaic.version = 11 : i64} {
  func.func @_attention_classifier_kernel(%arg0: i32, %arg1: memref<8x144x128xf32, #tpu.memory_space<vmem>>, %arg2: memref<128x384xf32, #tpu.memory_space<vmem>>, %arg3: memref<1x384xf32, #tpu.memory_space<vmem>>, %arg4: memref<1x128xf32, #tpu.memory_space<vmem>>, %arg5: memref<144x1xf32, #tpu.memory_space<vmem>>, %arg6: memref<2xf32, #tpu.memory_space<smem>>, %arg7: memref<1x1x8xf32, #tpu.memory_space<vmem>>, %arg8: memref<144x384xf32, #tpu.memory_space<vmem>>) attributes {dimension_semantics = [#tpu.dimension_semantics<parallel>], iteration_bounds = array<i64: 2>, scalar_prefetch = 0 : i64, scratch_operands = 1 : i64, tpu.core_type = #tpu.core_type<tc>, window_params = [{transform_indices = @transform_0, window_bounds = array<i64: 8, 144, 128>}, {pipeline_mode = #tpu.pipeline_mode<synchronous>, transform_indices = @transform_1, window_bounds = array<i64: 128, 384>}, {pipeline_mode = #tpu.pipeline_mode<synchronous>, transform_indices = @transform_2, window_bounds = array<i64: 1, 384>}, {pipeline_mode = #tpu.pipeline_mode<synchronous>, transform_indices = @transform_3, window_bounds = array<i64: 1, 128>}, {pipeline_mode = #tpu.pipeline_mode<synchronous>, transform_indices = @transform_4, window_bounds = array<i64: 144, 1>}, {transform_indices = @transform_5, window_bounds = array<i64: 2>}, {transform_indices = @transform_6, window_bounds = array<i64: 1, 1, 8>}]} {
    %c0 = arith.constant 0 : index
    %0 = memref.load %arg6[%c0] : memref<2xf32, #tpu.memory_space<smem>>
    %c1 = arith.constant 1 : index
    %1 = memref.load %arg6[%c1] : memref<2xf32, #tpu.memory_space<smem>>
    %cst = arith.constant 0.000000e+00 : f32
    %2 = vector.broadcast %cst : f32 to vector<1x1x8xf32>
    %c0_i32 = arith.constant 0 : i32
    %c8_i32 = arith.constant 8 : i32
    %3 = arith.addi %c0_i32, %c8_i32 : i32
    %c1_i32 = arith.constant 1 : i32
    %4 = scf.for %arg9 = %c0_i32 to %3 step %c1_i32 iter_args(%arg10 = %2) -> (vector<1x1x8xf32>)  : i32 {
      %6 = arith.index_cast %arg9 : i32 to index
      %c0_4 = arith.constant 0 : index
      %c0_5 = arith.constant 0 : index
      %7 = vector.load %arg1[%6, %c0_4, %c0_5] : memref<8x144x128xf32, #tpu.memory_space<vmem>>, vector<1x144x128xf32>
      %8 = vector.shape_cast %7 : vector<1x144x128xf32> to vector<144x128xf32>
      %c0_6 = arith.constant 0 : index
      %c0_7 = arith.constant 0 : index
      %9 = vector.load %arg2[%c0_6, %c0_7] : memref<128x384xf32, #tpu.memory_space<vmem>>, vector<128x384xf32>
      %cst_8 = arith.constant dense<0.000000e+00> : vector<144x384xf32>
      %10 = tpu.matmul %8, %9, %cst_8 {dimension_numbers = #tpu.dot_dimension_numbers<[1], [0], [0], [1], [0, 0, 1, 1], [], []>} : vector<144x128xf32>, vector<128x384xf32>, vector<144x384xf32> -> vector<144x384xf32>
      %c0_9 = arith.constant 0 : index
      %c0_10 = arith.constant 0 : index
      %11 = vector.load %arg3[%c0_9, %c0_10] : memref<1x384xf32, #tpu.memory_space<vmem>>, vector<1x384xf32>
      %12 = vector.broadcast %11 : vector<1x384xf32> to vector<144x384xf32>
      %13 = arith.addf %10, %12 : vector<144x384xf32>
      %c0_11 = arith.constant 0 : index
      %c0_12 = arith.constant 0 : index
      %14 = vector.load %arg8[%c0_11, %c0_12] : memref<144x384xf32, #tpu.memory_space<vmem>>, vector<144x384xf32>
      tpu.vector_store %arg8[%c0_11, %c0_12], %13 {strides = array<i32>} : memref<144x384xf32, #tpu.memory_space<vmem>>, vector<144x384xf32>,
      %cst_13 = arith.constant 0.000000e+00 : f32
      %15 = vector.broadcast %cst_13 : f32 to vector<144x1xf32>
      %c0_14 = arith.constant 0 : index
      %c0_15 = arith.constant 0 : index
      %16 = vector.load %arg8[%c0_14, %c0_15] : memref<144x384xf32, #tpu.memory_space<vmem>>, vector<144x16xf32>
      %c0_16 = arith.constant 0 : index
      %c128 = arith.constant 128 : index
      %17 = vector.load %arg8[%c0_16, %c128] : memref<144x384xf32, #tpu.memory_space<vmem>>, vector<144x16xf32>
      %c0_17 = arith.constant 0 : index
      %c256 = arith.constant 256 : index
      %18 = vector.load %arg8[%c0_17, %c256] : memref<144x384xf32, #tpu.memory_space<vmem>>, vector<144x16xf32>
      "tpu.trace_start"() <{level = 10 : i32, message = "qd,kd->qk"}> : () -> ()
      %cst_18 = arith.constant dense<0.000000e+00> : vector<144x144xf32>
      %19 = tpu.matmul %16, %17, %cst_18 {dimension_numbers = #tpu.dot_dimension_numbers<[1], [1], [0], [0], [0, 0, 1, 0], [], []>} : vector<144x16xf32>, vector<144x16xf32>, vector<144x144xf32> -> vector<144x144xf32>
      "tpu.trace_stop"() : () -> ()
      %cst_19 = arith.constant dense<0xFF800000> : vector<144xf32>
      %20 = vector.multi_reduction <maximumf>, %19, %cst_19 [1] : vector<144x144xf32> to vector<144xf32>
      %21 = vector.shape_cast %20 : vector<144xf32> to vector<144x1xf32>
      %22 = vector.broadcast %21 : vector<144x1xf32> to vector<144x144xf32>
      %23 = arith.subf %19, %22 : vector<144x144xf32>
      %24 = math.exp %23 : vector<144x144xf32>
      %cst_20 = arith.constant dense<0.000000e+00> : vector<144xf32>
      %25 = vector.multi_reduction <add>, %24, %cst_20 [1] : vector<144x144xf32> to vector<144xf32>
      %26 = vector.shape_cast %25 : vector<144xf32> to vector<144x1xf32>
      %cst_21 = arith.constant dense<0.000000e+00> : vector<144x16xf32>
      %27 = tpu.matmul %24, %18, %cst_21 {dimension_numbers = #tpu.dot_dimension_numbers<[1], [0], [0], [1], [0, 0, 1, 1], [], []>} : vector<144x144xf32>, vector<144x16xf32>, vector<144x16xf32> -> vector<144x16xf32>
      %c0_22 = arith.constant 0 : index
      %c0_23 = arith.constant 0 : index
      %28 = vector.load %arg4[%c0_22, %c0_23] : memref<1x128xf32, #tpu.memory_space<vmem>>, vector<1x16xf32>
      %29 = vector.broadcast %28 : vector<1x16xf32> to vector<144x16xf32>
      %30 = arith.mulf %27, %29 : vector<144x16xf32>
      %cst_24 = arith.constant dense<0.000000e+00> : vector<144xf32>
      %31 = vector.multi_reduction <add>, %30, %cst_24 [1] : vector<144x16xf32> to vector<144xf32>
      %32 = vector.shape_cast %31 : vector<144xf32> to vector<144x1xf32>
      %33 = arith.divf %32, %26 : vector<144x1xf32>
      %34 = arith.addf %15, %33 : vector<144x1xf32>
      %c0_25 = arith.constant 0 : index
      %c16 = arith.constant 16 : index
      %35 = vector.load %arg8[%c0_25, %c16] : memref<144x384xf32, #tpu.memory_space<vmem>>, vector<144x16xf32>
      %c0_26 = arith.constant 0 : index
      %c144 = arith.constant 144 : index
      %36 = vector.load %arg8[%c0_26, %c144] : memref<144x384xf32, #tpu.memory_space<vmem>>, vector<144x16xf32>
      %c0_27 = arith.constant 0 : index
      %c272 = arith.constant 272 : index
      %37 = vector.load %arg8[%c0_27, %c272] : memref<144x384xf32, #tpu.memory_space<vmem>>, vector<144x16xf32>
      "tpu.trace_start"() <{level = 10 : i32, message = "qd,kd->qk"}> : () -> ()
      %cst_28 = arith.constant dense<0.000000e+00> : vector<144x144xf32>
      %38 = tpu.matmul %35, %36, %cst_28 {dimension_numbers = #tpu.dot_dimension_numbers<[1], [1], [0], [0], [0, 0, 1, 0], [], []>} : vector<144x16xf32>, vector<144x16xf32>, vector<144x144xf32> -> vector<144x144xf32>
      "tpu.trace_stop"() : () -> ()
      %cst_29 = arith.constant dense<0xFF800000> : vector<144xf32>
      %39 = vector.multi_reduction <maximumf>, %38, %cst_29 [1] : vector<144x144xf32> to vector<144xf32>
      %40 = vector.shape_cast %39 : vector<144xf32> to vector<144x1xf32>
      %41 = vector.broadcast %40 : vector<144x1xf32> to vector<144x144xf32>
      %42 = arith.subf %38, %41 : vector<144x144xf32>
      %43 = math.exp %42 : vector<144x144xf32>
      %cst_30 = arith.constant dense<0.000000e+00> : vector<144xf32>
      %44 = vector.multi_reduction <add>, %43, %cst_30 [1] : vector<144x144xf32> to vector<144xf32>
      %45 = vector.shape_cast %44 : vector<144xf32> to vector<144x1xf32>
      %cst_31 = arith.constant dense<0.000000e+00> : vector<144x16xf32>
      %46 = tpu.matmul %43, %37, %cst_31 {dimension_numbers = #tpu.dot_dimension_numbers<[1], [0], [0], [1], [0, 0, 1, 1], [], []>} : vector<144x144xf32>, vector<144x16xf32>, vector<144x16xf32> -> vector<144x16xf32>
      %c0_32 = arith.constant 0 : index
      %c16_33 = arith.constant 16 : index
      %47 = vector.load %arg4[%c0_32, %c16_33] : memref<1x128xf32, #tpu.memory_space<vmem>>, vector<1x16xf32>
      %48 = vector.broadcast %47 : vector<1x16xf32> to vector<144x16xf32>
      %49 = arith.mulf %46, %48 : vector<144x16xf32>
      %cst_34 = arith.constant dense<0.000000e+00> : vector<144xf32>
      %50 = vector.multi_reduction <add>, %49, %cst_34 [1] : vector<144x16xf32> to vector<144xf32>
      %51 = vector.shape_cast %50 : vector<144xf32> to vector<144x1xf32>
      %52 = arith.divf %51, %45 : vector<144x1xf32>
      %53 = arith.addf %34, %52 : vector<144x1xf32>
      %c0_35 = arith.constant 0 : index
      %c32 = arith.constant 32 : index
      %54 = vector.load %arg8[%c0_35, %c32] : memref<144x384xf32, #tpu.memory_space<vmem>>, vector<144x16xf32>
      %c0_36 = arith.constant 0 : index
      %c160 = arith.constant 160 : index
      %55 = vector.load %arg8[%c0_36, %c160] : memref<144x384xf32, #tpu.memory_space<vmem>>, vector<144x16xf32>
      %c0_37 = arith.constant 0 : index
      %c288 = arith.constant 288 : index
      %56 = vector.load %arg8[%c0_37, %c288] : memref<144x384xf32, #tpu.memory_space<vmem>>, vector<144x16xf32>
      "tpu.trace_start"() <{level = 10 : i32, message = "qd,kd->qk"}> : () -> ()
      %cst_38 = arith.constant dense<0.000000e+00> : vector<144x144xf32>
      %57 = tpu.matmul %54, %55, %cst_38 {dimension_numbers = #tpu.dot_dimension_numbers<[1], [1], [0], [0], [0, 0, 1, 0], [], []>} : vector<144x16xf32>, vector<144x16xf32>, vector<144x144xf32> -> vector<144x144xf32>
      "tpu.trace_stop"() : () -> ()
      %cst_39 = arith.constant dense<0xFF800000> : vector<144xf32>
      %58 = vector.multi_reduction <maximumf>, %57, %cst_39 [1] : vector<144x144xf32> to vector<144xf32>
      %59 = vector.shape_cast %58 : vector<144xf32> to vector<144x1xf32>
      %60 = vector.broadcast %59 : vector<144x1xf32> to vector<144x144xf32>
      %61 = arith.subf %57, %60 : vector<144x144xf32>
      %62 = math.exp %61 : vector<144x144xf32>
      %cst_40 = arith.constant dense<0.000000e+00> : vector<144xf32>
      %63 = vector.multi_reduction <add>, %62, %cst_40 [1] : vector<144x144xf32> to vector<144xf32>
      %64 = vector.shape_cast %63 : vector<144xf32> to vector<144x1xf32>
      %cst_41 = arith.constant dense<0.000000e+00> : vector<144x16xf32>
      %65 = tpu.matmul %62, %56, %cst_41 {dimension_numbers = #tpu.dot_dimension_numbers<[1], [0], [0], [1], [0, 0, 1, 1], [], []>} : vector<144x144xf32>, vector<144x16xf32>, vector<144x16xf32> -> vector<144x16xf32>
      %c0_42 = arith.constant 0 : index
      %c32_43 = arith.constant 32 : index
      %66 = vector.load %arg4[%c0_42, %c32_43] : memref<1x128xf32, #tpu.memory_space<vmem>>, vector<1x16xf32>
      %67 = vector.broadcast %66 : vector<1x16xf32> to vector<144x16xf32>
      %68 = arith.mulf %65, %67 : vector<144x16xf32>
      %cst_44 = arith.constant dense<0.000000e+00> : vector<144xf32>
      %69 = vector.multi_reduction <add>, %68, %cst_44 [1] : vector<144x16xf32> to vector<144xf32>
      %70 = vector.shape_cast %69 : vector<144xf32> to vector<144x1xf32>
      %71 = arith.divf %70, %64 : vector<144x1xf32>
      %72 = arith.addf %53, %71 : vector<144x1xf32>
      %c0_45 = arith.constant 0 : index
      %c48 = arith.constant 48 : index
      %73 = vector.load %arg8[%c0_45, %c48] : memref<144x384xf32, #tpu.memory_space<vmem>>, vector<144x16xf32>
      %c0_46 = arith.constant 0 : index
      %c176 = arith.constant 176 : index
      %74 = vector.load %arg8[%c0_46, %c176] : memref<144x384xf32, #tpu.memory_space<vmem>>, vector<144x16xf32>
      %c0_47 = arith.constant 0 : index
      %c304 = arith.constant 304 : index
      %75 = vector.load %arg8[%c0_47, %c304] : memref<144x384xf32, #tpu.memory_space<vmem>>, vector<144x16xf32>
      "tpu.trace_start"() <{level = 10 : i32, message = "qd,kd->qk"}> : () -> ()
      %cst_48 = arith.constant dense<0.000000e+00> : vector<144x144xf32>
      %76 = tpu.matmul %73, %74, %cst_48 {dimension_numbers = #tpu.dot_dimension_numbers<[1], [1], [0], [0], [0, 0, 1, 0], [], []>} : vector<144x16xf32>, vector<144x16xf32>, vector<144x144xf32> -> vector<144x144xf32>
      "tpu.trace_stop"() : () -> ()
      %cst_49 = arith.constant dense<0xFF800000> : vector<144xf32>
      %77 = vector.multi_reduction <maximumf>, %76, %cst_49 [1] : vector<144x144xf32> to vector<144xf32>
      %78 = vector.shape_cast %77 : vector<144xf32> to vector<144x1xf32>
      %79 = vector.broadcast %78 : vector<144x1xf32> to vector<144x144xf32>
      %80 = arith.subf %76, %79 : vector<144x144xf32>
      %81 = math.exp %80 : vector<144x144xf32>
      %cst_50 = arith.constant dense<0.000000e+00> : vector<144xf32>
      %82 = vector.multi_reduction <add>, %81, %cst_50 [1] : vector<144x144xf32> to vector<144xf32>
      %83 = vector.shape_cast %82 : vector<144xf32> to vector<144x1xf32>
      %cst_51 = arith.constant dense<0.000000e+00> : vector<144x16xf32>
      %84 = tpu.matmul %81, %75, %cst_51 {dimension_numbers = #tpu.dot_dimension_numbers<[1], [0], [0], [1], [0, 0, 1, 1], [], []>} : vector<144x144xf32>, vector<144x16xf32>, vector<144x16xf32> -> vector<144x16xf32>
      %c0_52 = arith.constant 0 : index
      %c48_53 = arith.constant 48 : index
      %85 = vector.load %arg4[%c0_52, %c48_53] : memref<1x128xf32, #tpu.memory_space<vmem>>, vector<1x16xf32>
      %86 = vector.broadcast %85 : vector<1x16xf32> to vector<144x16xf32>
      %87 = arith.mulf %84, %86 : vector<144x16xf32>
      %cst_54 = arith.constant dense<0.000000e+00> : vector<144xf32>
      %88 = vector.multi_reduction <add>, %87, %cst_54 [1] : vector<144x16xf32> to vector<144xf32>
      %89 = vector.shape_cast %88 : vector<144xf32> to vector<144x1xf32>
      %90 = arith.divf %89, %83 : vector<144x1xf32>
      %91 = arith.addf %72, %90 : vector<144x1xf32>
      %c0_55 = arith.constant 0 : index
      %c64 = arith.constant 64 : index
      %92 = vector.load %arg8[%c0_55, %c64] : memref<144x384xf32, #tpu.memory_space<vmem>>, vector<144x16xf32>
      %c0_56 = arith.constant 0 : index
      %c192 = arith.constant 192 : index
      %93 = vector.load %arg8[%c0_56, %c192] : memref<144x384xf32, #tpu.memory_space<vmem>>, vector<144x16xf32>
      %c0_57 = arith.constant 0 : index
      %c320 = arith.constant 320 : index
      %94 = vector.load %arg8[%c0_57, %c320] : memref<144x384xf32, #tpu.memory_space<vmem>>, vector<144x16xf32>
      "tpu.trace_start"() <{level = 10 : i32, message = "qd,kd->qk"}> : () -> ()
      %cst_58 = arith.constant dense<0.000000e+00> : vector<144x144xf32>
      %95 = tpu.matmul %92, %93, %cst_58 {dimension_numbers = #tpu.dot_dimension_numbers<[1], [1], [0], [0], [0, 0, 1, 0], [], []>} : vector<144x16xf32>, vector<144x16xf32>, vector<144x144xf32> -> vector<144x144xf32>
      "tpu.trace_stop"() : () -> ()
      %cst_59 = arith.constant dense<0xFF800000> : vector<144xf32>
      %96 = vector.multi_reduction <maximumf>, %95, %cst_59 [1] : vector<144x144xf32> to vector<144xf32>
      %97 = vector.shape_cast %96 : vector<144xf32> to vector<144x1xf32>
      %98 = vector.broadcast %97 : vector<144x1xf32> to vector<144x144xf32>
      %99 = arith.subf %95, %98 : vector<144x144xf32>
      %100 = math.exp %99 : vector<144x144xf32>
      %cst_60 = arith.constant dense<0.000000e+00> : vector<144xf32>
      %101 = vector.multi_reduction <add>, %100, %cst_60 [1] : vector<144x144xf32> to vector<144xf32>
      %102 = vector.shape_cast %101 : vector<144xf32> to vector<144x1xf32>
      %cst_61 = arith.constant dense<0.000000e+00> : vector<144x16xf32>
      %103 = tpu.matmul %100, %94, %cst_61 {dimension_numbers = #tpu.dot_dimension_numbers<[1], [0], [0], [1], [0, 0, 1, 1], [], []>} : vector<144x144xf32>, vector<144x16xf32>, vector<144x16xf32> -> vector<144x16xf32>
      %c0_62 = arith.constant 0 : index
      %c64_63 = arith.constant 64 : index
      %104 = vector.load %arg4[%c0_62, %c64_63] : memref<1x128xf32, #tpu.memory_space<vmem>>, vector<1x16xf32>
      %105 = vector.broadcast %104 : vector<1x16xf32> to vector<144x16xf32>
      %106 = arith.mulf %103, %105 : vector<144x16xf32>
      %cst_64 = arith.constant dense<0.000000e+00> : vector<144xf32>
      %107 = vector.multi_reduction <add>, %106, %cst_64 [1] : vector<144x16xf32> to vector<144xf32>
      %108 = vector.shape_cast %107 : vector<144xf32> to vector<144x1xf32>
      %109 = arith.divf %108, %102 : vector<144x1xf32>
      %110 = arith.addf %91, %109 : vector<144x1xf32>
      %c0_65 = arith.constant 0 : index
      %c80 = arith.constant 80 : index
      %111 = vector.load %arg8[%c0_65, %c80] : memref<144x384xf32, #tpu.memory_space<vmem>>, vector<144x16xf32>
      %c0_66 = arith.constant 0 : index
      %c208 = arith.constant 208 : index
      %112 = vector.load %arg8[%c0_66, %c208] : memref<144x384xf32, #tpu.memory_space<vmem>>, vector<144x16xf32>
      %c0_67 = arith.constant 0 : index
      %c336 = arith.constant 336 : index
      %113 = vector.load %arg8[%c0_67, %c336] : memref<144x384xf32, #tpu.memory_space<vmem>>, vector<144x16xf32>
      "tpu.trace_start"() <{level = 10 : i32, message = "qd,kd->qk"}> : () -> ()
      %cst_68 = arith.constant dense<0.000000e+00> : vector<144x144xf32>
      %114 = tpu.matmul %111, %112, %cst_68 {dimension_numbers = #tpu.dot_dimension_numbers<[1], [1], [0], [0], [0, 0, 1, 0], [], []>} : vector<144x16xf32>, vector<144x16xf32>, vector<144x144xf32> -> vector<144x144xf32>
      "tpu.trace_stop"() : () -> ()
      %cst_69 = arith.constant dense<0xFF800000> : vector<144xf32>
      %115 = vector.multi_reduction <maximumf>, %114, %cst_69 [1] : vector<144x144xf32> to vector<144xf32>
      %116 = vector.shape_cast %115 : vector<144xf32> to vector<144x1xf32>
      %117 = vector.broadcast %116 : vector<144x1xf32> to vector<144x144xf32>
      %118 = arith.subf %114, %117 : vector<144x144xf32>
      %119 = math.exp %118 : vector<144x144xf32>
      %cst_70 = arith.constant dense<0.000000e+00> : vector<144xf32>
      %120 = vector.multi_reduction <add>, %119, %cst_70 [1] : vector<144x144xf32> to vector<144xf32>
      %121 = vector.shape_cast %120 : vector<144xf32> to vector<144x1xf32>
      %cst_71 = arith.constant dense<0.000000e+00> : vector<144x16xf32>
      %122 = tpu.matmul %119, %113, %cst_71 {dimension_numbers = #tpu.dot_dimension_numbers<[1], [0], [0], [1], [0, 0, 1, 1], [], []>} : vector<144x144xf32>, vector<144x16xf32>, vector<144x16xf32> -> vector<144x16xf32>
      %c0_72 = arith.constant 0 : index
      %c80_73 = arith.constant 80 : index
      %123 = vector.load %arg4[%c0_72, %c80_73] : memref<1x128xf32, #tpu.memory_space<vmem>>, vector<1x16xf32>
      %124 = vector.broadcast %123 : vector<1x16xf32> to vector<144x16xf32>
      %125 = arith.mulf %122, %124 : vector<144x16xf32>
      %cst_74 = arith.constant dense<0.000000e+00> : vector<144xf32>
      %126 = vector.multi_reduction <add>, %125, %cst_74 [1] : vector<144x16xf32> to vector<144xf32>
      %127 = vector.shape_cast %126 : vector<144xf32> to vector<144x1xf32>
      %128 = arith.divf %127, %121 : vector<144x1xf32>
      %129 = arith.addf %110, %128 : vector<144x1xf32>
      %c0_75 = arith.constant 0 : index
      %c96 = arith.constant 96 : index
      %130 = vector.load %arg8[%c0_75, %c96] : memref<144x384xf32, #tpu.memory_space<vmem>>, vector<144x16xf32>
      %c0_76 = arith.constant 0 : index
      %c224 = arith.constant 224 : index
      %131 = vector.load %arg8[%c0_76, %c224] : memref<144x384xf32, #tpu.memory_space<vmem>>, vector<144x16xf32>
      %c0_77 = arith.constant 0 : index
      %c352 = arith.constant 352 : index
      %132 = vector.load %arg8[%c0_77, %c352] : memref<144x384xf32, #tpu.memory_space<vmem>>, vector<144x16xf32>
      "tpu.trace_start"() <{level = 10 : i32, message = "qd,kd->qk"}> : () -> ()
      %cst_78 = arith.constant dense<0.000000e+00> : vector<144x144xf32>
      %133 = tpu.matmul %130, %131, %cst_78 {dimension_numbers = #tpu.dot_dimension_numbers<[1], [1], [0], [0], [0, 0, 1, 0], [], []>} : vector<144x16xf32>, vector<144x16xf32>, vector<144x144xf32> -> vector<144x144xf32>
      "tpu.trace_stop"() : () -> ()
      %cst_79 = arith.constant dense<0xFF800000> : vector<144xf32>
      %134 = vector.multi_reduction <maximumf>, %133, %cst_79 [1] : vector<144x144xf32> to vector<144xf32>
      %135 = vector.shape_cast %134 : vector<144xf32> to vector<144x1xf32>
      %136 = vector.broadcast %135 : vector<144x1xf32> to vector<144x144xf32>
      %137 = arith.subf %133, %136 : vector<144x144xf32>
      %138 = math.exp %137 : vector<144x144xf32>
      %cst_80 = arith.constant dense<0.000000e+00> : vector<144xf32>
      %139 = vector.multi_reduction <add>, %138, %cst_80 [1] : vector<144x144xf32> to vector<144xf32>
      %140 = vector.shape_cast %139 : vector<144xf32> to vector<144x1xf32>
      %cst_81 = arith.constant dense<0.000000e+00> : vector<144x16xf32>
      %141 = tpu.matmul %138, %132, %cst_81 {dimension_numbers = #tpu.dot_dimension_numbers<[1], [0], [0], [1], [0, 0, 1, 1], [], []>} : vector<144x144xf32>, vector<144x16xf32>, vector<144x16xf32> -> vector<144x16xf32>
      %c0_82 = arith.constant 0 : index
      %c96_83 = arith.constant 96 : index
      %142 = vector.load %arg4[%c0_82, %c96_83] : memref<1x128xf32, #tpu.memory_space<vmem>>, vector<1x16xf32>
      %143 = vector.broadcast %142 : vector<1x16xf32> to vector<144x16xf32>
      %144 = arith.mulf %141, %143 : vector<144x16xf32>
      %cst_84 = arith.constant dense<0.000000e+00> : vector<144xf32>
      %145 = vector.multi_reduction <add>, %144, %cst_84 [1] : vector<144x16xf32> to vector<144xf32>
      %146 = vector.shape_cast %145 : vector<144xf32> to vector<144x1xf32>
      %147 = arith.divf %146, %140 : vector<144x1xf32>
      %148 = arith.addf %129, %147 : vector<144x1xf32>
      %c0_85 = arith.constant 0 : index
      %c112 = arith.constant 112 : index
      %149 = vector.load %arg8[%c0_85, %c112] : memref<144x384xf32, #tpu.memory_space<vmem>>, vector<144x16xf32>
      %c0_86 = arith.constant 0 : index
      %c240 = arith.constant 240 : index
      %150 = vector.load %arg8[%c0_86, %c240] : memref<144x384xf32, #tpu.memory_space<vmem>>, vector<144x16xf32>
      %c0_87 = arith.constant 0 : index
      %c368 = arith.constant 368 : index
      %151 = vector.load %arg8[%c0_87, %c368] : memref<144x384xf32, #tpu.memory_space<vmem>>, vector<144x16xf32>
      "tpu.trace_start"() <{level = 10 : i32, message = "qd,kd->qk"}> : () -> ()
      %cst_88 = arith.constant dense<0.000000e+00> : vector<144x144xf32>
      %152 = tpu.matmul %149, %150, %cst_88 {dimension_numbers = #tpu.dot_dimension_numbers<[1], [1], [0], [0], [0, 0, 1, 0], [], []>} : vector<144x16xf32>, vector<144x16xf32>, vector<144x144xf32> -> vector<144x144xf32>
      "tpu.trace_stop"() : () -> ()
      %cst_89 = arith.constant dense<0xFF800000> : vector<144xf32>
      %153 = vector.multi_reduction <maximumf>, %152, %cst_89 [1] : vector<144x144xf32> to vector<144xf32>
      %154 = vector.shape_cast %153 : vector<144xf32> to vector<144x1xf32>
      %155 = vector.broadcast %154 : vector<144x1xf32> to vector<144x144xf32>
      %156 = arith.subf %152, %155 : vector<144x144xf32>
      %157 = math.exp %156 : vector<144x144xf32>
      %cst_90 = arith.constant dense<0.000000e+00> : vector<144xf32>
      %158 = vector.multi_reduction <add>, %157, %cst_90 [1] : vector<144x144xf32> to vector<144xf32>
      %159 = vector.shape_cast %158 : vector<144xf32> to vector<144x1xf32>
      %cst_91 = arith.constant dense<0.000000e+00> : vector<144x16xf32>
      %160 = tpu.matmul %157, %151, %cst_91 {dimension_numbers = #tpu.dot_dimension_numbers<[1], [0], [0], [1], [0, 0, 1, 1], [], []>} : vector<144x144xf32>, vector<144x16xf32>, vector<144x16xf32> -> vector<144x16xf32>
      %c0_92 = arith.constant 0 : index
      %c112_93 = arith.constant 112 : index
      %161 = vector.load %arg4[%c0_92, %c112_93] : memref<1x128xf32, #tpu.memory_space<vmem>>, vector<1x16xf32>
      %162 = vector.broadcast %161 : vector<1x16xf32> to vector<144x16xf32>
      %163 = arith.mulf %160, %162 : vector<144x16xf32>
      %cst_94 = arith.constant dense<0.000000e+00> : vector<144xf32>
      %164 = vector.multi_reduction <add>, %163, %cst_94 [1] : vector<144x16xf32> to vector<144xf32>
      %165 = vector.shape_cast %164 : vector<144xf32> to vector<144x1xf32>
      %166 = arith.divf %165, %159 : vector<144x1xf32>
      %167 = arith.addf %148, %166 : vector<144x1xf32>
      %168 = vector.broadcast %0 : f32 to vector<144x1xf32>
      %169 = arith.addf %167, %168 : vector<144x1xf32>
      %170 = arith.negf %169 : vector<144x1xf32>
      %171 = math.exp %170 : vector<144x1xf32>
      %cst_95 = arith.constant 1.000000e+00 : f32
      %172 = vector.broadcast %cst_95 : f32 to vector<144x1xf32>
      %173 = arith.addf %172, %171 : vector<144x1xf32>
      %174 = arith.divf %172, %173 : vector<144x1xf32>
      %c0_96 = arith.constant 0 : index
      %c0_97 = arith.constant 0 : index
      %175 = vector.load %arg5[%c0_96, %c0_97] : memref<144x1xf32, #tpu.memory_space<vmem>>, vector<144x1xf32>
      %176 = arith.mulf %174, %175 : vector<144x1xf32>
      %177 = vector.shape_cast %176 : vector<144x1xf32> to vector<1x144x1xf32>
      %cst_98 = arith.constant dense<0.000000e+00> : vector<1xf32>
      %178 = vector.multi_reduction <add>, %177, %cst_98 [1, 2] : vector<1x144x1xf32> to vector<1xf32>
      %179 = vector.shape_cast %178 : vector<1xf32> to vector<1x1x1xf32>
      %180 = vector.extract %179[0, 0, 0] : f32 from vector<1x1x1xf32>
      %181 = arith.addf %180, %1 : f32
      %182 = arith.negf %181 : f32
      %183 = math.exp %182 : f32
      %cst_99 = arith.constant 1.000000e+00 : f32
      %184 = arith.addf %cst_99, %183 : f32
      %185 = arith.divf %cst_99, %184 : f32
      %186 = tpu.iota {dimensions = array<i32: 2>} : vector<1x1x8xi32>
      %187 = vector.broadcast %arg9 : i32 to vector<1x1x8xi32>
      %188 = arith.cmpi eq, %186, %187 : vector<1x1x8xi32>
      %189 = vector.broadcast %185 : f32 to vector<1x1x8xf32>
      %190 = arith.select %188, %189, %arg10 : vector<1x1x8xi1>, vector<1x1x8xf32>
      scf.yield %190 : vector<1x1x8xf32>
    }
    %c8_i32_0 = arith.constant 8 : i32
    %c0_1 = arith.constant 0 : index
    %c0_2 = arith.constant 0 : index
    %c0_3 = arith.constant 0 : index
    %5 = vector.load %arg7[%c0_1, %c0_2, %c0_3] : memref<1x1x8xf32, #tpu.memory_space<vmem>>, vector<1x1x8xf32>
    tpu.vector_store %arg7[%c0_1, %c0_2, %c0_3], %4 {strides = array<i32>} : memref<1x1x8xf32, #tpu.memory_space<vmem>>, vector<1x1x8xf32>,
    return
  }
  func.func @transform_0(%arg0: i32) -> (i32, i32, i32) {
    %c0_i32 = arith.constant 0 : i32
    %c0_i32_0 = arith.constant 0 : i32
    %c0_i32_1 = arith.constant 0 : i32
    return %arg0, %c0_i32, %c0_i32_0 : i32, i32, i32
  }
  func.func @transform_1(%arg0: i32) -> (i32, i32) {
    %c0_i32 = arith.constant 0 : i32
    %c0_i32_0 = arith.constant 0 : i32
    %c0_i32_1 = arith.constant 0 : i32
    return %c0_i32, %c0_i32_0 : i32, i32
  }
  func.func @transform_2(%arg0: i32) -> (i32, i32) {
    %c0_i32 = arith.constant 0 : i32
    %c0_i32_0 = arith.constant 0 : i32
    %c0_i32_1 = arith.constant 0 : i32
    return %c0_i32, %c0_i32_0 : i32, i32
  }
  func.func @transform_3(%arg0: i32) -> (i32, i32) {
    %c0_i32 = arith.constant 0 : i32
    %c0_i32_0 = arith.constant 0 : i32
    %c0_i32_1 = arith.constant 0 : i32
    return %c0_i32, %c0_i32_0 : i32, i32
  }
  func.func @transform_4(%arg0: i32) -> (i32, i32) {
    %c0_i32 = arith.constant 0 : i32
    %c0_i32_0 = arith.constant 0 : i32
    %c0_i32_1 = arith.constant 0 : i32
    return %c0_i32, %c0_i32_0 : i32, i32
  }
  func.func @transform_5(%arg0: i32) -> i32 {
    %c0_i32 = arith.constant 0 : i32
    %c0_i32_0 = arith.constant 0 : i32
    return %c0_i32 : i32
  }
  func.func @transform_6(%arg0: i32) -> (i32, i32, i32) {
    %c0_i32 = arith.constant 0 : i32
    %c0_i32_0 = arith.constant 0 : i32
    %c0_i32_1 = arith.constant 0 : i32
    return %arg0, %c0_i32, %c0_i32_0 : i32, i32, i32
  }
}

</mosaic_0001>

<llo_original>
// kernel: attention_classifier.1
$region0: #{attention_classifier.1}
  #allocation0 [shape = 'u32[]', space=smem, size = 0x4, offset = 0x4, fixed_abs, tag = 'smem constant byte address 0x4 - core index']
  #allocation1 [shape = 'u32[72,128]{1,0:T(1,128)}', space=vmem, size = 0x9000, scoped, tag = 'internal scratch']
  #allocation2 [shape = 'f32[144,384]{1,0:T(8,128)}', space=vmem, size = 0x36000, scoped, tag = 'scratch operand']
  %s0 = inlined_call_operand.vmem [shape: f32[16,144,128], index: 0, kind: input, shape index: {}]
  %s1 = inlined_call_operand.vmem [shape: f32[128,384], index: 1, kind: input, shape index: {}]
  %s2 = inlined_call_operand.vmem [shape: f32[1,384], index: 2, kind: input, shape index: {}]
  %s3 = inlined_call_operand.vmem [shape: f32[1,128], index: 3, kind: input, shape index: {}]
  %s4 = inlined_call_operand.vmem [shape: f32[144,1], index: 4, kind: input, shape index: {}]
  %s5 = inlined_call_operand.vmem [shape: f32[2], index: 5, kind: input, shape index: {}]
  %s6 = inlined_call_operand.vmem [shape: f32[2,1,8], index: 6, kind: output, shape index: {}]
  %s7 = sld [smem:[#allocation0]]
  $region68: #{attention_classifier.1} parent=0
    _
  %s9 = ssub.s32 1, %s7
  %s10 = scalar_select 0, %s9, %s7
  $region1: #{attention_classifier.1} parent=0
    #allocation3 [shape = 'u8[512]{0}', space=smem, size = 0x200, scoped, tag = 'input window, operand 5, single buffered']
    #allocation4 [shape = 's32[2]{0}', space=sflag, size = 0x8, scoped, tag = 'scoped memory for attention_classifier.1']
    %11 = vsyncpa [#allocation4], 0
    loop: start=0, step=1, limit=4
    $region2: #{attention_classifier.1} parent=1 // loop_pre_header
      _
    $region3: #{attention_classifier.1} parent=1 // loop_header
      %s13 = sphi 0, %s17
      %p14 = scmp.ge.s32.totalorder %s13, 4
      %s23 = sphi 0, %s25
      %s26 = sphi 0, %s23
      %s27 = sphi 0, %s26
      %s43 = sphi 0, %s27
      %s47 = sphi 0, %s47
      %s49 = sphi 0, %s47
      %s50 = sphi 0, %s49
      %s64 = sphi 0, %s50
      %s68 = sphi 0, %s68
      %s70 = sphi 0, %s68
      %s71 = sphi 0, %s70
      %s85 = sphi 0, %s71
      %s89 = sphi 0, %s89
      %s91 = sphi 0, %s89
      %s92 = sphi 0, %s91
      %s106 = sphi 0, %s92
      %s110 = sphi 0, %s110
      %s112 = sphi 0, %s110
      %s113 = sphi 0, %s112
      %s127 = sphi 0, %s113
      %s131 = sphi 0, %s131
      %s133 = sphi 0, %s131
      %s134 = sphi 0, %s133
      %s148 = sphi 0, %s134
      %s154 = sphi 0, %s156
      %s157 = sphi 0, %s154
      %s158 = sphi 0, %s157
      %s174 = sphi 0, %s158
    $region4: #{attention_classifier.1} parent=1 // loop_header_branch
      %16 = sbr.rel (%p14) target = $region8
    $region5: #{attention_classifier.1} parent=1 // loop_body
      %s18 = ssub.s32 %s13, 1
      %s19 = ssub.s32 %s13, 2
      %s20 = sadd.s32 %s13, 1
      %s21 = ssub.s32 %s13, %s20
      %p22 = scmp.eq.s32.totalorder %s21, 0
      %s24 = sadd.s32 %s23, 1
      %s25 = scalar_select %p22, %s23, %s24
      %p28 = pneg %p22
      %p29 = scmp.eq.s32.totalorder %s13, 1
      %p30 = por %p28, %p29
      %p31 = scmp.ne.s32.totalorder %s23, %s26
      %p32 = scmp.eq.s32.totalorder %s13, 0
      %p33 = por %p31, %p32
      %p34 = scmp.ne.s32.totalorder %s23, %s26
      %p35 = scmp.eq.s32.totalorder %s18, 1
      %p36 = por %p34, %p35
      %p37 = scmp.ne.s32.totalorder %s26, %s27
      %p38 = scmp.eq.s32.totalorder %s18, 0
      %p39 = por %p37, %p38
      %p40 = scmp.ne.s32.totalorder %s26, %s27
      %p41 = scmp.eq.s32.totalorder %s19, 1
      %p42 = por %p40, %p41
      %p44 = scmp.ne.s32.totalorder %s27, %s43
      %p45 = scmp.eq.s32.totalorder %s19, 0
      %p46 = por %p44, %p45
      %s48 = sadd.s32 %s47, 1
      %p51 = scmp.eq.s32.totalorder %s13, 1
      %p52 = scmp.ne.s32.totalorder %s47, %s49
      %p53 = scmp.eq.s32.totalorder %s13, 0
      %p54 = por %p52, %p53
      %p55 = scmp.ne.s32.totalorder %s47, %s49
      %p56 = scmp.eq.s32.totalorder %s18, 1
      %p57 = por %p55, %p56
      %p58 = scmp.ne.s32.totalorder %s49, %s50
      %p59 = scmp.eq.s32.totalorder %s18, 0
      %p60 = por %p58, %p59
      %p61 = scmp.ne.s32.totalorder %s49, %s50
      %p62 = scmp.eq.s32.totalorder %s19, 1
      %p63 = por %p61, %p62
      %p65 = scmp.ne.s32.totalorder %s50, %s64
      %p66 = scmp.eq.s32.totalorder %s19, 0
      %p67 = por %p65, %p66
      %s69 = sadd.s32 %s68, 1
      %p72 = scmp.eq.s32.totalorder %s13, 1
      %p73 = scmp.ne.s32.totalorder %s68, %s70
      %p74 = scmp.eq.s32.totalorder %s13, 0
      %p75 = por %p73, %p74
      %p76 = scmp.ne.s32.totalorder %s68, %s70
      %p77 = scmp.eq.s32.totalorder %s18, 1
      %p78 = por %p76, %p77
      %p79 = scmp.ne.s32.totalorder %s70, %s71
      %p80 = scmp.eq.s32.totalorder %s18, 0
      %p81 = por %p79, %p80
      %p82 = scmp.ne.s32.totalorder %s70, %s71
      %p83 = scmp.eq.s32.totalorder %s19, 1
      %p84 = por %p82, %p83
      %p86 = scmp.ne.s32.totalorder %s71, %s85
      %p87 = scmp.eq.s32.totalorder %s19, 0
      %p88 = por %p86, %p87
      %s90 = sadd.s32 %s89, 1
      %p93 = scmp.eq.s32.totalorder %s13, 1
      %p94 = scmp.ne.s32.totalorder %s89, %s91
      %p95 = scmp.eq.s32.totalorder %s13, 0
      %p96 = por %p94, %p95
      %p97 = scmp.ne.s32.totalorder %s89, %s91
      %p98 = scmp.eq.s32.totalorder %s18, 1
      %p99 = por %p97, %p98
      %p100 = scmp.ne.s32.totalorder %s91, %s92
      %p101 = scmp.eq.s32.totalorder %s18, 0
      %p102 = por %p100, %p101
      %p103 = scmp.ne.s32.totalorder %s91, %s92
      %p104 = scmp.eq.s32.totalorder %s19, 1
      %p105 = por %p103, %p104
      %p107 = scmp.ne.s32.totalorder %s92, %s106
      %p108 = scmp.eq.s32.totalorder %s19, 0
      %p109 = por %p107, %p108
      %s111 = sadd.s32 %s110, 1
      %p114 = scmp.eq.s32.totalorder %s13, 1
      %p115 = scmp.ne.s32.totalorder %s110, %s112
      %p116 = scmp.eq.s32.totalorder %s13, 0
      %p117 = por %p115, %p116
      %p118 = scmp.ne.s32.totalorder %s110, %s112
      %p119 = scmp.eq.s32.totalorder %s18, 1
      %p120 = por %p118, %p119
      %p121 = scmp.ne.s32.totalorder %s112, %s113
      %p122 = scmp.eq.s32.totalorder %s18, 0
      %p123 = por %p121, %p122
      %p124 = scmp.ne.s32.totalorder %s112, %s113
      %p125 = scmp.eq.s32.totalorder %s19, 1
      %p126 = por %p124, %p125
      %p128 = scmp.ne.s32.totalorder %s113, %s127
      %p129 = scmp.eq.s32.totalorder %s19, 0
      %p130 = por %p128, %p129
      %s132 = sadd.s32 %s131, 1
      %p135 = scmp.eq.s32.totalorder %s13, 1
      %p136 = scmp.ne.s32.totalorder %s131, %s133
      %p137 = scmp.eq.s32.totalorder %s13, 0
      %p138 = por %p136, %p137
      %p139 = scmp.ne.s32.totalorder %s131, %s133
      %p140 = scmp.eq.s32.totalorder %s18, 1
      %p141 = por %p139, %p140
      %p142 = scmp.ne.s32.totalorder %s133, %s134
      %p143 = scmp.eq.s32.totalorder %s18, 0
      %p144 = por %p142, %p143
      %p145 = scmp.ne.s32.totalorder %s133, %s134
      %p146 = scmp.eq.s32.totalorder %s19, 1
      %p147 = por %p145, %p146
      %p149 = scmp.ne.s32.totalorder %s134, %s148
      %p150 = scmp.eq.s32.totalorder %s19, 0
      %p151 = por %p149, %p150
      %s152 = ssub.s32 %s13, %s20
      %p153 = scmp.eq.s32.totalorder %s152, 0
      %s155 = sadd.s32 %s154, 1
      %s156 = scalar_select %p153, %s154, %s155
      %p159 = pneg %p153
      %p160 = scmp.eq.s32.totalorder %s13, 1
      %p161 = por %p159, %p160
      %p162 = scmp.ne.s32.totalorder %s154, %s157
      %p163 = scmp.eq.s32.totalorder %s13, 0
      %p164 = por %p162, %p163
      %p165 = scmp.ne.s32.totalorder %s154, %s157
      %p166 = scmp.eq.s32.totalorder %s18, 1
      %p167 = por %p165, %p166
      %p168 = scmp.ne.s32.totalorder %s157, %s158
      %p169 = scmp.eq.s32.totalorder %s18, 0
      %p170 = por %p168, %p169
      %p171 = scmp.ne.s32.totalorder %s157, %s158
      %p172 = scmp.eq.s32.totalorder %s19, 1
      %p173 = por %p171, %p172
      %p175 = scmp.ne.s32.totalorder %s158, %s174
      %p176 = scmp.eq.s32.totalorder %s19, 0
      %p177 = por %p175, %p176
      %p178 = scmp.le.s32.totalorder 1, %s13
      %p179 = scmp.lt.s32.totalorder %s13, 3
      %p180 = pnand %p178, %p179
      %p181 = pneg %p180
      // Predicated region
      $region9: #{attention_classifier.1} parent=5 // pred_check
        _
      $region10: #{attention_classifier.1} parent=5 // pred_check_branch
        %183 = sbr.rel (%p180) target = $region12
      $region11: #{attention_classifier.1} parent=5 // pred_region
        %s184 = ssub.s32 %s13, 1
        // Predicated region
        $region13: #{attention_classifier.1} parent=11 // pred_check
          %p185 = pneg %p60
        $region14: #{attention_classifier.1} parent=11 // pred_check_branch
          %187 = sbr.rel (%p185) target = $region16
        $region15: #{attention_classifier.1} parent=11 // pred_region
          _
        $region16: #{attention_classifier.1} parent=11 // pred_fallthru
          _
        // Predicated region
        $region17: #{attention_classifier.1} parent=11 // pred_check
          %p188 = pneg %p81
        $region18: #{attention_classifier.1} parent=11 // pred_check_branch
          %190 = sbr.rel (%p188) target = $region20
        $region19: #{attention_classifier.1} parent=11 // pred_region
          _
        $region20: #{attention_classifier.1} parent=11 // pred_fallthru
          _
        // Predicated region
        $region21: #{attention_classifier.1} parent=11 // pred_check
          %p191 = pneg %p102
        $region22: #{attention_classifier.1} parent=11 // pred_check_branch
          %193 = sbr.rel (%p191) target = $region24
        $region23: #{attention_classifier.1} parent=11 // pred_region
          _
        $region24: #{attention_classifier.1} parent=11 // pred_fallthru
          _
        // Predicated region
        $region25: #{attention_classifier.1} parent=11 // pred_check
          %p194 = pneg %p123
        $region26: #{attention_classifier.1} parent=11 // pred_check_branch
          %196 = sbr.rel (%p194) target = $region28
        $region27: #{attention_classifier.1} parent=11 // pred_region
          _
        $region28: #{attention_classifier.1} parent=11 // pred_fallthru
          _
        // Predicated region
        $region29: #{attention_classifier.1} parent=11 // pred_check
          %p197 = pneg %p144
        $region30: #{attention_classifier.1} parent=11 // pred_check_branch
          %199 = sbr.rel (%p197) target = $region32
        $region31: #{attention_classifier.1} parent=11 // pred_region
          %201 = vsyncadd [#allocation4], 0
          %s203 = sshll.u32 %s5, 4
          %s204 = int_to_ptr.vmem [resolvable:$true] %s203
          %206 = dma.vmem_to_smem %s204, 16, [#allocation3], [#allocation4]
        $region32: #{attention_classifier.1} parent=11 // pred_fallthru
          _
      $region12: #{attention_classifier.1} parent=5 // pred_fallthru
        _
      %p207 = scmp.lt.s32.totalorder %s13, 2
      // Predicated region
      $region33: #{attention_classifier.1} parent=5 // pred_check
        %p208 = pneg %p207
      $region34: #{attention_classifier.1} parent=5 // pred_check_branch
        %210 = sbr.rel (%p208) target = $region36
      $region35: #{attention_classifier.1} parent=5 // pred_region
        // Predicated region
        $region37: #{attention_classifier.1} parent=35 // pred_check
          %p211 = pneg %p33
        $region38: #{attention_classifier.1} parent=35 // pred_check_branch
          %213 = sbr.rel (%p211) target = $region40
        $region39: #{attention_classifier.1} parent=35 // pred_region
          %s214 = smul.u32 8, %s13
          %p215 = scmp.lt.s32.totalorder %s214, 15
          %s216 = scalar_select %p215, %s214, 15
          %s217 = smul.addr %s216, 18
          %s218 = smul.addr %s217, 8
          %s219 = scalar_lea.vmem %s0, %s218
          %s220 = smul.u32 8, %s13
        $region40: #{attention_classifier.1} parent=35 // pred_fallthru
          _
      $region36: #{attention_classifier.1} parent=5 // pred_fallthru
        _
      %p221 = scmp.le.s32.totalorder 1, %s13
      %p222 = scmp.lt.s32.totalorder %s13, 3
      %p223 = pnand %p221, %p222
      %p224 = pneg %p223
      // Predicated region
      $region41: #{attention_classifier.1} parent=5 // pred_check
        _
      $region42: #{attention_classifier.1} parent=5 // pred_check_branch
        %226 = sbr.rel (%p223) target = $region44
      $region43: #{attention_classifier.1} parent=5 // pred_region
        %s227 = ssub.s32 %s13, 1
        // Predicated region
        $region45: #{attention_classifier.1} parent=43 // pred_check
          %p228 = pneg %p144
        $region46: #{attention_classifier.1} parent=43 // pred_check_branch
          %230 = sbr.rel (%p228) target = $region48
        $region47: #{attention_classifier.1} parent=43 // pred_region
          %232 = dma.done [#allocation4], 16
        $region48: #{attention_classifier.1} parent=43 // pred_fallthru
          _
        %233 = sfence
        %s234 = smul.u32 8, %s18
        %p235 = scmp.lt.s32.totalorder %s234, 15
        %s236 = scalar_select %p235, %s234, 15
        %s237 = smul.addr %s236, 18
        %s238 = smul.addr %s237, 8
        %s239 = scalar_lea.vmem %s0, %s238
        %p240 = pneg %p39
        %p241 = pneg %p36
        %p242 = pneg %p60
        %p243 = pneg %p57
        %p244 = pneg %p81
        %p245 = pneg %p78
        %p246 = pneg %p102
        %p247 = pneg %p99
        %p248 = pneg %p123
        %p249 = pneg %p120
        %p250 = pneg %p144
        %p251 = pneg %p141
        %p252 = pneg %p170
        %p253 = pneg %p167
        %p254 = scmp.lt.s32.totalorder %s18, 1
        %s255 = scalar_select %p254, %s18, 1
        %s256 = scalar_lea.vmem %s6, %s255
        %s257 = smul.u32 8, %s18
        %p258 = scmp.lt.s32.totalorder %s257, 15
        %s259 = scalar_select %p258, %s257, 15
        %s260 = smul.addr %s259, 18
        %s261 = smul.addr %s260, 8
        %s262 = scalar_lea.vmem %s0, %s261
        %s263 = smul.u32 8, %s18
        %p264 = scmp.lt.s32.totalorder %s18, 1
        %s265 = scalar_select %p264, %s18, 1
        %s266 = scalar_lea.vmem %s6, %s265
        %s267 = sld [smem:[#allocation3]]
        %s268 = sld [smem:[#allocation3 + $0x1]]
        loop: start=0, step=1, limit=8
        $region49: #{attention_classifier.1} parent=43 // loop_pre_header
          _
        $region50: #{attention_classifier.1} parent=43 // loop_header
          %s270 = sphi 0, %s274
          %p271 = scmp.ge.s32.totalorder %s270, 8
          %v275 = vphi 0.0, %v11040
        $region51: #{attention_classifier.1} parent=43 // loop_header_branch
          %273 = sbr.rel (%p271) target = $region55
        $region52: #{attention_classifier.1} parent=43 // loop_body
          %s276 = smul.u32 %s270, 144
          %s277 = scalar_lea.vmem %s262, %s276
          %v278 = vld [vmem:[%s277] sm:$0xff]
          %v279 = vld [vmem:[%s277 + $0x8] sm:$0xff]
          %v280 = vld [vmem:[%s277 + $0x10] sm:$0xff]
          %v281 = vld [vmem:[%s277 + $0x18] sm:$0xff]
          %v282 = vld [vmem:[%s277 + $0x20] sm:$0xff]
          %v283 = vld [vmem:[%s277 + $0x28] sm:$0xff]
          %v284 = vld [vmem:[%s277 + $0x30] sm:$0xff]
          %v285 = vld [vmem:[%s277 + $0x38] sm:$0xff]
          %v286 = vld [vmem:[%s277 + $0x40] sm:$0xff]
          %v287 = vld [vmem:[%s277 + $0x48] sm:$0xff]
          %v288 = vld [vmem:[%s277 + $0x50] sm:$0xff]
          %v289 = vld [vmem:[%s277 + $0x58] sm:$0xff]
          %v290 = vld [vmem:[%s277 + $0x60] sm:$0xff]
          %v291 = vld [vmem:[%s277 + $0x68] sm:$0xff]
          %v292 = vld [vmem:[%s277 + $0x70] sm:$0xff]
          %v293 = vld [vmem:[%s277 + $0x78] sm:$0xff]
          %v294 = vld [vmem:[%s277 + $0x80] sm:$0xff]
          %v295 = vld [vmem:[%s277 + $0x88] sm:$0xff]
          %v296 = vld [vmem:[%s1] sm:$0xff]
          %v297 = vld [vmem:[%s1 + $0x8] sm:$0xff]
          %v298 = vld [vmem:[%s1 + $0x10] sm:$0xff]
          %v299 = vld [vmem:[%s1 + $0x18] sm:$0xff]
          %v300 = vld [vmem:[%s1 + $0x20] sm:$0xff]
          %v301 = vld [vmem:[%s1 + $0x28] sm:$0xff]
          %v302 = vld [vmem:[%s1 + $0x30] sm:$0xff]
          %v303 = vld [vmem:[%s1 + $0x38] sm:$0xff]
          %v304 = vld [vmem:[%s1 + $0x40] sm:$0xff]
          %v305 = vld [vmem:[%s1 + $0x48] sm:$0xff]
          %v306 = vld [vmem:[%s1 + $0x50] sm:$0xff]
          %v307 = vld [vmem:[%s1 + $0x58] sm:$0xff]
          %v308 = vld [vmem:[%s1 + $0x60] sm:$0xff]
          %v309 = vld [vmem:[%s1 + $0x68] sm:$0xff]
          %v310 = vld [vmem:[%s1 + $0x70] sm:$0xff]
          %v311 = vld [vmem:[%s1 + $0x78] sm:$0xff]
          %v312 = vld [vmem:[%s1 + $0x80] sm:$0xff]
          %v313 = vld [vmem:[%s1 + $0x88] sm:$0xff]
          %v314 = vld [vmem:[%s1 + $0x90] sm:$0xff]
          %v315 = vld [vmem:[%s1 + $0x98] sm:$0xff]
          %v316 = vld [vmem:[%s1 + $0xa0] sm:$0xff]
          %v317 = vld [vmem:[%s1 + $0xa8] sm:$0xff]
          %v318 = vld [vmem:[%s1 + $0xb0] sm:$0xff]
          %v319 = vld [vmem:[%s1 + $0xb8] sm:$0xff]
          %v320 = vld [vmem:[%s1 + $0xc0] sm:$0xff]
          %v321 = vld [vmem:[%s1 + $0xc8] sm:$0xff]
          %v322 = vld [vmem:[%s1 + $0xd0] sm:$0xff]
          %v323 = vld [vmem:[%s1 + $0xd8] sm:$0xff]
          %v324 = vld [vmem:[%s1 + $0xe0] sm:$0xff]
          %v325 = vld [vmem:[%s1 + $0xe8] sm:$0xff]
          %v326 = vld [vmem:[%s1 + $0xf0] sm:$0xff]
          %v327 = vld [vmem:[%s1 + $0xf8] sm:$0xff]
          %v328 = vld [vmem:[%s1 + $0x100] sm:$0xff]
          %v329 = vld [vmem:[%s1 + $0x108] sm:$0xff]
          %v330 = vld [vmem:[%s1 + $0x110] sm:$0xff]
          %v331 = vld [vmem:[%s1 + $0x118] sm:$0xff]
          %v332 = vld [vmem:[%s1 + $0x120] sm:$0xff]
          %v333 = vld [vmem:[%s1 + $0x128] sm:$0xff]
          %v334 = vld [vmem:[%s1 + $0x130] sm:$0xff]
          %v335 = vld [vmem:[%s1 + $0x138] sm:$0xff]
          %v336 = vld [vmem:[%s1 + $0x140] sm:$0xff]
          %v337 = vld [vmem:[%s1 + $0x148] sm:$0xff]
          %v338 = vld [vmem:[%s1 + $0x150] sm:$0xff]
          %v339 = vld [vmem:[%s1 + $0x158] sm:$0xff]
          %v340 = vld [vmem:[%s1 + $0x160] sm:$0xff]
          %v341 = vld [vmem:[%s1 + $0x168] sm:$0xff]
          %v342 = vld [vmem:[%s1 + $0x170] sm:$0xff]
          %v343 = vld [vmem:[%s1 + $0x178] sm:$0xff]
          %v344 = vld [vmem:[%s2] sm:$0x7]
          %v346 = vperm.slane %v344, 0
          %v347 = vperm.slane %v344, 1
          %v348 = vperm.slane %v344, 2
          %352 = vmatpush.msra.mxu0 %v341
          %353 = vmatpush.msra.mxu0 %v338
          %354 = vmatpush.msra.mxu0 %v335
          %355 = vmatpush.msra.mxu0 %v332
          %356 = vmatpush.msra.mxu0 %v329
          %357 = vmatpush.msra.mxu0 %v326
          %358 = vmatpush.msra.mxu0 %v323
          %359 = vmatpush.msra.mxu0 %v320
          %360 = vmatpush.msra.mxu0 %v317
          %361 = vmatpush.msra.mxu0 %v314
          %362 = vmatpush.msra.mxu0 %v311
          %363 = vmatpush.msra.mxu0 %v308
          %364 = vmatpush.msra.mxu0 %v305
          %365 = vmatpush.msra.mxu0 %v302
          %366 = vmatpush.msra.mxu0 %v299
          %367 = vmatpush.msra.mxu0 %v296
          %368 = vmatmul.f32.gmra.mxu0 %v278
          %v369 = vpop.f32.mrf.mxu0
          %v370 = vadd.f32 %v346, %v369
          %371 = vmatmul.f32.gmra.mxu0 %v279
          %v372 = vpop.f32.mrf.mxu0
          %v373 = vadd.f32 %v346, %v372
          %374 = vmatmul.f32.gmra.mxu0 %v280
          %v375 = vpop.f32.mrf.mxu0
          %v376 = vadd.f32 %v346, %v375
          %377 = vmatmul.f32.gmra.mxu0 %v281
          %v378 = vpop.f32.mrf.mxu0
          %v379 = vadd.f32 %v346, %v378
          %380 = vmatmul.f32.gmra.mxu0 %v282
          %v381 = vpop.f32.mrf.mxu0
          %v382 = vadd.f32 %v346, %v381
          %383 = vmatmul.f32.gmra.mxu0 %v283
          %v384 = vpop.f32.mrf.mxu0
          %v385 = vadd.f32 %v346, %v384
          %386 = vmatmul.f32.gmra.mxu0 %v284
          %v387 = vpop.f32.mrf.mxu0
          %v388 = vadd.f32 %v346, %v387
          %389 = vmatmul.f32.gmra.mxu0 %v285
          %v390 = vpop.f32.mrf.mxu0
          %v391 = vadd.f32 %v346, %v390
          %392 = vmatmul.f32.gmra.mxu0 %v286
          %v393 = vpop.f32.mrf.mxu0
          %v394 = vadd.f32 %v346, %v393
          %395 = vmatmul.f32.gmra.mxu0 %v287
          %v396 = vpop.f32.mrf.mxu0
          %v397 = vadd.f32 %v346, %v396
          %398 = vmatmul.f32.gmra.mxu0 %v288
          %v399 = vpop.f32.mrf.mxu0
          %v400 = vadd.f32 %v346, %v399
          %401 = vmatmul.f32.gmra.mxu0 %v289
          %v402 = vpop.f32.mrf.mxu0
          %v403 = vadd.f32 %v346, %v402
          %404 = vmatmul.f32.gmra.mxu0 %v290
          %v405 = vpop.f32.mrf.mxu0
          %v406 = vadd.f32 %v346, %v405
          %407 = vmatmul.f32.gmra.mxu0 %v291
          %v408 = vpop.f32.mrf.mxu0
          %v409 = vadd.f32 %v346, %v408
          %410 = vmatmul.f32.gmra.mxu0 %v292
          %v411 = vpop.f32.mrf.mxu0
          %v412 = vadd.f32 %v346, %v411
          %413 = vmatmul.f32.gmra.mxu0 %v293
          %v414 = vpop.f32.mrf.mxu0
          %v415 = vadd.f32 %v346, %v414
          %416 = vmatmul.f32.gmra.mxu0 %v294
          %v417 = vpop.f32.mrf.mxu0
          %v418 = vadd.f32 %v346, %v417
          %419 = vmatmul.f32.gmra.mxu0 %v295
          %v420 = vpop.f32.mrf.mxu0
          %v421 = vadd.f32 %v346, %v420
          %422 = vdwg.mxu0
          %423 = vmatpush.msra.mxu0 %v342
          %424 = vmatpush.msra.mxu0 %v339
          %425 = vmatpush.msra.mxu0 %v336
          %426 = vmatpush.msra.mxu0 %v333
          %427 = vmatpush.msra.mxu0 %v330
          %428 = vmatpush.msra.mxu0 %v327
          %429 = vmatpush.msra.mxu0 %v324
          %430 = vmatpush.msra.mxu0 %v321
          %431 = vmatpush.msra.mxu0 %v318
          %432 = vmatpush.msra.mxu0 %v315
          %433 = vmatpush.msra.mxu0 %v312
          %434 = vmatpush.msra.mxu0 %v309
          %435 = vmatpush.msra.mxu0 %v306
          %436 = vmatpush.msra.mxu0 %v303
          %437 = vmatpush.msra.mxu0 %v300
          %438 = vmatpush.msra.mxu0 %v297
          %439 = vmatmul.f32.gmra.mxu0 %v278
          %v440 = vpop.f32.mrf.mxu0
          %v441 = vadd.f32 %v347, %v440
          %442 = vmatmul.f32.gmra.mxu0 %v279
          %v443 = vpop.f32.mrf.mxu0
          %v444 = vadd.f32 %v347, %v443
          %445 = vmatmul.f32.gmra.mxu0 %v280
          %v446 = vpop.f32.mrf.mxu0
          %v447 = vadd.f32 %v347, %v446
          %448 = vmatmul.f32.gmra.mxu0 %v281
          %v449 = vpop.f32.mrf.mxu0
          %v450 = vadd.f32 %v347, %v449
          %451 = vmatmul.f32.gmra.mxu0 %v282
          %v452 = vpop.f32.mrf.mxu0
          %v453 = vadd.f32 %v347, %v452
          %454 = vmatmul.f32.gmra.mxu0 %v283
          %v455 = vpop.f32.mrf.mxu0
          %v456 = vadd.f32 %v347, %v455
          %457 = vmatmul.f32.gmra.mxu0 %v284
          %v458 = vpop.f32.mrf.mxu0
          %v459 = vadd.f32 %v347, %v458
          %460 = vmatmul.f32.gmra.mxu0 %v285
          %v461 = vpop.f32.mrf.mxu0
          %v462 = vadd.f32 %v347, %v461
          %463 = vmatmul.f32.gmra.mxu0 %v286
          %v464 = vpop.f32.mrf.mxu0
          %v465 = vadd.f32 %v347, %v464
          %466 = vmatmul.f32.gmra.mxu0 %v287
          %v467 = vpop.f32.mrf.mxu0
          %v468 = vadd.f32 %v347, %v467
          %469 = vmatmul.f32.gmra.mxu0 %v288
          %v470 = vpop.f32.mrf.mxu0
          %v471 = vadd.f32 %v347, %v470
          %472 = vmatmul.f32.gmra.mxu0 %v289
          %v473 = vpop.f32.mrf.mxu0
          %v474 = vadd.f32 %v347, %v473
          %475 = vmatmul.f32.gmra.mxu0 %v290
          %v476 = vpop.f32.mrf.mxu0
          %v477 = vadd.f32 %v347, %v476
          %478 = vmatmul.f32.gmra.mxu0 %v291
          %v479 = vpop.f32.mrf.mxu0
          %v480 = vadd.f32 %v347, %v479
          %481 = vmatmul.f32.gmra.mxu0 %v292
          %v482 = vpop.f32.mrf.mxu0
          %v483 = vadd.f32 %v347, %v482
          %484 = vmatmul.f32.gmra.mxu0 %v293
          %v485 = vpop.f32.mrf.mxu0
          %v486 = vadd.f32 %v347, %v485
          %487 = vmatmul.f32.gmra.mxu0 %v294
          %v488 = vpop.f32.mrf.mxu0
          %v489 = vadd.f32 %v347, %v488
          %490 = vmatmul.f32.gmra.mxu0 %v295
          %v491 = vpop.f32.mrf.mxu0
          %v492 = vadd.f32 %v347, %v491
          %493 = vdwg.mxu0
          %494 = vmatpush.msra.mxu0 %v343
          %495 = vmatpush.msra.mxu0 %v340
          %496 = vmatpush.msra.mxu0 %v337
          %497 = vmatpush.msra.mxu0 %v334
          %498 = vmatpush.msra.mxu0 %v331
          %499 = vmatpush.msra.mxu0 %v328
          %500 = vmatpush.msra.mxu0 %v325
          %501 = vmatpush.msra.mxu0 %v322
          %502 = vmatpush.msra.mxu0 %v319
          %503 = vmatpush.msra.mxu0 %v316
          %504 = vmatpush.msra.mxu0 %v313
          %505 = vmatpush.msra.mxu0 %v310
          %506 = vmatpush.msra.mxu0 %v307
          %507 = vmatpush.msra.mxu0 %v304
          %508 = vmatpush.msra.mxu0 %v301
          %509 = vmatpush.msra.mxu0 %v298
          %510 = vmatmul.f32.gmra.mxu0 %v278
          %v511 = vpop.f32.mrf.mxu0
          %v512 = vadd.f32 %v348, %v511
          %513 = vmatmul.f32.gmra.mxu0 %v279
          %v514 = vpop.f32.mrf.mxu0
          %v515 = vadd.f32 %v348, %v514
          %516 = vmatmul.f32.gmra.mxu0 %v280
          %v517 = vpop.f32.mrf.mxu0
          %v518 = vadd.f32 %v348, %v517
          %519 = vmatmul.f32.gmra.mxu0 %v281
          %v520 = vpop.f32.mrf.mxu0
          %v521 = vadd.f32 %v348, %v520
          %522 = vmatmul.f32.gmra.mxu0 %v282
          %v523 = vpop.f32.mrf.mxu0
          %v524 = vadd.f32 %v348, %v523
          %525 = vmatmul.f32.gmra.mxu0 %v283
          %v526 = vpop.f32.mrf.mxu0
          %v527 = vadd.f32 %v348, %v526
          %528 = vmatmul.f32.gmra.mxu0 %v284
          %v529 = vpop.f32.mrf.mxu0
          %v530 = vadd.f32 %v348, %v529
          %531 = vmatmul.f32.gmra.mxu0 %v285
          %v532 = vpop.f32.mrf.mxu0
          %v533 = vadd.f32 %v348, %v532
          %534 = vmatmul.f32.gmra.mxu0 %v286
          %v535 = vpop.f32.mrf.mxu0
          %v536 = vadd.f32 %v348, %v535
          %537 = vmatmul.f32.gmra.mxu0 %v287
          %v538 = vpop.f32.mrf.mxu0
          %v539 = vadd.f32 %v348, %v538
          %540 = vmatmul.f32.gmra.mxu0 %v288
          %v541 = vpop.f32.mrf.mxu0
          %v542 = vadd.f32 %v348, %v541
          %543 = vmatmul.f32.gmra.mxu0 %v289
          %v544 = vpop.f32.mrf.mxu0
          %v545 = vadd.f32 %v348, %v544
          %546 = vmatmul.f32.gmra.mxu0 %v290
          %v547 = vpop.f32.mrf.mxu0
          %v548 = vadd.f32 %v348, %v547
          %549 = vmatmul.f32.gmra.mxu0 %v291
          %v550 = vpop.f32.mrf.mxu0
          %v551 = vadd.f32 %v348, %v550
          %552 = vmatmul.f32.gmra.mxu0 %v292
          %v553 = vpop.f32.mrf.mxu0
          %v554 = vadd.f32 %v348, %v553
          %555 = vmatmul.f32.gmra.mxu0 %v293
          %v556 = vpop.f32.mrf.mxu0
          %v557 = vadd.f32 %v348, %v556
          %558 = vmatmul.f32.gmra.mxu0 %v294
          %v559 = vpop.f32.mrf.mxu0
          %v560 = vadd.f32 %v348, %v559
          %561 = vmatmul.f32.gmra.mxu0 %v295
          %v562 = vpop.f32.mrf.mxu0
          %v563 = vadd.f32 %v348, %v562
          %564 = vdwg.mxu0
          %565 = vst [vmem:[#allocation2] sm:$0xff] %v370
          %566 = vst [vmem:[#allocation2 + $0x8] sm:$0xff] %v441
          %567 = vst [vmem:[#allocation2 + $0x10] sm:$0xff] %v512
          %568 = vst [vmem:[#allocation2 + $0x18] sm:$0xff] %v373
          %569 = vst [vmem:[#allocation2 + $0x20] sm:$0xff] %v444
          %570 = vst [vmem:[#allocation2 + $0x28] sm:$0xff] %v515
          %571 = vst [vmem:[#allocation2 + $0x30] sm:$0xff] %v376
          %572 = vst [vmem:[#allocation2 + $0x38] sm:$0xff] %v447
          %573 = vst [vmem:[#allocation2 + $0x40] sm:$0xff] %v518
          %574 = vst [vmem:[#allocation2 + $0x48] sm:$0xff] %v379
          %575 = vst [vmem:[#allocation2 + $0x50] sm:$0xff] %v450
          %576 = vst [vmem:[#allocation2 + $0x58] sm:$0xff] %v521
          %577 = vst [vmem:[#allocation2 + $0x60] sm:$0xff] %v382
          %578 = vst [vmem:[#allocation2 + $0x68] sm:$0xff] %v453
          %579 = vst [vmem:[#allocation2 + $0x70] sm:$0xff] %v524
          %580 = vst [vmem:[#allocation2 + $0x78] sm:$0xff] %v385
          %581 = vst [vmem:[#allocation2 + $0x80] sm:$0xff] %v456
          %582 = vst [vmem:[#allocation2 + $0x88] sm:$0xff] %v527
          %583 = vst [vmem:[#allocation2 + $0x90] sm:$0xff] %v388
          %584 = vst [vmem:[#allocation2 + $0x98] sm:$0xff] %v459
          %585 = vst [vmem:[#allocation2 + $0xa0] sm:$0xff] %v530
          %586 = vst [vmem:[#allocation2 + $0xa8] sm:$0xff] %v391
          %587 = vst [vmem:[#allocation2 + $0xb0] sm:$0xff] %v462
          %588 = vst [vmem:[#allocation2 + $0xb8] sm:$0xff] %v533
          %589 = vst [vmem:[#allocation2 + $0xc0] sm:$0xff] %v394
          %590 = vst [vmem:[#allocation2 + $0xc8] sm:$0xff] %v465
          %591 = vst [vmem:[#allocation2 + $0xd0] sm:$0xff] %v536
          %592 = vst [vmem:[#allocation2 + $0xd8] sm:$0xff] %v397
          %593 = vst [vmem:[#allocation2 + $0xe0] sm:$0xff] %v468
          %594 = vst [vmem:[#allocation2 + $0xe8] sm:$0xff] %v539
          %595 = vst [vmem:[#allocation2 + $0xf0] sm:$0xff] %v400
          %596 = vst [vmem:[#allocation2 + $0xf8] sm:$0xff] %v471
          %597 = vst [vmem:[#allocation2 + $0x100] sm:$0xff] %v542
          %598 = vst [vmem:[#allocation2 + $0x108] sm:$0xff] %v403
          %599 = vst [vmem:[#allocation2 + $0x110] sm:$0xff] %v474
          %600 = vst [vmem:[#allocation2 + $0x118] sm:$0xff] %v545
          %601 = vst [vmem:[#allocation2 + $0x120] sm:$0xff] %v406
          %602 = vst [vmem:[#allocation2 + $0x128] sm:$0xff] %v477
          %603 = vst [vmem:[#allocation2 + $0x130] sm:$0xff] %v548
          %604 = vst [vmem:[#allocation2 + $0x138] sm:$0xff] %v409
          %605 = vst [vmem:[#allocation2 + $0x140] sm:$0xff] %v480
          %606 = vst [vmem:[#allocation2 + $0x148] sm:$0xff] %v551
          %607 = vst [vmem:[#allocation2 + $0x150] sm:$0xff] %v412
          %608 = vst [vmem:[#allocation2 + $0x158] sm:$0xff] %v483
          %609 = vst [vmem:[#allocation2 + $0x160] sm:$0xff] %v554
          %610 = vst [vmem:[#allocation2 + $0x168] sm:$0xff] %v415
          %611 = vst [vmem:[#allocation2 + $0x170] sm:$0xff] %v486
          %612 = vst [vmem:[#allocation2 + $0x178] sm:$0xff] %v557
          %613 = vst [vmem:[#allocation2 + $0x180] sm:$0xff] %v418
          %614 = vst [vmem:[#allocation2 + $0x188] sm:$0xff] %v489
          %615 = vst [vmem:[#allocation2 + $0x190] sm:$0xff] %v560
          %616 = vst [vmem:[#allocation2 + $0x198] sm:$0xff] %v421
          %617 = vst [vmem:[#allocation2 + $0x1a0] sm:$0xff] %v492
          %618 = vst [vmem:[#allocation2 + $0x1a8] sm:$0xff] %v563
          %v619 = vld [vmem:[#allocation2] sm:$0xff]
          %v620 = vld [vmem:[#allocation2 + $0x18] sm:$0xff]
          %v621 = vld [vmem:[#allocation2 + $0x30] sm:$0xff]
          %v622 = vld [vmem:[#allocation2 + $0x48] sm:$0xff]
          %v623 = vld [vmem:[#allocation2 + $0x60] sm:$0xff]
          %v624 = vld [vmem:[#allocation2 + $0x78] sm:$0xff]
          %v625 = vld [vmem:[#allocation2 + $0x90] sm:$0xff]
          %v626 = vld [vmem:[#allocation2 + $0xa8] sm:$0xff]
          %v627 = vld [vmem:[#allocation2 + $0xc0] sm:$0xff]
          %v628 = vld [vmem:[#allocation2 + $0xd8] sm:$0xff]
          %v629 = vld [vmem:[#allocation2 + $0xf0] sm:$0xff]
          %v630 = vld [vmem:[#allocation2 + $0x108] sm:$0xff]
          %v631 = vld [vmem:[#allocation2 + $0x120] sm:$0xff]
          %v632 = vld [vmem:[#allocation2 + $0x138] sm:$0xff]
          %v633 = vld [vmem:[#allocation2 + $0x150] sm:$0xff]
          %v634 = vld [vmem:[#allocation2 + $0x168] sm:$0xff]
          %v635 = vld [vmem:[#allocation2 + $0x180] sm:$0xff]
          %v636 = vld [vmem:[#allocation2 + $0x198] sm:$0xff]
          %v637 = vld [vmem:[#allocation2 + $0x8] sm:$0xff]
          %v638 = vld [vmem:[#allocation2 + $0x20] sm:$0xff]
          %v639 = vld [vmem:[#allocation2 + $0x38] sm:$0xff]
          %v640 = vld [vmem:[#allocation2 + $0x50] sm:$0xff]
          %v641 = vld [vmem:[#allocation2 + $0x68] sm:$0xff]
          %v642 = vld [vmem:[#allocation2 + $0x80] sm:$0xff]
          %v643 = vld [vmem:[#allocation2 + $0x98] sm:$0xff]
          %v644 = vld [vmem:[#allocation2 + $0xb0] sm:$0xff]
          %v645 = vld [vmem:[#allocation2 + $0xc8] sm:$0xff]
          %v646 = vld [vmem:[#allocation2 + $0xe0] sm:$0xff]
          %v647 = vld [vmem:[#allocation2 + $0xf8] sm:$0xff]
          %v648 = vld [vmem:[#allocation2 + $0x110] sm:$0xff]
          %v649 = vld [vmem:[#allocation2 + $0x128] sm:$0xff]
          %v650 = vld [vmem:[#allocation2 + $0x140] sm:$0xff]
          %v651 = vld [vmem:[#allocation2 + $0x158] sm:$0xff]
          %v652 = vld [vmem:[#allocation2 + $0x170] sm:$0xff]
          %v653 = vld [vmem:[#allocation2 + $0x188] sm:$0xff]
          %v654 = vld [vmem:[#allocation2 + $0x1a0] sm:$0xff]
          %v655 = vld [vmem:[#allocation2 + $0x10] sm:$0xff]
          %v656 = vld [vmem:[#allocation2 + $0x28] sm:$0xff]
          %v657 = vld [vmem:[#allocation2 + $0x40] sm:$0xff]
          %v658 = vld [vmem:[#allocation2 + $0x58] sm:$0xff]
          %v659 = vld [vmem:[#allocation2 + $0x70] sm:$0xff]
          %v660 = vld [vmem:[#allocation2 + $0x88] sm:$0xff]
          %v661 = vld [vmem:[#allocation2 + $0xa0] sm:$0xff]
          %v662 = vld [vmem:[#allocation2 + $0xb8] sm:$0xff]
          %v663 = vld [vmem:[#allocation2 + $0xd0] sm:$0xff]
          %v664 = vld [vmem:[#allocation2 + $0xe8] sm:$0xff]
          %v665 = vld [vmem:[#allocation2 + $0x100] sm:$0xff]
          %v666 = vld [vmem:[#allocation2 + $0x118] sm:$0xff]
          %v667 = vld [vmem:[#allocation2 + $0x130] sm:$0xff]
          %v668 = vld [vmem:[#allocation2 + $0x148] sm:$0xff]
          %v669 = vld [vmem:[#allocation2 + $0x160] sm:$0xff]
          %v670 = vld [vmem:[#allocation2 + $0x178] sm:$0xff]
          %v671 = vld [vmem:[#allocation2 + $0x190] sm:$0xff]
          %v672 = vld [vmem:[#allocation2 + $0x1a8] sm:$0xff]
          %vm673 = vcmask 130048
          %v675 = vsel %vm673, %v619, 0
          %v678 = vsel %vm673, %v620, 0
          %v681 = vsel %vm673, %v621, 0
          %v684 = vsel %vm673, %v622, 0
          %v687 = vsel %vm673, %v623, 0
          %v690 = vsel %vm673, %v624, 0
          %v693 = vsel %vm673, %v625, 0
          %v696 = vsel %vm673, %v626, 0
          %v699 = vsel %vm673, %v627, 0
          %v702 = vsel %vm673, %v628, 0
          %v705 = vsel %vm673, %v629, 0
          %v708 = vsel %vm673, %v630, 0
          %v711 = vsel %vm673, %v631, 0
          %v714 = vsel %vm673, %v632, 0
          %v717 = vsel %vm673, %v633, 0
          %v720 = vsel %vm673, %v634, 0
          %v723 = vsel %vm673, %v635, 0
          %v726 = vsel %vm673, %v636, 0
          %v729 = vsel %vm673, %v637, 0
          %v732 = vsel %vm673, %v638, 0
          %v735 = vsel %vm673, %v639, 0
          %v738 = vsel %vm673, %v640, 0
          %v741 = vsel %vm673, %v641, 0
          %v744 = vsel %vm673, %v642, 0
          %v747 = vsel %vm673, %v643, 0
          %v750 = vsel %vm673, %v644, 0
          %v753 = vsel %vm673, %v645, 0
          %v756 = vsel %vm673, %v646, 0
          %v759 = vsel %vm673, %v647, 0
          %v762 = vsel %vm673, %v648, 0
          %v765 = vsel %vm673, %v649, 0
          %v768 = vsel %vm673, %v650, 0
          %v771 = vsel %vm673, %v651, 0
          %v774 = vsel %vm673, %v652, 0
          %v777 = vsel %vm673, %v653, 0
          %v780 = vsel %vm673, %v654, 0
          %782 = vmatpush.xpose.msra.mxu0 %v774
          %783 = vmatpush.xpose.msra.mxu0 %v771
          %784 = vmatpush.xpose.msra.mxu0 %v768
          %785 = vmatpush.xpose.msra.mxu0 %v765
          %786 = vmatpush.xpose.msra.mxu0 %v762
          %787 = vmatpush.xpose.msra.mxu0 %v759
          %788 = vmatpush.xpose.msra.mxu0 %v756
          %789 = vmatpush.xpose.msra.mxu0 %v753
          %790 = vmatpush.xpose.msra.mxu0 %v750
          %791 = vmatpush.xpose.msra.mxu0 %v747
          %792 = vmatpush.xpose.msra.mxu0 %v744
          %793 = vmatpush.xpose.msra.mxu0 %v741
          %794 = vmatpush.xpose.msra.mxu0 %v738
          %795 = vmatpush.xpose.msra.mxu0 %v735
          %796 = vmatpush.xpose.msra.mxu0 %v732
          %797 = vmatpush.xpose.msra.mxu0 %v729
          %798 = vmatmul.f32.gmra.mxu0 %v675
          %v799 = vpop.f32.mrf.mxu0
          %v800 = vadd.f32 0.0, %v799
          %801 = vmatmul.f32.gmra.mxu0 %v678
          %v802 = vpop.f32.mrf.mxu0
          %v803 = vadd.f32 0.0, %v802
          %804 = vmatmul.f32.gmra.mxu0 %v681
          %v805 = vpop.f32.mrf.mxu0
          %v806 = vadd.f32 0.0, %v805
          %807 = vmatmul.f32.gmra.mxu0 %v684
          %v808 = vpop.f32.mrf.mxu0
          %v809 = vadd.f32 0.0, %v808
          %810 = vmatmul.f32.gmra.mxu0 %v687
          %v811 = vpop.f32.mrf.mxu0
          %v812 = vadd.f32 0.0, %v811
          %813 = vmatmul.f32.gmra.mxu0 %v690
          %v814 = vpop.f32.mrf.mxu0
          %v815 = vadd.f32 0.0, %v814
          %816 = vmatmul.f32.gmra.mxu0 %v693
          %v817 = vpop.f32.mrf.mxu0
          %v818 = vadd.f32 0.0, %v817
          %819 = vmatmul.f32.gmra.mxu0 %v696
          %v820 = vpop.f32.mrf.mxu0
          %v821 = vadd.f32 0.0, %v820
          %822 = vmatmul.f32.gmra.mxu0 %v699
          %v823 = vpop.f32.mrf.mxu0
          %v824 = vadd.f32 0.0, %v823
          %825 = vmatmul.f32.gmra.mxu0 %v702
          %v826 = vpop.f32.mrf.mxu0
          %v827 = vadd.f32 0.0, %v826
          %828 = vmatmul.f32.gmra.mxu0 %v705
          %v829 = vpop.f32.mrf.mxu0
          %v830 = vadd.f32 0.0, %v829
          %831 = vmatmul.f32.gmra.mxu0 %v708
          %v832 = vpop.f32.mrf.mxu0
          %v833 = vadd.f32 0.0, %v832
          %834 = vmatmul.f32.gmra.mxu0 %v711
          %v835 = vpop.f32.mrf.mxu0
          %v836 = vadd.f32 0.0, %v835
          %837 = vmatmul.f32.gmra.mxu0 %v714
          %v838 = vpop.f32.mrf.mxu0
          %v839 = vadd.f32 0.0, %v838
          %840 = vmatmul.f32.gmra.mxu0 %v717
          %v841 = vpop.f32.mrf.mxu0
          %v842 = vadd.f32 0.0, %v841
          %843 = vmatmul.f32.gmra.mxu0 %v720
          %v844 = vpop.f32.mrf.mxu0
          %v845 = vadd.f32 0.0, %v844
          %846 = vmatmul.f32.gmra.mxu0 %v723
          %v847 = vpop.f32.mrf.mxu0
          %v848 = vadd.f32 0.0, %v847
          %849 = vmatmul.f32.gmra.mxu0 %v726
          %v850 = vpop.f32.mrf.mxu0
          %v851 = vadd.f32 0.0, %v850
          %852 = vdwg.mxu0
          %853 = vmatpush.xpose.msra.mxu0 0.0
          %854 = vmatpush.xpose.msra.mxu0 0.0
          %855 = vmatpush.xpose.msra.mxu0 0.0
          %856 = vmatpush.xpose.msra.mxu0 0.0
          %857 = vmatpush.xpose.msra.mxu0 0.0
          %858 = vmatpush.xpose.msra.mxu0 0.0
          %859 = vmatpush.xpose.msra.mxu0 0.0
          %860 = vmatpush.xpose.msra.mxu0 0.0
          %861 = vmatpush.xpose.msra.mxu0 0.0
          %862 = vmatpush.xpose.msra.mxu0 0.0
          %863 = vmatpush.xpose.msra.mxu0 0.0
          %864 = vmatpush.xpose.msra.mxu0 0.0
          %865 = vmatpush.xpose.msra.mxu0 0.0
          %866 = vmatpush.xpose.msra.mxu0 0.0
          %867 = vmatpush.xpose.msra.mxu0 %v780
          %868 = vmatpush.xpose.msra.mxu0 %v777
          %869 = vmatmul.f32.gmra.mxu0 %v675
          %v870 = vpop.f32.mrf.mxu0
          %v871 = vadd.f32 0.0, %v870
          %872 = vmatmul.f32.gmra.mxu0 %v678
          %v873 = vpop.f32.mrf.mxu0
          %v874 = vadd.f32 0.0, %v873
          %875 = vmatmul.f32.gmra.mxu0 %v681
          %v876 = vpop.f32.mrf.mxu0
          %v877 = vadd.f32 0.0, %v876
          %878 = vmatmul.f32.gmra.mxu0 %v684
          %v879 = vpop.f32.mrf.mxu0
          %v880 = vadd.f32 0.0, %v879
          %881 = vmatmul.f32.gmra.mxu0 %v687
          %v882 = vpop.f32.mrf.mxu0
          %v883 = vadd.f32 0.0, %v882
          %884 = vmatmul.f32.gmra.mxu0 %v690
          %v885 = vpop.f32.mrf.mxu0
          %v886 = vadd.f32 0.0, %v885
          %887 = vmatmul.f32.gmra.mxu0 %v693
          %v888 = vpop.f32.mrf.mxu0
          %v889 = vadd.f32 0.0, %v888
          %890 = vmatmul.f32.gmra.mxu0 %v696
          %v891 = vpop.f32.mrf.mxu0
          %v892 = vadd.f32 0.0, %v891
          %893 = vmatmul.f32.gmra.mxu0 %v699
          %v894 = vpop.f32.mrf.mxu0
          %v895 = vadd.f32 0.0, %v894
          %896 = vmatmul.f32.gmra.mxu0 %v702
          %v897 = vpop.f32.mrf.mxu0
          %v898 = vadd.f32 0.0, %v897
          %899 = vmatmul.f32.gmra.mxu0 %v705
          %v900 = vpop.f32.mrf.mxu0
          %v901 = vadd.f32 0.0, %v900
          %902 = vmatmul.f32.gmra.mxu0 %v708
          %v903 = vpop.f32.mrf.mxu0
          %v904 = vadd.f32 0.0, %v903
          %905 = vmatmul.f32.gmra.mxu0 %v711
          %v906 = vpop.f32.mrf.mxu0
          %v907 = vadd.f32 0.0, %v906
          %908 = vmatmul.f32.gmra.mxu0 %v714
          %v909 = vpop.f32.mrf.mxu0
          %v910 = vadd.f32 0.0, %v909
          %911 = vmatmul.f32.gmra.mxu0 %v717
          %v912 = vpop.f32.mrf.mxu0
          %v913 = vadd.f32 0.0, %v912
          %914 = vmatmul.f32.gmra.mxu0 %v720
          %v915 = vpop.f32.mrf.mxu0
          %v916 = vadd.f32 0.0, %v915
          %917 = vmatmul.f32.gmra.mxu0 %v723
          %v918 = vpop.f32.mrf.mxu0
          %v919 = vadd.f32 0.0, %v918
          %920 = vmatmul.f32.gmra.mxu0 %v726
          %v921 = vpop.f32.mrf.mxu0
          %v922 = vadd.f32 0.0, %v921
          %923 = vdwg.mxu0
          %v924 = vsel %vm673, %v871, -inf
          %v925 = vmax.f32 %v800, %v924
          %926 = vmax.xlane.f32.xlu0 %v925
          %v927 = vpop.xlane.xlu0 %926
          %v928 = vsel %vm673, %v874, -inf
          %v929 = vmax.f32 %v803, %v928
          %930 = vmax.xlane.f32.xlu0 %v929
          %v931 = vpop.xlane.xlu0 %930
          %v932 = vsel %vm673, %v877, -inf
          %v933 = vmax.f32 %v806, %v932
          %934 = vmax.xlane.f32.xlu0 %v933
          %v935 = vpop.xlane.xlu0 %934
          %v936 = vsel %vm673, %v880, -inf
          %v937 = vmax.f32 %v809, %v936
          %938 = vmax.xlane.f32.xlu0 %v937
          %v939 = vpop.xlane.xlu0 %938
          %v940 = vsel %vm673, %v883, -inf
          %v941 = vmax.f32 %v812, %v940
          %942 = vmax.xlane.f32.xlu0 %v941
          %v943 = vpop.xlane.xlu0 %942
          %v944 = vsel %vm673, %v886, -inf
          %v945 = vmax.f32 %v815, %v944
          %946 = vmax.xlane.f32.xlu0 %v945
          %v947 = vpop.xlane.xlu0 %946
          %v948 = vsel %vm673, %v889, -inf
          %v949 = vmax.f32 %v818, %v948
          %950 = vmax.xlane.f32.xlu0 %v949
          %v951 = vpop.xlane.xlu0 %950
          %v952 = vsel %vm673, %v892, -inf
          %v953 = vmax.f32 %v821, %v952
          %954 = vmax.xlane.f32.xlu0 %v953
          %v955 = vpop.xlane.xlu0 %954
          %v956 = vsel %vm673, %v895, -inf
          %v957 = vmax.f32 %v824, %v956
          %958 = vmax.xlane.f32.xlu0 %v957
          %v959 = vpop.xlane.xlu0 %958
          %v960 = vsel %vm673, %v898, -inf
          %v961 = vmax.f32 %v827, %v960
          %962 = vmax.xlane.f32.xlu0 %v961
          %v963 = vpop.xlane.xlu0 %962
          %v964 = vsel %vm673, %v901, -inf
          %v965 = vmax.f32 %v830, %v964
          %966 = vmax.xlane.f32.xlu0 %v965
          %v967 = vpop.xlane.xlu0 %966
          %v968 = vsel %vm673, %v904, -inf
          %v969 = vmax.f32 %v833, %v968
          %970 = vmax.xlane.f32.xlu0 %v969
          %v971 = vpop.xlane.xlu0 %970
          %v972 = vsel %vm673, %v907, -inf
          %v973 = vmax.f32 %v836, %v972
          %974 = vmax.xlane.f32.xlu0 %v973
          %v975 = vpop.xlane.xlu0 %974
          %v976 = vsel %vm673, %v910, -inf
          %v977 = vmax.f32 %v839, %v976
          %978 = vmax.xlane.f32.xlu0 %v977
          %v979 = vpop.xlane.xlu0 %978
          %v980 = vsel %vm673, %v913, -inf
          %v981 = vmax.f32 %v842, %v980
          %982 = vmax.xlane.f32.xlu0 %v981
          %v983 = vpop.xlane.xlu0 %982
          %v984 = vsel %vm673, %v916, -inf
          %v985 = vmax.f32 %v845, %v984
          %986 = vmax.xlane.f32.xlu0 %v985
          %v987 = vpop.xlane.xlu0 %986
          %v988 = vsel %vm673, %v919, -inf
          %v989 = vmax.f32 %v848, %v988
          %990 = vmax.xlane.f32.xlu0 %v989
          %v991 = vpop.xlane.xlu0 %990
          %v992 = vsel %vm673, %v922, -inf
          %v993 = vmax.f32 %v851, %v992
          %994 = vmax.xlane.f32.xlu0 %v993
          %v995 = vpop.xlane.xlu0 %994
          %v996 = vsub.f32 %v800, %v927
          %v997 = vsub.f32 %v871, %v927
          %v998 = vsub.f32 %v803, %v931
          %v999 = vsub.f32 %v874, %v931
          %v1000 = vsub.f32 %v806, %v935
          %v1001 = vsub.f32 %v877, %v935
          %v1002 = vsub.f32 %v809, %v939
          %v1003 = vsub.f32 %v880, %v939
          %v1004 = vsub.f32 %v812, %v943
          %v1005 = vsub.f32 %v883, %v943
          %v1006 = vsub.f32 %v815, %v947
          %v1007 = vsub.f32 %v886, %v947
          %v1008 = vsub.f32 %v818, %v951
          %v1009 = vsub.f32 %v889, %v951
          %v1010 = vsub.f32 %v821, %v955
          %v1011 = vsub.f32 %v892, %v955
          %v1012 = vsub.f32 %v824, %v959
          %v1013 = vsub.f32 %v895, %v959
          %v1014 = vsub.f32 %v827, %v963
          %v1015 = vsub.f32 %v898, %v963
          %v1016 = vsub.f32 %v830, %v967
          %v1017 = vsub.f32 %v901, %v967
          %v1018 = vsub.f32 %v833, %v971
          %v1019 = vsub.f32 %v904, %v971
          %v1020 = vsub.f32 %v836, %v975
          %v1021 = vsub.f32 %v907, %v975
          %v1022 = vsub.f32 %v839, %v979
          %v1023 = vsub.f32 %v910, %v979
          %v1024 = vsub.f32 %v842, %v983
          %v1025 = vsub.f32 %v913, %v983
          %v1026 = vsub.f32 %v845, %v987
          %v1027 = vsub.f32 %v916, %v987
          %v1028 = vsub.f32 %v848, %v991
          %v1029 = vsub.f32 %v919, %v991
          %v1030 = vsub.f32 %v851, %v995
          %v1031 = vsub.f32 %v922, %v995
          %v1032 = vmul.f32 %v996, 1.442695
          %v1033 = vpow.pop %v1032
          %v1034 = vmul.f32 %v997, 1.442695
          %v1035 = vpow.pop %v1034
          %v1036 = vmul.f32 %v998, 1.442695
          %v1037 = vpow.pop %v1036
          %v1038 = vmul.f32 %v999, 1.442695
          %v1039 = vpow.pop %v1038
          %v1040 = vmul.f32 %v1000, 1.442695
          %v1041 = vpow.pop %v1040
          %v1042 = vmul.f32 %v1001, 1.442695
          %v1043 = vpow.pop %v1042
          %v1044 = vmul.f32 %v1002, 1.442695
          %v1045 = vpow.pop %v1044
          %v1046 = vmul.f32 %v1003, 1.442695
          %v1047 = vpow.pop %v1046
          %v1048 = vmul.f32 %v1004, 1.442695
          %v1049 = vpow.pop %v1048
          %v1050 = vmul.f32 %v1005, 1.442695
          %v1051 = vpow.pop %v1050
          %v1052 = vmul.f32 %v1006, 1.442695
          %v1053 = vpow.pop %v1052
          %v1054 = vmul.f32 %v1007, 1.442695
          %v1055 = vpow.pop %v1054
          %v1056 = vmul.f32 %v1008, 1.442695
          %v1057 = vpow.pop %v1056
          %v1058 = vmul.f32 %v1009, 1.442695
          %v1059 = vpow.pop %v1058
          %v1060 = vmul.f32 %v1010, 1.442695
          %v1061 = vpow.pop %v1060
          %v1062 = vmul.f32 %v1011, 1.442695
          %v1063 = vpow.pop %v1062
          %v1064 = vmul.f32 %v1012, 1.442695
          %v1065 = vpow.pop %v1064
          %v1066 = vmul.f32 %v1013, 1.442695
          %v1067 = vpow.pop %v1066
          %v1068 = vmul.f32 %v1014, 1.442695
          %v1069 = vpow.pop %v1068
          %v1070 = vmul.f32 %v1015, 1.442695
          %v1071 = vpow.pop %v1070
          %v1072 = vmul.f32 %v1016, 1.442695
          %v1073 = vpow.pop %v1072
          %v1074 = vmul.f32 %v1017, 1.442695
          %v1075 = vpow.pop %v1074
          %v1076 = vmul.f32 %v1018, 1.442695
          %v1077 = vpow.pop %v1076
          %v1078 = vmul.f32 %v1019, 1.442695
          %v1079 = vpow.pop %v1078
          %v1080 = vmul.f32 %v1020, 1.442695
          %v1081 = vpow.pop %v1080
          %v1082 = vmul.f32 %v1021, 1.442695
          %v1083 = vpow.pop %v1082
          %v1084 = vmul.f32 %v1022, 1.442695
          %v1085 = vpow.pop %v1084
          %v1086 = vmul.f32 %v1023, 1.442695
          %v1087 = vpow.pop %v1086
          %v1088 = vmul.f32 %v1024, 1.442695
          %v1089 = vpow.pop %v1088
          %v1090 = vmul.f32 %v1025, 1.442695
          %v1091 = vpow.pop %v1090
          %v1092 = vmul.f32 %v1026, 1.442695
          %v1093 = vpow.pop %v1092
          %v1094 = vmul.f32 %v1027, 1.442695
          %v1095 = vpow.pop %v1094
          %v1096 = vmul.f32 %v1028, 1.442695
          %v1097 = vpow.pop %v1096
          %v1098 = vmul.f32 %v1029, 1.442695
          %v1099 = vpow.pop %v1098
          %v1100 = vmul.f32 %v1030, 1.442695
          %v1101 = vpow.pop %v1100
          %v1102 = vmul.f32 %v1031, 1.442695
          %v1103 = vpow.pop %v1102
          %v1104 = vsel %vm673, %v1035, 0.0
          %v1105 = vadd.f32 %v1033, %v1104
          %1106 = vadd.xlane.f32.xlu0 %v1105
          %v1107 = vpop.xlane.xlu0 %1106
          %v1108 = vsel %vm673, %v1039, 0.0
          %v1109 = vadd.f32 %v1037, %v1108
          %1110 = vadd.xlane.f32.xlu0 %v1109
          %v1111 = vpop.xlane.xlu0 %1110
          %v1112 = vsel %vm673, %v1043, 0.0
          %v1113 = vadd.f32 %v1041, %v1112
          %1114 = vadd.xlane.f32.xlu0 %v1113
          %v1115 = vpop.xlane.xlu0 %1114
          %v1116 = vsel %vm673, %v1047, 0.0
          %v1117 = vadd.f32 %v1045, %v1116
          %1118 = vadd.xlane.f32.xlu0 %v1117
          %v1119 = vpop.xlane.xlu0 %1118
          %v1120 = vsel %vm673, %v1051, 0.0
          %v1121 = vadd.f32 %v1049, %v1120
          %1122 = vadd.xlane.f32.xlu0 %v1121
          %v1123 = vpop.xlane.xlu0 %1122
          %v1124 = vsel %vm673, %v1055, 0.0
          %v1125 = vadd.f32 %v1053, %v1124
          %1126 = vadd.xlane.f32.xlu0 %v1125
          %v1127 = vpop.xlane.xlu0 %1126
          %v1128 = vsel %vm673, %v1059, 0.0
          %v1129 = vadd.f32 %v1057, %v1128
          %1130 = vadd.xlane.f32.xlu0 %v1129
          %v1131 = vpop.xlane.xlu0 %1130
          %v1132 = vsel %vm673, %v1063, 0.0
          %v1133 = vadd.f32 %v1061, %v1132
          %1134 = vadd.xlane.f32.xlu0 %v1133
          %v1135 = vpop.xlane.xlu0 %1134
          %v1136 = vsel %vm673, %v1067, 0.0
          %v1137 = vadd.f32 %v1065, %v1136
          %1138 = vadd.xlane.f32.xlu0 %v1137
          %v1139 = vpop.xlane.xlu0 %1138
          %v1140 = vsel %vm673, %v1071, 0.0
          %v1141 = vadd.f32 %v1069, %v1140
          %1142 = vadd.xlane.f32.xlu0 %v1141
          %v1143 = vpop.xlane.xlu0 %1142
          %v1144 = vsel %vm673, %v1075, 0.0
          %v1145 = vadd.f32 %v1073, %v1144
          %1146 = vadd.xlane.f32.xlu0 %v1145
          %v1147 = vpop.xlane.xlu0 %1146
          %v1148 = vsel %vm673, %v1079, 0.0
          %v1149 = vadd.f32 %v1077, %v1148
          %1150 = vadd.xlane.f32.xlu0 %v1149
          %v1151 = vpop.xlane.xlu0 %1150
          %v1152 = vsel %vm673, %v1083, 0.0
          %v1153 = vadd.f32 %v1081, %v1152
          %1154 = vadd.xlane.f32.xlu0 %v1153
          %v1155 = vpop.xlane.xlu0 %1154
          %v1156 = vsel %vm673, %v1087, 0.0
          %v1157 = vadd.f32 %v1085, %v1156
          %1158 = vadd.xlane.f32.xlu0 %v1157
          %v1159 = vpop.xlane.xlu0 %1158
          %v1160 = vsel %vm673, %v1091, 0.0
          %v1161 = vadd.f32 %v1089, %v1160
          %1162 = vadd.xlane.f32.xlu0 %v1161
          %v1163 = vpop.xlane.xlu0 %1162
          %v1164 = vsel %vm673, %v1095, 0.0
          %v1165 = vadd.f32 %v1093, %v1164
          %1166 = vadd.xlane.f32.xlu0 %v1165
          %v1167 = vpop.xlane.xlu0 %1166
          %v1168 = vsel %vm673, %v1099, 0.0
          %v1169 = vadd.f32 %v1097, %v1168
          %1170 = vadd.xlane.f32.xlu0 %v1169
          %v1171 = vpop.xlane.xlu0 %1170
          %v1172 = vsel %vm673, %v1103, 0.0
          %v1173 = vadd.f32 %v1101, %v1172
          %1174 = vadd.xlane.f32.xlu0 %v1173
          %v1175 = vpop.xlane.xlu0 %1174
          %v1177 = vsel %vm673, %v1035, 0
          %v1180 = vsel %vm673, %v1039, 0
          %v1183 = vsel %vm673, %v1043, 0
          %v1186 = vsel %vm673, %v1047, 0
          %v1189 = vsel %vm673, %v1051, 0
          %v1192 = vsel %vm673, %v1055, 0
          %v1195 = vsel %vm673, %v1059, 0
          %v1198 = vsel %vm673, %v1063, 0
          %v1201 = vsel %vm673, %v1067, 0
          %v1204 = vsel %vm673, %v1071, 0
          %v1207 = vsel %vm673, %v1075, 0
          %v1210 = vsel %vm673, %v1079, 0
          %v1213 = vsel %vm673, %v1083, 0
          %v1216 = vsel %vm673, %v1087, 0
          %v1219 = vsel %vm673, %v1091, 0
          %v1222 = vsel %vm673, %v1095, 0
          %v1225 = vsel %vm673, %v1099, 0
          %v1228 = vsel %vm673, %v1103, 0
          %1230 = vmatpush.msra.mxu0 %v670
          %1231 = vmatpush.msra.mxu0 %v669
          %1232 = vmatpush.msra.mxu0 %v668
          %1233 = vmatpush.msra.mxu0 %v667
          %1234 = vmatpush.msra.mxu0 %v666
          %1235 = vmatpush.msra.mxu0 %v665
          %1236 = vmatpush.msra.mxu0 %v664
          %1237 = vmatpush.msra.mxu0 %v663
          %1238 = vmatpush.msra.mxu0 %v662
          %1239 = vmatpush.msra.mxu0 %v661
          %1240 = vmatpush.msra.mxu0 %v660
          %1241 = vmatpush.msra.mxu0 %v659
          %1242 = vmatpush.msra.mxu0 %v658
          %1243 = vmatpush.msra.mxu0 %v657
          %1244 = vmatpush.msra.mxu0 %v656
          %1245 = vmatpush.msra.mxu0 %v655
          %1246 = vmatmul.f32.gmra.mxu0 %v1033
          %v1247 = vpop.f32.mrf.mxu0
          %v1248 = vadd.f32 0.0, %v1247
          %1249 = vmatmul.f32.gmra.mxu0 %v1037
          %v1250 = vpop.f32.mrf.mxu0
          %v1251 = vadd.f32 0.0, %v1250
          %1252 = vmatmul.f32.gmra.mxu0 %v1041
          %v1253 = vpop.f32.mrf.mxu0
          %v1254 = vadd.f32 0.0, %v1253
          %1255 = vmatmul.f32.gmra.mxu0 %v1045
          %v1256 = vpop.f32.mrf.mxu0
          %v1257 = vadd.f32 0.0, %v1256
          %1258 = vmatmul.f32.gmra.mxu0 %v1049
          %v1259 = vpop.f32.mrf.mxu0
          %v1260 = vadd.f32 0.0, %v1259
          %1261 = vmatmul.f32.gmra.mxu0 %v1053
          %v1262 = vpop.f32.mrf.mxu0
          %v1263 = vadd.f32 0.0, %v1262
          %1264 = vmatmul.f32.gmra.mxu0 %v1057
          %v1265 = vpop.f32.mrf.mxu0
          %v1266 = vadd.f32 0.0, %v1265
          %1267 = vmatmul.f32.gmra.mxu0 %v1061
          %v1268 = vpop.f32.mrf.mxu0
          %v1269 = vadd.f32 0.0, %v1268
          %1270 = vmatmul.f32.gmra.mxu0 %v1065
          %v1271 = vpop.f32.mrf.mxu0
          %v1272 = vadd.f32 0.0, %v1271
          %1273 = vmatmul.f32.gmra.mxu0 %v1069
          %v1274 = vpop.f32.mrf.mxu0
          %v1275 = vadd.f32 0.0, %v1274
          %1276 = vmatmul.f32.gmra.mxu0 %v1073
          %v1277 = vpop.f32.mrf.mxu0
          %v1278 = vadd.f32 0.0, %v1277
          %1279 = vmatmul.f32.gmra.mxu0 %v1077
          %v1280 = vpop.f32.mrf.mxu0
          %v1281 = vadd.f32 0.0, %v1280
          %1282 = vmatmul.f32.gmra.mxu0 %v1081
          %v1283 = vpop.f32.mrf.mxu0
          %v1284 = vadd.f32 0.0, %v1283
          %1285 = vmatmul.f32.gmra.mxu0 %v1085
          %v1286 = vpop.f32.mrf.mxu0
          %v1287 = vadd.f32 0.0, %v1286
          %1288 = vmatmul.f32.gmra.mxu0 %v1089
          %v1289 = vpop.f32.mrf.mxu0
          %v1290 = vadd.f32 0.0, %v1289
          %1291 = vmatmul.f32.gmra.mxu0 %v1093
          %v1292 = vpop.f32.mrf.mxu0
          %v1293 = vadd.f32 0.0, %v1292
          %1294 = vmatmul.f32.gmra.mxu0 %v1097
          %v1295 = vpop.f32.mrf.mxu0
          %v1296 = vadd.f32 0.0, %v1295
          %1297 = vmatmul.f32.gmra.mxu0 %v1101
          %v1298 = vpop.f32.mrf.mxu0
          %v1299 = vadd.f32 0.0, %v1298
          %1300 = vdwg.mxu0
          %1301 = vmatpush.msra.mxu0 0.0
          %1302 = vmatpush.msra.mxu0 0.0
          %1303 = vmatpush.msra.mxu0 0.0
          %1304 = vmatpush.msra.mxu0 0.0
          %1305 = vmatpush.msra.mxu0 0.0
          %1306 = vmatpush.msra.mxu0 0.0
          %1307 = vmatpush.msra.mxu0 0.0
          %1308 = vmatpush.msra.mxu0 0.0
          %1309 = vmatpush.msra.mxu0 0.0
          %1310 = vmatpush.msra.mxu0 0.0
          %1311 = vmatpush.msra.mxu0 0.0
          %1312 = vmatpush.msra.mxu0 0.0
          %1313 = vmatpush.msra.mxu0 0.0
          %1314 = vmatpush.msra.mxu0 0.0
          %1315 = vmatpush.msra.mxu0 %v672
          %1316 = vmatpush.msra.mxu0 %v671
          %1317 = vmatmul.f32.gmra.mxu0 %v1177
          %v1318 = vpop.f32.mrf.mxu0
          %v1319 = vadd.f32 %v1248, %v1318
          %1320 = vmatmul.f32.gmra.mxu0 %v1180
          %v1321 = vpop.f32.mrf.mxu0
          %v1322 = vadd.f32 %v1251, %v1321
          %1323 = vmatmul.f32.gmra.mxu0 %v1183
          %v1324 = vpop.f32.mrf.mxu0
          %v1325 = vadd.f32 %v1254, %v1324
          %1326 = vmatmul.f32.gmra.mxu0 %v1186
          %v1327 = vpop.f32.mrf.mxu0
          %v1328 = vadd.f32 %v1257, %v1327
          %1329 = vmatmul.f32.gmra.mxu0 %v1189
          %v1330 = vpop.f32.mrf.mxu0
          %v1331 = vadd.f32 %v1260, %v1330
          %1332 = vmatmul.f32.gmra.mxu0 %v1192
          %v1333 = vpop.f32.mrf.mxu0
          %v1334 = vadd.f32 %v1263, %v1333
          %1335 = vmatmul.f32.gmra.mxu0 %v1195
          %v1336 = vpop.f32.mrf.mxu0
          %v1337 = vadd.f32 %v1266, %v1336
          %1338 = vmatmul.f32.gmra.mxu0 %v1198
          %v1339 = vpop.f32.mrf.mxu0
          %v1340 = vadd.f32 %v1269, %v1339
          %1341 = vmatmul.f32.gmra.mxu0 %v1201
          %v1342 = vpop.f32.mrf.mxu0
          %v1343 = vadd.f32 %v1272, %v1342
          %1344 = vmatmul.f32.gmra.mxu0 %v1204
          %v1345 = vpop.f32.mrf.mxu0
          %v1346 = vadd.f32 %v1275, %v1345
          %1347 = vmatmul.f32.gmra.mxu0 %v1207
          %v1348 = vpop.f32.mrf.mxu0
          %v1349 = vadd.f32 %v1278, %v1348
          %1350 = vmatmul.f32.gmra.mxu0 %v1210
          %v1351 = vpop.f32.mrf.mxu0
          %v1352 = vadd.f32 %v1281, %v1351
          %1353 = vmatmul.f32.gmra.mxu0 %v1213
          %v1354 = vpop.f32.mrf.mxu0
          %v1355 = vadd.f32 %v1284, %v1354
          %1356 = vmatmul.f32.gmra.mxu0 %v1216
          %v1357 = vpop.f32.mrf.mxu0
          %v1358 = vadd.f32 %v1287, %v1357
          %1359 = vmatmul.f32.gmra.mxu0 %v1219
          %v1360 = vpop.f32.mrf.mxu0
          %v1361 = vadd.f32 %v1290, %v1360
          %1362 = vmatmul.f32.gmra.mxu0 %v1222
          %v1363 = vpop.f32.mrf.mxu0
          %v1364 = vadd.f32 %v1293, %v1363
          %1365 = vmatmul.f32.gmra.mxu0 %v1225
          %v1366 = vpop.f32.mrf.mxu0
          %v1367 = vadd.f32 %v1296, %v1366
          %1368 = vmatmul.f32.gmra.mxu0 %v1228
          %v1369 = vpop.f32.mrf.mxu0
          %v1370 = vadd.f32 %v1299, %v1369
          %1371 = vdwg.mxu0
          %v1372 = vld [vmem:[%s3] sm:$0x1]
          %v1374 = vperm.slane %v1372, 0
          %v1376 = vmul.f32 %v1319, %v1374
          %v1377 = vmul.f32 %v1322, %v1374
          %v1378 = vmul.f32 %v1325, %v1374
          %v1379 = vmul.f32 %v1328, %v1374
          %v1380 = vmul.f32 %v1331, %v1374
          %v1381 = vmul.f32 %v1334, %v1374
          %v1382 = vmul.f32 %v1337, %v1374
          %v1383 = vmul.f32 %v1340, %v1374
          %v1384 = vmul.f32 %v1343, %v1374
          %v1385 = vmul.f32 %v1346, %v1374
          %v1386 = vmul.f32 %v1349, %v1374
          %v1387 = vmul.f32 %v1352, %v1374
          %v1388 = vmul.f32 %v1355, %v1374
          %v1389 = vmul.f32 %v1358, %v1374
          %v1390 = vmul.f32 %v1361, %v1374
          %v1391 = vmul.f32 %v1364, %v1374
          %v1392 = vmul.f32 %v1367, %v1374
          %v1393 = vmul.f32 %v1370, %v1374
          %v1394 = vsel %vm673, %v1376, 0.0
          %1395 = vadd.xlane.f32.xlu0 %v1394
          %v1396 = vpop.xlane.xlu0 %1395
          %v1397 = vsel %vm673, %v1377, 0.0
          %1398 = vadd.xlane.f32.xlu0 %v1397
          %v1399 = vpop.xlane.xlu0 %1398
          %v1400 = vsel %vm673, %v1378, 0.0
          %1401 = vadd.xlane.f32.xlu0 %v1400
          %v1402 = vpop.xlane.xlu0 %1401
          %v1403 = vsel %vm673, %v1379, 0.0
          %1404 = vadd.xlane.f32.xlu0 %v1403
          %v1405 = vpop.xlane.xlu0 %1404
          %v1406 = vsel %vm673, %v1380, 0.0
          %1407 = vadd.xlane.f32.xlu0 %v1406
          %v1408 = vpop.xlane.xlu0 %1407
          %v1409 = vsel %vm673, %v1381, 0.0
          %1410 = vadd.xlane.f32.xlu0 %v1409
          %v1411 = vpop.xlane.xlu0 %1410
          %v1412 = vsel %vm673, %v1382, 0.0
          %1413 = vadd.xlane.f32.xlu0 %v1412
          %v1414 = vpop.xlane.xlu0 %1413
          %v1415 = vsel %vm673, %v1383, 0.0
          %1416 = vadd.xlane.f32.xlu0 %v1415
          %v1417 = vpop.xlane.xlu0 %1416
          %v1418 = vsel %vm673, %v1384, 0.0
          %1419 = vadd.xlane.f32.xlu0 %v1418
          %v1420 = vpop.xlane.xlu0 %1419
          %v1421 = vsel %vm673, %v1385, 0.0
          %1422 = vadd.xlane.f32.xlu0 %v1421
          %v1423 = vpop.xlane.xlu0 %1422
          %v1424 = vsel %vm673, %v1386, 0.0
          %1425 = vadd.xlane.f32.xlu0 %v1424
          %v1426 = vpop.xlane.xlu0 %1425
          %v1427 = vsel %vm673, %v1387, 0.0
          %1428 = vadd.xlane.f32.xlu0 %v1427
          %v1429 = vpop.xlane.xlu0 %1428
          %v1430 = vsel %vm673, %v1388, 0.0
          %1431 = vadd.xlane.f32.xlu0 %v1430
          %v1432 = vpop.xlane.xlu0 %1431
          %v1433 = vsel %vm673, %v1389, 0.0
          %1434 = vadd.xlane.f32.xlu0 %v1433
          %v1435 = vpop.xlane.xlu0 %1434
          %v1436 = vsel %vm673, %v1390, 0.0
          %1437 = vadd.xlane.f32.xlu0 %v1436
          %v1438 = vpop.xlane.xlu0 %1437
          %v1439 = vsel %vm673, %v1391, 0.0
          %1440 = vadd.xlane.f32.xlu0 %v1439
          %v1441 = vpop.xlane.xlu0 %1440
          %v1442 = vsel %vm673, %v1392, 0.0
          %1443 = vadd.xlane.f32.xlu0 %v1442
          %v1444 = vpop.xlane.xlu0 %1443
          %v1445 = vsel %vm673, %v1393, 0.0
          %1446 = vadd.xlane.f32.xlu0 %v1445
          %v1447 = vpop.xlane.xlu0 %1446
          %v1448 = vrcp.pop %v1107
          %v1449 = vmul.f32 %v1107, %v1448
          %v1450 = vsub.f32 1.0, %v1449
          %v1451 = vmul.f32 %v1448, %v1450
          %v1452 = vadd.f32 %v1448, %v1451
          %vm1453 = vweird.f32 %v1107
          %vm1454 = vweird.f32 %v1448
          %vm1455 = vmor %vm1453, %vm1454
          %v1456 = vsel %vm1455, %v1448, %v1452
          %v1457 = vand.u32 2147483647, %v1107
          %vm1458 = vcmp.eq.f32.partialorder %v1457, 8.507059e+37
          %v1459 = vand.u32 %v1107, 2147483648
          %v1460 = vor.u32 1.1754944e-38, %v1459
          %v1461 = vsel %vm1458, %v1460, %v1456
          %v1462 = vmul.f32 %v1396, %v1461
          %v1463 = vrcp.pop %v1111
          %v1464 = vmul.f32 %v1111, %v1463
          %v1465 = vsub.f32 1.0, %v1464
          %v1466 = vmul.f32 %v1463, %v1465
          %v1467 = vadd.f32 %v1463, %v1466
          %vm1468 = vweird.f32 %v1111
          %vm1469 = vweird.f32 %v1463
          %vm1470 = vmor %vm1468, %vm1469
          %v1471 = vsel %vm1470, %v1463, %v1467
          %v1472 = vand.u32 2147483647, %v1111
          %vm1473 = vcmp.eq.f32.partialorder %v1472, 8.507059e+37
          %v1474 = vand.u32 %v1111, 2147483648
          %v1475 = vor.u32 1.1754944e-38, %v1474
          %v1476 = vsel %vm1473, %v1475, %v1471
          %v1477 = vmul.f32 %v1399, %v1476
          %v1478 = vrcp.pop %v1115
          %v1479 = vmul.f32 %v1115, %v1478
          %v1480 = vsub.f32 1.0, %v1479
          %v1481 = vmul.f32 %v1478, %v1480
          %v1482 = vadd.f32 %v1478, %v1481
          %vm1483 = vweird.f32 %v1115
          %vm1484 = vweird.f32 %v1478
          %vm1485 = vmor %vm1483, %vm1484
          %v1486 = vsel %vm1485, %v1478, %v1482
          %v1487 = vand.u32 2147483647, %v1115
          %vm1488 = vcmp.eq.f32.partialorder %v1487, 8.507059e+37
          %v1489 = vand.u32 %v1115, 2147483648
          %v1490 = vor.u32 1.1754944e-38, %v1489
          %v1491 = vsel %vm1488, %v1490, %v1486
          %v1492 = vmul.f32 %v1402, %v1491
          %v1493 = vrcp.pop %v1119
          %v1494 = vmul.f32 %v1119, %v1493
          %v1495 = vsub.f32 1.0, %v1494
          %v1496 = vmul.f32 %v1493, %v1495
          %v1497 = vadd.f32 %v1493, %v1496
          %vm1498 = vweird.f32 %v1119
          %vm1499 = vweird.f32 %v1493
          %vm1500 = vmor %vm1498, %vm1499
          %v1501 = vsel %vm1500, %v1493, %v1497
          %v1502 = vand.u32 2147483647, %v1119
          %vm1503 = vcmp.eq.f32.partialorder %v1502, 8.507059e+37
          %v1504 = vand.u32 %v1119, 2147483648
          %v1505 = vor.u32 1.1754944e-38, %v1504
          %v1506 = vsel %vm1503, %v1505, %v1501
          %v1507 = vmul.f32 %v1405, %v1506
          %v1508 = vrcp.pop %v1123
          %v1509 = vmul.f32 %v1123, %v1508
          %v1510 = vsub.f32 1.0, %v1509
          %v1511 = vmul.f32 %v1508, %v1510
          %v1512 = vadd.f32 %v1508, %v1511
          %vm1513 = vweird.f32 %v1123
          %vm1514 = vweird.f32 %v1508
          %vm1515 = vmor %vm1513, %vm1514
          %v1516 = vsel %vm1515, %v1508, %v1512
          %v1517 = vand.u32 2147483647, %v1123
          %vm1518 = vcmp.eq.f32.partialorder %v1517, 8.507059e+37
          %v1519 = vand.u32 %v1123, 2147483648
          %v1520 = vor.u32 1.1754944e-38, %v1519
          %v1521 = vsel %vm1518, %v1520, %v1516
          %v1522 = vmul.f32 %v1408, %v1521
          %v1523 = vrcp.pop %v1127
          %v1524 = vmul.f32 %v1127, %v1523
          %v1525 = vsub.f32 1.0, %v1524
          %v1526 = vmul.f32 %v1523, %v1525
          %v1527 = vadd.f32 %v1523, %v1526
          %vm1528 = vweird.f32 %v1127
          %vm1529 = vweird.f32 %v1523
          %vm1530 = vmor %vm1528, %vm1529
          %v1531 = vsel %vm1530, %v1523, %v1527
          %v1532 = vand.u32 2147483647, %v1127
          %vm1533 = vcmp.eq.f32.partialorder %v1532, 8.507059e+37
          %v1534 = vand.u32 %v1127, 2147483648
          %v1535 = vor.u32 1.1754944e-38, %v1534
          %v1536 = vsel %vm1533, %v1535, %v1531
          %v1537 = vmul.f32 %v1411, %v1536
          %v1538 = vrcp.pop %v1131
          %v1539 = vmul.f32 %v1131, %v1538
          %v1540 = vsub.f32 1.0, %v1539
          %v1541 = vmul.f32 %v1538, %v1540
          %v1542 = vadd.f32 %v1538, %v1541
          %vm1543 = vweird.f32 %v1131
          %vm1544 = vweird.f32 %v1538
          %vm1545 = vmor %vm1543, %vm1544
          %v1546 = vsel %vm1545, %v1538, %v1542
          %v1547 = vand.u32 2147483647, %v1131
          %vm1548 = vcmp.eq.f32.partialorder %v1547, 8.507059e+37
          %v1549 = vand.u32 %v1131, 2147483648
          %v1550 = vor.u32 1.1754944e-38, %v1549
          %v1551 = vsel %vm1548, %v1550, %v1546
          %v1552 = vmul.f32 %v1414, %v1551
          %v1553 = vrcp.pop %v1135
          %v1554 = vmul.f32 %v1135, %v1553
          %v1555 = vsub.f32 1.0, %v1554
          %v1556 = vmul.f32 %v1553, %v1555
          %v1557 = vadd.f32 %v1553, %v1556
          %vm1558 = vweird.f32 %v1135
          %vm1559 = vweird.f32 %v1553
          %vm1560 = vmor %vm1558, %vm1559
          %v1561 = vsel %vm1560, %v1553, %v1557
          %v1562 = vand.u32 2147483647, %v1135
          %vm1563 = vcmp.eq.f32.partialorder %v1562, 8.507059e+37
          %v1564 = vand.u32 %v1135, 2147483648
          %v1565 = vor.u32 1.1754944e-38, %v1564
          %v1566 = vsel %vm1563, %v1565, %v1561
          %v1567 = vmul.f32 %v1417, %v1566
          %v1568 = vrcp.pop %v1139
          %v1569 = vmul.f32 %v1139, %v1568
          %v1570 = vsub.f32 1.0, %v1569
          %v1571 = vmul.f32 %v1568, %v1570
          %v1572 = vadd.f32 %v1568, %v1571
          %vm1573 = vweird.f32 %v1139
          %vm1574 = vweird.f32 %v1568
          %vm1575 = vmor %vm1573, %vm1574
          %v1576 = vsel %vm1575, %v1568, %v1572
          %v1577 = vand.u32 2147483647, %v1139
          %vm1578 = vcmp.eq.f32.partialorder %v1577, 8.507059e+37
          %v1579 = vand.u32 %v1139, 2147483648
          %v1580 = vor.u32 1.1754944e-38, %v1579
          %v1581 = vsel %vm1578, %v1580, %v1576
          %v1582 = vmul.f32 %v1420, %v1581
          %v1583 = vrcp.pop %v1143
          %v1584 = vmul.f32 %v1143, %v1583
          %v1585 = vsub.f32 1.0, %v1584
          %v1586 = vmul.f32 %v1583, %v1585
          %v1587 = vadd.f32 %v1583, %v1586
          %vm1588 = vweird.f32 %v1143
          %vm1589 = vweird.f32 %v1583
          %vm1590 = vmor %vm1588, %vm1589
          %v1591 = vsel %vm1590, %v1583, %v1587
          %v1592 = vand.u32 2147483647, %v1143
          %vm1593 = vcmp.eq.f32.partialorder %v1592, 8.507059e+37
          %v1594 = vand.u32 %v1143, 2147483648
          %v1595 = vor.u32 1.1754944e-38, %v1594
          %v1596 = vsel %vm1593, %v1595, %v1591
          %v1597 = vmul.f32 %v1423, %v1596
          %v1598 = vrcp.pop %v1147
          %v1599 = vmul.f32 %v1147, %v1598
          %v1600 = vsub.f32 1.0, %v1599
          %v1601 = vmul.f32 %v1598, %v1600
          %v1602 = vadd.f32 %v1598, %v1601
          %vm1603 = vweird.f32 %v1147
          %vm1604 = vweird.f32 %v1598
          %vm1605 = vmor %vm1603, %vm1604
          %v1606 = vsel %vm1605, %v1598, %v1602
          %v1607 = vand.u32 2147483647, %v1147
          %vm1608 = vcmp.eq.f32.partialorder %v1607, 8.507059e+37
          %v1609 = vand.u32 %v1147, 2147483648
          %v1610 = vor.u32 1.1754944e-38, %v1609
          %v1611 = vsel %vm1608, %v1610, %v1606
          %v1612 = vmul.f32 %v1426, %v1611
          %v1613 = vrcp.pop %v1151
          %v1614 = vmul.f32 %v1151, %v1613
          %v1615 = vsub.f32 1.0, %v1614
          %v1616 = vmul.f32 %v1613, %v1615
          %v1617 = vadd.f32 %v1613, %v1616
          %vm1618 = vweird.f32 %v1151
          %vm1619 = vweird.f32 %v1613
          %vm1620 = vmor %vm1618, %vm1619
          %v1621 = vsel %vm1620, %v1613, %v1617
          %v1622 = vand.u32 2147483647, %v1151
          %vm1623 = vcmp.eq.f32.partialorder %v1622, 8.507059e+37
          %v1624 = vand.u32 %v1151, 2147483648
          %v1625 = vor.u32 1.1754944e-38, %v1624
          %v1626 = vsel %vm1623, %v1625, %v1621
          %v1627 = vmul.f32 %v1429, %v1626
          %v1628 = vrcp.pop %v1155
          %v1629 = vmul.f32 %v1155, %v1628
          %v1630 = vsub.f32 1.0, %v1629
          %v1631 = vmul.f32 %v1628, %v1630
          %v1632 = vadd.f32 %v1628, %v1631
          %vm1633 = vweird.f32 %v1155
          %vm1634 = vweird.f32 %v1628
          %vm1635 = vmor %vm1633, %vm1634
          %v1636 = vsel %vm1635, %v1628, %v1632
          %v1637 = vand.u32 2147483647, %v1155
          %vm1638 = vcmp.eq.f32.partialorder %v1637, 8.507059e+37
          %v1639 = vand.u32 %v1155, 2147483648
          %v1640 = vor.u32 1.1754944e-38, %v1639
          %v1641 = vsel %vm1638, %v1640, %v1636
          %v1642 = vmul.f32 %v1432, %v1641
          %v1643 = vrcp.pop %v1159
          %v1644 = vmul.f32 %v1159, %v1643
          %v1645 = vsub.f32 1.0, %v1644
          %v1646 = vmul.f32 %v1643, %v1645
          %v1647 = vadd.f32 %v1643, %v1646
          %vm1648 = vweird.f32 %v1159
          %vm1649 = vweird.f32 %v1643
          %vm1650 = vmor %vm1648, %vm1649
          %v1651 = vsel %vm1650, %v1643, %v1647
          %v1652 = vand.u32 2147483647, %v1159
          %vm1653 = vcmp.eq.f32.partialorder %v1652, 8.507059e+37
          %v1654 = vand.u32 %v1159, 2147483648
          %v1655 = vor.u32 1.1754944e-38, %v1654
          %v1656 = vsel %vm1653, %v1655, %v1651
          %v1657 = vmul.f32 %v1435, %v1656
          %v1658 = vrcp.pop %v1163
          %v1659 = vmul.f32 %v1163, %v1658
          %v1660 = vsub.f32 1.0, %v1659
          %v1661 = vmul.f32 %v1658, %v1660
          %v1662 = vadd.f32 %v1658, %v1661
          %vm1663 = vweird.f32 %v1163
          %vm1664 = vweird.f32 %v1658
          %vm1665 = vmor %vm1663, %vm1664
          %v1666 = vsel %vm1665, %v1658, %v1662
          %v1667 = vand.u32 2147483647, %v1163
          %vm1668 = vcmp.eq.f32.partialorder %v1667, 8.507059e+37
          %v1669 = vand.u32 %v1163, 2147483648
          %v1670 = vor.u32 1.1754944e-38, %v1669
          %v1671 = vsel %vm1668, %v1670, %v1666
          %v1672 = vmul.f32 %v1438, %v1671
          %v1673 = vrcp.pop %v1167
          %v1674 = vmul.f32 %v1167, %v1673
          %v1675 = vsub.f32 1.0, %v1674
          %v1676 = vmul.f32 %v1673, %v1675
          %v1677 = vadd.f32 %v1673, %v1676
          %vm1678 = vweird.f32 %v1167
          %vm1679 = vweird.f32 %v1673
          %vm1680 = vmor %vm1678, %vm1679
          %v1681 = vsel %vm1680, %v1673, %v1677
          %v1682 = vand.u32 2147483647, %v1167
          %vm1683 = vcmp.eq.f32.partialorder %v1682, 8.507059e+37
          %v1684 = vand.u32 %v1167, 2147483648
          %v1685 = vor.u32 1.1754944e-38, %v1684
          %v1686 = vsel %vm1683, %v1685, %v1681
          %v1687 = vmul.f32 %v1441, %v1686
          %v1688 = vrcp.pop %v1171
          %v1689 = vmul.f32 %v1171, %v1688
          %v1690 = vsub.f32 1.0, %v1689
          %v1691 = vmul.f32 %v1688, %v1690
          %v1692 = vadd.f32 %v1688, %v1691
          %vm1693 = vweird.f32 %v1171
          %vm1694 = vweird.f32 %v1688
          %vm1695 = vmor %vm1693, %vm1694
          %v1696 = vsel %vm1695, %v1688, %v1692
          %v1697 = vand.u32 2147483647, %v1171
          %vm1698 = vcmp.eq.f32.partialorder %v1697, 8.507059e+37
          %v1699 = vand.u32 %v1171, 2147483648
          %v1700 = vor.u32 1.1754944e-38, %v1699
          %v1701 = vsel %vm1698, %v1700, %v1696
          %v1702 = vmul.f32 %v1444, %v1701
          %v1703 = vrcp.pop %v1175
          %v1704 = vmul.f32 %v1175, %v1703
          %v1705 = vsub.f32 1.0, %v1704
          %v1706 = vmul.f32 %v1703, %v1705
          %v1707 = vadd.f32 %v1703, %v1706
          %vm1708 = vweird.f32 %v1175
          %vm1709 = vweird.f32 %v1703
          %vm1710 = vmor %vm1708, %vm1709
          %v1711 = vsel %vm1710, %v1703, %v1707
          %v1712 = vand.u32 2147483647, %v1175
          %vm1713 = vcmp.eq.f32.partialorder %v1712, 8.507059e+37
          %v1714 = vand.u32 %v1175, 2147483648
          %v1715 = vor.u32 1.1754944e-38, %v1714
          %v1716 = vsel %vm1713, %v1715, %v1711
          %v1717 = vmul.f32 %v1447, %v1716
          %v1718 = vadd.f32 %v1462, 0.0
          %v1719 = vadd.f32 %v1477, 0.0
          %v1720 = vadd.f32 %v1492, 0.0
          %v1721 = vadd.f32 %v1507, 0.0
          %v1722 = vadd.f32 %v1522, 0.0
          %v1723 = vadd.f32 %v1537, 0.0
          %v1724 = vadd.f32 %v1552, 0.0
          %v1725 = vadd.f32 %v1567, 0.0
          %v1726 = vadd.f32 %v1582, 0.0
          %v1727 = vadd.f32 %v1597, 0.0
          %v1728 = vadd.f32 %v1612, 0.0
          %v1729 = vadd.f32 %v1627, 0.0
          %v1730 = vadd.f32 %v1642, 0.0
          %v1731 = vadd.f32 %v1657, 0.0
          %v1732 = vadd.f32 %v1672, 0.0
          %v1733 = vadd.f32 %v1687, 0.0
          %v1734 = vadd.f32 %v1702, 0.0
          %v1735 = vadd.f32 %v1717, 0.0
          %v1736 = vld [vmem:[#allocation2] sm:$0xff]
          %v1737 = vld [vmem:[#allocation2 + $0x18] sm:$0xff]
          %v1738 = vld [vmem:[#allocation2 + $0x30] sm:$0xff]
          %v1739 = vld [vmem:[#allocation2 + $0x48] sm:$0xff]
          %v1740 = vld [vmem:[#allocation2 + $0x60] sm:$0xff]
          %v1741 = vld [vmem:[#allocation2 + $0x78] sm:$0xff]
          %v1742 = vld [vmem:[#allocation2 + $0x90] sm:$0xff]
          %v1743 = vld [vmem:[#allocation2 + $0xa8] sm:$0xff]
          %v1744 = vld [vmem:[#allocation2 + $0xc0] sm:$0xff]
          %v1745 = vld [vmem:[#allocation2 + $0xd8] sm:$0xff]
          %v1746 = vld [vmem:[#allocation2 + $0xf0] sm:$0xff]
          %v1747 = vld [vmem:[#allocation2 + $0x108] sm:$0xff]
          %v1748 = vld [vmem:[#allocation2 + $0x120] sm:$0xff]
          %v1749 = vld [vmem:[#allocation2 + $0x138] sm:$0xff]
          %v1750 = vld [vmem:[#allocation2 + $0x150] sm:$0xff]
          %v1751 = vld [vmem:[#allocation2 + $0x168] sm:$0xff]
          %v1752 = vld [vmem:[#allocation2 + $0x180] sm:$0xff]
          %v1753 = vld [vmem:[#allocation2 + $0x198] sm:$0xff]
          %v1754 = vld [vmem:[#allocation2 + $0x8] sm:$0xff]
          %v1755 = vld [vmem:[#allocation2 + $0x20] sm:$0xff]
          %v1756 = vld [vmem:[#allocation2 + $0x38] sm:$0xff]
          %v1757 = vld [vmem:[#allocation2 + $0x50] sm:$0xff]
          %v1758 = vld [vmem:[#allocation2 + $0x68] sm:$0xff]
          %v1759 = vld [vmem:[#allocation2 + $0x80] sm:$0xff]
          %v1760 = vld [vmem:[#allocation2 + $0x98] sm:$0xff]
          %v1761 = vld [vmem:[#allocation2 + $0xb0] sm:$0xff]
          %v1762 = vld [vmem:[#allocation2 + $0xc8] sm:$0xff]
          %v1763 = vld [vmem:[#allocation2 + $0xe0] sm:$0xff]
          %v1764 = vld [vmem:[#allocation2 + $0xf8] sm:$0xff]
          %v1765 = vld [vmem:[#allocation2 + $0x110] sm:$0xff]
          %v1766 = vld [vmem:[#allocation2 + $0x128] sm:$0xff]
          %v1767 = vld [vmem:[#allocation2 + $0x140] sm:$0xff]
          %v1768 = vld [vmem:[#allocation2 + $0x158] sm:$0xff]
          %v1769 = vld [vmem:[#allocation2 + $0x170] sm:$0xff]
          %v1770 = vld [vmem:[#allocation2 + $0x188] sm:$0xff]
          %v1771 = vld [vmem:[#allocation2 + $0x1a0] sm:$0xff]
          %v1772 = vld [vmem:[#allocation2 + $0x10] sm:$0xff]
          %v1773 = vld [vmem:[#allocation2 + $0x28] sm:$0xff]
          %v1774 = vld [vmem:[#allocation2 + $0x40] sm:$0xff]
          %v1775 = vld [vmem:[#allocation2 + $0x58] sm:$0xff]
          %v1776 = vld [vmem:[#allocation2 + $0x70] sm:$0xff]
          %v1777 = vld [vmem:[#allocation2 + $0x88] sm:$0xff]
          %v1778 = vld [vmem:[#allocation2 + $0xa0] sm:$0xff]
          %v1779 = vld [vmem:[#allocation2 + $0xb8] sm:$0xff]
          %v1780 = vld [vmem:[#allocation2 + $0xd0] sm:$0xff]
          %v1781 = vld [vmem:[#allocation2 + $0xe8] sm:$0xff]
          %v1782 = vld [vmem:[#allocation2 + $0x100] sm:$0xff]
          %v1783 = vld [vmem:[#allocation2 + $0x118] sm:$0xff]
          %v1784 = vld [vmem:[#allocation2 + $0x130] sm:$0xff]
          %v1785 = vld [vmem:[#allocation2 + $0x148] sm:$0xff]
          %v1786 = vld [vmem:[#allocation2 + $0x160] sm:$0xff]
          %v1787 = vld [vmem:[#allocation2 + $0x178] sm:$0xff]
          %v1788 = vld [vmem:[#allocation2 + $0x190] sm:$0xff]
          %v1789 = vld [vmem:[#allocation2 + $0x1a8] sm:$0xff]
          %1808 = vrot.lane.b32.xlu0 %v1736, 112
          %v1809 = vpop.permute.xlu0 %1808
          %1810 = vrot.lane.b32.xlu0 %v1737, 112
          %v1811 = vpop.permute.xlu0 %1810
          %1812 = vrot.lane.b32.xlu0 %v1738, 112
          %v1813 = vpop.permute.xlu0 %1812
          %1814 = vrot.lane.b32.xlu0 %v1739, 112
          %v1815 = vpop.permute.xlu0 %1814
          %1816 = vrot.lane.b32.xlu0 %v1740, 112
          %v1817 = vpop.permute.xlu0 %1816
          %1818 = vrot.lane.b32.xlu0 %v1741, 112
          %v1819 = vpop.permute.xlu0 %1818
          %1820 = vrot.lane.b32.xlu0 %v1742, 112
          %v1821 = vpop.permute.xlu0 %1820
          %1822 = vrot.lane.b32.xlu0 %v1743, 112
          %v1823 = vpop.permute.xlu0 %1822
          %1824 = vrot.lane.b32.xlu0 %v1744, 112
          %v1825 = vpop.permute.xlu0 %1824
          %1826 = vrot.lane.b32.xlu0 %v1745, 112
          %v1827 = vpop.permute.xlu0 %1826
          %1828 = vrot.lane.b32.xlu0 %v1746, 112
          %v1829 = vpop.permute.xlu0 %1828
          %1830 = vrot.lane.b32.xlu0 %v1747, 112
          %v1831 = vpop.permute.xlu0 %1830
          %1832 = vrot.lane.b32.xlu0 %v1748, 112
          %v1833 = vpop.permute.xlu0 %1832
          %1834 = vrot.lane.b32.xlu0 %v1749, 112
          %v1835 = vpop.permute.xlu0 %1834
          %1836 = vrot.lane.b32.xlu0 %v1750, 112
          %v1837 = vpop.permute.xlu0 %1836
          %1838 = vrot.lane.b32.xlu0 %v1751, 112
          %v1839 = vpop.permute.xlu0 %1838
          %1840 = vrot.lane.b32.xlu0 %v1752, 112
          %v1841 = vpop.permute.xlu0 %1840
          %1842 = vrot.lane.b32.xlu0 %v1753, 112
          %v1843 = vpop.permute.xlu0 %1842
          %1862 = vrot.lane.b32.xlu0 %v1754, 112
          %v1863 = vpop.permute.xlu0 %1862
          %1864 = vrot.lane.b32.xlu0 %v1755, 112
          %v1865 = vpop.permute.xlu0 %1864
          %1866 = vrot.lane.b32.xlu0 %v1756, 112
          %v1867 = vpop.permute.xlu0 %1866
          %1868 = vrot.lane.b32.xlu0 %v1757, 112
          %v1869 = vpop.permute.xlu0 %1868
          %1870 = vrot.lane.b32.xlu0 %v1758, 112
          %v1871 = vpop.permute.xlu0 %1870
          %1872 = vrot.lane.b32.xlu0 %v1759, 112
          %v1873 = vpop.permute.xlu0 %1872
          %1874 = vrot.lane.b32.xlu0 %v1760, 112
          %v1875 = vpop.permute.xlu0 %1874
          %1876 = vrot.lane.b32.xlu0 %v1761, 112
          %v1877 = vpop.permute.xlu0 %1876
          %1878 = vrot.lane.b32.xlu0 %v1762, 112
          %v1879 = vpop.permute.xlu0 %1878
          %1880 = vrot.lane.b32.xlu0 %v1763, 112
          %v1881 = vpop.permute.xlu0 %1880
          %1882 = vrot.lane.b32.xlu0 %v1764, 112
          %v1883 = vpop.permute.xlu0 %1882
          %1884 = vrot.lane.b32.xlu0 %v1765, 112
          %v1885 = vpop.permute.xlu0 %1884
          %1886 = vrot.lane.b32.xlu0 %v1766, 112
          %v1887 = vpop.permute.xlu0 %1886
          %1888 = vrot.lane.b32.xlu0 %v1767, 112
          %v1889 = vpop.permute.xlu0 %1888
          %1890 = vrot.lane.b32.xlu0 %v1768, 112
          %v1891 = vpop.permute.xlu0 %1890
          %1892 = vrot.lane.b32.xlu0 %v1769, 112
          %v1893 = vpop.permute.xlu0 %1892
          %1894 = vrot.lane.b32.xlu0 %v1770, 112
          %v1895 = vpop.permute.xlu0 %1894
          %1896 = vrot.lane.b32.xlu0 %v1771, 112
          %v1897 = vpop.permute.xlu0 %1896
          %v1898 = vsel %vm673, %v1809, 0
          %v1900 = vsel %vm673, %v1811, 0
          %v1902 = vsel %vm673, %v1813, 0
          %v1904 = vsel %vm673, %v1815, 0
          %v1906 = vsel %vm673, %v1817, 0
          %v1908 = vsel %vm673, %v1819, 0
          %v1910 = vsel %vm673, %v1821, 0
          %v1912 = vsel %vm673, %v1823, 0
          %v1914 = vsel %vm673, %v1825, 0
          %v1916 = vsel %vm673, %v1827, 0
          %v1918 = vsel %vm673, %v1829, 0
          %v1920 = vsel %vm673, %v1831, 0
          %v1922 = vsel %vm673, %v1833, 0
          %v1924 = vsel %vm673, %v1835, 0
          %v1926 = vsel %vm673, %v1837, 0
          %v1928 = vsel %vm673, %v1839, 0
          %v1930 = vsel %vm673, %v1841, 0
          %v1932 = vsel %vm673, %v1843, 0
          %v1934 = vsel %vm673, %v1863, 0
          %v1936 = vsel %vm673, %v1865, 0
          %v1938 = vsel %vm673, %v1867, 0
          %v1940 = vsel %vm673, %v1869, 0
          %v1942 = vsel %vm673, %v1871, 0
          %v1944 = vsel %vm673, %v1873, 0
          %v1946 = vsel %vm673, %v1875, 0
          %v1948 = vsel %vm673, %v1877, 0
          %v1950 = vsel %vm673, %v1879, 0
          %v1952 = vsel %vm673, %v1881, 0
          %v1954 = vsel %vm673, %v1883, 0
          %v1956 = vsel %vm673, %v1885, 0
          %v1958 = vsel %vm673, %v1887, 0
          %v1960 = vsel %vm673, %v1889, 0
          %v1962 = vsel %vm673, %v1891, 0
          %v1964 = vsel %vm673, %v1893, 0
          %v1966 = vsel %vm673, %v1895, 0
          %v1968 = vsel %vm673, %v1897, 0
          %1970 = vmatpush.xpose.msra.mxu0 %v1964
          %1971 = vmatpush.xpose.msra.mxu0 %v1962
          %1972 = vmatpush.xpose.msra.mxu0 %v1960
          %1973 = vmatpush.xpose.msra.mxu0 %v1958
          %1974 = vmatpush.xpose.msra.mxu0 %v1956
          %1975 = vmatpush.xpose.msra.mxu0 %v1954
          %1976 = vmatpush.xpose.msra.mxu0 %v1952
          %1977 = vmatpush.xpose.msra.mxu0 %v1950
          %1978 = vmatpush.xpose.msra.mxu0 %v1948
          %1979 = vmatpush.xpose.msra.mxu0 %v1946
          %1980 = vmatpush.xpose.msra.mxu0 %v1944
          %1981 = vmatpush.xpose.msra.mxu0 %v1942
          %1982 = vmatpush.xpose.msra.mxu0 %v1940
          %1983 = vmatpush.xpose.msra.mxu0 %v1938
          %1984 = vmatpush.xpose.msra.mxu0 %v1936
          %1985 = vmatpush.xpose.msra.mxu0 %v1934
          %1986 = vmatmul.f32.gmra.mxu0 %v1898
          %v1987 = vpop.f32.mrf.mxu0
          %v1988 = vadd.f32 0.0, %v1987
          %1989 = vmatmul.f32.gmra.mxu0 %v1900
          %v1990 = vpop.f32.mrf.mxu0
          %v1991 = vadd.f32 0.0, %v1990
          %1992 = vmatmul.f32.gmra.mxu0 %v1902
          %v1993 = vpop.f32.mrf.mxu0
          %v1994 = vadd.f32 0.0, %v1993
          %1995 = vmatmul.f32.gmra.mxu0 %v1904
          %v1996 = vpop.f32.mrf.mxu0
          %v1997 = vadd.f32 0.0, %v1996
          %1998 = vmatmul.f32.gmra.mxu0 %v1906
          %v1999 = vpop.f32.mrf.mxu0
          %v2000 = vadd.f32 0.0, %v1999
          %2001 = vmatmul.f32.gmra.mxu0 %v1908
          %v2002 = vpop.f32.mrf.mxu0
          %v2003 = vadd.f32 0.0, %v2002
          %2004 = vmatmul.f32.gmra.mxu0 %v1910
          %v2005 = vpop.f32.mrf.mxu0
          %v2006 = vadd.f32 0.0, %v2005
          %2007 = vmatmul.f32.gmra.mxu0 %v1912
          %v2008 = vpop.f32.mrf.mxu0
          %v2009 = vadd.f32 0.0, %v2008
          %2010 = vmatmul.f32.gmra.mxu0 %v1914
          %v2011 = vpop.f32.mrf.mxu0
          %v2012 = vadd.f32 0.0, %v2011
          %2013 = vmatmul.f32.gmra.mxu0 %v1916
          %v2014 = vpop.f32.mrf.mxu0
          %v2015 = vadd.f32 0.0, %v2014
          %2016 = vmatmul.f32.gmra.mxu0 %v1918
          %v2017 = vpop.f32.mrf.mxu0
          %v2018 = vadd.f32 0.0, %v2017
          %2019 = vmatmul.f32.gmra.mxu0 %v1920
          %v2020 = vpop.f32.mrf.mxu0
          %v2021 = vadd.f32 0.0, %v2020
          %2022 = vmatmul.f32.gmra.mxu0 %v1922
          %v2023 = vpop.f32.mrf.mxu0
          %v2024 = vadd.f32 0.0, %v2023
          %2025 = vmatmul.f32.gmra.mxu0 %v1924
          %v2026 = vpop.f32.mrf.mxu0
          %v2027 = vadd.f32 0.0, %v2026
          %2028 = vmatmul.f32.gmra.mxu0 %v1926
          %v2029 = vpop.f32.mrf.mxu0
          %v2030 = vadd.f32 0.0, %v2029
          %2031 = vmatmul.f32.gmra.mxu0 %v1928
          %v2032 = vpop.f32.mrf.mxu0
          %v2033 = vadd.f32 0.0, %v2032
          %2034 = vmatmul.f32.gmra.mxu0 %v1930
          %v2035 = vpop.f32.mrf.mxu0
          %v2036 = vadd.f32 0.0, %v2035
          %2037 = vmatmul.f32.gmra.mxu0 %v1932
          %v2038 = vpop.f32.mrf.mxu0
          %v2039 = vadd.f32 0.0, %v2038
          %2040 = vdwg.mxu0
          %2041 = vmatpush.xpose.msra.mxu0 0.0
          %2042 = vmatpush.xpose.msra.mxu0 0.0
          %2043 = vmatpush.xpose.msra.mxu0 0.0
          %2044 = vmatpush.xpose.msra.mxu0 0.0
          %2045 = vmatpush.xpose.msra.mxu0 0.0
          %2046 = vmatpush.xpose.msra.mxu0 0.0
          %2047 = vmatpush.xpose.msra.mxu0 0.0
          %2048 = vmatpush.xpose.msra.mxu0 0.0
          %2049 = vmatpush.xpose.msra.mxu0 0.0
          %2050 = vmatpush.xpose.msra.mxu0 0.0
          %2051 = vmatpush.xpose.msra.mxu0 0.0
          %2052 = vmatpush.xpose.msra.mxu0 0.0
          %2053 = vmatpush.xpose.msra.mxu0 0.0
          %2054 = vmatpush.xpose.msra.mxu0 0.0
          %2055 = vmatpush.xpose.msra.mxu0 %v1968
          %2056 = vmatpush.xpose.msra.mxu0 %v1966
          %2057 = vmatmul.f32.gmra.mxu0 %v1898
          %v2058 = vpop.f32.mrf.mxu0
          %v2059 = vadd.f32 0.0, %v2058
          %2060 = vmatmul.f32.gmra.mxu0 %v1900
          %v2061 = vpop.f32.mrf.mxu0
          %v2062 = vadd.f32 0.0, %v2061
          %2063 = vmatmul.f32.gmra.mxu0 %v1902
          %v2064 = vpop.f32.mrf.mxu0
          %v2065 = vadd.f32 0.0, %v2064
          %2066 = vmatmul.f32.gmra.mxu0 %v1904
          %v2067 = vpop.f32.mrf.mxu0
          %v2068 = vadd.f32 0.0, %v2067
          %2069 = vmatmul.f32.gmra.mxu0 %v1906
          %v2070 = vpop.f32.mrf.mxu0
          %v2071 = vadd.f32 0.0, %v2070
          %2072 = vmatmul.f32.gmra.mxu0 %v1908
          %v2073 = vpop.f32.mrf.mxu0
          %v2074 = vadd.f32 0.0, %v2073
          %2075 = vmatmul.f32.gmra.mxu0 %v1910
          %v2076 = vpop.f32.mrf.mxu0
          %v2077 = vadd.f32 0.0, %v2076
          %2078 = vmatmul.f32.gmra.mxu0 %v1912
          %v2079 = vpop.f32.mrf.mxu0
          %v2080 = vadd.f32 0.0, %v2079
          %2081 = vmatmul.f32.gmra.mxu0 %v1914
          %v2082 = vpop.f32.mrf.mxu0
          %v2083 = vadd.f32 0.0, %v2082
          %2084 = vmatmul.f32.gmra.mxu0 %v1916
          %v2085 = vpop.f32.mrf.mxu0
          %v2086 = vadd.f32 0.0, %v2085
          %2087 = vmatmul.f32.gmra.mxu0 %v1918
          %v2088 = vpop.f32.mrf.mxu0
          %v2089 = vadd.f32 0.0, %v2088
          %2090 = vmatmul.f32.gmra.mxu0 %v1920
          %v2091 = vpop.f32.mrf.mxu0
          %v2092 = vadd.f32 0.0, %v2091
          %2093 = vmatmul.f32.gmra.mxu0 %v1922
          %v2094 = vpop.f32.mrf.mxu0
          %v2095 = vadd.f32 0.0, %v2094
          %2096 = vmatmul.f32.gmra.mxu0 %v1924
          %v2097 = vpop.f32.mrf.mxu0
          %v2098 = vadd.f32 0.0, %v2097
          %2099 = vmatmul.f32.gmra.mxu0 %v1926
          %v2100 = vpop.f32.mrf.mxu0
          %v2101 = vadd.f32 0.0, %v2100
          %2102 = vmatmul.f32.gmra.mxu0 %v1928
          %v2103 = vpop.f32.mrf.mxu0
          %v2104 = vadd.f32 0.0, %v2103
          %2105 = vmatmul.f32.gmra.mxu0 %v1930
          %v2106 = vpop.f32.mrf.mxu0
          %v2107 = vadd.f32 0.0, %v2106
          %2108 = vmatmul.f32.gmra.mxu0 %v1932
          %v2109 = vpop.f32.mrf.mxu0
          %v2110 = vadd.f32 0.0, %v2109
          %2111 = vdwg.mxu0
          %v2112 = vsel %vm673, %v2059, -inf
          %v2113 = vmax.f32 %v1988, %v2112
          %2114 = vmax.xlane.f32.xlu0 %v2113
          %v2115 = vpop.xlane.xlu0 %2114
          %v2116 = vsel %vm673, %v2062, -inf
          %v2117 = vmax.f32 %v1991, %v2116
          %2118 = vmax.xlane.f32.xlu0 %v2117
          %v2119 = vpop.xlane.xlu0 %2118
          %v2120 = vsel %vm673, %v2065, -inf
          %v2121 = vmax.f32 %v1994, %v2120
          %2122 = vmax.xlane.f32.xlu0 %v2121
          %v2123 = vpop.xlane.xlu0 %2122
          %v2124 = vsel %vm673, %v2068, -inf
          %v2125 = vmax.f32 %v1997, %v2124
          %2126 = vmax.xlane.f32.xlu0 %v2125
          %v2127 = vpop.xlane.xlu0 %2126
          %v2128 = vsel %vm673, %v2071, -inf
          %v2129 = vmax.f32 %v2000, %v2128
          %2130 = vmax.xlane.f32.xlu0 %v2129
          %v2131 = vpop.xlane.xlu0 %2130
          %v2132 = vsel %vm673, %v2074, -inf
          %v2133 = vmax.f32 %v2003, %v2132
          %2134 = vmax.xlane.f32.xlu0 %v2133
          %v2135 = vpop.xlane.xlu0 %2134
          %v2136 = vsel %vm673, %v2077, -inf
          %v2137 = vmax.f32 %v2006, %v2136
          %2138 = vmax.xlane.f32.xlu0 %v2137
          %v2139 = vpop.xlane.xlu0 %2138
          %v2140 = vsel %vm673, %v2080, -inf
          %v2141 = vmax.f32 %v2009, %v2140
          %2142 = vmax.xlane.f32.xlu0 %v2141
          %v2143 = vpop.xlane.xlu0 %2142
          %v2144 = vsel %vm673, %v2083, -inf
          %v2145 = vmax.f32 %v2012, %v2144
          %2146 = vmax.xlane.f32.xlu0 %v2145
          %v2147 = vpop.xlane.xlu0 %2146
          %v2148 = vsel %vm673, %v2086, -inf
          %v2149 = vmax.f32 %v2015, %v2148
          %2150 = vmax.xlane.f32.xlu0 %v2149
          %v2151 = vpop.xlane.xlu0 %2150
          %v2152 = vsel %vm673, %v2089, -inf
          %v2153 = vmax.f32 %v2018, %v2152
          %2154 = vmax.xlane.f32.xlu0 %v2153
          %v2155 = vpop.xlane.xlu0 %2154
          %v2156 = vsel %vm673, %v2092, -inf
          %v2157 = vmax.f32 %v2021, %v2156
          %2158 = vmax.xlane.f32.xlu0 %v2157
          %v2159 = vpop.xlane.xlu0 %2158
          %v2160 = vsel %vm673, %v2095, -inf
          %v2161 = vmax.f32 %v2024, %v2160
          %2162 = vmax.xlane.f32.xlu0 %v2161
          %v2163 = vpop.xlane.xlu0 %2162
          %v2164 = vsel %vm673, %v2098, -inf
          %v2165 = vmax.f32 %v2027, %v2164
          %2166 = vmax.xlane.f32.xlu0 %v2165
          %v2167 = vpop.xlane.xlu0 %2166
          %v2168 = vsel %vm673, %v2101, -inf
          %v2169 = vmax.f32 %v2030, %v2168
          %2170 = vmax.xlane.f32.xlu0 %v2169
          %v2171 = vpop.xlane.xlu0 %2170
          %v2172 = vsel %vm673, %v2104, -inf
          %v2173 = vmax.f32 %v2033, %v2172
          %2174 = vmax.xlane.f32.xlu0 %v2173
          %v2175 = vpop.xlane.xlu0 %2174
          %v2176 = vsel %vm673, %v2107, -inf
          %v2177 = vmax.f32 %v2036, %v2176
          %2178 = vmax.xlane.f32.xlu0 %v2177
          %v2179 = vpop.xlane.xlu0 %2178
          %v2180 = vsel %vm673, %v2110, -inf
          %v2181 = vmax.f32 %v2039, %v2180
          %2182 = vmax.xlane.f32.xlu0 %v2181
          %v2183 = vpop.xlane.xlu0 %2182
          %v2184 = vsub.f32 %v1988, %v2115
          %v2185 = vsub.f32 %v2059, %v2115
          %v2186 = vsub.f32 %v1991, %v2119
          %v2187 = vsub.f32 %v2062, %v2119
          %v2188 = vsub.f32 %v1994, %v2123
          %v2189 = vsub.f32 %v2065, %v2123
          %v2190 = vsub.f32 %v1997, %v2127
          %v2191 = vsub.f32 %v2068, %v2127
          %v2192 = vsub.f32 %v2000, %v2131
          %v2193 = vsub.f32 %v2071, %v2131
          %v2194 = vsub.f32 %v2003, %v2135
          %v2195 = vsub.f32 %v2074, %v2135
          %v2196 = vsub.f32 %v2006, %v2139
          %v2197 = vsub.f32 %v2077, %v2139
          %v2198 = vsub.f32 %v2009, %v2143
          %v2199 = vsub.f32 %v2080, %v2143
          %v2200 = vsub.f32 %v2012, %v2147
          %v2201 = vsub.f32 %v2083, %v2147
          %v2202 = vsub.f32 %v2015, %v2151
          %v2203 = vsub.f32 %v2086, %v2151
          %v2204 = vsub.f32 %v2018, %v2155
          %v2205 = vsub.f32 %v2089, %v2155
          %v2206 = vsub.f32 %v2021, %v2159
          %v2207 = vsub.f32 %v2092, %v2159
          %v2208 = vsub.f32 %v2024, %v2163
          %v2209 = vsub.f32 %v2095, %v2163
          %v2210 = vsub.f32 %v2027, %v2167
          %v2211 = vsub.f32 %v2098, %v2167
          %v2212 = vsub.f32 %v2030, %v2171
          %v2213 = vsub.f32 %v2101, %v2171
          %v2214 = vsub.f32 %v2033, %v2175
          %v2215 = vsub.f32 %v2104, %v2175
          %v2216 = vsub.f32 %v2036, %v2179
          %v2217 = vsub.f32 %v2107, %v2179
          %v2218 = vsub.f32 %v2039, %v2183
          %v2219 = vsub.f32 %v2110, %v2183
          %v2220 = vmul.f32 %v2184, 1.442695
          %v2221 = vpow.pop %v2220
          %v2222 = vmul.f32 %v2185, 1.442695
          %v2223 = vpow.pop %v2222
          %v2224 = vmul.f32 %v2186, 1.442695
          %v2225 = vpow.pop %v2224
          %v2226 = vmul.f32 %v2187, 1.442695
          %v2227 = vpow.pop %v2226
          %v2228 = vmul.f32 %v2188, 1.442695
          %v2229 = vpow.pop %v2228
          %v2230 = vmul.f32 %v2189, 1.442695
          %v2231 = vpow.pop %v2230
          %v2232 = vmul.f32 %v2190, 1.442695
          %v2233 = vpow.pop %v2232
          %v2234 = vmul.f32 %v2191, 1.442695
          %v2235 = vpow.pop %v2234
          %v2236 = vmul.f32 %v2192, 1.442695
          %v2237 = vpow.pop %v2236
          %v2238 = vmul.f32 %v2193, 1.442695
          %v2239 = vpow.pop %v2238
          %v2240 = vmul.f32 %v2194, 1.442695
          %v2241 = vpow.pop %v2240
          %v2242 = vmul.f32 %v2195, 1.442695
          %v2243 = vpow.pop %v2242
          %v2244 = vmul.f32 %v2196, 1.442695
          %v2245 = vpow.pop %v2244
          %v2246 = vmul.f32 %v2197, 1.442695
          %v2247 = vpow.pop %v2246
          %v2248 = vmul.f32 %v2198, 1.442695
          %v2249 = vpow.pop %v2248
          %v2250 = vmul.f32 %v2199, 1.442695
          %v2251 = vpow.pop %v2250
          %v2252 = vmul.f32 %v2200, 1.442695
          %v2253 = vpow.pop %v2252
          %v2254 = vmul.f32 %v2201, 1.442695
          %v2255 = vpow.pop %v2254
          %v2256 = vmul.f32 %v2202, 1.442695
          %v2257 = vpow.pop %v2256
          %v2258 = vmul.f32 %v2203, 1.442695
          %v2259 = vpow.pop %v2258
          %v2260 = vmul.f32 %v2204, 1.442695
          %v2261 = vpow.pop %v2260
          %v2262 = vmul.f32 %v2205, 1.442695
          %v2263 = vpow.pop %v2262
          %v2264 = vmul.f32 %v2206, 1.442695
          %v2265 = vpow.pop %v2264
          %v2266 = vmul.f32 %v2207, 1.442695
          %v2267 = vpow.pop %v2266
          %v2268 = vmul.f32 %v2208, 1.442695
          %v2269 = vpow.pop %v2268
          %v2270 = vmul.f32 %v2209, 1.442695
          %v2271 = vpow.pop %v2270
          %v2272 = vmul.f32 %v2210, 1.442695
          %v2273 = vpow.pop %v2272
          %v2274 = vmul.f32 %v2211, 1.442695
          %v2275 = vpow.pop %v2274
          %v2276 = vmul.f32 %v2212, 1.442695
          %v2277 = vpow.pop %v2276
          %v2278 = vmul.f32 %v2213, 1.442695
          %v2279 = vpow.pop %v2278
          %v2280 = vmul.f32 %v2214, 1.442695
          %v2281 = vpow.pop %v2280
          %v2282 = vmul.f32 %v2215, 1.442695
          %v2283 = vpow.pop %v2282
          %v2284 = vmul.f32 %v2216, 1.442695
          %v2285 = vpow.pop %v2284
          %v2286 = vmul.f32 %v2217, 1.442695
          %v2287 = vpow.pop %v2286
          %v2288 = vmul.f32 %v2218, 1.442695
          %v2289 = vpow.pop %v2288
          %v2290 = vmul.f32 %v2219, 1.442695
          %v2291 = vpow.pop %v2290
          %v2292 = vsel %vm673, %v2223, 0.0
          %v2293 = vadd.f32 %v2221, %v2292
          %2294 = vadd.xlane.f32.xlu0 %v2293
          %v2295 = vpop.xlane.xlu0 %2294
          %v2296 = vsel %vm673, %v2227, 0.0
          %v2297 = vadd.f32 %v2225, %v2296
          %2298 = vadd.xlane.f32.xlu0 %v2297
          %v2299 = vpop.xlane.xlu0 %2298
          %v2300 = vsel %vm673, %v2231, 0.0
          %v2301 = vadd.f32 %v2229, %v2300
          %2302 = vadd.xlane.f32.xlu0 %v2301
          %v2303 = vpop.xlane.xlu0 %2302
          %v2304 = vsel %vm673, %v2235, 0.0
          %v2305 = vadd.f32 %v2233, %v2304
          %2306 = vadd.xlane.f32.xlu0 %v2305
          %v2307 = vpop.xlane.xlu0 %2306
          %v2308 = vsel %vm673, %v2239, 0.0
          %v2309 = vadd.f32 %v2237, %v2308
          %2310 = vadd.xlane.f32.xlu0 %v2309
          %v2311 = vpop.xlane.xlu0 %2310
          %v2312 = vsel %vm673, %v2243, 0.0
          %v2313 = vadd.f32 %v2241, %v2312
          %2314 = vadd.xlane.f32.xlu0 %v2313
          %v2315 = vpop.xlane.xlu0 %2314
          %v2316 = vsel %vm673, %v2247, 0.0
          %v2317 = vadd.f32 %v2245, %v2316
          %2318 = vadd.xlane.f32.xlu0 %v2317
          %v2319 = vpop.xlane.xlu0 %2318
          %v2320 = vsel %vm673, %v2251, 0.0
          %v2321 = vadd.f32 %v2249, %v2320
          %2322 = vadd.xlane.f32.xlu0 %v2321
          %v2323 = vpop.xlane.xlu0 %2322
          %v2324 = vsel %vm673, %v2255, 0.0
          %v2325 = vadd.f32 %v2253, %v2324
          %2326 = vadd.xlane.f32.xlu0 %v2325
          %v2327 = vpop.xlane.xlu0 %2326
          %v2328 = vsel %vm673, %v2259, 0.0
          %v2329 = vadd.f32 %v2257, %v2328
          %2330 = vadd.xlane.f32.xlu0 %v2329
          %v2331 = vpop.xlane.xlu0 %2330
          %v2332 = vsel %vm673, %v2263, 0.0
          %v2333 = vadd.f32 %v2261, %v2332
          %2334 = vadd.xlane.f32.xlu0 %v2333
          %v2335 = vpop.xlane.xlu0 %2334
          %v2336 = vsel %vm673, %v2267, 0.0
          %v2337 = vadd.f32 %v2265, %v2336
          %2338 = vadd.xlane.f32.xlu0 %v2337
          %v2339 = vpop.xlane.xlu0 %2338
          %v2340 = vsel %vm673, %v2271, 0.0
          %v2341 = vadd.f32 %v2269, %v2340
          %2342 = vadd.xlane.f32.xlu0 %v2341
          %v2343 = vpop.xlane.xlu0 %2342
          %v2344 = vsel %vm673, %v2275, 0.0
          %v2345 = vadd.f32 %v2273, %v2344
          %2346 = vadd.xlane.f32.xlu0 %v2345
          %v2347 = vpop.xlane.xlu0 %2346
          %v2348 = vsel %vm673, %v2279, 0.0
          %v2349 = vadd.f32 %v2277, %v2348
          %2350 = vadd.xlane.f32.xlu0 %v2349
          %v2351 = vpop.xlane.xlu0 %2350
          %v2352 = vsel %vm673, %v2283, 0.0
          %v2353 = vadd.f32 %v2281, %v2352
          %2354 = vadd.xlane.f32.xlu0 %v2353
          %v2355 = vpop.xlane.xlu0 %2354
          %v2356 = vsel %vm673, %v2287, 0.0
          %v2357 = vadd.f32 %v2285, %v2356
          %2358 = vadd.xlane.f32.xlu0 %v2357
          %v2359 = vpop.xlane.xlu0 %2358
          %v2360 = vsel %vm673, %v2291, 0.0
          %v2361 = vadd.f32 %v2289, %v2360
          %2362 = vadd.xlane.f32.xlu0 %v2361
          %v2363 = vpop.xlane.xlu0 %2362
          %2382 = vrot.lane.b32.xlu0 %v1772, 112
          %v2383 = vpop.permute.xlu0 %2382
          %2384 = vrot.lane.b32.xlu0 %v1773, 112
          %v2385 = vpop.permute.xlu0 %2384
          %2386 = vrot.lane.b32.xlu0 %v1774, 112
          %v2387 = vpop.permute.xlu0 %2386
          %2388 = vrot.lane.b32.xlu0 %v1775, 112
          %v2389 = vpop.permute.xlu0 %2388
          %2390 = vrot.lane.b32.xlu0 %v1776, 112
          %v2391 = vpop.permute.xlu0 %2390
          %2392 = vrot.lane.b32.xlu0 %v1777, 112
          %v2393 = vpop.permute.xlu0 %2392
          %2394 = vrot.lane.b32.xlu0 %v1778, 112
          %v2395 = vpop.permute.xlu0 %2394
          %2396 = vrot.lane.b32.xlu0 %v1779, 112
          %v2397 = vpop.permute.xlu0 %2396
          %2398 = vrot.lane.b32.xlu0 %v1780, 112
          %v2399 = vpop.permute.xlu0 %2398
          %2400 = vrot.lane.b32.xlu0 %v1781, 112
          %v2401 = vpop.permute.xlu0 %2400
          %2402 = vrot.lane.b32.xlu0 %v1782, 112
          %v2403 = vpop.permute.xlu0 %2402
          %2404 = vrot.lane.b32.xlu0 %v1783, 112
          %v2405 = vpop.permute.xlu0 %2404
          %2406 = vrot.lane.b32.xlu0 %v1784, 112
          %v2407 = vpop.permute.xlu0 %2406
          %2408 = vrot.lane.b32.xlu0 %v1785, 112
          %v2409 = vpop.permute.xlu0 %2408
          %2410 = vrot.lane.b32.xlu0 %v1786, 112
          %v2411 = vpop.permute.xlu0 %2410
          %2412 = vrot.lane.b32.xlu0 %v1787, 112
          %v2413 = vpop.permute.xlu0 %2412
          %2414 = vrot.lane.b32.xlu0 %v1788, 112
          %v2415 = vpop.permute.xlu0 %2414
          %2416 = vrot.lane.b32.xlu0 %v1789, 112
          %v2417 = vpop.permute.xlu0 %2416
          %v2437 = vsel %vm673, %v2223, 0
          %v2440 = vsel %vm673, %v2227, 0
          %v2443 = vsel %vm673, %v2231, 0
          %v2446 = vsel %vm673, %v2235, 0
          %v2449 = vsel %vm673, %v2239, 0
          %v2452 = vsel %vm673, %v2243, 0
          %v2455 = vsel %vm673, %v2247, 0
          %v2458 = vsel %vm673, %v2251, 0
          %v2461 = vsel %vm673, %v2255, 0
          %v2464 = vsel %vm673, %v2259, 0
          %v2467 = vsel %vm673, %v2263, 0
          %v2470 = vsel %vm673, %v2267, 0
          %v2473 = vsel %vm673, %v2271, 0
          %v2476 = vsel %vm673, %v2275, 0
          %v2479 = vsel %vm673, %v2279, 0
          %v2482 = vsel %vm673, %v2283, 0
          %v2485 = vsel %vm673, %v2287, 0
          %v2488 = vsel %vm673, %v2291, 0
          %2490 = vmatpush.msra.mxu0 %v2413
          %2491 = vmatpush.msra.mxu0 %v2411
          %2492 = vmatpush.msra.mxu0 %v2409
          %2493 = vmatpush.msra.mxu0 %v2407
          %2494 = vmatpush.msra.mxu0 %v2405
          %2495 = vmatpush.msra.mxu0 %v2403
          %2496 = vmatpush.msra.mxu0 %v2401
          %2497 = vmatpush.msra.mxu0 %v2399
          %2498 = vmatpush.msra.mxu0 %v2397
          %2499 = vmatpush.msra.mxu0 %v2395
          %2500 = vmatpush.msra.mxu0 %v2393
          %2501 = vmatpush.msra.mxu0 %v2391
          %2502 = vmatpush.msra.mxu0 %v2389
          %2503 = vmatpush.msra.mxu0 %v2387
          %2504 = vmatpush.msra.mxu0 %v2385
          %2505 = vmatpush.msra.mxu0 %v2383
          %2506 = vmatmul.f32.gmra.mxu0 %v2221
          %v2507 = vpop.f32.mrf.mxu0
          %v2508 = vadd.f32 0.0, %v2507
          %2509 = vmatmul.f32.gmra.mxu0 %v2225
          %v2510 = vpop.f32.mrf.mxu0
          %v2511 = vadd.f32 0.0, %v2510
          %2512 = vmatmul.f32.gmra.mxu0 %v2229
          %v2513 = vpop.f32.mrf.mxu0
          %v2514 = vadd.f32 0.0, %v2513
          %2515 = vmatmul.f32.gmra.mxu0 %v2233
          %v2516 = vpop.f32.mrf.mxu0
          %v2517 = vadd.f32 0.0, %v2516
          %2518 = vmatmul.f32.gmra.mxu0 %v2237
          %v2519 = vpop.f32.mrf.mxu0
          %v2520 = vadd.f32 0.0, %v2519
          %2521 = vmatmul.f32.gmra.mxu0 %v2241
          %v2522 = vpop.f32.mrf.mxu0
          %v2523 = vadd.f32 0.0, %v2522
          %2524 = vmatmul.f32.gmra.mxu0 %v2245
          %v2525 = vpop.f32.mrf.mxu0
          %v2526 = vadd.f32 0.0, %v2525
          %2527 = vmatmul.f32.gmra.mxu0 %v2249
          %v2528 = vpop.f32.mrf.mxu0
          %v2529 = vadd.f32 0.0, %v2528
          %2530 = vmatmul.f32.gmra.mxu0 %v2253
          %v2531 = vpop.f32.mrf.mxu0
          %v2532 = vadd.f32 0.0, %v2531
          %2533 = vmatmul.f32.gmra.mxu0 %v2257
          %v2534 = vpop.f32.mrf.mxu0
          %v2535 = vadd.f32 0.0, %v2534
          %2536 = vmatmul.f32.gmra.mxu0 %v2261
          %v2537 = vpop.f32.mrf.mxu0
          %v2538 = vadd.f32 0.0, %v2537
          %2539 = vmatmul.f32.gmra.mxu0 %v2265
          %v2540 = vpop.f32.mrf.mxu0
          %v2541 = vadd.f32 0.0, %v2540
          %2542 = vmatmul.f32.gmra.mxu0 %v2269
          %v2543 = vpop.f32.mrf.mxu0
          %v2544 = vadd.f32 0.0, %v2543
          %2545 = vmatmul.f32.gmra.mxu0 %v2273
          %v2546 = vpop.f32.mrf.mxu0
          %v2547 = vadd.f32 0.0, %v2546
          %2548 = vmatmul.f32.gmra.mxu0 %v2277
          %v2549 = vpop.f32.mrf.mxu0
          %v2550 = vadd.f32 0.0, %v2549
          %2551 = vmatmul.f32.gmra.mxu0 %v2281
          %v2552 = vpop.f32.mrf.mxu0
          %v2553 = vadd.f32 0.0, %v2552
          %2554 = vmatmul.f32.gmra.mxu0 %v2285
          %v2555 = vpop.f32.mrf.mxu0
          %v2556 = vadd.f32 0.0, %v2555
          %2557 = vmatmul.f32.gmra.mxu0 %v2289
          %v2558 = vpop.f32.mrf.mxu0
          %v2559 = vadd.f32 0.0, %v2558
          %2560 = vdwg.mxu0
          %2561 = vmatpush.msra.mxu0 0.0
          %2562 = vmatpush.msra.mxu0 0.0
          %2563 = vmatpush.msra.mxu0 0.0
          %2564 = vmatpush.msra.mxu0 0.0
          %2565 = vmatpush.msra.mxu0 0.0
          %2566 = vmatpush.msra.mxu0 0.0
          %2567 = vmatpush.msra.mxu0 0.0
          %2568 = vmatpush.msra.mxu0 0.0
          %2569 = vmatpush.msra.mxu0 0.0
          %2570 = vmatpush.msra.mxu0 0.0
          %2571 = vmatpush.msra.mxu0 0.0
          %2572 = vmatpush.msra.mxu0 0.0
          %2573 = vmatpush.msra.mxu0 0.0
          %2574 = vmatpush.msra.mxu0 0.0
          %2575 = vmatpush.msra.mxu0 %v2417
          %2576 = vmatpush.msra.mxu0 %v2415
          %2577 = vmatmul.f32.gmra.mxu0 %v2437
          %v2578 = vpop.f32.mrf.mxu0
          %v2579 = vadd.f32 %v2508, %v2578
          %2580 = vmatmul.f32.gmra.mxu0 %v2440
          %v2581 = vpop.f32.mrf.mxu0
          %v2582 = vadd.f32 %v2511, %v2581
          %2583 = vmatmul.f32.gmra.mxu0 %v2443
          %v2584 = vpop.f32.mrf.mxu0
          %v2585 = vadd.f32 %v2514, %v2584
          %2586 = vmatmul.f32.gmra.mxu0 %v2446
          %v2587 = vpop.f32.mrf.mxu0
          %v2588 = vadd.f32 %v2517, %v2587
          %2589 = vmatmul.f32.gmra.mxu0 %v2449
          %v2590 = vpop.f32.mrf.mxu0
          %v2591 = vadd.f32 %v2520, %v2590
          %2592 = vmatmul.f32.gmra.mxu0 %v2452
          %v2593 = vpop.f32.mrf.mxu0
          %v2594 = vadd.f32 %v2523, %v2593
          %2595 = vmatmul.f32.gmra.mxu0 %v2455
          %v2596 = vpop.f32.mrf.mxu0
          %v2597 = vadd.f32 %v2526, %v2596
          %2598 = vmatmul.f32.gmra.mxu0 %v2458
          %v2599 = vpop.f32.mrf.mxu0
          %v2600 = vadd.f32 %v2529, %v2599
          %2601 = vmatmul.f32.gmra.mxu0 %v2461
          %v2602 = vpop.f32.mrf.mxu0
          %v2603 = vadd.f32 %v2532, %v2602
          %2604 = vmatmul.f32.gmra.mxu0 %v2464
          %v2605 = vpop.f32.mrf.mxu0
          %v2606 = vadd.f32 %v2535, %v2605
          %2607 = vmatmul.f32.gmra.mxu0 %v2467
          %v2608 = vpop.f32.mrf.mxu0
          %v2609 = vadd.f32 %v2538, %v2608
          %2610 = vmatmul.f32.gmra.mxu0 %v2470
          %v2611 = vpop.f32.mrf.mxu0
          %v2612 = vadd.f32 %v2541, %v2611
          %2613 = vmatmul.f32.gmra.mxu0 %v2473
          %v2614 = vpop.f32.mrf.mxu0
          %v2615 = vadd.f32 %v2544, %v2614
          %2616 = vmatmul.f32.gmra.mxu0 %v2476
          %v2617 = vpop.f32.mrf.mxu0
          %v2618 = vadd.f32 %v2547, %v2617
          %2619 = vmatmul.f32.gmra.mxu0 %v2479
          %v2620 = vpop.f32.mrf.mxu0
          %v2621 = vadd.f32 %v2550, %v2620
          %2622 = vmatmul.f32.gmra.mxu0 %v2482
          %v2623 = vpop.f32.mrf.mxu0
          %v2624 = vadd.f32 %v2553, %v2623
          %2625 = vmatmul.f32.gmra.mxu0 %v2485
          %v2626 = vpop.f32.mrf.mxu0
          %v2627 = vadd.f32 %v2556, %v2626
          %2628 = vmatmul.f32.gmra.mxu0 %v2488
          %v2629 = vpop.f32.mrf.mxu0
          %v2630 = vadd.f32 %v2559, %v2629
          %2631 = vdwg.mxu0
          %v2632 = vld [vmem:[%s3] sm:$0x1]
          %v2634 = vperm.slane %v2632, 0
          %2635 = vrot.lane.b32.xlu0 %v2634, 112
          %v2636 = vpop.permute.xlu0 %2635
          %v2638 = vmul.f32 %v2579, %v2636
          %v2639 = vmul.f32 %v2582, %v2636
          %v2640 = vmul.f32 %v2585, %v2636
          %v2641 = vmul.f32 %v2588, %v2636
          %v2642 = vmul.f32 %v2591, %v2636
          %v2643 = vmul.f32 %v2594, %v2636
          %v2644 = vmul.f32 %v2597, %v2636
          %v2645 = vmul.f32 %v2600, %v2636
          %v2646 = vmul.f32 %v2603, %v2636
          %v2647 = vmul.f32 %v2606, %v2636
          %v2648 = vmul.f32 %v2609, %v2636
          %v2649 = vmul.f32 %v2612, %v2636
          %v2650 = vmul.f32 %v2615, %v2636
          %v2651 = vmul.f32 %v2618, %v2636
          %v2652 = vmul.f32 %v2621, %v2636
          %v2653 = vmul.f32 %v2624, %v2636
          %v2654 = vmul.f32 %v2627, %v2636
          %v2655 = vmul.f32 %v2630, %v2636
          %v2656 = vsel %vm673, %v2638, 0.0
          %2657 = vadd.xlane.f32.xlu0 %v2656
          %v2658 = vpop.xlane.xlu0 %2657
          %v2659 = vsel %vm673, %v2639, 0.0
          %2660 = vadd.xlane.f32.xlu0 %v2659
          %v2661 = vpop.xlane.xlu0 %2660
          %v2662 = vsel %vm673, %v2640, 0.0
          %2663 = vadd.xlane.f32.xlu0 %v2662
          %v2664 = vpop.xlane.xlu0 %2663
          %v2665 = vsel %vm673, %v2641, 0.0
          %2666 = vadd.xlane.f32.xlu0 %v2665
          %v2667 = vpop.xlane.xlu0 %2666
          %v2668 = vsel %vm673, %v2642, 0.0
          %2669 = vadd.xlane.f32.xlu0 %v2668
          %v2670 = vpop.xlane.xlu0 %2669
          %v2671 = vsel %vm673, %v2643, 0.0
          %2672 = vadd.xlane.f32.xlu0 %v2671
          %v2673 = vpop.xlane.xlu0 %2672
          %v2674 = vsel %vm673, %v2644, 0.0
          %2675 = vadd.xlane.f32.xlu0 %v2674
          %v2676 = vpop.xlane.xlu0 %2675
          %v2677 = vsel %vm673, %v2645, 0.0
          %2678 = vadd.xlane.f32.xlu0 %v2677
          %v2679 = vpop.xlane.xlu0 %2678
          %v2680 = vsel %vm673, %v2646, 0.0
          %2681 = vadd.xlane.f32.xlu0 %v2680
          %v2682 = vpop.xlane.xlu0 %2681
          %v2683 = vsel %vm673, %v2647, 0.0
          %2684 = vadd.xlane.f32.xlu0 %v2683
          %v2685 = vpop.xlane.xlu0 %2684
          %v2686 = vsel %vm673, %v2648, 0.0
          %2687 = vadd.xlane.f32.xlu0 %v2686
          %v2688 = vpop.xlane.xlu0 %2687
          %v2689 = vsel %vm673, %v2649, 0.0
          %2690 = vadd.xlane.f32.xlu0 %v2689
          %v2691 = vpop.xlane.xlu0 %2690
          %v2692 = vsel %vm673, %v2650, 0.0
          %2693 = vadd.xlane.f32.xlu0 %v2692
          %v2694 = vpop.xlane.xlu0 %2693
          %v2695 = vsel %vm673, %v2651, 0.0
          %2696 = vadd.xlane.f32.xlu0 %v2695
          %v2697 = vpop.xlane.xlu0 %2696
          %v2698 = vsel %vm673, %v2652, 0.0
          %2699 = vadd.xlane.f32.xlu0 %v2698
          %v2700 = vpop.xlane.xlu0 %2699
          %v2701 = vsel %vm673, %v2653, 0.0
          %2702 = vadd.xlane.f32.xlu0 %v2701
          %v2703 = vpop.xlane.xlu0 %2702
          %v2704 = vsel %vm673, %v2654, 0.0
          %2705 = vadd.xlane.f32.xlu0 %v2704
          %v2706 = vpop.xlane.xlu0 %2705
          %v2707 = vsel %vm673, %v2655, 0.0
          %2708 = vadd.xlane.f32.xlu0 %v2707
          %v2709 = vpop.xlane.xlu0 %2708
          %v2710 = vrcp.pop %v2295
          %v2711 = vmul.f32 %v2295, %v2710
          %v2712 = vsub.f32 1.0, %v2711
          %v2713 = vmul.f32 %v2710, %v2712
          %v2714 = vadd.f32 %v2710, %v2713
          %vm2715 = vweird.f32 %v2295
          %vm2716 = vweird.f32 %v2710
          %vm2717 = vmor %vm2715, %vm2716
          %v2718 = vsel %vm2717, %v2710, %v2714
          %v2719 = vand.u32 2147483647, %v2295
          %vm2720 = vcmp.eq.f32.partialorder %v2719, 8.507059e+37
          %v2721 = vand.u32 %v2295, 2147483648
          %v2722 = vor.u32 1.1754944e-38, %v2721
          %v2723 = vsel %vm2720, %v2722, %v2718
          %v2724 = vmul.f32 %v2658, %v2723
          %v2725 = vrcp.pop %v2299
          %v2726 = vmul.f32 %v2299, %v2725
          %v2727 = vsub.f32 1.0, %v2726
          %v2728 = vmul.f32 %v2725, %v2727
          %v2729 = vadd.f32 %v2725, %v2728
          %vm2730 = vweird.f32 %v2299
          %vm2731 = vweird.f32 %v2725
          %vm2732 = vmor %vm2730, %vm2731
          %v2733 = vsel %vm2732, %v2725, %v2729
          %v2734 = vand.u32 2147483647, %v2299
          %vm2735 = vcmp.eq.f32.partialorder %v2734, 8.507059e+37
          %v2736 = vand.u32 %v2299, 2147483648
          %v2737 = vor.u32 1.1754944e-38, %v2736
          %v2738 = vsel %vm2735, %v2737, %v2733
          %v2739 = vmul.f32 %v2661, %v2738
          %v2740 = vrcp.pop %v2303
          %v2741 = vmul.f32 %v2303, %v2740
          %v2742 = vsub.f32 1.0, %v2741
          %v2743 = vmul.f32 %v2740, %v2742
          %v2744 = vadd.f32 %v2740, %v2743
          %vm2745 = vweird.f32 %v2303
          %vm2746 = vweird.f32 %v2740
          %vm2747 = vmor %vm2745, %vm2746
          %v2748 = vsel %vm2747, %v2740, %v2744
          %v2749 = vand.u32 2147483647, %v2303
          %vm2750 = vcmp.eq.f32.partialorder %v2749, 8.507059e+37
          %v2751 = vand.u32 %v2303, 2147483648
          %v2752 = vor.u32 1.1754944e-38, %v2751
          %v2753 = vsel %vm2750, %v2752, %v2748
          %v2754 = vmul.f32 %v2664, %v2753
          %v2755 = vrcp.pop %v2307
          %v2756 = vmul.f32 %v2307, %v2755
          %v2757 = vsub.f32 1.0, %v2756
          %v2758 = vmul.f32 %v2755, %v2757
          %v2759 = vadd.f32 %v2755, %v2758
          %vm2760 = vweird.f32 %v2307
          %vm2761 = vweird.f32 %v2755
          %vm2762 = vmor %vm2760, %vm2761
          %v2763 = vsel %vm2762, %v2755, %v2759
          %v2764 = vand.u32 2147483647, %v2307
          %vm2765 = vcmp.eq.f32.partialorder %v2764, 8.507059e+37
          %v2766 = vand.u32 %v2307, 2147483648
          %v2767 = vor.u32 1.1754944e-38, %v2766
          %v2768 = vsel %vm2765, %v2767, %v2763
          %v2769 = vmul.f32 %v2667, %v2768
          %v2770 = vrcp.pop %v2311
          %v2771 = vmul.f32 %v2311, %v2770
          %v2772 = vsub.f32 1.0, %v2771
          %v2773 = vmul.f32 %v2770, %v2772
          %v2774 = vadd.f32 %v2770, %v2773
          %vm2775 = vweird.f32 %v2311
          %vm2776 = vweird.f32 %v2770
          %vm2777 = vmor %vm2775, %vm2776
          %v2778 = vsel %vm2777, %v2770, %v2774
          %v2779 = vand.u32 2147483647, %v2311
          %vm2780 = vcmp.eq.f32.partialorder %v2779, 8.507059e+37
          %v2781 = vand.u32 %v2311, 2147483648
          %v2782 = vor.u32 1.1754944e-38, %v2781
          %v2783 = vsel %vm2780, %v2782, %v2778
          %v2784 = vmul.f32 %v2670, %v2783
          %v2785 = vrcp.pop %v2315
          %v2786 = vmul.f32 %v2315, %v2785
          %v2787 = vsub.f32 1.0, %v2786
          %v2788 = vmul.f32 %v2785, %v2787
          %v2789 = vadd.f32 %v2785, %v2788
          %vm2790 = vweird.f32 %v2315
          %vm2791 = vweird.f32 %v2785
          %vm2792 = vmor %vm2790, %vm2791
          %v2793 = vsel %vm2792, %v2785, %v2789
          %v2794 = vand.u32 2147483647, %v2315
          %vm2795 = vcmp.eq.f32.partialorder %v2794, 8.507059e+37
          %v2796 = vand.u32 %v2315, 2147483648
          %v2797 = vor.u32 1.1754944e-38, %v2796
          %v2798 = vsel %vm2795, %v2797, %v2793
          %v2799 = vmul.f32 %v2673, %v2798
          %v2800 = vrcp.pop %v2319
          %v2801 = vmul.f32 %v2319, %v2800
          %v2802 = vsub.f32 1.0, %v2801
          %v2803 = vmul.f32 %v2800, %v2802
          %v2804 = vadd.f32 %v2800, %v2803
          %vm2805 = vweird.f32 %v2319
          %vm2806 = vweird.f32 %v2800
          %vm2807 = vmor %vm2805, %vm2806
          %v2808 = vsel %vm2807, %v2800, %v2804
          %v2809 = vand.u32 2147483647, %v2319
          %vm2810 = vcmp.eq.f32.partialorder %v2809, 8.507059e+37
          %v2811 = vand.u32 %v2319, 2147483648
          %v2812 = vor.u32 1.1754944e-38, %v2811
          %v2813 = vsel %vm2810, %v2812, %v2808
          %v2814 = vmul.f32 %v2676, %v2813
          %v2815 = vrcp.pop %v2323
          %v2816 = vmul.f32 %v2323, %v2815
          %v2817 = vsub.f32 1.0, %v2816
          %v2818 = vmul.f32 %v2815, %v2817
          %v2819 = vadd.f32 %v2815, %v2818
          %vm2820 = vweird.f32 %v2323
          %vm2821 = vweird.f32 %v2815
          %vm2822 = vmor %vm2820, %vm2821
          %v2823 = vsel %vm2822, %v2815, %v2819
          %v2824 = vand.u32 2147483647, %v2323
          %vm2825 = vcmp.eq.f32.partialorder %v2824, 8.507059e+37
          %v2826 = vand.u32 %v2323, 2147483648
          %v2827 = vor.u32 1.1754944e-38, %v2826
          %v2828 = vsel %vm2825, %v2827, %v2823
          %v2829 = vmul.f32 %v2679, %v2828
          %v2830 = vrcp.pop %v2327
          %v2831 = vmul.f32 %v2327, %v2830
          %v2832 = vsub.f32 1.0, %v2831
          %v2833 = vmul.f32 %v2830, %v2832
          %v2834 = vadd.f32 %v2830, %v2833
          %vm2835 = vweird.f32 %v2327
          %vm2836 = vweird.f32 %v2830
          %vm2837 = vmor %vm2835, %vm2836
          %v2838 = vsel %vm2837, %v2830, %v2834
          %v2839 = vand.u32 2147483647, %v2327
          %vm2840 = vcmp.eq.f32.partialorder %v2839, 8.507059e+37
          %v2841 = vand.u32 %v2327, 2147483648
          %v2842 = vor.u32 1.1754944e-38, %v2841
          %v2843 = vsel %vm2840, %v2842, %v2838
          %v2844 = vmul.f32 %v2682, %v2843
          %v2845 = vrcp.pop %v2331
          %v2846 = vmul.f32 %v2331, %v2845
          %v2847 = vsub.f32 1.0, %v2846
          %v2848 = vmul.f32 %v2845, %v2847
          %v2849 = vadd.f32 %v2845, %v2848
          %vm2850 = vweird.f32 %v2331
          %vm2851 = vweird.f32 %v2845
          %vm2852 = vmor %vm2850, %vm2851
          %v2853 = vsel %vm2852, %v2845, %v2849
          %v2854 = vand.u32 2147483647, %v2331
          %vm2855 = vcmp.eq.f32.partialorder %v2854, 8.507059e+37
          %v2856 = vand.u32 %v2331, 2147483648
          %v2857 = vor.u32 1.1754944e-38, %v2856
          %v2858 = vsel %vm2855, %v2857, %v2853
          %v2859 = vmul.f32 %v2685, %v2858
          %v2860 = vrcp.pop %v2335
          %v2861 = vmul.f32 %v2335, %v2860
          %v2862 = vsub.f32 1.0, %v2861
          %v2863 = vmul.f32 %v2860, %v2862
          %v2864 = vadd.f32 %v2860, %v2863
          %vm2865 = vweird.f32 %v2335
          %vm2866 = vweird.f32 %v2860
          %vm2867 = vmor %vm2865, %vm2866
          %v2868 = vsel %vm2867, %v2860, %v2864
          %v2869 = vand.u32 2147483647, %v2335
          %vm2870 = vcmp.eq.f32.partialorder %v2869, 8.507059e+37
          %v2871 = vand.u32 %v2335, 2147483648
          %v2872 = vor.u32 1.1754944e-38, %v2871
          %v2873 = vsel %vm2870, %v2872, %v2868
          %v2874 = vmul.f32 %v2688, %v2873
          %v2875 = vrcp.pop %v2339
          %v2876 = vmul.f32 %v2339, %v2875
          %v2877 = vsub.f32 1.0, %v2876
          %v2878 = vmul.f32 %v2875, %v2877
          %v2879 = vadd.f32 %v2875, %v2878
          %vm2880 = vweird.f32 %v2339
          %vm2881 = vweird.f32 %v2875
          %vm2882 = vmor %vm2880, %vm2881
          %v2883 = vsel %vm2882, %v2875, %v2879
          %v2884 = vand.u32 2147483647, %v2339
          %vm2885 = vcmp.eq.f32.partialorder %v2884, 8.507059e+37
          %v2886 = vand.u32 %v2339, 2147483648
          %v2887 = vor.u32 1.1754944e-38, %v2886
          %v2888 = vsel %vm2885, %v2887, %v2883
          %v2889 = vmul.f32 %v2691, %v2888
          %v2890 = vrcp.pop %v2343
          %v2891 = vmul.f32 %v2343, %v2890
          %v2892 = vsub.f32 1.0, %v2891
          %v2893 = vmul.f32 %v2890, %v2892
          %v2894 = vadd.f32 %v2890, %v2893
          %vm2895 = vweird.f32 %v2343
          %vm2896 = vweird.f32 %v2890
          %vm2897 = vmor %vm2895, %vm2896
          %v2898 = vsel %vm2897, %v2890, %v2894
          %v2899 = vand.u32 2147483647, %v2343
          %vm2900 = vcmp.eq.f32.partialorder %v2899, 8.507059e+37
          %v2901 = vand.u32 %v2343, 2147483648
          %v2902 = vor.u32 1.1754944e-38, %v2901
          %v2903 = vsel %vm2900, %v2902, %v2898
          %v2904 = vmul.f32 %v2694, %v2903
          %v2905 = vrcp.pop %v2347
          %v2906 = vmul.f32 %v2347, %v2905
          %v2907 = vsub.f32 1.0, %v2906
          %v2908 = vmul.f32 %v2905, %v2907
          %v2909 = vadd.f32 %v2905, %v2908
          %vm2910 = vweird.f32 %v2347
          %vm2911 = vweird.f32 %v2905
          %vm2912 = vmor %vm2910, %vm2911
          %v2913 = vsel %vm2912, %v2905, %v2909
          %v2914 = vand.u32 2147483647, %v2347
          %vm2915 = vcmp.eq.f32.partialorder %v2914, 8.507059e+37
          %v2916 = vand.u32 %v2347, 2147483648
          %v2917 = vor.u32 1.1754944e-38, %v2916
          %v2918 = vsel %vm2915, %v2917, %v2913
          %v2919 = vmul.f32 %v2697, %v2918
          %v2920 = vrcp.pop %v2351
          %v2921 = vmul.f32 %v2351, %v2920
          %v2922 = vsub.f32 1.0, %v2921
          %v2923 = vmul.f32 %v2920, %v2922
          %v2924 = vadd.f32 %v2920, %v2923
          %vm2925 = vweird.f32 %v2351
          %vm2926 = vweird.f32 %v2920
          %vm2927 = vmor %vm2925, %vm2926
          %v2928 = vsel %vm2927, %v2920, %v2924
          %v2929 = vand.u32 2147483647, %v2351
          %vm2930 = vcmp.eq.f32.partialorder %v2929, 8.507059e+37
          %v2931 = vand.u32 %v2351, 2147483648
          %v2932 = vor.u32 1.1754944e-38, %v2931
          %v2933 = vsel %vm2930, %v2932, %v2928
          %v2934 = vmul.f32 %v2700, %v2933
          %v2935 = vrcp.pop %v2355
          %v2936 = vmul.f32 %v2355, %v2935
          %v2937 = vsub.f32 1.0, %v2936
          %v2938 = vmul.f32 %v2935, %v2937
          %v2939 = vadd.f32 %v2935, %v2938
          %vm2940 = vweird.f32 %v2355
          %vm2941 = vweird.f32 %v2935
          %vm2942 = vmor %vm2940, %vm2941
          %v2943 = vsel %vm2942, %v2935, %v2939
          %v2944 = vand.u32 2147483647, %v2355
          %vm2945 = vcmp.eq.f32.partialorder %v2944, 8.507059e+37
          %v2946 = vand.u32 %v2355, 2147483648
          %v2947 = vor.u32 1.1754944e-38, %v2946
          %v2948 = vsel %vm2945, %v2947, %v2943
          %v2949 = vmul.f32 %v2703, %v2948
          %v2950 = vrcp.pop %v2359
          %v2951 = vmul.f32 %v2359, %v2950
          %v2952 = vsub.f32 1.0, %v2951
          %v2953 = vmul.f32 %v2950, %v2952
          %v2954 = vadd.f32 %v2950, %v2953
          %vm2955 = vweird.f32 %v2359
          %vm2956 = vweird.f32 %v2950
          %vm2957 = vmor %vm2955, %vm2956
          %v2958 = vsel %vm2957, %v2950, %v2954
          %v2959 = vand.u32 2147483647, %v2359
          %vm2960 = vcmp.eq.f32.partialorder %v2959, 8.507059e+37
          %v2961 = vand.u32 %v2359, 2147483648
          %v2962 = vor.u32 1.1754944e-38, %v2961
          %v2963 = vsel %vm2960, %v2962, %v2958
          %v2964 = vmul.f32 %v2706, %v2963
          %v2965 = vrcp.pop %v2363
          %v2966 = vmul.f32 %v2363, %v2965
          %v2967 = vsub.f32 1.0, %v2966
          %v2968 = vmul.f32 %v2965, %v2967
          %v2969 = vadd.f32 %v2965, %v2968
          %vm2970 = vweird.f32 %v2363
          %vm2971 = vweird.f32 %v2965
          %vm2972 = vmor %vm2970, %vm2971
          %v2973 = vsel %vm2972, %v2965, %v2969
          %v2974 = vand.u32 2147483647, %v2363
          %vm2975 = vcmp.eq.f32.partialorder %v2974, 8.507059e+37
          %v2976 = vand.u32 %v2363, 2147483648
          %v2977 = vor.u32 1.1754944e-38, %v2976
          %v2978 = vsel %vm2975, %v2977, %v2973
          %v2979 = vmul.f32 %v2709, %v2978
          %v2980 = vadd.f32 %v1718, %v2724
          %v2981 = vadd.f32 %v1719, %v2739
          %v2982 = vadd.f32 %v1720, %v2754
          %v2983 = vadd.f32 %v1721, %v2769
          %v2984 = vadd.f32 %v1722, %v2784
          %v2985 = vadd.f32 %v1723, %v2799
          %v2986 = vadd.f32 %v1724, %v2814
          %v2987 = vadd.f32 %v1725, %v2829
          %v2988 = vadd.f32 %v1726, %v2844
          %v2989 = vadd.f32 %v1727, %v2859
          %v2990 = vadd.f32 %v1728, %v2874
          %v2991 = vadd.f32 %v1729, %v2889
          %v2992 = vadd.f32 %v1730, %v2904
          %v2993 = vadd.f32 %v1731, %v2919
          %v2994 = vadd.f32 %v1732, %v2934
          %v2995 = vadd.f32 %v1733, %v2949
          %v2996 = vadd.f32 %v1734, %v2964
          %v2997 = vadd.f32 %v1735, %v2979
          %v2998 = vld [vmem:[#allocation2] sm:$0xff]
          %v2999 = vld [vmem:[#allocation2 + $0x18] sm:$0xff]
          %v3000 = vld [vmem:[#allocation2 + $0x30] sm:$0xff]
          %v3001 = vld [vmem:[#allocation2 + $0x48] sm:$0xff]
          %v3002 = vld [vmem:[#allocation2 + $0x60] sm:$0xff]
          %v3003 = vld [vmem:[#allocation2 + $0x78] sm:$0xff]
          %v3004 = vld [vmem:[#allocation2 + $0x90] sm:$0xff]
          %v3005 = vld [vmem:[#allocation2 + $0xa8] sm:$0xff]
          %v3006 = vld [vmem:[#allocation2 + $0xc0] sm:$0xff]
          %v3007 = vld [vmem:[#allocation2 + $0xd8] sm:$0xff]
          %v3008 = vld [vmem:[#allocation2 + $0xf0] sm:$0xff]
          %v3009 = vld [vmem:[#allocation2 + $0x108] sm:$0xff]
          %v3010 = vld [vmem:[#allocation2 + $0x120] sm:$0xff]
          %v3011 = vld [vmem:[#allocation2 + $0x138] sm:$0xff]
          %v3012 = vld [vmem:[#allocation2 + $0x150] sm:$0xff]
          %v3013 = vld [vmem:[#allocation2 + $0x168] sm:$0xff]
          %v3014 = vld [vmem:[#allocation2 + $0x180] sm:$0xff]
          %v3015 = vld [vmem:[#allocation2 + $0x198] sm:$0xff]
          %v3016 = vld [vmem:[#allocation2 + $0x8] sm:$0xff]
          %v3017 = vld [vmem:[#allocation2 + $0x20] sm:$0xff]
          %v3018 = vld [vmem:[#allocation2 + $0x38] sm:$0xff]
          %v3019 = vld [vmem:[#allocation2 + $0x50] sm:$0xff]
          %v3020 = vld [vmem:[#allocation2 + $0x68] sm:$0xff]
          %v3021 = vld [vmem:[#allocation2 + $0x80] sm:$0xff]
          %v3022 = vld [vmem:[#allocation2 + $0x98] sm:$0xff]
          %v3023 = vld [vmem:[#allocation2 + $0xb0] sm:$0xff]
          %v3024 = vld [vmem:[#allocation2 + $0xc8] sm:$0xff]
          %v3025 = vld [vmem:[#allocation2 + $0xe0] sm:$0xff]
          %v3026 = vld [vmem:[#allocation2 + $0xf8] sm:$0xff]
          %v3027 = vld [vmem:[#allocation2 + $0x110] sm:$0xff]
          %v3028 = vld [vmem:[#allocation2 + $0x128] sm:$0xff]
          %v3029 = vld [vmem:[#allocation2 + $0x140] sm:$0xff]
          %v3030 = vld [vmem:[#allocation2 + $0x158] sm:$0xff]
          %v3031 = vld [vmem:[#allocation2 + $0x170] sm:$0xff]
          %v3032 = vld [vmem:[#allocation2 + $0x188] sm:$0xff]
          %v3033 = vld [vmem:[#allocation2 + $0x1a0] sm:$0xff]
          %v3034 = vld [vmem:[#allocation2 + $0x10] sm:$0xff]
          %v3035 = vld [vmem:[#allocation2 + $0x28] sm:$0xff]
          %v3036 = vld [vmem:[#allocation2 + $0x40] sm:$0xff]
          %v3037 = vld [vmem:[#allocation2 + $0x58] sm:$0xff]
          %v3038 = vld [vmem:[#allocation2 + $0x70] sm:$0xff]
          %v3039 = vld [vmem:[#allocation2 + $0x88] sm:$0xff]
          %v3040 = vld [vmem:[#allocation2 + $0xa0] sm:$0xff]
          %v3041 = vld [vmem:[#allocation2 + $0xb8] sm:$0xff]
          %v3042 = vld [vmem:[#allocation2 + $0xd0] sm:$0xff]
          %v3043 = vld [vmem:[#allocation2 + $0xe8] sm:$0xff]
          %v3044 = vld [vmem:[#allocation2 + $0x100] sm:$0xff]
          %v3045 = vld [vmem:[#allocation2 + $0x118] sm:$0xff]
          %v3046 = vld [vmem:[#allocation2 + $0x130] sm:$0xff]
          %v3047 = vld [vmem:[#allocation2 + $0x148] sm:$0xff]
          %v3048 = vld [vmem:[#allocation2 + $0x160] sm:$0xff]
          %v3049 = vld [vmem:[#allocation2 + $0x178] sm:$0xff]
          %v3050 = vld [vmem:[#allocation2 + $0x190] sm:$0xff]
          %v3051 = vld [vmem:[#allocation2 + $0x1a8] sm:$0xff]
          %3070 = vrot.lane.b32.xlu0 %v2998, 96
          %v3071 = vpop.permute.xlu0 %3070
          %3072 = vrot.lane.b32.xlu0 %v2999, 96
          %v3073 = vpop.permute.xlu0 %3072
          %3074 = vrot.lane.b32.xlu0 %v3000, 96
          %v3075 = vpop.permute.xlu0 %3074
          %3076 = vrot.lane.b32.xlu0 %v3001, 96
          %v3077 = vpop.permute.xlu0 %3076
          %3078 = vrot.lane.b32.xlu0 %v3002, 96
          %v3079 = vpop.permute.xlu0 %3078
          %3080 = vrot.lane.b32.xlu0 %v3003, 96
          %v3081 = vpop.permute.xlu0 %3080
          %3082 = vrot.lane.b32.xlu0 %v3004, 96
          %v3083 = vpop.permute.xlu0 %3082
          %3084 = vrot.lane.b32.xlu0 %v3005, 96
          %v3085 = vpop.permute.xlu0 %3084
          %3086 = vrot.lane.b32.xlu0 %v3006, 96
          %v3087 = vpop.permute.xlu0 %3086
          %3088 = vrot.lane.b32.xlu0 %v3007, 96
          %v3089 = vpop.permute.xlu0 %3088
          %3090 = vrot.lane.b32.xlu0 %v3008, 96
          %v3091 = vpop.permute.xlu0 %3090
          %3092 = vrot.lane.b32.xlu0 %v3009, 96
          %v3093 = vpop.permute.xlu0 %3092
          %3094 = vrot.lane.b32.xlu0 %v3010, 96
          %v3095 = vpop.permute.xlu0 %3094
          %3096 = vrot.lane.b32.xlu0 %v3011, 96
          %v3097 = vpop.permute.xlu0 %3096
          %3098 = vrot.lane.b32.xlu0 %v3012, 96
          %v3099 = vpop.permute.xlu0 %3098
          %3100 = vrot.lane.b32.xlu0 %v3013, 96
          %v3101 = vpop.permute.xlu0 %3100
          %3102 = vrot.lane.b32.xlu0 %v3014, 96
          %v3103 = vpop.permute.xlu0 %3102
          %3104 = vrot.lane.b32.xlu0 %v3015, 96
          %v3105 = vpop.permute.xlu0 %3104
          %3124 = vrot.lane.b32.xlu0 %v3016, 96
          %v3125 = vpop.permute.xlu0 %3124
          %3126 = vrot.lane.b32.xlu0 %v3017, 96
          %v3127 = vpop.permute.xlu0 %3126
          %3128 = vrot.lane.b32.xlu0 %v3018, 96
          %v3129 = vpop.permute.xlu0 %3128
          %3130 = vrot.lane.b32.xlu0 %v3019, 96
          %v3131 = vpop.permute.xlu0 %3130
          %3132 = vrot.lane.b32.xlu0 %v3020, 96
          %v3133 = vpop.permute.xlu0 %3132
          %3134 = vrot.lane.b32.xlu0 %v3021, 96
          %v3135 = vpop.permute.xlu0 %3134
          %3136 = vrot.lane.b32.xlu0 %v3022, 96
          %v3137 = vpop.permute.xlu0 %3136
          %3138 = vrot.lane.b32.xlu0 %v3023, 96
          %v3139 = vpop.permute.xlu0 %3138
          %3140 = vrot.lane.b32.xlu0 %v3024, 96
          %v3141 = vpop.permute.xlu0 %3140
          %3142 = vrot.lane.b32.xlu0 %v3025, 96
          %v3143 = vpop.permute.xlu0 %3142
          %3144 = vrot.lane.b32.xlu0 %v3026, 96
          %v3145 = vpop.permute.xlu0 %3144
          %3146 = vrot.lane.b32.xlu0 %v3027, 96
          %v3147 = vpop.permute.xlu0 %3146
          %3148 = vrot.lane.b32.xlu0 %v3028, 96
          %v3149 = vpop.permute.xlu0 %3148
          %3150 = vrot.lane.b32.xlu0 %v3029, 96
          %v3151 = vpop.permute.xlu0 %3150
          %3152 = vrot.lane.b32.xlu0 %v3030, 96
          %v3153 = vpop.permute.xlu0 %3152
          %3154 = vrot.lane.b32.xlu0 %v3031, 96
          %v3155 = vpop.permute.xlu0 %3154
          %3156 = vrot.lane.b32.xlu0 %v3032, 96
          %v3157 = vpop.permute.xlu0 %3156
          %3158 = vrot.lane.b32.xlu0 %v3033, 96
          %v3159 = vpop.permute.xlu0 %3158
          %v3160 = vsel %vm673, %v3071, 0
          %v3162 = vsel %vm673, %v3073, 0
          %v3164 = vsel %vm673, %v3075, 0
          %v3166 = vsel %vm673, %v3077, 0
          %v3168 = vsel %vm673, %v3079, 0
          %v3170 = vsel %vm673, %v3081, 0
          %v3172 = vsel %vm673, %v3083, 0
          %v3174 = vsel %vm673, %v3085, 0
          %v3176 = vsel %vm673, %v3087, 0
          %v3178 = vsel %vm673, %v3089, 0
          %v3180 = vsel %vm673, %v3091, 0
          %v3182 = vsel %vm673, %v3093, 0
          %v3184 = vsel %vm673, %v3095, 0
          %v3186 = vsel %vm673, %v3097, 0
          %v3188 = vsel %vm673, %v3099, 0
          %v3190 = vsel %vm673, %v3101, 0
          %v3192 = vsel %vm673, %v3103, 0
          %v3194 = vsel %vm673, %v3105, 0
          %v3196 = vsel %vm673, %v3125, 0
          %v3198 = vsel %vm673, %v3127, 0
          %v3200 = vsel %vm673, %v3129, 0
          %v3202 = vsel %vm673, %v3131, 0
          %v3204 = vsel %vm673, %v3133, 0
          %v3206 = vsel %vm673, %v3135, 0
          %v3208 = vsel %vm673, %v3137, 0
          %v3210 = vsel %vm673, %v3139, 0
          %v3212 = vsel %vm673, %v3141, 0
          %v3214 = vsel %vm673, %v3143, 0
          %v3216 = vsel %vm673, %v3145, 0
          %v3218 = vsel %vm673, %v3147, 0
          %v3220 = vsel %vm673, %v3149, 0
          %v3222 = vsel %vm673, %v3151, 0
          %v3224 = vsel %vm673, %v3153, 0
          %v3226 = vsel %vm673, %v3155, 0
          %v3228 = vsel %vm673, %v3157, 0
          %v3230 = vsel %vm673, %v3159, 0
          %3232 = vmatpush.xpose.msra.mxu0 %v3226
          %3233 = vmatpush.xpose.msra.mxu0 %v3224
          %3234 = vmatpush.xpose.msra.mxu0 %v3222
          %3235 = vmatpush.xpose.msra.mxu0 %v3220
          %3236 = vmatpush.xpose.msra.mxu0 %v3218
          %3237 = vmatpush.xpose.msra.mxu0 %v3216
          %3238 = vmatpush.xpose.msra.mxu0 %v3214
          %3239 = vmatpush.xpose.msra.mxu0 %v3212
          %3240 = vmatpush.xpose.msra.mxu0 %v3210
          %3241 = vmatpush.xpose.msra.mxu0 %v3208
          %3242 = vmatpush.xpose.msra.mxu0 %v3206
          %3243 = vmatpush.xpose.msra.mxu0 %v3204
          %3244 = vmatpush.xpose.msra.mxu0 %v3202
          %3245 = vmatpush.xpose.msra.mxu0 %v3200
          %3246 = vmatpush.xpose.msra.mxu0 %v3198
          %3247 = vmatpush.xpose.msra.mxu0 %v3196
          %3248 = vmatmul.f32.gmra.mxu0 %v3160
          %v3249 = vpop.f32.mrf.mxu0
          %v3250 = vadd.f32 0.0, %v3249
          %3251 = vmatmul.f32.gmra.mxu0 %v3162
          %v3252 = vpop.f32.mrf.mxu0
          %v3253 = vadd.f32 0.0, %v3252
          %3254 = vmatmul.f32.gmra.mxu0 %v3164
          %v3255 = vpop.f32.mrf.mxu0
          %v3256 = vadd.f32 0.0, %v3255
          %3257 = vmatmul.f32.gmra.mxu0 %v3166
          %v3258 = vpop.f32.mrf.mxu0
          %v3259 = vadd.f32 0.0, %v3258
          %3260 = vmatmul.f32.gmra.mxu0 %v3168
          %v3261 = vpop.f32.mrf.mxu0
          %v3262 = vadd.f32 0.0, %v3261
          %3263 = vmatmul.f32.gmra.mxu0 %v3170
          %v3264 = vpop.f32.mrf.mxu0
          %v3265 = vadd.f32 0.0, %v3264
          %3266 = vmatmul.f32.gmra.mxu0 %v3172
          %v3267 = vpop.f32.mrf.mxu0
          %v3268 = vadd.f32 0.0, %v3267
          %3269 = vmatmul.f32.gmra.mxu0 %v3174
          %v3270 = vpop.f32.mrf.mxu0
          %v3271 = vadd.f32 0.0, %v3270
          %3272 = vmatmul.f32.gmra.mxu0 %v3176
          %v3273 = vpop.f32.mrf.mxu0
          %v3274 = vadd.f32 0.0, %v3273
          %3275 = vmatmul.f32.gmra.mxu0 %v3178
          %v3276 = vpop.f32.mrf.mxu0
          %v3277 = vadd.f32 0.0, %v3276
          %3278 = vmatmul.f32.gmra.mxu0 %v3180
          %v3279 = vpop.f32.mrf.mxu0
          %v3280 = vadd.f32 0.0, %v3279
          %3281 = vmatmul.f32.gmra.mxu0 %v3182
          %v3282 = vpop.f32.mrf.mxu0
          %v3283 = vadd.f32 0.0, %v3282
          %3284 = vmatmul.f32.gmra.mxu0 %v3184
          %v3285 = vpop.f32.mrf.mxu0
          %v3286 = vadd.f32 0.0, %v3285
          %3287 = vmatmul.f32.gmra.mxu0 %v3186
          %v3288 = vpop.f32.mrf.mxu0
          %v3289 = vadd.f32 0.0, %v3288
          %3290 = vmatmul.f32.gmra.mxu0 %v3188
          %v3291 = vpop.f32.mrf.mxu0
          %v3292 = vadd.f32 0.0, %v3291
          %3293 = vmatmul.f32.gmra.mxu0 %v3190
          %v3294 = vpop.f32.mrf.mxu0
          %v3295 = vadd.f32 0.0, %v3294
          %3296 = vmatmul.f32.gmra.mxu0 %v3192
          %v3297 = vpop.f32.mrf.mxu0
          %v3298 = vadd.f32 0.0, %v3297
          %3299 = vmatmul.f32.gmra.mxu0 %v3194
          %v3300 = vpop.f32.mrf.mxu0
          %v3301 = vadd.f32 0.0, %v3300
          %3302 = vdwg.mxu0
          %3303 = vmatpush.xpose.msra.mxu0 0.0
          %3304 = vmatpush.xpose.msra.mxu0 0.0
          %3305 = vmatpush.xpose.msra.mxu0 0.0
          %3306 = vmatpush.xpose.msra.mxu0 0.0
          %3307 = vmatpush.xpose.msra.mxu0 0.0
          %3308 = vmatpush.xpose.msra.mxu0 0.0
          %3309 = vmatpush.xpose.msra.mxu0 0.0
          %3310 = vmatpush.xpose.msra.mxu0 0.0
          %3311 = vmatpush.xpose.msra.mxu0 0.0
          %3312 = vmatpush.xpose.msra.mxu0 0.0
          %3313 = vmatpush.xpose.msra.mxu0 0.0
          %3314 = vmatpush.xpose.msra.mxu0 0.0
          %3315 = vmatpush.xpose.msra.mxu0 0.0
          %3316 = vmatpush.xpose.msra.mxu0 0.0
          %3317 = vmatpush.xpose.msra.mxu0 %v3230
          %3318 = vmatpush.xpose.msra.mxu0 %v3228
          %3319 = vmatmul.f32.gmra.mxu0 %v3160
          %v3320 = vpop.f32.mrf.mxu0
          %v3321 = vadd.f32 0.0, %v3320
          %3322 = vmatmul.f32.gmra.mxu0 %v3162
          %v3323 = vpop.f32.mrf.mxu0
          %v3324 = vadd.f32 0.0, %v3323
          %3325 = vmatmul.f32.gmra.mxu0 %v3164
          %v3326 = vpop.f32.mrf.mxu0
          %v3327 = vadd.f32 0.0, %v3326
          %3328 = vmatmul.f32.gmra.mxu0 %v3166
          %v3329 = vpop.f32.mrf.mxu0
          %v3330 = vadd.f32 0.0, %v3329
          %3331 = vmatmul.f32.gmra.mxu0 %v3168
          %v3332 = vpop.f32.mrf.mxu0
          %v3333 = vadd.f32 0.0, %v3332
          %3334 = vmatmul.f32.gmra.mxu0 %v3170
          %v3335 = vpop.f32.mrf.mxu0
          %v3336 = vadd.f32 0.0, %v3335
          %3337 = vmatmul.f32.gmra.mxu0 %v3172
          %v3338 = vpop.f32.mrf.mxu0
          %v3339 = vadd.f32 0.0, %v3338
          %3340 = vmatmul.f32.gmra.mxu0 %v3174
          %v3341 = vpop.f32.mrf.mxu0
          %v3342 = vadd.f32 0.0, %v3341
          %3343 = vmatmul.f32.gmra.mxu0 %v3176
          %v3344 = vpop.f32.mrf.mxu0
          %v3345 = vadd.f32 0.0, %v3344
          %3346 = vmatmul.f32.gmra.mxu0 %v3178
          %v3347 = vpop.f32.mrf.mxu0
          %v3348 = vadd.f32 0.0, %v3347
          %3349 = vmatmul.f32.gmra.mxu0 %v3180
          %v3350 = vpop.f32.mrf.mxu0
          %v3351 = vadd.f32 0.0, %v3350
          %3352 = vmatmul.f32.gmra.mxu0 %v3182
          %v3353 = vpop.f32.mrf.mxu0
          %v3354 = vadd.f32 0.0, %v3353
          %3355 = vmatmul.f32.gmra.mxu0 %v3184
          %v3356 = vpop.f32.mrf.mxu0
          %v3357 = vadd.f32 0.0, %v3356
          %3358 = vmatmul.f32.gmra.mxu0 %v3186
          %v3359 = vpop.f32.mrf.mxu0
          %v3360 = vadd.f32 0.0, %v3359
          %3361 = vmatmul.f32.gmra.mxu0 %v3188
          %v3362 = vpop.f32.mrf.mxu0
          %v3363 = vadd.f32 0.0, %v3362
          %3364 = vmatmul.f32.gmra.mxu0 %v3190
          %v3365 = vpop.f32.mrf.mxu0
          %v3366 = vadd.f32 0.0, %v3365
          %3367 = vmatmul.f32.gmra.mxu0 %v3192
          %v3368 = vpop.f32.mrf.mxu0
          %v3369 = vadd.f32 0.0, %v3368
          %3370 = vmatmul.f32.gmra.mxu0 %v3194
          %v3371 = vpop.f32.mrf.mxu0
          %v3372 = vadd.f32 0.0, %v3371
          %3373 = vdwg.mxu0
          %v3374 = vsel %vm673, %v3321, -inf
          %v3375 = vmax.f32 %v3250, %v3374
          %3376 = vmax.xlane.f32.xlu0 %v3375
          %v3377 = vpop.xlane.xlu0 %3376
          %v3378 = vsel %vm673, %v3324, -inf
          %v3379 = vmax.f32 %v3253, %v3378
          %3380 = vmax.xlane.f32.xlu0 %v3379
          %v3381 = vpop.xlane.xlu0 %3380
          %v3382 = vsel %vm673, %v3327, -inf
          %v3383 = vmax.f32 %v3256, %v3382
          %3384 = vmax.xlane.f32.xlu0 %v3383
          %v3385 = vpop.xlane.xlu0 %3384
          %v3386 = vsel %vm673, %v3330, -inf
          %v3387 = vmax.f32 %v3259, %v3386
          %3388 = vmax.xlane.f32.xlu0 %v3387
          %v3389 = vpop.xlane.xlu0 %3388
          %v3390 = vsel %vm673, %v3333, -inf
          %v3391 = vmax.f32 %v3262, %v3390
          %3392 = vmax.xlane.f32.xlu0 %v3391
          %v3393 = vpop.xlane.xlu0 %3392
          %v3394 = vsel %vm673, %v3336, -inf
          %v3395 = vmax.f32 %v3265, %v3394
          %3396 = vmax.xlane.f32.xlu0 %v3395
          %v3397 = vpop.xlane.xlu0 %3396
          %v3398 = vsel %vm673, %v3339, -inf
          %v3399 = vmax.f32 %v3268, %v3398
          %3400 = vmax.xlane.f32.xlu0 %v3399
          %v3401 = vpop.xlane.xlu0 %3400
          %v3402 = vsel %vm673, %v3342, -inf
          %v3403 = vmax.f32 %v3271, %v3402
          %3404 = vmax.xlane.f32.xlu0 %v3403
          %v3405 = vpop.xlane.xlu0 %3404
          %v3406 = vsel %vm673, %v3345, -inf
          %v3407 = vmax.f32 %v3274, %v3406
          %3408 = vmax.xlane.f32.xlu0 %v3407
          %v3409 = vpop.xlane.xlu0 %3408
          %v3410 = vsel %vm673, %v3348, -inf
          %v3411 = vmax.f32 %v3277, %v3410
          %3412 = vmax.xlane.f32.xlu0 %v3411
          %v3413 = vpop.xlane.xlu0 %3412
          %v3414 = vsel %vm673, %v3351, -inf
          %v3415 = vmax.f32 %v3280, %v3414
          %3416 = vmax.xlane.f32.xlu0 %v3415
          %v3417 = vpop.xlane.xlu0 %3416
          %v3418 = vsel %vm673, %v3354, -inf
          %v3419 = vmax.f32 %v3283, %v3418
          %3420 = vmax.xlane.f32.xlu0 %v3419
          %v3421 = vpop.xlane.xlu0 %3420
          %v3422 = vsel %vm673, %v3357, -inf
          %v3423 = vmax.f32 %v3286, %v3422
          %3424 = vmax.xlane.f32.xlu0 %v3423
          %v3425 = vpop.xlane.xlu0 %3424
          %v3426 = vsel %vm673, %v3360, -inf
          %v3427 = vmax.f32 %v3289, %v3426
          %3428 = vmax.xlane.f32.xlu0 %v3427
          %v3429 = vpop.xlane.xlu0 %3428
          %v3430 = vsel %vm673, %v3363, -inf
          %v3431 = vmax.f32 %v3292, %v3430
          %3432 = vmax.xlane.f32.xlu0 %v3431
          %v3433 = vpop.xlane.xlu0 %3432
          %v3434 = vsel %vm673, %v3366, -inf
          %v3435 = vmax.f32 %v3295, %v3434
          %3436 = vmax.xlane.f32.xlu0 %v3435
          %v3437 = vpop.xlane.xlu0 %3436
          %v3438 = vsel %vm673, %v3369, -inf
          %v3439 = vmax.f32 %v3298, %v3438
          %3440 = vmax.xlane.f32.xlu0 %v3439
          %v3441 = vpop.xlane.xlu0 %3440
          %v3442 = vsel %vm673, %v3372, -inf
          %v3443 = vmax.f32 %v3301, %v3442
          %3444 = vmax.xlane.f32.xlu0 %v3443
          %v3445 = vpop.xlane.xlu0 %3444
          %v3446 = vsub.f32 %v3250, %v3377
          %v3447 = vsub.f32 %v3321, %v3377
          %v3448 = vsub.f32 %v3253, %v3381
          %v3449 = vsub.f32 %v3324, %v3381
          %v3450 = vsub.f32 %v3256, %v3385
          %v3451 = vsub.f32 %v3327, %v3385
          %v3452 = vsub.f32 %v3259, %v3389
          %v3453 = vsub.f32 %v3330, %v3389
          %v3454 = vsub.f32 %v3262, %v3393
          %v3455 = vsub.f32 %v3333, %v3393
          %v3456 = vsub.f32 %v3265, %v3397
          %v3457 = vsub.f32 %v3336, %v3397
          %v3458 = vsub.f32 %v3268, %v3401
          %v3459 = vsub.f32 %v3339, %v3401
          %v3460 = vsub.f32 %v3271, %v3405
          %v3461 = vsub.f32 %v3342, %v3405
          %v3462 = vsub.f32 %v3274, %v3409
          %v3463 = vsub.f32 %v3345, %v3409
          %v3464 = vsub.f32 %v3277, %v3413
          %v3465 = vsub.f32 %v3348, %v3413
          %v3466 = vsub.f32 %v3280, %v3417
          %v3467 = vsub.f32 %v3351, %v3417
          %v3468 = vsub.f32 %v3283, %v3421
          %v3469 = vsub.f32 %v3354, %v3421
          %v3470 = vsub.f32 %v3286, %v3425
          %v3471 = vsub.f32 %v3357, %v3425
          %v3472 = vsub.f32 %v3289, %v3429
          %v3473 = vsub.f32 %v3360, %v3429
          %v3474 = vsub.f32 %v3292, %v3433
          %v3475 = vsub.f32 %v3363, %v3433
          %v3476 = vsub.f32 %v3295, %v3437
          %v3477 = vsub.f32 %v3366, %v3437
          %v3478 = vsub.f32 %v3298, %v3441
          %v3479 = vsub.f32 %v3369, %v3441
          %v3480 = vsub.f32 %v3301, %v3445
          %v3481 = vsub.f32 %v3372, %v3445
          %v3482 = vmul.f32 %v3446, 1.442695
          %v3483 = vpow.pop %v3482
          %v3484 = vmul.f32 %v3447, 1.442695
          %v3485 = vpow.pop %v3484
          %v3486 = vmul.f32 %v3448, 1.442695
          %v3487 = vpow.pop %v3486
          %v3488 = vmul.f32 %v3449, 1.442695
          %v3489 = vpow.pop %v3488
          %v3490 = vmul.f32 %v3450, 1.442695
          %v3491 = vpow.pop %v3490
          %v3492 = vmul.f32 %v3451, 1.442695
          %v3493 = vpow.pop %v3492
          %v3494 = vmul.f32 %v3452, 1.442695
          %v3495 = vpow.pop %v3494
          %v3496 = vmul.f32 %v3453, 1.442695
          %v3497 = vpow.pop %v3496
          %v3498 = vmul.f32 %v3454, 1.442695
          %v3499 = vpow.pop %v3498
          %v3500 = vmul.f32 %v3455, 1.442695
          %v3501 = vpow.pop %v3500
          %v3502 = vmul.f32 %v3456, 1.442695
          %v3503 = vpow.pop %v3502
          %v3504 = vmul.f32 %v3457, 1.442695
          %v3505 = vpow.pop %v3504
          %v3506 = vmul.f32 %v3458, 1.442695
          %v3507 = vpow.pop %v3506
          %v3508 = vmul.f32 %v3459, 1.442695
          %v3509 = vpow.pop %v3508
          %v3510 = vmul.f32 %v3460, 1.442695
          %v3511 = vpow.pop %v3510
          %v3512 = vmul.f32 %v3461, 1.442695
          %v3513 = vpow.pop %v3512
          %v3514 = vmul.f32 %v3462, 1.442695
          %v3515 = vpow.pop %v3514
          %v3516 = vmul.f32 %v3463, 1.442695
          %v3517 = vpow.pop %v3516
          %v3518 = vmul.f32 %v3464, 1.442695
          %v3519 = vpow.pop %v3518
          %v3520 = vmul.f32 %v3465, 1.442695
          %v3521 = vpow.pop %v3520
          %v3522 = vmul.f32 %v3466, 1.442695
          %v3523 = vpow.pop %v3522
          %v3524 = vmul.f32 %v3467, 1.442695
          %v3525 = vpow.pop %v3524
          %v3526 = vmul.f32 %v3468, 1.442695
          %v3527 = vpow.pop %v3526
          %v3528 = vmul.f32 %v3469, 1.442695
          %v3529 = vpow.pop %v3528
          %v3530 = vmul.f32 %v3470, 1.442695
          %v3531 = vpow.pop %v3530
          %v3532 = vmul.f32 %v3471, 1.442695
          %v3533 = vpow.pop %v3532
          %v3534 = vmul.f32 %v3472, 1.442695
          %v3535 = vpow.pop %v3534
          %v3536 = vmul.f32 %v3473, 1.442695
          %v3537 = vpow.pop %v3536
          %v3538 = vmul.f32 %v3474, 1.442695
          %v3539 = vpow.pop %v3538
          %v3540 = vmul.f32 %v3475, 1.442695
          %v3541 = vpow.pop %v3540
          %v3542 = vmul.f32 %v3476, 1.442695
          %v3543 = vpow.pop %v3542
          %v3544 = vmul.f32 %v3477, 1.442695
          %v3545 = vpow.pop %v3544
          %v3546 = vmul.f32 %v3478, 1.442695
          %v3547 = vpow.pop %v3546
          %v3548 = vmul.f32 %v3479, 1.442695
          %v3549 = vpow.pop %v3548
          %v3550 = vmul.f32 %v3480, 1.442695
          %v3551 = vpow.pop %v3550
          %v3552 = vmul.f32 %v3481, 1.442695
          %v3553 = vpow.pop %v3552
          %v3554 = vsel %vm673, %v3485, 0.0
          %v3555 = vadd.f32 %v3483, %v3554
          %3556 = vadd.xlane.f32.xlu0 %v3555
          %v3557 = vpop.xlane.xlu0 %3556
          %v3558 = vsel %vm673, %v3489, 0.0
          %v3559 = vadd.f32 %v3487, %v3558
          %3560 = vadd.xlane.f32.xlu0 %v3559
          %v3561 = vpop.xlane.xlu0 %3560
          %v3562 = vsel %vm673, %v3493, 0.0
          %v3563 = vadd.f32 %v3491, %v3562
          %3564 = vadd.xlane.f32.xlu0 %v3563
          %v3565 = vpop.xlane.xlu0 %3564
          %v3566 = vsel %vm673, %v3497, 0.0
          %v3567 = vadd.f32 %v3495, %v3566
          %3568 = vadd.xlane.f32.xlu0 %v3567
          %v3569 = vpop.xlane.xlu0 %3568
          %v3570 = vsel %vm673, %v3501, 0.0
          %v3571 = vadd.f32 %v3499, %v3570
          %3572 = vadd.xlane.f32.xlu0 %v3571
          %v3573 = vpop.xlane.xlu0 %3572
          %v3574 = vsel %vm673, %v3505, 0.0
          %v3575 = vadd.f32 %v3503, %v3574
          %3576 = vadd.xlane.f32.xlu0 %v3575
          %v3577 = vpop.xlane.xlu0 %3576
          %v3578 = vsel %vm673, %v3509, 0.0
          %v3579 = vadd.f32 %v3507, %v3578
          %3580 = vadd.xlane.f32.xlu0 %v3579
          %v3581 = vpop.xlane.xlu0 %3580
          %v3582 = vsel %vm673, %v3513, 0.0
          %v3583 = vadd.f32 %v3511, %v3582
          %3584 = vadd.xlane.f32.xlu0 %v3583
          %v3585 = vpop.xlane.xlu0 %3584
          %v3586 = vsel %vm673, %v3517, 0.0
          %v3587 = vadd.f32 %v3515, %v3586
          %3588 = vadd.xlane.f32.xlu0 %v3587
          %v3589 = vpop.xlane.xlu0 %3588
          %v3590 = vsel %vm673, %v3521, 0.0
          %v3591 = vadd.f32 %v3519, %v3590
          %3592 = vadd.xlane.f32.xlu0 %v3591
          %v3593 = vpop.xlane.xlu0 %3592
          %v3594 = vsel %vm673, %v3525, 0.0
          %v3595 = vadd.f32 %v3523, %v3594
          %3596 = vadd.xlane.f32.xlu0 %v3595
          %v3597 = vpop.xlane.xlu0 %3596
          %v3598 = vsel %vm673, %v3529, 0.0
          %v3599 = vadd.f32 %v3527, %v3598
          %3600 = vadd.xlane.f32.xlu0 %v3599
          %v3601 = vpop.xlane.xlu0 %3600
          %v3602 = vsel %vm673, %v3533, 0.0
          %v3603 = vadd.f32 %v3531, %v3602
          %3604 = vadd.xlane.f32.xlu0 %v3603
          %v3605 = vpop.xlane.xlu0 %3604
          %v3606 = vsel %vm673, %v3537, 0.0
          %v3607 = vadd.f32 %v3535, %v3606
          %3608 = vadd.xlane.f32.xlu0 %v3607
          %v3609 = vpop.xlane.xlu0 %3608
          %v3610 = vsel %vm673, %v3541, 0.0
          %v3611 = vadd.f32 %v3539, %v3610
          %3612 = vadd.xlane.f32.xlu0 %v3611
          %v3613 = vpop.xlane.xlu0 %3612
          %v3614 = vsel %vm673, %v3545, 0.0
          %v3615 = vadd.f32 %v3543, %v3614
          %3616 = vadd.xlane.f32.xlu0 %v3615
          %v3617 = vpop.xlane.xlu0 %3616
          %v3618 = vsel %vm673, %v3549, 0.0
          %v3619 = vadd.f32 %v3547, %v3618
          %3620 = vadd.xlane.f32.xlu0 %v3619
          %v3621 = vpop.xlane.xlu0 %3620
          %v3622 = vsel %vm673, %v3553, 0.0
          %v3623 = vadd.f32 %v3551, %v3622
          %3624 = vadd.xlane.f32.xlu0 %v3623
          %v3625 = vpop.xlane.xlu0 %3624
          %3644 = vrot.lane.b32.xlu0 %v3034, 96
          %v3645 = vpop.permute.xlu0 %3644
          %3646 = vrot.lane.b32.xlu0 %v3035, 96
          %v3647 = vpop.permute.xlu0 %3646
          %3648 = vrot.lane.b32.xlu0 %v3036, 96
          %v3649 = vpop.permute.xlu0 %3648
          %3650 = vrot.lane.b32.xlu0 %v3037, 96
          %v3651 = vpop.permute.xlu0 %3650
          %3652 = vrot.lane.b32.xlu0 %v3038, 96
          %v3653 = vpop.permute.xlu0 %3652
          %3654 = vrot.lane.b32.xlu0 %v3039, 96
          %v3655 = vpop.permute.xlu0 %3654
          %3656 = vrot.lane.b32.xlu0 %v3040, 96
          %v3657 = vpop.permute.xlu0 %3656
          %3658 = vrot.lane.b32.xlu0 %v3041, 96
          %v3659 = vpop.permute.xlu0 %3658
          %3660 = vrot.lane.b32.xlu0 %v3042, 96
          %v3661 = vpop.permute.xlu0 %3660
          %3662 = vrot.lane.b32.xlu0 %v3043, 96
          %v3663 = vpop.permute.xlu0 %3662
          %3664 = vrot.lane.b32.xlu0 %v3044, 96
          %v3665 = vpop.permute.xlu0 %3664
          %3666 = vrot.lane.b32.xlu0 %v3045, 96
          %v3667 = vpop.permute.xlu0 %3666
          %3668 = vrot.lane.b32.xlu0 %v3046, 96
          %v3669 = vpop.permute.xlu0 %3668
          %3670 = vrot.lane.b32.xlu0 %v3047, 96
          %v3671 = vpop.permute.xlu0 %3670
          %3672 = vrot.lane.b32.xlu0 %v3048, 96
          %v3673 = vpop.permute.xlu0 %3672
          %3674 = vrot.lane.b32.xlu0 %v3049, 96
          %v3675 = vpop.permute.xlu0 %3674
          %3676 = vrot.lane.b32.xlu0 %v3050, 96
          %v3677 = vpop.permute.xlu0 %3676
          %3678 = vrot.lane.b32.xlu0 %v3051, 96
          %v3679 = vpop.permute.xlu0 %3678
          %v3699 = vsel %vm673, %v3485, 0
          %v3702 = vsel %vm673, %v3489, 0
          %v3705 = vsel %vm673, %v3493, 0
          %v3708 = vsel %vm673, %v3497, 0
          %v3711 = vsel %vm673, %v3501, 0
          %v3714 = vsel %vm673, %v3505, 0
          %v3717 = vsel %vm673, %v3509, 0
          %v3720 = vsel %vm673, %v3513, 0
          %v3723 = vsel %vm673, %v3517, 0
          %v3726 = vsel %vm673, %v3521, 0
          %v3729 = vsel %vm673, %v3525, 0
          %v3732 = vsel %vm673, %v3529, 0
          %v3735 = vsel %vm673, %v3533, 0
          %v3738 = vsel %vm673, %v3537, 0
          %v3741 = vsel %vm673, %v3541, 0
          %v3744 = vsel %vm673, %v3545, 0
          %v3747 = vsel %vm673, %v3549, 0
          %v3750 = vsel %vm673, %v3553, 0
          %3752 = vmatpush.msra.mxu0 %v3675
          %3753 = vmatpush.msra.mxu0 %v3673
          %3754 = vmatpush.msra.mxu0 %v3671
          %3755 = vmatpush.msra.mxu0 %v3669
          %3756 = vmatpush.msra.mxu0 %v3667
          %3757 = vmatpush.msra.mxu0 %v3665
          %3758 = vmatpush.msra.mxu0 %v3663
          %3759 = vmatpush.msra.mxu0 %v3661
          %3760 = vmatpush.msra.mxu0 %v3659
          %3761 = vmatpush.msra.mxu0 %v3657
          %3762 = vmatpush.msra.mxu0 %v3655
          %3763 = vmatpush.msra.mxu0 %v3653
          %3764 = vmatpush.msra.mxu0 %v3651
          %3765 = vmatpush.msra.mxu0 %v3649
          %3766 = vmatpush.msra.mxu0 %v3647
          %3767 = vmatpush.msra.mxu0 %v3645
          %3768 = vmatmul.f32.gmra.mxu0 %v3483
          %v3769 = vpop.f32.mrf.mxu0
          %v3770 = vadd.f32 0.0, %v3769
          %3771 = vmatmul.f32.gmra.mxu0 %v3487
          %v3772 = vpop.f32.mrf.mxu0
          %v3773 = vadd.f32 0.0, %v3772
          %3774 = vmatmul.f32.gmra.mxu0 %v3491
          %v3775 = vpop.f32.mrf.mxu0
          %v3776 = vadd.f32 0.0, %v3775
          %3777 = vmatmul.f32.gmra.mxu0 %v3495
          %v3778 = vpop.f32.mrf.mxu0
          %v3779 = vadd.f32 0.0, %v3778
          %3780 = vmatmul.f32.gmra.mxu0 %v3499
          %v3781 = vpop.f32.mrf.mxu0
          %v3782 = vadd.f32 0.0, %v3781
          %3783 = vmatmul.f32.gmra.mxu0 %v3503
          %v3784 = vpop.f32.mrf.mxu0
          %v3785 = vadd.f32 0.0, %v3784
          %3786 = vmatmul.f32.gmra.mxu0 %v3507
          %v3787 = vpop.f32.mrf.mxu0
          %v3788 = vadd.f32 0.0, %v3787
          %3789 = vmatmul.f32.gmra.mxu0 %v3511
          %v3790 = vpop.f32.mrf.mxu0
          %v3791 = vadd.f32 0.0, %v3790
          %3792 = vmatmul.f32.gmra.mxu0 %v3515
          %v3793 = vpop.f32.mrf.mxu0
          %v3794 = vadd.f32 0.0, %v3793
          %3795 = vmatmul.f32.gmra.mxu0 %v3519
          %v3796 = vpop.f32.mrf.mxu0
          %v3797 = vadd.f32 0.0, %v3796
          %3798 = vmatmul.f32.gmra.mxu0 %v3523
          %v3799 = vpop.f32.mrf.mxu0
          %v3800 = vadd.f32 0.0, %v3799
          %3801 = vmatmul.f32.gmra.mxu0 %v3527
          %v3802 = vpop.f32.mrf.mxu0
          %v3803 = vadd.f32 0.0, %v3802
          %3804 = vmatmul.f32.gmra.mxu0 %v3531
          %v3805 = vpop.f32.mrf.mxu0
          %v3806 = vadd.f32 0.0, %v3805
          %3807 = vmatmul.f32.gmra.mxu0 %v3535
          %v3808 = vpop.f32.mrf.mxu0
          %v3809 = vadd.f32 0.0, %v3808
          %3810 = vmatmul.f32.gmra.mxu0 %v3539
          %v3811 = vpop.f32.mrf.mxu0
          %v3812 = vadd.f32 0.0, %v3811
          %3813 = vmatmul.f32.gmra.mxu0 %v3543
          %v3814 = vpop.f32.mrf.mxu0
          %v3815 = vadd.f32 0.0, %v3814
          %3816 = vmatmul.f32.gmra.mxu0 %v3547
          %v3817 = vpop.f32.mrf.mxu0
          %v3818 = vadd.f32 0.0, %v3817
          %3819 = vmatmul.f32.gmra.mxu0 %v3551
          %v3820 = vpop.f32.mrf.mxu0
          %v3821 = vadd.f32 0.0, %v3820
          %3822 = vdwg.mxu0
          %3823 = vmatpush.msra.mxu0 0.0
          %3824 = vmatpush.msra.mxu0 0.0
          %3825 = vmatpush.msra.mxu0 0.0
          %3826 = vmatpush.msra.mxu0 0.0
          %3827 = vmatpush.msra.mxu0 0.0
          %3828 = vmatpush.msra.mxu0 0.0
          %3829 = vmatpush.msra.mxu0 0.0
          %3830 = vmatpush.msra.mxu0 0.0
          %3831 = vmatpush.msra.mxu0 0.0
          %3832 = vmatpush.msra.mxu0 0.0
          %3833 = vmatpush.msra.mxu0 0.0
          %3834 = vmatpush.msra.mxu0 0.0
          %3835 = vmatpush.msra.mxu0 0.0
          %3836 = vmatpush.msra.mxu0 0.0
          %3837 = vmatpush.msra.mxu0 %v3679
          %3838 = vmatpush.msra.mxu0 %v3677
          %3839 = vmatmul.f32.gmra.mxu0 %v3699
          %v3840 = vpop.f32.mrf.mxu0
          %v3841 = vadd.f32 %v3770, %v3840
          %3842 = vmatmul.f32.gmra.mxu0 %v3702
          %v3843 = vpop.f32.mrf.mxu0
          %v3844 = vadd.f32 %v3773, %v3843
          %3845 = vmatmul.f32.gmra.mxu0 %v3705
          %v3846 = vpop.f32.mrf.mxu0
          %v3847 = vadd.f32 %v3776, %v3846
          %3848 = vmatmul.f32.gmra.mxu0 %v3708
          %v3849 = vpop.f32.mrf.mxu0
          %v3850 = vadd.f32 %v3779, %v3849
          %3851 = vmatmul.f32.gmra.mxu0 %v3711
          %v3852 = vpop.f32.mrf.mxu0
          %v3853 = vadd.f32 %v3782, %v3852
          %3854 = vmatmul.f32.gmra.mxu0 %v3714
          %v3855 = vpop.f32.mrf.mxu0
          %v3856 = vadd.f32 %v3785, %v3855
          %3857 = vmatmul.f32.gmra.mxu0 %v3717
          %v3858 = vpop.f32.mrf.mxu0
          %v3859 = vadd.f32 %v3788, %v3858
          %3860 = vmatmul.f32.gmra.mxu0 %v3720
          %v3861 = vpop.f32.mrf.mxu0
          %v3862 = vadd.f32 %v3791, %v3861
          %3863 = vmatmul.f32.gmra.mxu0 %v3723
          %v3864 = vpop.f32.mrf.mxu0
          %v3865 = vadd.f32 %v3794, %v3864
          %3866 = vmatmul.f32.gmra.mxu0 %v3726
          %v3867 = vpop.f32.mrf.mxu0
          %v3868 = vadd.f32 %v3797, %v3867
          %3869 = vmatmul.f32.gmra.mxu0 %v3729
          %v3870 = vpop.f32.mrf.mxu0
          %v3871 = vadd.f32 %v3800, %v3870
          %3872 = vmatmul.f32.gmra.mxu0 %v3732
          %v3873 = vpop.f32.mrf.mxu0
          %v3874 = vadd.f32 %v3803, %v3873
          %3875 = vmatmul.f32.gmra.mxu0 %v3735
          %v3876 = vpop.f32.mrf.mxu0
          %v3877 = vadd.f32 %v3806, %v3876
          %3878 = vmatmul.f32.gmra.mxu0 %v3738
          %v3879 = vpop.f32.mrf.mxu0
          %v3880 = vadd.f32 %v3809, %v3879
          %3881 = vmatmul.f32.gmra.mxu0 %v3741
          %v3882 = vpop.f32.mrf.mxu0
          %v3883 = vadd.f32 %v3812, %v3882
          %3884 = vmatmul.f32.gmra.mxu0 %v3744
          %v3885 = vpop.f32.mrf.mxu0
          %v3886 = vadd.f32 %v3815, %v3885
          %3887 = vmatmul.f32.gmra.mxu0 %v3747
          %v3888 = vpop.f32.mrf.mxu0
          %v3889 = vadd.f32 %v3818, %v3888
          %3890 = vmatmul.f32.gmra.mxu0 %v3750
          %v3891 = vpop.f32.mrf.mxu0
          %v3892 = vadd.f32 %v3821, %v3891
          %3893 = vdwg.mxu0
          %v3894 = vld [vmem:[%s3] sm:$0x1]
          %v3896 = vperm.slane %v3894, 0
          %3897 = vrot.lane.b32.xlu0 %v3896, 96
          %v3898 = vpop.permute.xlu0 %3897
          %v3900 = vmul.f32 %v3841, %v3898
          %v3901 = vmul.f32 %v3844, %v3898
          %v3902 = vmul.f32 %v3847, %v3898
          %v3903 = vmul.f32 %v3850, %v3898
          %v3904 = vmul.f32 %v3853, %v3898
          %v3905 = vmul.f32 %v3856, %v3898
          %v3906 = vmul.f32 %v3859, %v3898
          %v3907 = vmul.f32 %v3862, %v3898
          %v3908 = vmul.f32 %v3865, %v3898
          %v3909 = vmul.f32 %v3868, %v3898
          %v3910 = vmul.f32 %v3871, %v3898
          %v3911 = vmul.f32 %v3874, %v3898
          %v3912 = vmul.f32 %v3877, %v3898
          %v3913 = vmul.f32 %v3880, %v3898
          %v3914 = vmul.f32 %v3883, %v3898
          %v3915 = vmul.f32 %v3886, %v3898
          %v3916 = vmul.f32 %v3889, %v3898
          %v3917 = vmul.f32 %v3892, %v3898
          %v3918 = vsel %vm673, %v3900, 0.0
          %3919 = vadd.xlane.f32.xlu0 %v3918
          %v3920 = vpop.xlane.xlu0 %3919
          %v3921 = vsel %vm673, %v3901, 0.0
          %3922 = vadd.xlane.f32.xlu0 %v3921
          %v3923 = vpop.xlane.xlu0 %3922
          %v3924 = vsel %vm673, %v3902, 0.0
          %3925 = vadd.xlane.f32.xlu0 %v3924
          %v3926 = vpop.xlane.xlu0 %3925
          %v3927 = vsel %vm673, %v3903, 0.0
          %3928 = vadd.xlane.f32.xlu0 %v3927
          %v3929 = vpop.xlane.xlu0 %3928
          %v3930 = vsel %vm673, %v3904, 0.0
          %3931 = vadd.xlane.f32.xlu0 %v3930
          %v3932 = vpop.xlane.xlu0 %3931
          %v3933 = vsel %vm673, %v3905, 0.0
          %3934 = vadd.xlane.f32.xlu0 %v3933
          %v3935 = vpop.xlane.xlu0 %3934
          %v3936 = vsel %vm673, %v3906, 0.0
          %3937 = vadd.xlane.f32.xlu0 %v3936
          %v3938 = vpop.xlane.xlu0 %3937
          %v3939 = vsel %vm673, %v3907, 0.0
          %3940 = vadd.xlane.f32.xlu0 %v3939
          %v3941 = vpop.xlane.xlu0 %3940
          %v3942 = vsel %vm673, %v3908, 0.0
          %3943 = vadd.xlane.f32.xlu0 %v3942
          %v3944 = vpop.xlane.xlu0 %3943
          %v3945 = vsel %vm673, %v3909, 0.0
          %3946 = vadd.xlane.f32.xlu0 %v3945
          %v3947 = vpop.xlane.xlu0 %3946
          %v3948 = vsel %vm673, %v3910, 0.0
          %3949 = vadd.xlane.f32.xlu0 %v3948
          %v3950 = vpop.xlane.xlu0 %3949
          %v3951 = vsel %vm673, %v3911, 0.0
          %3952 = vadd.xlane.f32.xlu0 %v3951
          %v3953 = vpop.xlane.xlu0 %3952
          %v3954 = vsel %vm673, %v3912, 0.0
          %3955 = vadd.xlane.f32.xlu0 %v3954
          %v3956 = vpop.xlane.xlu0 %3955
          %v3957 = vsel %vm673, %v3913, 0.0
          %3958 = vadd.xlane.f32.xlu0 %v3957
          %v3959 = vpop.xlane.xlu0 %3958
          %v3960 = vsel %vm673, %v3914, 0.0
          %3961 = vadd.xlane.f32.xlu0 %v3960
          %v3962 = vpop.xlane.xlu0 %3961
          %v3963 = vsel %vm673, %v3915, 0.0
          %3964 = vadd.xlane.f32.xlu0 %v3963
          %v3965 = vpop.xlane.xlu0 %3964
          %v3966 = vsel %vm673, %v3916, 0.0
          %3967 = vadd.xlane.f32.xlu0 %v3966
          %v3968 = vpop.xlane.xlu0 %3967
          %v3969 = vsel %vm673, %v3917, 0.0
          %3970 = vadd.xlane.f32.xlu0 %v3969
          %v3971 = vpop.xlane.xlu0 %3970
          %v3972 = vrcp.pop %v3557
          %v3973 = vmul.f32 %v3557, %v3972
          %v3974 = vsub.f32 1.0, %v3973
          %v3975 = vmul.f32 %v3972, %v3974
          %v3976 = vadd.f32 %v3972, %v3975
          %vm3977 = vweird.f32 %v3557
          %vm3978 = vweird.f32 %v3972
          %vm3979 = vmor %vm3977, %vm3978
          %v3980 = vsel %vm3979, %v3972, %v3976
          %v3981 = vand.u32 2147483647, %v3557
          %vm3982 = vcmp.eq.f32.partialorder %v3981, 8.507059e+37
          %v3983 = vand.u32 %v3557, 2147483648
          %v3984 = vor.u32 1.1754944e-38, %v3983
          %v3985 = vsel %vm3982, %v3984, %v3980
          %v3986 = vmul.f32 %v3920, %v3985
          %v3987 = vrcp.pop %v3561
          %v3988 = vmul.f32 %v3561, %v3987
          %v3989 = vsub.f32 1.0, %v3988
          %v3990 = vmul.f32 %v3987, %v3989
          %v3991 = vadd.f32 %v3987, %v3990
          %vm3992 = vweird.f32 %v3561
          %vm3993 = vweird.f32 %v3987
          %vm3994 = vmor %vm3992, %vm3993
          %v3995 = vsel %vm3994, %v3987, %v3991
          %v3996 = vand.u32 2147483647, %v3561
          %vm3997 = vcmp.eq.f32.partialorder %v3996, 8.507059e+37
          %v3998 = vand.u32 %v3561, 2147483648
          %v3999 = vor.u32 1.1754944e-38, %v3998
          %v4000 = vsel %vm3997, %v3999, %v3995
          %v4001 = vmul.f32 %v3923, %v4000
          %v4002 = vrcp.pop %v3565
          %v4003 = vmul.f32 %v3565, %v4002
          %v4004 = vsub.f32 1.0, %v4003
          %v4005 = vmul.f32 %v4002, %v4004
          %v4006 = vadd.f32 %v4002, %v4005
          %vm4007 = vweird.f32 %v3565
          %vm4008 = vweird.f32 %v4002
          %vm4009 = vmor %vm4007, %vm4008
          %v4010 = vsel %vm4009, %v4002, %v4006
          %v4011 = vand.u32 2147483647, %v3565
          %vm4012 = vcmp.eq.f32.partialorder %v4011, 8.507059e+37
          %v4013 = vand.u32 %v3565, 2147483648
          %v4014 = vor.u32 1.1754944e-38, %v4013
          %v4015 = vsel %vm4012, %v4014, %v4010
          %v4016 = vmul.f32 %v3926, %v4015
          %v4017 = vrcp.pop %v3569
          %v4018 = vmul.f32 %v3569, %v4017
          %v4019 = vsub.f32 1.0, %v4018
          %v4020 = vmul.f32 %v4017, %v4019
          %v4021 = vadd.f32 %v4017, %v4020
          %vm4022 = vweird.f32 %v3569
          %vm4023 = vweird.f32 %v4017
          %vm4024 = vmor %vm4022, %vm4023
          %v4025 = vsel %vm4024, %v4017, %v4021
          %v4026 = vand.u32 2147483647, %v3569
          %vm4027 = vcmp.eq.f32.partialorder %v4026, 8.507059e+37
          %v4028 = vand.u32 %v3569, 2147483648
          %v4029 = vor.u32 1.1754944e-38, %v4028
          %v4030 = vsel %vm4027, %v4029, %v4025
          %v4031 = vmul.f32 %v3929, %v4030
          %v4032 = vrcp.pop %v3573
          %v4033 = vmul.f32 %v3573, %v4032
          %v4034 = vsub.f32 1.0, %v4033
          %v4035 = vmul.f32 %v4032, %v4034
          %v4036 = vadd.f32 %v4032, %v4035
          %vm4037 = vweird.f32 %v3573
          %vm4038 = vweird.f32 %v4032
          %vm4039 = vmor %vm4037, %vm4038
          %v4040 = vsel %vm4039, %v4032, %v4036
          %v4041 = vand.u32 2147483647, %v3573
          %vm4042 = vcmp.eq.f32.partialorder %v4041, 8.507059e+37
          %v4043 = vand.u32 %v3573, 2147483648
          %v4044 = vor.u32 1.1754944e-38, %v4043
          %v4045 = vsel %vm4042, %v4044, %v4040
          %v4046 = vmul.f32 %v3932, %v4045
          %v4047 = vrcp.pop %v3577
          %v4048 = vmul.f32 %v3577, %v4047
          %v4049 = vsub.f32 1.0, %v4048
          %v4050 = vmul.f32 %v4047, %v4049
          %v4051 = vadd.f32 %v4047, %v4050
          %vm4052 = vweird.f32 %v3577
          %vm4053 = vweird.f32 %v4047
          %vm4054 = vmor %vm4052, %vm4053
          %v4055 = vsel %vm4054, %v4047, %v4051
          %v4056 = vand.u32 2147483647, %v3577
          %vm4057 = vcmp.eq.f32.partialorder %v4056, 8.507059e+37
          %v4058 = vand.u32 %v3577, 2147483648
          %v4059 = vor.u32 1.1754944e-38, %v4058
          %v4060 = vsel %vm4057, %v4059, %v4055
          %v4061 = vmul.f32 %v3935, %v4060
          %v4062 = vrcp.pop %v3581
          %v4063 = vmul.f32 %v3581, %v4062
          %v4064 = vsub.f32 1.0, %v4063
          %v4065 = vmul.f32 %v4062, %v4064
          %v4066 = vadd.f32 %v4062, %v4065
          %vm4067 = vweird.f32 %v3581
          %vm4068 = vweird.f32 %v4062
          %vm4069 = vmor %vm4067, %vm4068
          %v4070 = vsel %vm4069, %v4062, %v4066
          %v4071 = vand.u32 2147483647, %v3581
          %vm4072 = vcmp.eq.f32.partialorder %v4071, 8.507059e+37
          %v4073 = vand.u32 %v3581, 2147483648
          %v4074 = vor.u32 1.1754944e-38, %v4073
          %v4075 = vsel %vm4072, %v4074, %v4070
          %v4076 = vmul.f32 %v3938, %v4075
          %v4077 = vrcp.pop %v3585
          %v4078 = vmul.f32 %v3585, %v4077
          %v4079 = vsub.f32 1.0, %v4078
          %v4080 = vmul.f32 %v4077, %v4079
          %v4081 = vadd.f32 %v4077, %v4080
          %vm4082 = vweird.f32 %v3585
          %vm4083 = vweird.f32 %v4077
          %vm4084 = vmor %vm4082, %vm4083
          %v4085 = vsel %vm4084, %v4077, %v4081
          %v4086 = vand.u32 2147483647, %v3585
          %vm4087 = vcmp.eq.f32.partialorder %v4086, 8.507059e+37
          %v4088 = vand.u32 %v3585, 2147483648
          %v4089 = vor.u32 1.1754944e-38, %v4088
          %v4090 = vsel %vm4087, %v4089, %v4085
          %v4091 = vmul.f32 %v3941, %v4090
          %v4092 = vrcp.pop %v3589
          %v4093 = vmul.f32 %v3589, %v4092
          %v4094 = vsub.f32 1.0, %v4093
          %v4095 = vmul.f32 %v4092, %v4094
          %v4096 = vadd.f32 %v4092, %v4095
          %vm4097 = vweird.f32 %v3589
          %vm4098 = vweird.f32 %v4092
          %vm4099 = vmor %vm4097, %vm4098
          %v4100 = vsel %vm4099, %v4092, %v4096
          %v4101 = vand.u32 2147483647, %v3589
          %vm4102 = vcmp.eq.f32.partialorder %v4101, 8.507059e+37
          %v4103 = vand.u32 %v3589, 2147483648
          %v4104 = vor.u32 1.1754944e-38, %v4103
          %v4105 = vsel %vm4102, %v4104, %v4100
          %v4106 = vmul.f32 %v3944, %v4105
          %v4107 = vrcp.pop %v3593
          %v4108 = vmul.f32 %v3593, %v4107
          %v4109 = vsub.f32 1.0, %v4108
          %v4110 = vmul.f32 %v4107, %v4109
          %v4111 = vadd.f32 %v4107, %v4110
          %vm4112 = vweird.f32 %v3593
          %vm4113 = vweird.f32 %v4107
          %vm4114 = vmor %vm4112, %vm4113
          %v4115 = vsel %vm4114, %v4107, %v4111
          %v4116 = vand.u32 2147483647, %v3593
          %vm4117 = vcmp.eq.f32.partialorder %v4116, 8.507059e+37
          %v4118 = vand.u32 %v3593, 2147483648
          %v4119 = vor.u32 1.1754944e-38, %v4118
          %v4120 = vsel %vm4117, %v4119, %v4115
          %v4121 = vmul.f32 %v3947, %v4120
          %v4122 = vrcp.pop %v3597
          %v4123 = vmul.f32 %v3597, %v4122
          %v4124 = vsub.f32 1.0, %v4123
          %v4125 = vmul.f32 %v4122, %v4124
          %v4126 = vadd.f32 %v4122, %v4125
          %vm4127 = vweird.f32 %v3597
          %vm4128 = vweird.f32 %v4122
          %vm4129 = vmor %vm4127, %vm4128
          %v4130 = vsel %vm4129, %v4122, %v4126
          %v4131 = vand.u32 2147483647, %v3597
          %vm4132 = vcmp.eq.f32.partialorder %v4131, 8.507059e+37
          %v4133 = vand.u32 %v3597, 2147483648
          %v4134 = vor.u32 1.1754944e-38, %v4133
          %v4135 = vsel %vm4132, %v4134, %v4130
          %v4136 = vmul.f32 %v3950, %v4135
          %v4137 = vrcp.pop %v3601
          %v4138 = vmul.f32 %v3601, %v4137
          %v4139 = vsub.f32 1.0, %v4138
          %v4140 = vmul.f32 %v4137, %v4139
          %v4141 = vadd.f32 %v4137, %v4140
          %vm4142 = vweird.f32 %v3601
          %vm4143 = vweird.f32 %v4137
          %vm4144 = vmor %vm4142, %vm4143
          %v4145 = vsel %vm4144, %v4137, %v4141
          %v4146 = vand.u32 2147483647, %v3601
          %vm4147 = vcmp.eq.f32.partialorder %v4146, 8.507059e+37
          %v4148 = vand.u32 %v3601, 2147483648
          %v4149 = vor.u32 1.1754944e-38, %v4148
          %v4150 = vsel %vm4147, %v4149, %v4145
          %v4151 = vmul.f32 %v3953, %v4150
          %v4152 = vrcp.pop %v3605
          %v4153 = vmul.f32 %v3605, %v4152
          %v4154 = vsub.f32 1.0, %v4153
          %v4155 = vmul.f32 %v4152, %v4154
          %v4156 = vadd.f32 %v4152, %v4155
          %vm4157 = vweird.f32 %v3605
          %vm4158 = vweird.f32 %v4152
          %vm4159 = vmor %vm4157, %vm4158
          %v4160 = vsel %vm4159, %v4152, %v4156
          %v4161 = vand.u32 2147483647, %v3605
          %vm4162 = vcmp.eq.f32.partialorder %v4161, 8.507059e+37
          %v4163 = vand.u32 %v3605, 2147483648
          %v4164 = vor.u32 1.1754944e-38, %v4163
          %v4165 = vsel %vm4162, %v4164, %v4160
          %v4166 = vmul.f32 %v3956, %v4165
          %v4167 = vrcp.pop %v3609
          %v4168 = vmul.f32 %v3609, %v4167
          %v4169 = vsub.f32 1.0, %v4168
          %v4170 = vmul.f32 %v4167, %v4169
          %v4171 = vadd.f32 %v4167, %v4170
          %vm4172 = vweird.f32 %v3609
          %vm4173 = vweird.f32 %v4167
          %vm4174 = vmor %vm4172, %vm4173
          %v4175 = vsel %vm4174, %v4167, %v4171
          %v4176 = vand.u32 2147483647, %v3609
          %vm4177 = vcmp.eq.f32.partialorder %v4176, 8.507059e+37
          %v4178 = vand.u32 %v3609, 2147483648
          %v4179 = vor.u32 1.1754944e-38, %v4178
          %v4180 = vsel %vm4177, %v4179, %v4175
          %v4181 = vmul.f32 %v3959, %v4180
          %v4182 = vrcp.pop %v3613
          %v4183 = vmul.f32 %v3613, %v4182
          %v4184 = vsub.f32 1.0, %v4183
          %v4185 = vmul.f32 %v4182, %v4184
          %v4186 = vadd.f32 %v4182, %v4185
          %vm4187 = vweird.f32 %v3613
          %vm4188 = vweird.f32 %v4182
          %vm4189 = vmor %vm4187, %vm4188
          %v4190 = vsel %vm4189, %v4182, %v4186
          %v4191 = vand.u32 2147483647, %v3613
          %vm4192 = vcmp.eq.f32.partialorder %v4191, 8.507059e+37
          %v4193 = vand.u32 %v3613, 2147483648
          %v4194 = vor.u32 1.1754944e-38, %v4193
          %v4195 = vsel %vm4192, %v4194, %v4190
          %v4196 = vmul.f32 %v3962, %v4195
          %v4197 = vrcp.pop %v3617
          %v4198 = vmul.f32 %v3617, %v4197
          %v4199 = vsub.f32 1.0, %v4198
          %v4200 = vmul.f32 %v4197, %v4199
          %v4201 = vadd.f32 %v4197, %v4200
          %vm4202 = vweird.f32 %v3617
          %vm4203 = vweird.f32 %v4197
          %vm4204 = vmor %vm4202, %vm4203
          %v4205 = vsel %vm4204, %v4197, %v4201
          %v4206 = vand.u32 2147483647, %v3617
          %vm4207 = vcmp.eq.f32.partialorder %v4206, 8.507059e+37
          %v4208 = vand.u32 %v3617, 2147483648
          %v4209 = vor.u32 1.1754944e-38, %v4208
          %v4210 = vsel %vm4207, %v4209, %v4205
          %v4211 = vmul.f32 %v3965, %v4210
          %v4212 = vrcp.pop %v3621
          %v4213 = vmul.f32 %v3621, %v4212
          %v4214 = vsub.f32 1.0, %v4213
          %v4215 = vmul.f32 %v4212, %v4214
          %v4216 = vadd.f32 %v4212, %v4215
          %vm4217 = vweird.f32 %v3621
          %vm4218 = vweird.f32 %v4212
          %vm4219 = vmor %vm4217, %vm4218
          %v4220 = vsel %vm4219, %v4212, %v4216
          %v4221 = vand.u32 2147483647, %v3621
          %vm4222 = vcmp.eq.f32.partialorder %v4221, 8.507059e+37
          %v4223 = vand.u32 %v3621, 2147483648
          %v4224 = vor.u32 1.1754944e-38, %v4223
          %v4225 = vsel %vm4222, %v4224, %v4220
          %v4226 = vmul.f32 %v3968, %v4225
          %v4227 = vrcp.pop %v3625
          %v4228 = vmul.f32 %v3625, %v4227
          %v4229 = vsub.f32 1.0, %v4228
          %v4230 = vmul.f32 %v4227, %v4229
          %v4231 = vadd.f32 %v4227, %v4230
          %vm4232 = vweird.f32 %v3625
          %vm4233 = vweird.f32 %v4227
          %vm4234 = vmor %vm4232, %vm4233
          %v4235 = vsel %vm4234, %v4227, %v4231
          %v4236 = vand.u32 2147483647, %v3625
          %vm4237 = vcmp.eq.f32.partialorder %v4236, 8.507059e+37
          %v4238 = vand.u32 %v3625, 2147483648
          %v4239 = vor.u32 1.1754944e-38, %v4238
          %v4240 = vsel %vm4237, %v4239, %v4235
          %v4241 = vmul.f32 %v3971, %v4240
          %v4242 = vadd.f32 %v2980, %v3986
          %v4243 = vadd.f32 %v2981, %v4001
          %v4244 = vadd.f32 %v2982, %v4016
          %v4245 = vadd.f32 %v2983, %v4031
          %v4246 = vadd.f32 %v2984, %v4046
          %v4247 = vadd.f32 %v2985, %v4061
          %v4248 = vadd.f32 %v2986, %v4076
          %v4249 = vadd.f32 %v2987, %v4091
          %v4250 = vadd.f32 %v2988, %v4106
          %v4251 = vadd.f32 %v2989, %v4121
          %v4252 = vadd.f32 %v2990, %v4136
          %v4253 = vadd.f32 %v2991, %v4151
          %v4254 = vadd.f32 %v2992, %v4166
          %v4255 = vadd.f32 %v2993, %v4181
          %v4256 = vadd.f32 %v2994, %v4196
          %v4257 = vadd.f32 %v2995, %v4211
          %v4258 = vadd.f32 %v2996, %v4226
          %v4259 = vadd.f32 %v2997, %v4241
          %v4260 = vld [vmem:[#allocation2] sm:$0xff]
          %v4261 = vld [vmem:[#allocation2 + $0x18] sm:$0xff]
          %v4262 = vld [vmem:[#allocation2 + $0x30] sm:$0xff]
          %v4263 = vld [vmem:[#allocation2 + $0x48] sm:$0xff]
          %v4264 = vld [vmem:[#allocation2 + $0x60] sm:$0xff]
          %v4265 = vld [vmem:[#allocation2 + $0x78] sm:$0xff]
          %v4266 = vld [vmem:[#allocation2 + $0x90] sm:$0xff]
          %v4267 = vld [vmem:[#allocation2 + $0xa8] sm:$0xff]
          %v4268 = vld [vmem:[#allocation2 + $0xc0] sm:$0xff]
          %v4269 = vld [vmem:[#allocation2 + $0xd8] sm:$0xff]
          %v4270 = vld [vmem:[#allocation2 + $0xf0] sm:$0xff]
          %v4271 = vld [vmem:[#allocation2 + $0x108] sm:$0xff]
          %v4272 = vld [vmem:[#allocation2 + $0x120] sm:$0xff]
          %v4273 = vld [vmem:[#allocation2 + $0x138] sm:$0xff]
          %v4274 = vld [vmem:[#allocation2 + $0x150] sm:$0xff]
          %v4275 = vld [vmem:[#allocation2 + $0x168] sm:$0xff]
          %v4276 = vld [vmem:[#allocation2 + $0x180] sm:$0xff]
          %v4277 = vld [vmem:[#allocation2 + $0x198] sm:$0xff]
          %v4278 = vld [vmem:[#allocation2 + $0x8] sm:$0xff]
          %v4279 = vld [vmem:[#allocation2 + $0x20] sm:$0xff]
          %v4280 = vld [vmem:[#allocation2 + $0x38] sm:$0xff]
          %v4281 = vld [vmem:[#allocation2 + $0x50] sm:$0xff]
          %v4282 = vld [vmem:[#allocation2 + $0x68] sm:$0xff]
          %v4283 = vld [vmem:[#allocation2 + $0x80] sm:$0xff]
          %v4284 = vld [vmem:[#allocation2 + $0x98] sm:$0xff]
          %v4285 = vld [vmem:[#allocation2 + $0xb0] sm:$0xff]
          %v4286 = vld [vmem:[#allocation2 + $0xc8] sm:$0xff]
          %v4287 = vld [vmem:[#allocation2 + $0xe0] sm:$0xff]
          %v4288 = vld [vmem:[#allocation2 + $0xf8] sm:$0xff]
          %v4289 = vld [vmem:[#allocation2 + $0x110] sm:$0xff]
          %v4290 = vld [vmem:[#allocation2 + $0x128] sm:$0xff]
          %v4291 = vld [vmem:[#allocation2 + $0x140] sm:$0xff]
          %v4292 = vld [vmem:[#allocation2 + $0x158] sm:$0xff]
          %v4293 = vld [vmem:[#allocation2 + $0x170] sm:$0xff]
          %v4294 = vld [vmem:[#allocation2 + $0x188] sm:$0xff]
          %v4295 = vld [vmem:[#allocation2 + $0x1a0] sm:$0xff]
          %v4296 = vld [vmem:[#allocation2 + $0x10] sm:$0xff]
          %v4297 = vld [vmem:[#allocation2 + $0x28] sm:$0xff]
          %v4298 = vld [vmem:[#allocation2 + $0x40] sm:$0xff]
          %v4299 = vld [vmem:[#allocation2 + $0x58] sm:$0xff]
          %v4300 = vld [vmem:[#allocation2 + $0x70] sm:$0xff]
          %v4301 = vld [vmem:[#allocation2 + $0x88] sm:$0xff]
          %v4302 = vld [vmem:[#allocation2 + $0xa0] sm:$0xff]
          %v4303 = vld [vmem:[#allocation2 + $0xb8] sm:$0xff]
          %v4304 = vld [vmem:[#allocation2 + $0xd0] sm:$0xff]
          %v4305 = vld [vmem:[#allocation2 + $0xe8] sm:$0xff]
          %v4306 = vld [vmem:[#allocation2 + $0x100] sm:$0xff]
          %v4307 = vld [vmem:[#allocation2 + $0x118] sm:$0xff]
          %v4308 = vld [vmem:[#allocation2 + $0x130] sm:$0xff]
          %v4309 = vld [vmem:[#allocation2 + $0x148] sm:$0xff]
          %v4310 = vld [vmem:[#allocation2 + $0x160] sm:$0xff]
          %v4311 = vld [vmem:[#allocation2 + $0x178] sm:$0xff]
          %v4312 = vld [vmem:[#allocation2 + $0x190] sm:$0xff]
          %v4313 = vld [vmem:[#allocation2 + $0x1a8] sm:$0xff]
          %4332 = vrot.lane.b32.xlu0 %v4260, 80
          %v4333 = vpop.permute.xlu0 %4332
          %4334 = vrot.lane.b32.xlu0 %v4261, 80
          %v4335 = vpop.permute.xlu0 %4334
          %4336 = vrot.lane.b32.xlu0 %v4262, 80
          %v4337 = vpop.permute.xlu0 %4336
          %4338 = vrot.lane.b32.xlu0 %v4263, 80
          %v4339 = vpop.permute.xlu0 %4338
          %4340 = vrot.lane.b32.xlu0 %v4264, 80
          %v4341 = vpop.permute.xlu0 %4340
          %4342 = vrot.lane.b32.xlu0 %v4265, 80
          %v4343 = vpop.permute.xlu0 %4342
          %4344 = vrot.lane.b32.xlu0 %v4266, 80
          %v4345 = vpop.permute.xlu0 %4344
          %4346 = vrot.lane.b32.xlu0 %v4267, 80
          %v4347 = vpop.permute.xlu0 %4346
          %4348 = vrot.lane.b32.xlu0 %v4268, 80
          %v4349 = vpop.permute.xlu0 %4348
          %4350 = vrot.lane.b32.xlu0 %v4269, 80
          %v4351 = vpop.permute.xlu0 %4350
          %4352 = vrot.lane.b32.xlu0 %v4270, 80
          %v4353 = vpop.permute.xlu0 %4352
          %4354 = vrot.lane.b32.xlu0 %v4271, 80
          %v4355 = vpop.permute.xlu0 %4354
          %4356 = vrot.lane.b32.xlu0 %v4272, 80
          %v4357 = vpop.permute.xlu0 %4356
          %4358 = vrot.lane.b32.xlu0 %v4273, 80
          %v4359 = vpop.permute.xlu0 %4358
          %4360 = vrot.lane.b32.xlu0 %v4274, 80
          %v4361 = vpop.permute.xlu0 %4360
          %4362 = vrot.lane.b32.xlu0 %v4275, 80
          %v4363 = vpop.permute.xlu0 %4362
          %4364 = vrot.lane.b32.xlu0 %v4276, 80
          %v4365 = vpop.permute.xlu0 %4364
          %4366 = vrot.lane.b32.xlu0 %v4277, 80
          %v4367 = vpop.permute.xlu0 %4366
          %4386 = vrot.lane.b32.xlu0 %v4278, 80
          %v4387 = vpop.permute.xlu0 %4386
          %4388 = vrot.lane.b32.xlu0 %v4279, 80
          %v4389 = vpop.permute.xlu0 %4388
          %4390 = vrot.lane.b32.xlu0 %v4280, 80
          %v4391 = vpop.permute.xlu0 %4390
          %4392 = vrot.lane.b32.xlu0 %v4281, 80
          %v4393 = vpop.permute.xlu0 %4392
          %4394 = vrot.lane.b32.xlu0 %v4282, 80
          %v4395 = vpop.permute.xlu0 %4394
          %4396 = vrot.lane.b32.xlu0 %v4283, 80
          %v4397 = vpop.permute.xlu0 %4396
          %4398 = vrot.lane.b32.xlu0 %v4284, 80
          %v4399 = vpop.permute.xlu0 %4398
          %4400 = vrot.lane.b32.xlu0 %v4285, 80
          %v4401 = vpop.permute.xlu0 %4400
          %4402 = vrot.lane.b32.xlu0 %v4286, 80
          %v4403 = vpop.permute.xlu0 %4402
          %4404 = vrot.lane.b32.xlu0 %v4287, 80
          %v4405 = vpop.permute.xlu0 %4404
          %4406 = vrot.lane.b32.xlu0 %v4288, 80
          %v4407 = vpop.permute.xlu0 %4406
          %4408 = vrot.lane.b32.xlu0 %v4289, 80
          %v4409 = vpop.permute.xlu0 %4408
          %4410 = vrot.lane.b32.xlu0 %v4290, 80
          %v4411 = vpop.permute.xlu0 %4410
          %4412 = vrot.lane.b32.xlu0 %v4291, 80
          %v4413 = vpop.permute.xlu0 %4412
          %4414 = vrot.lane.b32.xlu0 %v4292, 80
          %v4415 = vpop.permute.xlu0 %4414
          %4416 = vrot.lane.b32.xlu0 %v4293, 80
          %v4417 = vpop.permute.xlu0 %4416
          %4418 = vrot.lane.b32.xlu0 %v4294, 80
          %v4419 = vpop.permute.xlu0 %4418
          %4420 = vrot.lane.b32.xlu0 %v4295, 80
          %v4421 = vpop.permute.xlu0 %4420
          %v4422 = vsel %vm673, %v4333, 0
          %v4424 = vsel %vm673, %v4335, 0
          %v4426 = vsel %vm673, %v4337, 0
          %v4428 = vsel %vm673, %v4339, 0
          %v4430 = vsel %vm673, %v4341, 0
          %v4432 = vsel %vm673, %v4343, 0
          %v4434 = vsel %vm673, %v4345, 0
          %v4436 = vsel %vm673, %v4347, 0
          %v4438 = vsel %vm673, %v4349, 0
          %v4440 = vsel %vm673, %v4351, 0
          %v4442 = vsel %vm673, %v4353, 0
          %v4444 = vsel %vm673, %v4355, 0
          %v4446 = vsel %vm673, %v4357, 0
          %v4448 = vsel %vm673, %v4359, 0
          %v4450 = vsel %vm673, %v4361, 0
          %v4452 = vsel %vm673, %v4363, 0
          %v4454 = vsel %vm673, %v4365, 0
          %v4456 = vsel %vm673, %v4367, 0
          %v4458 = vsel %vm673, %v4387, 0
          %v4460 = vsel %vm673, %v4389, 0
          %v4462 = vsel %vm673, %v4391, 0
          %v4464 = vsel %vm673, %v4393, 0
          %v4466 = vsel %vm673, %v4395, 0
          %v4468 = vsel %vm673, %v4397, 0
          %v4470 = vsel %vm673, %v4399, 0
          %v4472 = vsel %vm673, %v4401, 0
          %v4474 = vsel %vm673, %v4403, 0
          %v4476 = vsel %vm673, %v4405, 0
          %v4478 = vsel %vm673, %v4407, 0
          %v4480 = vsel %vm673, %v4409, 0
          %v4482 = vsel %vm673, %v4411, 0
          %v4484 = vsel %vm673, %v4413, 0
          %v4486 = vsel %vm673, %v4415, 0
          %v4488 = vsel %vm673, %v4417, 0
          %v4490 = vsel %vm673, %v4419, 0
          %v4492 = vsel %vm673, %v4421, 0
          %4494 = vmatpush.xpose.msra.mxu0 %v4488
          %4495 = vmatpush.xpose.msra.mxu0 %v4486
          %4496 = vmatpush.xpose.msra.mxu0 %v4484
          %4497 = vmatpush.xpose.msra.mxu0 %v4482
          %4498 = vmatpush.xpose.msra.mxu0 %v4480
          %4499 = vmatpush.xpose.msra.mxu0 %v4478
          %4500 = vmatpush.xpose.msra.mxu0 %v4476
          %4501 = vmatpush.xpose.msra.mxu0 %v4474
          %4502 = vmatpush.xpose.msra.mxu0 %v4472
          %4503 = vmatpush.xpose.msra.mxu0 %v4470
          %4504 = vmatpush.xpose.msra.mxu0 %v4468
          %4505 = vmatpush.xpose.msra.mxu0 %v4466
          %4506 = vmatpush.xpose.msra.mxu0 %v4464
          %4507 = vmatpush.xpose.msra.mxu0 %v4462
          %4508 = vmatpush.xpose.msra.mxu0 %v4460
          %4509 = vmatpush.xpose.msra.mxu0 %v4458
          %4510 = vmatmul.f32.gmra.mxu0 %v4422
          %v4511 = vpop.f32.mrf.mxu0
          %v4512 = vadd.f32 0.0, %v4511
          %4513 = vmatmul.f32.gmra.mxu0 %v4424
          %v4514 = vpop.f32.mrf.mxu0
          %v4515 = vadd.f32 0.0, %v4514
          %4516 = vmatmul.f32.gmra.mxu0 %v4426
          %v4517 = vpop.f32.mrf.mxu0
          %v4518 = vadd.f32 0.0, %v4517
          %4519 = vmatmul.f32.gmra.mxu0 %v4428
          %v4520 = vpop.f32.mrf.mxu0
          %v4521 = vadd.f32 0.0, %v4520
          %4522 = vmatmul.f32.gmra.mxu0 %v4430
          %v4523 = vpop.f32.mrf.mxu0
          %v4524 = vadd.f32 0.0, %v4523
          %4525 = vmatmul.f32.gmra.mxu0 %v4432
          %v4526 = vpop.f32.mrf.mxu0
          %v4527 = vadd.f32 0.0, %v4526
          %4528 = vmatmul.f32.gmra.mxu0 %v4434
          %v4529 = vpop.f32.mrf.mxu0
          %v4530 = vadd.f32 0.0, %v4529
          %4531 = vmatmul.f32.gmra.mxu0 %v4436
          %v4532 = vpop.f32.mrf.mxu0
          %v4533 = vadd.f32 0.0, %v4532
          %4534 = vmatmul.f32.gmra.mxu0 %v4438
          %v4535 = vpop.f32.mrf.mxu0
          %v4536 = vadd.f32 0.0, %v4535
          %4537 = vmatmul.f32.gmra.mxu0 %v4440
          %v4538 = vpop.f32.mrf.mxu0
          %v4539 = vadd.f32 0.0, %v4538
          %4540 = vmatmul.f32.gmra.mxu0 %v4442
          %v4541 = vpop.f32.mrf.mxu0
          %v4542 = vadd.f32 0.0, %v4541
          %4543 = vmatmul.f32.gmra.mxu0 %v4444
          %v4544 = vpop.f32.mrf.mxu0
          %v4545 = vadd.f32 0.0, %v4544
          %4546 = vmatmul.f32.gmra.mxu0 %v4446
          %v4547 = vpop.f32.mrf.mxu0
          %v4548 = vadd.f32 0.0, %v4547
          %4549 = vmatmul.f32.gmra.mxu0 %v4448
          %v4550 = vpop.f32.mrf.mxu0
          %v4551 = vadd.f32 0.0, %v4550
          %4552 = vmatmul.f32.gmra.mxu0 %v4450
          %v4553 = vpop.f32.mrf.mxu0
          %v4554 = vadd.f32 0.0, %v4553
          %4555 = vmatmul.f32.gmra.mxu0 %v4452
          %v4556 = vpop.f32.mrf.mxu0
          %v4557 = vadd.f32 0.0, %v4556
          %4558 = vmatmul.f32.gmra.mxu0 %v4454
          %v4559 = vpop.f32.mrf.mxu0
          %v4560 = vadd.f32 0.0, %v4559
          %4561 = vmatmul.f32.gmra.mxu0 %v4456
          %v4562 = vpop.f32.mrf.mxu0
          %v4563 = vadd.f32 0.0, %v4562
          %4564 = vdwg.mxu0
          %4565 = vmatpush.xpose.msra.mxu0 0.0
          %4566 = vmatpush.xpose.msra.mxu0 0.0
          %4567 = vmatpush.xpose.msra.mxu0 0.0
          %4568 = vmatpush.xpose.msra.mxu0 0.0
          %4569 = vmatpush.xpose.msra.mxu0 0.0
          %4570 = vmatpush.xpose.msra.mxu0 0.0
          %4571 = vmatpush.xpose.msra.mxu0 0.0
          %4572 = vmatpush.xpose.msra.mxu0 0.0
          %4573 = vmatpush.xpose.msra.mxu0 0.0
          %4574 = vmatpush.xpose.msra.mxu0 0.0
          %4575 = vmatpush.xpose.msra.mxu0 0.0
          %4576 = vmatpush.xpose.msra.mxu0 0.0
          %4577 = vmatpush.xpose.msra.mxu0 0.0
          %4578 = vmatpush.xpose.msra.mxu0 0.0
          %4579 = vmatpush.xpose.msra.mxu0 %v4492
          %4580 = vmatpush.xpose.msra.mxu0 %v4490
          %4581 = vmatmul.f32.gmra.mxu0 %v4422
          %v4582 = vpop.f32.mrf.mxu0
          %v4583 = vadd.f32 0.0, %v4582
          %4584 = vmatmul.f32.gmra.mxu0 %v4424
          %v4585 = vpop.f32.mrf.mxu0
          %v4586 = vadd.f32 0.0, %v4585
          %4587 = vmatmul.f32.gmra.mxu0 %v4426
          %v4588 = vpop.f32.mrf.mxu0
          %v4589 = vadd.f32 0.0, %v4588
          %4590 = vmatmul.f32.gmra.mxu0 %v4428
          %v4591 = vpop.f32.mrf.mxu0
          %v4592 = vadd.f32 0.0, %v4591
          %4593 = vmatmul.f32.gmra.mxu0 %v4430
          %v4594 = vpop.f32.mrf.mxu0
          %v4595 = vadd.f32 0.0, %v4594
          %4596 = vmatmul.f32.gmra.mxu0 %v4432
          %v4597 = vpop.f32.mrf.mxu0
          %v4598 = vadd.f32 0.0, %v4597
          %4599 = vmatmul.f32.gmra.mxu0 %v4434
          %v4600 = vpop.f32.mrf.mxu0
          %v4601 = vadd.f32 0.0, %v4600
          %4602 = vmatmul.f32.gmra.mxu0 %v4436
          %v4603 = vpop.f32.mrf.mxu0
          %v4604 = vadd.f32 0.0, %v4603
          %4605 = vmatmul.f32.gmra.mxu0 %v4438
          %v4606 = vpop.f32.mrf.mxu0
          %v4607 = vadd.f32 0.0, %v4606
          %4608 = vmatmul.f32.gmra.mxu0 %v4440
          %v4609 = vpop.f32.mrf.mxu0
          %v4610 = vadd.f32 0.0, %v4609
          %4611 = vmatmul.f32.gmra.mxu0 %v4442
          %v4612 = vpop.f32.mrf.mxu0
          %v4613 = vadd.f32 0.0, %v4612
          %4614 = vmatmul.f32.gmra.mxu0 %v4444
          %v4615 = vpop.f32.mrf.mxu0
          %v4616 = vadd.f32 0.0, %v4615
          %4617 = vmatmul.f32.gmra.mxu0 %v4446
          %v4618 = vpop.f32.mrf.mxu0
          %v4619 = vadd.f32 0.0, %v4618
          %4620 = vmatmul.f32.gmra.mxu0 %v4448
          %v4621 = vpop.f32.mrf.mxu0
          %v4622 = vadd.f32 0.0, %v4621
          %4623 = vmatmul.f32.gmra.mxu0 %v4450
          %v4624 = vpop.f32.mrf.mxu0
          %v4625 = vadd.f32 0.0, %v4624
          %4626 = vmatmul.f32.gmra.mxu0 %v4452
          %v4627 = vpop.f32.mrf.mxu0
          %v4628 = vadd.f32 0.0, %v4627
          %4629 = vmatmul.f32.gmra.mxu0 %v4454
          %v4630 = vpop.f32.mrf.mxu0
          %v4631 = vadd.f32 0.0, %v4630
          %4632 = vmatmul.f32.gmra.mxu0 %v4456
          %v4633 = vpop.f32.mrf.mxu0
          %v4634 = vadd.f32 0.0, %v4633
          %4635 = vdwg.mxu0
          %v4636 = vsel %vm673, %v4583, -inf
          %v4637 = vmax.f32 %v4512, %v4636
          %4638 = vmax.xlane.f32.xlu0 %v4637
          %v4639 = vpop.xlane.xlu0 %4638
          %v4640 = vsel %vm673, %v4586, -inf
          %v4641 = vmax.f32 %v4515, %v4640
          %4642 = vmax.xlane.f32.xlu0 %v4641
          %v4643 = vpop.xlane.xlu0 %4642
          %v4644 = vsel %vm673, %v4589, -inf
          %v4645 = vmax.f32 %v4518, %v4644
          %4646 = vmax.xlane.f32.xlu0 %v4645
          %v4647 = vpop.xlane.xlu0 %4646
          %v4648 = vsel %vm673, %v4592, -inf
          %v4649 = vmax.f32 %v4521, %v4648
          %4650 = vmax.xlane.f32.xlu0 %v4649
          %v4651 = vpop.xlane.xlu0 %4650
          %v4652 = vsel %vm673, %v4595, -inf
          %v4653 = vmax.f32 %v4524, %v4652
          %4654 = vmax.xlane.f32.xlu0 %v4653
          %v4655 = vpop.xlane.xlu0 %4654
          %v4656 = vsel %vm673, %v4598, -inf
          %v4657 = vmax.f32 %v4527, %v4656
          %4658 = vmax.xlane.f32.xlu0 %v4657
          %v4659 = vpop.xlane.xlu0 %4658
          %v4660 = vsel %vm673, %v4601, -inf
          %v4661 = vmax.f32 %v4530, %v4660
          %4662 = vmax.xlane.f32.xlu0 %v4661
          %v4663 = vpop.xlane.xlu0 %4662
          %v4664 = vsel %vm673, %v4604, -inf
          %v4665 = vmax.f32 %v4533, %v4664
          %4666 = vmax.xlane.f32.xlu0 %v4665
          %v4667 = vpop.xlane.xlu0 %4666
          %v4668 = vsel %vm673, %v4607, -inf
          %v4669 = vmax.f32 %v4536, %v4668
          %4670 = vmax.xlane.f32.xlu0 %v4669
          %v4671 = vpop.xlane.xlu0 %4670
          %v4672 = vsel %vm673, %v4610, -inf
          %v4673 = vmax.f32 %v4539, %v4672
          %4674 = vmax.xlane.f32.xlu0 %v4673
          %v4675 = vpop.xlane.xlu0 %4674
          %v4676 = vsel %vm673, %v4613, -inf
          %v4677 = vmax.f32 %v4542, %v4676
          %4678 = vmax.xlane.f32.xlu0 %v4677
          %v4679 = vpop.xlane.xlu0 %4678
          %v4680 = vsel %vm673, %v4616, -inf
          %v4681 = vmax.f32 %v4545, %v4680
          %4682 = vmax.xlane.f32.xlu0 %v4681
          %v4683 = vpop.xlane.xlu0 %4682
          %v4684 = vsel %vm673, %v4619, -inf
          %v4685 = vmax.f32 %v4548, %v4684
          %4686 = vmax.xlane.f32.xlu0 %v4685
          %v4687 = vpop.xlane.xlu0 %4686
          %v4688 = vsel %vm673, %v4622, -inf
          %v4689 = vmax.f32 %v4551, %v4688
          %4690 = vmax.xlane.f32.xlu0 %v4689
          %v4691 = vpop.xlane.xlu0 %4690
          %v4692 = vsel %vm673, %v4625, -inf
          %v4693 = vmax.f32 %v4554, %v4692
          %4694 = vmax.xlane.f32.xlu0 %v4693
          %v4695 = vpop.xlane.xlu0 %4694
          %v4696 = vsel %vm673, %v4628, -inf
          %v4697 = vmax.f32 %v4557, %v4696
          %4698 = vmax.xlane.f32.xlu0 %v4697
          %v4699 = vpop.xlane.xlu0 %4698
          %v4700 = vsel %vm673, %v4631, -inf
          %v4701 = vmax.f32 %v4560, %v4700
          %4702 = vmax.xlane.f32.xlu0 %v4701
          %v4703 = vpop.xlane.xlu0 %4702
          %v4704 = vsel %vm673, %v4634, -inf
          %v4705 = vmax.f32 %v4563, %v4704
          %4706 = vmax.xlane.f32.xlu0 %v4705
          %v4707 = vpop.xlane.xlu0 %4706
          %v4708 = vsub.f32 %v4512, %v4639
          %v4709 = vsub.f32 %v4583, %v4639
          %v4710 = vsub.f32 %v4515, %v4643
          %v4711 = vsub.f32 %v4586, %v4643
          %v4712 = vsub.f32 %v4518, %v4647
          %v4713 = vsub.f32 %v4589, %v4647
          %v4714 = vsub.f32 %v4521, %v4651
          %v4715 = vsub.f32 %v4592, %v4651
          %v4716 = vsub.f32 %v4524, %v4655
          %v4717 = vsub.f32 %v4595, %v4655
          %v4718 = vsub.f32 %v4527, %v4659
          %v4719 = vsub.f32 %v4598, %v4659
          %v4720 = vsub.f32 %v4530, %v4663
          %v4721 = vsub.f32 %v4601, %v4663
          %v4722 = vsub.f32 %v4533, %v4667
          %v4723 = vsub.f32 %v4604, %v4667
          %v4724 = vsub.f32 %v4536, %v4671
          %v4725 = vsub.f32 %v4607, %v4671
          %v4726 = vsub.f32 %v4539, %v4675
          %v4727 = vsub.f32 %v4610, %v4675
          %v4728 = vsub.f32 %v4542, %v4679
          %v4729 = vsub.f32 %v4613, %v4679
          %v4730 = vsub.f32 %v4545, %v4683
          %v4731 = vsub.f32 %v4616, %v4683
          %v4732 = vsub.f32 %v4548, %v4687
          %v4733 = vsub.f32 %v4619, %v4687
          %v4734 = vsub.f32 %v4551, %v4691
          %v4735 = vsub.f32 %v4622, %v4691
          %v4736 = vsub.f32 %v4554, %v4695
          %v4737 = vsub.f32 %v4625, %v4695
          %v4738 = vsub.f32 %v4557, %v4699
          %v4739 = vsub.f32 %v4628, %v4699
          %v4740 = vsub.f32 %v4560, %v4703
          %v4741 = vsub.f32 %v4631, %v4703
          %v4742 = vsub.f32 %v4563, %v4707
          %v4743 = vsub.f32 %v4634, %v4707
          %v4744 = vmul.f32 %v4708, 1.442695
          %v4745 = vpow.pop %v4744
          %v4746 = vmul.f32 %v4709, 1.442695
          %v4747 = vpow.pop %v4746
          %v4748 = vmul.f32 %v4710, 1.442695
          %v4749 = vpow.pop %v4748
          %v4750 = vmul.f32 %v4711, 1.442695
          %v4751 = vpow.pop %v4750
          %v4752 = vmul.f32 %v4712, 1.442695
          %v4753 = vpow.pop %v4752
          %v4754 = vmul.f32 %v4713, 1.442695
          %v4755 = vpow.pop %v4754
          %v4756 = vmul.f32 %v4714, 1.442695
          %v4757 = vpow.pop %v4756
          %v4758 = vmul.f32 %v4715, 1.442695
          %v4759 = vpow.pop %v4758
          %v4760 = vmul.f32 %v4716, 1.442695
          %v4761 = vpow.pop %v4760
          %v4762 = vmul.f32 %v4717, 1.442695
          %v4763 = vpow.pop %v4762
          %v4764 = vmul.f32 %v4718, 1.442695
          %v4765 = vpow.pop %v4764
          %v4766 = vmul.f32 %v4719, 1.442695
          %v4767 = vpow.pop %v4766
          %v4768 = vmul.f32 %v4720, 1.442695
          %v4769 = vpow.pop %v4768
          %v4770 = vmul.f32 %v4721, 1.442695
          %v4771 = vpow.pop %v4770
          %v4772 = vmul.f32 %v4722, 1.442695
          %v4773 = vpow.pop %v4772
          %v4774 = vmul.f32 %v4723, 1.442695
          %v4775 = vpow.pop %v4774
          %v4776 = vmul.f32 %v4724, 1.442695
          %v4777 = vpow.pop %v4776
          %v4778 = vmul.f32 %v4725, 1.442695
          %v4779 = vpow.pop %v4778
          %v4780 = vmul.f32 %v4726, 1.442695
          %v4781 = vpow.pop %v4780
          %v4782 = vmul.f32 %v4727, 1.442695
          %v4783 = vpow.pop %v4782
          %v4784 = vmul.f32 %v4728, 1.442695
          %v4785 = vpow.pop %v4784
          %v4786 = vmul.f32 %v4729, 1.442695
          %v4787 = vpow.pop %v4786
          %v4788 = vmul.f32 %v4730, 1.442695
          %v4789 = vpow.pop %v4788
          %v4790 = vmul.f32 %v4731, 1.442695
          %v4791 = vpow.pop %v4790
          %v4792 = vmul.f32 %v4732, 1.442695
          %v4793 = vpow.pop %v4792
          %v4794 = vmul.f32 %v4733, 1.442695
          %v4795 = vpow.pop %v4794
          %v4796 = vmul.f32 %v4734, 1.442695
          %v4797 = vpow.pop %v4796
          %v4798 = vmul.f32 %v4735, 1.442695
          %v4799 = vpow.pop %v4798
          %v4800 = vmul.f32 %v4736, 1.442695
          %v4801 = vpow.pop %v4800
          %v4802 = vmul.f32 %v4737, 1.442695
          %v4803 = vpow.pop %v4802
          %v4804 = vmul.f32 %v4738, 1.442695
          %v4805 = vpow.pop %v4804
          %v4806 = vmul.f32 %v4739, 1.442695
          %v4807 = vpow.pop %v4806
          %v4808 = vmul.f32 %v4740, 1.442695
          %v4809 = vpow.pop %v4808
          %v4810 = vmul.f32 %v4741, 1.442695
          %v4811 = vpow.pop %v4810
          %v4812 = vmul.f32 %v4742, 1.442695
          %v4813 = vpow.pop %v4812
          %v4814 = vmul.f32 %v4743, 1.442695
          %v4815 = vpow.pop %v4814
          %v4816 = vsel %vm673, %v4747, 0.0
          %v4817 = vadd.f32 %v4745, %v4816
          %4818 = vadd.xlane.f32.xlu0 %v4817
          %v4819 = vpop.xlane.xlu0 %4818
          %v4820 = vsel %vm673, %v4751, 0.0
          %v4821 = vadd.f32 %v4749, %v4820
          %4822 = vadd.xlane.f32.xlu0 %v4821
          %v4823 = vpop.xlane.xlu0 %4822
          %v4824 = vsel %vm673, %v4755, 0.0
          %v4825 = vadd.f32 %v4753, %v4824
          %4826 = vadd.xlane.f32.xlu0 %v4825
          %v4827 = vpop.xlane.xlu0 %4826
          %v4828 = vsel %vm673, %v4759, 0.0
          %v4829 = vadd.f32 %v4757, %v4828
          %4830 = vadd.xlane.f32.xlu0 %v4829
          %v4831 = vpop.xlane.xlu0 %4830
          %v4832 = vsel %vm673, %v4763, 0.0
          %v4833 = vadd.f32 %v4761, %v4832
          %4834 = vadd.xlane.f32.xlu0 %v4833
          %v4835 = vpop.xlane.xlu0 %4834
          %v4836 = vsel %vm673, %v4767, 0.0
          %v4837 = vadd.f32 %v4765, %v4836
          %4838 = vadd.xlane.f32.xlu0 %v4837
          %v4839 = vpop.xlane.xlu0 %4838
          %v4840 = vsel %vm673, %v4771, 0.0
          %v4841 = vadd.f32 %v4769, %v4840
          %4842 = vadd.xlane.f32.xlu0 %v4841
          %v4843 = vpop.xlane.xlu0 %4842
          %v4844 = vsel %vm673, %v4775, 0.0
          %v4845 = vadd.f32 %v4773, %v4844
          %4846 = vadd.xlane.f32.xlu0 %v4845
          %v4847 = vpop.xlane.xlu0 %4846
          %v4848 = vsel %vm673, %v4779, 0.0
          %v4849 = vadd.f32 %v4777, %v4848
          %4850 = vadd.xlane.f32.xlu0 %v4849
          %v4851 = vpop.xlane.xlu0 %4850
          %v4852 = vsel %vm673, %v4783, 0.0
          %v4853 = vadd.f32 %v4781, %v4852
          %4854 = vadd.xlane.f32.xlu0 %v4853
          %v4855 = vpop.xlane.xlu0 %4854
          %v4856 = vsel %vm673, %v4787, 0.0
          %v4857 = vadd.f32 %v4785, %v4856
          %4858 = vadd.xlane.f32.xlu0 %v4857
          %v4859 = vpop.xlane.xlu0 %4858
          %v4860 = vsel %vm673, %v4791, 0.0
          %v4861 = vadd.f32 %v4789, %v4860
          %4862 = vadd.xlane.f32.xlu0 %v4861
          %v4863 = vpop.xlane.xlu0 %4862
          %v4864 = vsel %vm673, %v4795, 0.0
          %v4865 = vadd.f32 %v4793, %v4864
          %4866 = vadd.xlane.f32.xlu0 %v4865
          %v4867 = vpop.xlane.xlu0 %4866
          %v4868 = vsel %vm673, %v4799, 0.0
          %v4869 = vadd.f32 %v4797, %v4868
          %4870 = vadd.xlane.f32.xlu0 %v4869
          %v4871 = vpop.xlane.xlu0 %4870
          %v4872 = vsel %vm673, %v4803, 0.0
          %v4873 = vadd.f32 %v4801, %v4872
          %4874 = vadd.xlane.f32.xlu0 %v4873
          %v4875 = vpop.xlane.xlu0 %4874
          %v4876 = vsel %vm673, %v4807, 0.0
          %v4877 = vadd.f32 %v4805, %v4876
          %4878 = vadd.xlane.f32.xlu0 %v4877
          %v4879 = vpop.xlane.xlu0 %4878
          %v4880 = vsel %vm673, %v4811, 0.0
          %v4881 = vadd.f32 %v4809, %v4880
          %4882 = vadd.xlane.f32.xlu0 %v4881
          %v4883 = vpop.xlane.xlu0 %4882
          %v4884 = vsel %vm673, %v4815, 0.0
          %v4885 = vadd.f32 %v4813, %v4884
          %4886 = vadd.xlane.f32.xlu0 %v4885
          %v4887 = vpop.xlane.xlu0 %4886
          %4906 = vrot.lane.b32.xlu0 %v4296, 80
          %v4907 = vpop.permute.xlu0 %4906
          %4908 = vrot.lane.b32.xlu0 %v4297, 80
          %v4909 = vpop.permute.xlu0 %4908
          %4910 = vrot.lane.b32.xlu0 %v4298, 80
          %v4911 = vpop.permute.xlu0 %4910
          %4912 = vrot.lane.b32.xlu0 %v4299, 80
          %v4913 = vpop.permute.xlu0 %4912
          %4914 = vrot.lane.b32.xlu0 %v4300, 80
          %v4915 = vpop.permute.xlu0 %4914
          %4916 = vrot.lane.b32.xlu0 %v4301, 80
          %v4917 = vpop.permute.xlu0 %4916
          %4918 = vrot.lane.b32.xlu0 %v4302, 80
          %v4919 = vpop.permute.xlu0 %4918
          %4920 = vrot.lane.b32.xlu0 %v4303, 80
          %v4921 = vpop.permute.xlu0 %4920
          %4922 = vrot.lane.b32.xlu0 %v4304, 80
          %v4923 = vpop.permute.xlu0 %4922
          %4924 = vrot.lane.b32.xlu0 %v4305, 80
          %v4925 = vpop.permute.xlu0 %4924
          %4926 = vrot.lane.b32.xlu0 %v4306, 80
          %v4927 = vpop.permute.xlu0 %4926
          %4928 = vrot.lane.b32.xlu0 %v4307, 80
          %v4929 = vpop.permute.xlu0 %4928
          %4930 = vrot.lane.b32.xlu0 %v4308, 80
          %v4931 = vpop.permute.xlu0 %4930
          %4932 = vrot.lane.b32.xlu0 %v4309, 80
          %v4933 = vpop.permute.xlu0 %4932
          %4934 = vrot.lane.b32.xlu0 %v4310, 80
          %v4935 = vpop.permute.xlu0 %4934
          %4936 = vrot.lane.b32.xlu0 %v4311, 80
          %v4937 = vpop.permute.xlu0 %4936
          %4938 = vrot.lane.b32.xlu0 %v4312, 80
          %v4939 = vpop.permute.xlu0 %4938
          %4940 = vrot.lane.b32.xlu0 %v4313, 80
          %v4941 = vpop.permute.xlu0 %4940
          %v4961 = vsel %vm673, %v4747, 0
          %v4964 = vsel %vm673, %v4751, 0
          %v4967 = vsel %vm673, %v4755, 0
          %v4970 = vsel %vm673, %v4759, 0
          %v4973 = vsel %vm673, %v4763, 0
          %v4976 = vsel %vm673, %v4767, 0
          %v4979 = vsel %vm673, %v4771, 0
          %v4982 = vsel %vm673, %v4775, 0
          %v4985 = vsel %vm673, %v4779, 0
          %v4988 = vsel %vm673, %v4783, 0
          %v4991 = vsel %vm673, %v4787, 0
          %v4994 = vsel %vm673, %v4791, 0
          %v4997 = vsel %vm673, %v4795, 0
          %v5000 = vsel %vm673, %v4799, 0
          %v5003 = vsel %vm673, %v4803, 0
          %v5006 = vsel %vm673, %v4807, 0
          %v5009 = vsel %vm673, %v4811, 0
          %v5012 = vsel %vm673, %v4815, 0
          %5014 = vmatpush.msra.mxu0 %v4937
          %5015 = vmatpush.msra.mxu0 %v4935
          %5016 = vmatpush.msra.mxu0 %v4933
          %5017 = vmatpush.msra.mxu0 %v4931
          %5018 = vmatpush.msra.mxu0 %v4929
          %5019 = vmatpush.msra.mxu0 %v4927
          %5020 = vmatpush.msra.mxu0 %v4925
          %5021 = vmatpush.msra.mxu0 %v4923
          %5022 = vmatpush.msra.mxu0 %v4921
          %5023 = vmatpush.msra.mxu0 %v4919
          %5024 = vmatpush.msra.mxu0 %v4917
          %5025 = vmatpush.msra.mxu0 %v4915
          %5026 = vmatpush.msra.mxu0 %v4913
          %5027 = vmatpush.msra.mxu0 %v4911
          %5028 = vmatpush.msra.mxu0 %v4909
          %5029 = vmatpush.msra.mxu0 %v4907
          %5030 = vmatmul.f32.gmra.mxu0 %v4745
          %v5031 = vpop.f32.mrf.mxu0
          %v5032 = vadd.f32 0.0, %v5031
          %5033 = vmatmul.f32.gmra.mxu0 %v4749
          %v5034 = vpop.f32.mrf.mxu0
          %v5035 = vadd.f32 0.0, %v5034
          %5036 = vmatmul.f32.gmra.mxu0 %v4753
          %v5037 = vpop.f32.mrf.mxu0
          %v5038 = vadd.f32 0.0, %v5037
          %5039 = vmatmul.f32.gmra.mxu0 %v4757
          %v5040 = vpop.f32.mrf.mxu0
          %v5041 = vadd.f32 0.0, %v5040
          %5042 = vmatmul.f32.gmra.mxu0 %v4761
          %v5043 = vpop.f32.mrf.mxu0
          %v5044 = vadd.f32 0.0, %v5043
          %5045 = vmatmul.f32.gmra.mxu0 %v4765
          %v5046 = vpop.f32.mrf.mxu0
          %v5047 = vadd.f32 0.0, %v5046
          %5048 = vmatmul.f32.gmra.mxu0 %v4769
          %v5049 = vpop.f32.mrf.mxu0
          %v5050 = vadd.f32 0.0, %v5049
          %5051 = vmatmul.f32.gmra.mxu0 %v4773
          %v5052 = vpop.f32.mrf.mxu0
          %v5053 = vadd.f32 0.0, %v5052
          %5054 = vmatmul.f32.gmra.mxu0 %v4777
          %v5055 = vpop.f32.mrf.mxu0
          %v5056 = vadd.f32 0.0, %v5055
          %5057 = vmatmul.f32.gmra.mxu0 %v4781
          %v5058 = vpop.f32.mrf.mxu0
          %v5059 = vadd.f32 0.0, %v5058
          %5060 = vmatmul.f32.gmra.mxu0 %v4785
          %v5061 = vpop.f32.mrf.mxu0
          %v5062 = vadd.f32 0.0, %v5061
          %5063 = vmatmul.f32.gmra.mxu0 %v4789
          %v5064 = vpop.f32.mrf.mxu0
          %v5065 = vadd.f32 0.0, %v5064
          %5066 = vmatmul.f32.gmra.mxu0 %v4793
          %v5067 = vpop.f32.mrf.mxu0
          %v5068 = vadd.f32 0.0, %v5067
          %5069 = vmatmul.f32.gmra.mxu0 %v4797
          %v5070 = vpop.f32.mrf.mxu0
          %v5071 = vadd.f32 0.0, %v5070
          %5072 = vmatmul.f32.gmra.mxu0 %v4801
          %v5073 = vpop.f32.mrf.mxu0
          %v5074 = vadd.f32 0.0, %v5073
          %5075 = vmatmul.f32.gmra.mxu0 %v4805
          %v5076 = vpop.f32.mrf.mxu0
          %v5077 = vadd.f32 0.0, %v5076
          %5078 = vmatmul.f32.gmra.mxu0 %v4809
          %v5079 = vpop.f32.mrf.mxu0
          %v5080 = vadd.f32 0.0, %v5079
          %5081 = vmatmul.f32.gmra.mxu0 %v4813
          %v5082 = vpop.f32.mrf.mxu0
          %v5083 = vadd.f32 0.0, %v5082
          %5084 = vdwg.mxu0
          %5085 = vmatpush.msra.mxu0 0.0
          %5086 = vmatpush.msra.mxu0 0.0
          %5087 = vmatpush.msra.mxu0 0.0
          %5088 = vmatpush.msra.mxu0 0.0
          %5089 = vmatpush.msra.mxu0 0.0
          %5090 = vmatpush.msra.mxu0 0.0
          %5091 = vmatpush.msra.mxu0 0.0
          %5092 = vmatpush.msra.mxu0 0.0
          %5093 = vmatpush.msra.mxu0 0.0
          %5094 = vmatpush.msra.mxu0 0.0
          %5095 = vmatpush.msra.mxu0 0.0
          %5096 = vmatpush.msra.mxu0 0.0
          %5097 = vmatpush.msra.mxu0 0.0
          %5098 = vmatpush.msra.mxu0 0.0
          %5099 = vmatpush.msra.mxu0 %v4941
          %5100 = vmatpush.msra.mxu0 %v4939
          %5101 = vmatmul.f32.gmra.mxu0 %v4961
          %v5102 = vpop.f32.mrf.mxu0
          %v5103 = vadd.f32 %v5032, %v5102
          %5104 = vmatmul.f32.gmra.mxu0 %v4964
          %v5105 = vpop.f32.mrf.mxu0
          %v5106 = vadd.f32 %v5035, %v5105
          %5107 = vmatmul.f32.gmra.mxu0 %v4967
          %v5108 = vpop.f32.mrf.mxu0
          %v5109 = vadd.f32 %v5038, %v5108
          %5110 = vmatmul.f32.gmra.mxu0 %v4970
          %v5111 = vpop.f32.mrf.mxu0
          %v5112 = vadd.f32 %v5041, %v5111
          %5113 = vmatmul.f32.gmra.mxu0 %v4973
          %v5114 = vpop.f32.mrf.mxu0
          %v5115 = vadd.f32 %v5044, %v5114
          %5116 = vmatmul.f32.gmra.mxu0 %v4976
          %v5117 = vpop.f32.mrf.mxu0
          %v5118 = vadd.f32 %v5047, %v5117
          %5119 = vmatmul.f32.gmra.mxu0 %v4979
          %v5120 = vpop.f32.mrf.mxu0
          %v5121 = vadd.f32 %v5050, %v5120
          %5122 = vmatmul.f32.gmra.mxu0 %v4982
          %v5123 = vpop.f32.mrf.mxu0
          %v5124 = vadd.f32 %v5053, %v5123
          %5125 = vmatmul.f32.gmra.mxu0 %v4985
          %v5126 = vpop.f32.mrf.mxu0
          %v5127 = vadd.f32 %v5056, %v5126
          %5128 = vmatmul.f32.gmra.mxu0 %v4988
          %v5129 = vpop.f32.mrf.mxu0
          %v5130 = vadd.f32 %v5059, %v5129
          %5131 = vmatmul.f32.gmra.mxu0 %v4991
          %v5132 = vpop.f32.mrf.mxu0
          %v5133 = vadd.f32 %v5062, %v5132
          %5134 = vmatmul.f32.gmra.mxu0 %v4994
          %v5135 = vpop.f32.mrf.mxu0
          %v5136 = vadd.f32 %v5065, %v5135
          %5137 = vmatmul.f32.gmra.mxu0 %v4997
          %v5138 = vpop.f32.mrf.mxu0
          %v5139 = vadd.f32 %v5068, %v5138
          %5140 = vmatmul.f32.gmra.mxu0 %v5000
          %v5141 = vpop.f32.mrf.mxu0
          %v5142 = vadd.f32 %v5071, %v5141
          %5143 = vmatmul.f32.gmra.mxu0 %v5003
          %v5144 = vpop.f32.mrf.mxu0
          %v5145 = vadd.f32 %v5074, %v5144
          %5146 = vmatmul.f32.gmra.mxu0 %v5006
          %v5147 = vpop.f32.mrf.mxu0
          %v5148 = vadd.f32 %v5077, %v5147
          %5149 = vmatmul.f32.gmra.mxu0 %v5009
          %v5150 = vpop.f32.mrf.mxu0
          %v5151 = vadd.f32 %v5080, %v5150
          %5152 = vmatmul.f32.gmra.mxu0 %v5012
          %v5153 = vpop.f32.mrf.mxu0
          %v5154 = vadd.f32 %v5083, %v5153
          %5155 = vdwg.mxu0
          %v5156 = vld [vmem:[%s3] sm:$0x1]
          %v5158 = vperm.slane %v5156, 0
          %5159 = vrot.lane.b32.xlu0 %v5158, 80
          %v5160 = vpop.permute.xlu0 %5159
          %v5162 = vmul.f32 %v5103, %v5160
          %v5163 = vmul.f32 %v5106, %v5160
          %v5164 = vmul.f32 %v5109, %v5160
          %v5165 = vmul.f32 %v5112, %v5160
          %v5166 = vmul.f32 %v5115, %v5160
          %v5167 = vmul.f32 %v5118, %v5160
          %v5168 = vmul.f32 %v5121, %v5160
          %v5169 = vmul.f32 %v5124, %v5160
          %v5170 = vmul.f32 %v5127, %v5160
          %v5171 = vmul.f32 %v5130, %v5160
          %v5172 = vmul.f32 %v5133, %v5160
          %v5173 = vmul.f32 %v5136, %v5160
          %v5174 = vmul.f32 %v5139, %v5160
          %v5175 = vmul.f32 %v5142, %v5160
          %v5176 = vmul.f32 %v5145, %v5160
          %v5177 = vmul.f32 %v5148, %v5160
          %v5178 = vmul.f32 %v5151, %v5160
          %v5179 = vmul.f32 %v5154, %v5160
          %v5180 = vsel %vm673, %v5162, 0.0
          %5181 = vadd.xlane.f32.xlu0 %v5180
          %v5182 = vpop.xlane.xlu0 %5181
          %v5183 = vsel %vm673, %v5163, 0.0
          %5184 = vadd.xlane.f32.xlu0 %v5183
          %v5185 = vpop.xlane.xlu0 %5184
          %v5186 = vsel %vm673, %v5164, 0.0
          %5187 = vadd.xlane.f32.xlu0 %v5186
          %v5188 = vpop.xlane.xlu0 %5187
          %v5189 = vsel %vm673, %v5165, 0.0
          %5190 = vadd.xlane.f32.xlu0 %v5189
          %v5191 = vpop.xlane.xlu0 %5190
          %v5192 = vsel %vm673, %v5166, 0.0
          %5193 = vadd.xlane.f32.xlu0 %v5192
          %v5194 = vpop.xlane.xlu0 %5193
          %v5195 = vsel %vm673, %v5167, 0.0
          %5196 = vadd.xlane.f32.xlu0 %v5195
          %v5197 = vpop.xlane.xlu0 %5196
          %v5198 = vsel %vm673, %v5168, 0.0
          %5199 = vadd.xlane.f32.xlu0 %v5198
          %v5200 = vpop.xlane.xlu0 %5199
          %v5201 = vsel %vm673, %v5169, 0.0
          %5202 = vadd.xlane.f32.xlu0 %v5201
          %v5203 = vpop.xlane.xlu0 %5202
          %v5204 = vsel %vm673, %v5170, 0.0
          %5205 = vadd.xlane.f32.xlu0 %v5204
          %v5206 = vpop.xlane.xlu0 %5205
          %v5207 = vsel %vm673, %v5171, 0.0
          %5208 = vadd.xlane.f32.xlu0 %v5207
          %v5209 = vpop.xlane.xlu0 %5208
          %v5210 = vsel %vm673, %v5172, 0.0
          %5211 = vadd.xlane.f32.xlu0 %v5210
          %v5212 = vpop.xlane.xlu0 %5211
          %v5213 = vsel %vm673, %v5173, 0.0
          %5214 = vadd.xlane.f32.xlu0 %v5213
          %v5215 = vpop.xlane.xlu0 %5214
          %v5216 = vsel %vm673, %v5174, 0.0
          %5217 = vadd.xlane.f32.xlu0 %v5216
          %v5218 = vpop.xlane.xlu0 %5217
          %v5219 = vsel %vm673, %v5175, 0.0
          %5220 = vadd.xlane.f32.xlu0 %v5219
          %v5221 = vpop.xlane.xlu0 %5220
          %v5222 = vsel %vm673, %v5176, 0.0
          %5223 = vadd.xlane.f32.xlu0 %v5222
          %v5224 = vpop.xlane.xlu0 %5223
          %v5225 = vsel %vm673, %v5177, 0.0
          %5226 = vadd.xlane.f32.xlu0 %v5225
          %v5227 = vpop.xlane.xlu0 %5226
          %v5228 = vsel %vm673, %v5178, 0.0
          %5229 = vadd.xlane.f32.xlu0 %v5228
          %v5230 = vpop.xlane.xlu0 %5229
          %v5231 = vsel %vm673, %v5179, 0.0
          %5232 = vadd.xlane.f32.xlu0 %v5231
          %v5233 = vpop.xlane.xlu0 %5232
          %v5234 = vrcp.pop %v4819
          %v5235 = vmul.f32 %v4819, %v5234
          %v5236 = vsub.f32 1.0, %v5235
          %v5237 = vmul.f32 %v5234, %v5236
          %v5238 = vadd.f32 %v5234, %v5237
          %vm5239 = vweird.f32 %v4819
          %vm5240 = vweird.f32 %v5234
          %vm5241 = vmor %vm5239, %vm5240
          %v5242 = vsel %vm5241, %v5234, %v5238
          %v5243 = vand.u32 2147483647, %v4819
          %vm5244 = vcmp.eq.f32.partialorder %v5243, 8.507059e+37
          %v5245 = vand.u32 %v4819, 2147483648
          %v5246 = vor.u32 1.1754944e-38, %v5245
          %v5247 = vsel %vm5244, %v5246, %v5242
          %v5248 = vmul.f32 %v5182, %v5247
          %v5249 = vrcp.pop %v4823
          %v5250 = vmul.f32 %v4823, %v5249
          %v5251 = vsub.f32 1.0, %v5250
          %v5252 = vmul.f32 %v5249, %v5251
          %v5253 = vadd.f32 %v5249, %v5252
          %vm5254 = vweird.f32 %v4823
          %vm5255 = vweird.f32 %v5249
          %vm5256 = vmor %vm5254, %vm5255
          %v5257 = vsel %vm5256, %v5249, %v5253
          %v5258 = vand.u32 2147483647, %v4823
          %vm5259 = vcmp.eq.f32.partialorder %v5258, 8.507059e+37
          %v5260 = vand.u32 %v4823, 2147483648
          %v5261 = vor.u32 1.1754944e-38, %v5260
          %v5262 = vsel %vm5259, %v5261, %v5257
          %v5263 = vmul.f32 %v5185, %v5262
          %v5264 = vrcp.pop %v4827
          %v5265 = vmul.f32 %v4827, %v5264
          %v5266 = vsub.f32 1.0, %v5265
          %v5267 = vmul.f32 %v5264, %v5266
          %v5268 = vadd.f32 %v5264, %v5267
          %vm5269 = vweird.f32 %v4827
          %vm5270 = vweird.f32 %v5264
          %vm5271 = vmor %vm5269, %vm5270
          %v5272 = vsel %vm5271, %v5264, %v5268
          %v5273 = vand.u32 2147483647, %v4827
          %vm5274 = vcmp.eq.f32.partialorder %v5273, 8.507059e+37
          %v5275 = vand.u32 %v4827, 2147483648
          %v5276 = vor.u32 1.1754944e-38, %v5275
          %v5277 = vsel %vm5274, %v5276, %v5272
          %v5278 = vmul.f32 %v5188, %v5277
          %v5279 = vrcp.pop %v4831
          %v5280 = vmul.f32 %v4831, %v5279
          %v5281 = vsub.f32 1.0, %v5280
          %v5282 = vmul.f32 %v5279, %v5281
          %v5283 = vadd.f32 %v5279, %v5282
          %vm5284 = vweird.f32 %v4831
          %vm5285 = vweird.f32 %v5279
          %vm5286 = vmor %vm5284, %vm5285
          %v5287 = vsel %vm5286, %v5279, %v5283
          %v5288 = vand.u32 2147483647, %v4831
          %vm5289 = vcmp.eq.f32.partialorder %v5288, 8.507059e+37
          %v5290 = vand.u32 %v4831, 2147483648
          %v5291 = vor.u32 1.1754944e-38, %v5290
          %v5292 = vsel %vm5289, %v5291, %v5287
          %v5293 = vmul.f32 %v5191, %v5292
          %v5294 = vrcp.pop %v4835
          %v5295 = vmul.f32 %v4835, %v5294
          %v5296 = vsub.f32 1.0, %v5295
          %v5297 = vmul.f32 %v5294, %v5296
          %v5298 = vadd.f32 %v5294, %v5297
          %vm5299 = vweird.f32 %v4835
          %vm5300 = vweird.f32 %v5294
          %vm5301 = vmor %vm5299, %vm5300
          %v5302 = vsel %vm5301, %v5294, %v5298
          %v5303 = vand.u32 2147483647, %v4835
          %vm5304 = vcmp.eq.f32.partialorder %v5303, 8.507059e+37
          %v5305 = vand.u32 %v4835, 2147483648
          %v5306 = vor.u32 1.1754944e-38, %v5305
          %v5307 = vsel %vm5304, %v5306, %v5302
          %v5308 = vmul.f32 %v5194, %v5307
          %v5309 = vrcp.pop %v4839
          %v5310 = vmul.f32 %v4839, %v5309
          %v5311 = vsub.f32 1.0, %v5310
          %v5312 = vmul.f32 %v5309, %v5311
          %v5313 = vadd.f32 %v5309, %v5312
          %vm5314 = vweird.f32 %v4839
          %vm5315 = vweird.f32 %v5309
          %vm5316 = vmor %vm5314, %vm5315
          %v5317 = vsel %vm5316, %v5309, %v5313
          %v5318 = vand.u32 2147483647, %v4839
          %vm5319 = vcmp.eq.f32.partialorder %v5318, 8.507059e+37
          %v5320 = vand.u32 %v4839, 2147483648
          %v5321 = vor.u32 1.1754944e-38, %v5320
          %v5322 = vsel %vm5319, %v5321, %v5317
          %v5323 = vmul.f32 %v5197, %v5322
          %v5324 = vrcp.pop %v4843
          %v5325 = vmul.f32 %v4843, %v5324
          %v5326 = vsub.f32 1.0, %v5325
          %v5327 = vmul.f32 %v5324, %v5326
          %v5328 = vadd.f32 %v5324, %v5327
          %vm5329 = vweird.f32 %v4843
          %vm5330 = vweird.f32 %v5324
          %vm5331 = vmor %vm5329, %vm5330
          %v5332 = vsel %vm5331, %v5324, %v5328
          %v5333 = vand.u32 2147483647, %v4843
          %vm5334 = vcmp.eq.f32.partialorder %v5333, 8.507059e+37
          %v5335 = vand.u32 %v4843, 2147483648
          %v5336 = vor.u32 1.1754944e-38, %v5335
          %v5337 = vsel %vm5334, %v5336, %v5332
          %v5338 = vmul.f32 %v5200, %v5337
          %v5339 = vrcp.pop %v4847
          %v5340 = vmul.f32 %v4847, %v5339
          %v5341 = vsub.f32 1.0, %v5340
          %v5342 = vmul.f32 %v5339, %v5341
          %v5343 = vadd.f32 %v5339, %v5342
          %vm5344 = vweird.f32 %v4847
          %vm5345 = vweird.f32 %v5339
          %vm5346 = vmor %vm5344, %vm5345
          %v5347 = vsel %vm5346, %v5339, %v5343
          %v5348 = vand.u32 2147483647, %v4847
          %vm5349 = vcmp.eq.f32.partialorder %v5348, 8.507059e+37
          %v5350 = vand.u32 %v4847, 2147483648
          %v5351 = vor.u32 1.1754944e-38, %v5350
          %v5352 = vsel %vm5349, %v5351, %v5347
          %v5353 = vmul.f32 %v5203, %v5352
          %v5354 = vrcp.pop %v4851
          %v5355 = vmul.f32 %v4851, %v5354
          %v5356 = vsub.f32 1.0, %v5355
          %v5357 = vmul.f32 %v5354, %v5356
          %v5358 = vadd.f32 %v5354, %v5357
          %vm5359 = vweird.f32 %v4851
          %vm5360 = vweird.f32 %v5354
          %vm5361 = vmor %vm5359, %vm5360
          %v5362 = vsel %vm5361, %v5354, %v5358
          %v5363 = vand.u32 2147483647, %v4851
          %vm5364 = vcmp.eq.f32.partialorder %v5363, 8.507059e+37
          %v5365 = vand.u32 %v4851, 2147483648
          %v5366 = vor.u32 1.1754944e-38, %v5365
          %v5367 = vsel %vm5364, %v5366, %v5362
          %v5368 = vmul.f32 %v5206, %v5367
          %v5369 = vrcp.pop %v4855
          %v5370 = vmul.f32 %v4855, %v5369
          %v5371 = vsub.f32 1.0, %v5370
          %v5372 = vmul.f32 %v5369, %v5371
          %v5373 = vadd.f32 %v5369, %v5372
          %vm5374 = vweird.f32 %v4855
          %vm5375 = vweird.f32 %v5369
          %vm5376 = vmor %vm5374, %vm5375
          %v5377 = vsel %vm5376, %v5369, %v5373
          %v5378 = vand.u32 2147483647, %v4855
          %vm5379 = vcmp.eq.f32.partialorder %v5378, 8.507059e+37
          %v5380 = vand.u32 %v4855, 2147483648
          %v5381 = vor.u32 1.1754944e-38, %v5380
          %v5382 = vsel %vm5379, %v5381, %v5377
          %v5383 = vmul.f32 %v5209, %v5382
          %v5384 = vrcp.pop %v4859
          %v5385 = vmul.f32 %v4859, %v5384
          %v5386 = vsub.f32 1.0, %v5385
          %v5387 = vmul.f32 %v5384, %v5386
          %v5388 = vadd.f32 %v5384, %v5387
          %vm5389 = vweird.f32 %v4859
          %vm5390 = vweird.f32 %v5384
          %vm5391 = vmor %vm5389, %vm5390
          %v5392 = vsel %vm5391, %v5384, %v5388
          %v5393 = vand.u32 2147483647, %v4859
          %vm5394 = vcmp.eq.f32.partialorder %v5393, 8.507059e+37
          %v5395 = vand.u32 %v4859, 2147483648
          %v5396 = vor.u32 1.1754944e-38, %v5395
          %v5397 = vsel %vm5394, %v5396, %v5392
          %v5398 = vmul.f32 %v5212, %v5397
          %v5399 = vrcp.pop %v4863
          %v5400 = vmul.f32 %v4863, %v5399
          %v5401 = vsub.f32 1.0, %v5400
          %v5402 = vmul.f32 %v5399, %v5401
          %v5403 = vadd.f32 %v5399, %v5402
          %vm5404 = vweird.f32 %v4863
          %vm5405 = vweird.f32 %v5399
          %vm5406 = vmor %vm5404, %vm5405
          %v5407 = vsel %vm5406, %v5399, %v5403
          %v5408 = vand.u32 2147483647, %v4863
          %vm5409 = vcmp.eq.f32.partialorder %v5408, 8.507059e+37
          %v5410 = vand.u32 %v4863, 2147483648
          %v5411 = vor.u32 1.1754944e-38, %v5410
          %v5412 = vsel %vm5409, %v5411, %v5407
          %v5413 = vmul.f32 %v5215, %v5412
          %v5414 = vrcp.pop %v4867
          %v5415 = vmul.f32 %v4867, %v5414
          %v5416 = vsub.f32 1.0, %v5415
          %v5417 = vmul.f32 %v5414, %v5416
          %v5418 = vadd.f32 %v5414, %v5417
          %vm5419 = vweird.f32 %v4867
          %vm5420 = vweird.f32 %v5414
          %vm5421 = vmor %vm5419, %vm5420
          %v5422 = vsel %vm5421, %v5414, %v5418
          %v5423 = vand.u32 2147483647, %v4867
          %vm5424 = vcmp.eq.f32.partialorder %v5423, 8.507059e+37
          %v5425 = vand.u32 %v4867, 2147483648
          %v5426 = vor.u32 1.1754944e-38, %v5425
          %v5427 = vsel %vm5424, %v5426, %v5422
          %v5428 = vmul.f32 %v5218, %v5427
          %v5429 = vrcp.pop %v4871
          %v5430 = vmul.f32 %v4871, %v5429
          %v5431 = vsub.f32 1.0, %v5430
          %v5432 = vmul.f32 %v5429, %v5431
          %v5433 = vadd.f32 %v5429, %v5432
          %vm5434 = vweird.f32 %v4871
          %vm5435 = vweird.f32 %v5429
          %vm5436 = vmor %vm5434, %vm5435
          %v5437 = vsel %vm5436, %v5429, %v5433
          %v5438 = vand.u32 2147483647, %v4871
          %vm5439 = vcmp.eq.f32.partialorder %v5438, 8.507059e+37
          %v5440 = vand.u32 %v4871, 2147483648
          %v5441 = vor.u32 1.1754944e-38, %v5440
          %v5442 = vsel %vm5439, %v5441, %v5437
          %v5443 = vmul.f32 %v5221, %v5442
          %v5444 = vrcp.pop %v4875
          %v5445 = vmul.f32 %v4875, %v5444
          %v5446 = vsub.f32 1.0, %v5445
          %v5447 = vmul.f32 %v5444, %v5446
          %v5448 = vadd.f32 %v5444, %v5447
          %vm5449 = vweird.f32 %v4875
          %vm5450 = vweird.f32 %v5444
          %vm5451 = vmor %vm5449, %vm5450
          %v5452 = vsel %vm5451, %v5444, %v5448
          %v5453 = vand.u32 2147483647, %v4875
          %vm5454 = vcmp.eq.f32.partialorder %v5453, 8.507059e+37
          %v5455 = vand.u32 %v4875, 2147483648
          %v5456 = vor.u32 1.1754944e-38, %v5455
          %v5457 = vsel %vm5454, %v5456, %v5452
          %v5458 = vmul.f32 %v5224, %v5457
          %v5459 = vrcp.pop %v4879
          %v5460 = vmul.f32 %v4879, %v5459
          %v5461 = vsub.f32 1.0, %v5460
          %v5462 = vmul.f32 %v5459, %v5461
          %v5463 = vadd.f32 %v5459, %v5462
          %vm5464 = vweird.f32 %v4879
          %vm5465 = vweird.f32 %v5459
          %vm5466 = vmor %vm5464, %vm5465
          %v5467 = vsel %vm5466, %v5459, %v5463
          %v5468 = vand.u32 2147483647, %v4879
          %vm5469 = vcmp.eq.f32.partialorder %v5468, 8.507059e+37
          %v5470 = vand.u32 %v4879, 2147483648
          %v5471 = vor.u32 1.1754944e-38, %v5470
          %v5472 = vsel %vm5469, %v5471, %v5467
          %v5473 = vmul.f32 %v5227, %v5472
          %v5474 = vrcp.pop %v4883
          %v5475 = vmul.f32 %v4883, %v5474
          %v5476 = vsub.f32 1.0, %v5475
          %v5477 = vmul.f32 %v5474, %v5476
          %v5478 = vadd.f32 %v5474, %v5477
          %vm5479 = vweird.f32 %v4883
          %vm5480 = vweird.f32 %v5474
          %vm5481 = vmor %vm5479, %vm5480
          %v5482 = vsel %vm5481, %v5474, %v5478
          %v5483 = vand.u32 2147483647, %v4883
          %vm5484 = vcmp.eq.f32.partialorder %v5483, 8.507059e+37
          %v5485 = vand.u32 %v4883, 2147483648
          %v5486 = vor.u32 1.1754944e-38, %v5485
          %v5487 = vsel %vm5484, %v5486, %v5482
          %v5488 = vmul.f32 %v5230, %v5487
          %v5489 = vrcp.pop %v4887
          %v5490 = vmul.f32 %v4887, %v5489
          %v5491 = vsub.f32 1.0, %v5490
          %v5492 = vmul.f32 %v5489, %v5491
          %v5493 = vadd.f32 %v5489, %v5492
          %vm5494 = vweird.f32 %v4887
          %vm5495 = vweird.f32 %v5489
          %vm5496 = vmor %vm5494, %vm5495
          %v5497 = vsel %vm5496, %v5489, %v5493
          %v5498 = vand.u32 2147483647, %v4887
          %vm5499 = vcmp.eq.f32.partialorder %v5498, 8.507059e+37
          %v5500 = vand.u32 %v4887, 2147483648
          %v5501 = vor.u32 1.1754944e-38, %v5500
          %v5502 = vsel %vm5499, %v5501, %v5497
          %v5503 = vmul.f32 %v5233, %v5502
          %v5504 = vadd.f32 %v4242, %v5248
          %v5505 = vadd.f32 %v4243, %v5263
          %v5506 = vadd.f32 %v4244, %v5278
          %v5507 = vadd.f32 %v4245, %v5293
          %v5508 = vadd.f32 %v4246, %v5308
          %v5509 = vadd.f32 %v4247, %v5323
          %v5510 = vadd.f32 %v4248, %v5338
          %v5511 = vadd.f32 %v4249, %v5353
          %v5512 = vadd.f32 %v4250, %v5368
          %v5513 = vadd.f32 %v4251, %v5383
          %v5514 = vadd.f32 %v4252, %v5398
          %v5515 = vadd.f32 %v4253, %v5413
          %v5516 = vadd.f32 %v4254, %v5428
          %v5517 = vadd.f32 %v4255, %v5443
          %v5518 = vadd.f32 %v4256, %v5458
          %v5519 = vadd.f32 %v4257, %v5473
          %v5520 = vadd.f32 %v4258, %v5488
          %v5521 = vadd.f32 %v4259, %v5503
          %v5522 = vld [vmem:[#allocation2] sm:$0xff]
          %v5523 = vld [vmem:[#allocation2 + $0x18] sm:$0xff]
          %v5524 = vld [vmem:[#allocation2 + $0x30] sm:$0xff]
          %v5525 = vld [vmem:[#allocation2 + $0x48] sm:$0xff]
          %v5526 = vld [vmem:[#allocation2 + $0x60] sm:$0xff]
          %v5527 = vld [vmem:[#allocation2 + $0x78] sm:$0xff]
          %v5528 = vld [vmem:[#allocation2 + $0x90] sm:$0xff]
          %v5529 = vld [vmem:[#allocation2 + $0xa8] sm:$0xff]
          %v5530 = vld [vmem:[#allocation2 + $0xc0] sm:$0xff]
          %v5531 = vld [vmem:[#allocation2 + $0xd8] sm:$0xff]
          %v5532 = vld [vmem:[#allocation2 + $0xf0] sm:$0xff]
          %v5533 = vld [vmem:[#allocation2 + $0x108] sm:$0xff]
          %v5534 = vld [vmem:[#allocation2 + $0x120] sm:$0xff]
          %v5535 = vld [vmem:[#allocation2 + $0x138] sm:$0xff]
          %v5536 = vld [vmem:[#allocation2 + $0x150] sm:$0xff]
          %v5537 = vld [vmem:[#allocation2 + $0x168] sm:$0xff]
          %v5538 = vld [vmem:[#allocation2 + $0x180] sm:$0xff]
          %v5539 = vld [vmem:[#allocation2 + $0x198] sm:$0xff]
          %v5540 = vld [vmem:[#allocation2 + $0x8] sm:$0xff]
          %v5541 = vld [vmem:[#allocation2 + $0x20] sm:$0xff]
          %v5542 = vld [vmem:[#allocation2 + $0x38] sm:$0xff]
          %v5543 = vld [vmem:[#allocation2 + $0x50] sm:$0xff]
          %v5544 = vld [vmem:[#allocation2 + $0x68] sm:$0xff]
          %v5545 = vld [vmem:[#allocation2 + $0x80] sm:$0xff]
          %v5546 = vld [vmem:[#allocation2 + $0x98] sm:$0xff]
          %v5547 = vld [vmem:[#allocation2 + $0xb0] sm:$0xff]
          %v5548 = vld [vmem:[#allocation2 + $0xc8] sm:$0xff]
          %v5549 = vld [vmem:[#allocation2 + $0xe0] sm:$0xff]
          %v5550 = vld [vmem:[#allocation2 + $0xf8] sm:$0xff]
          %v5551 = vld [vmem:[#allocation2 + $0x110] sm:$0xff]
          %v5552 = vld [vmem:[#allocation2 + $0x128] sm:$0xff]
          %v5553 = vld [vmem:[#allocation2 + $0x140] sm:$0xff]
          %v5554 = vld [vmem:[#allocation2 + $0x158] sm:$0xff]
          %v5555 = vld [vmem:[#allocation2 + $0x170] sm:$0xff]
          %v5556 = vld [vmem:[#allocation2 + $0x188] sm:$0xff]
          %v5557 = vld [vmem:[#allocation2 + $0x1a0] sm:$0xff]
          %v5558 = vld [vmem:[#allocation2 + $0x10] sm:$0xff]
          %v5559 = vld [vmem:[#allocation2 + $0x28] sm:$0xff]
          %v5560 = vld [vmem:[#allocation2 + $0x40] sm:$0xff]
          %v5561 = vld [vmem:[#allocation2 + $0x58] sm:$0xff]
          %v5562 = vld [vmem:[#allocation2 + $0x70] sm:$0xff]
          %v5563 = vld [vmem:[#allocation2 + $0x88] sm:$0xff]
          %v5564 = vld [vmem:[#allocation2 + $0xa0] sm:$0xff]
          %v5565 = vld [vmem:[#allocation2 + $0xb8] sm:$0xff]
          %v5566 = vld [vmem:[#allocation2 + $0xd0] sm:$0xff]
          %v5567 = vld [vmem:[#allocation2 + $0xe8] sm:$0xff]
          %v5568 = vld [vmem:[#allocation2 + $0x100] sm:$0xff]
          %v5569 = vld [vmem:[#allocation2 + $0x118] sm:$0xff]
          %v5570 = vld [vmem:[#allocation2 + $0x130] sm:$0xff]
          %v5571 = vld [vmem:[#allocation2 + $0x148] sm:$0xff]
          %v5572 = vld [vmem:[#allocation2 + $0x160] sm:$0xff]
          %v5573 = vld [vmem:[#allocation2 + $0x178] sm:$0xff]
          %v5574 = vld [vmem:[#allocation2 + $0x190] sm:$0xff]
          %v5575 = vld [vmem:[#allocation2 + $0x1a8] sm:$0xff]
          %5594 = vrot.lane.b32.xlu0 %v5522, 64
          %v5595 = vpop.permute.xlu0 %5594
          %5596 = vrot.lane.b32.xlu0 %v5523, 64
          %v5597 = vpop.permute.xlu0 %5596
          %5598 = vrot.lane.b32.xlu0 %v5524, 64
          %v5599 = vpop.permute.xlu0 %5598
          %5600 = vrot.lane.b32.xlu0 %v5525, 64
          %v5601 = vpop.permute.xlu0 %5600
          %5602 = vrot.lane.b32.xlu0 %v5526, 64
          %v5603 = vpop.permute.xlu0 %5602
          %5604 = vrot.lane.b32.xlu0 %v5527, 64
          %v5605 = vpop.permute.xlu0 %5604
          %5606 = vrot.lane.b32.xlu0 %v5528, 64
          %v5607 = vpop.permute.xlu0 %5606
          %5608 = vrot.lane.b32.xlu0 %v5529, 64
          %v5609 = vpop.permute.xlu0 %5608
          %5610 = vrot.lane.b32.xlu0 %v5530, 64
          %v5611 = vpop.permute.xlu0 %5610
          %5612 = vrot.lane.b32.xlu0 %v5531, 64
          %v5613 = vpop.permute.xlu0 %5612
          %5614 = vrot.lane.b32.xlu0 %v5532, 64
          %v5615 = vpop.permute.xlu0 %5614
          %5616 = vrot.lane.b32.xlu0 %v5533, 64
          %v5617 = vpop.permute.xlu0 %5616
          %5618 = vrot.lane.b32.xlu0 %v5534, 64
          %v5619 = vpop.permute.xlu0 %5618
          %5620 = vrot.lane.b32.xlu0 %v5535, 64
          %v5621 = vpop.permute.xlu0 %5620
          %5622 = vrot.lane.b32.xlu0 %v5536, 64
          %v5623 = vpop.permute.xlu0 %5622
          %5624 = vrot.lane.b32.xlu0 %v5537, 64
          %v5625 = vpop.permute.xlu0 %5624
          %5626 = vrot.lane.b32.xlu0 %v5538, 64
          %v5627 = vpop.permute.xlu0 %5626
          %5628 = vrot.lane.b32.xlu0 %v5539, 64
          %v5629 = vpop.permute.xlu0 %5628
          %5648 = vrot.lane.b32.xlu0 %v5540, 64
          %v5649 = vpop.permute.xlu0 %5648
          %5650 = vrot.lane.b32.xlu0 %v5541, 64
          %v5651 = vpop.permute.xlu0 %5650
          %5652 = vrot.lane.b32.xlu0 %v5542, 64
          %v5653 = vpop.permute.xlu0 %5652
          %5654 = vrot.lane.b32.xlu0 %v5543, 64
          %v5655 = vpop.permute.xlu0 %5654
          %5656 = vrot.lane.b32.xlu0 %v5544, 64
          %v5657 = vpop.permute.xlu0 %5656
          %5658 = vrot.lane.b32.xlu0 %v5545, 64
          %v5659 = vpop.permute.xlu0 %5658
          %5660 = vrot.lane.b32.xlu0 %v5546, 64
          %v5661 = vpop.permute.xlu0 %5660
          %5662 = vrot.lane.b32.xlu0 %v5547, 64
          %v5663 = vpop.permute.xlu0 %5662
          %5664 = vrot.lane.b32.xlu0 %v5548, 64
          %v5665 = vpop.permute.xlu0 %5664
          %5666 = vrot.lane.b32.xlu0 %v5549, 64
          %v5667 = vpop.permute.xlu0 %5666
          %5668 = vrot.lane.b32.xlu0 %v5550, 64
          %v5669 = vpop.permute.xlu0 %5668
          %5670 = vrot.lane.b32.xlu0 %v5551, 64
          %v5671 = vpop.permute.xlu0 %5670
          %5672 = vrot.lane.b32.xlu0 %v5552, 64
          %v5673 = vpop.permute.xlu0 %5672
          %5674 = vrot.lane.b32.xlu0 %v5553, 64
          %v5675 = vpop.permute.xlu0 %5674
          %5676 = vrot.lane.b32.xlu0 %v5554, 64
          %v5677 = vpop.permute.xlu0 %5676
          %5678 = vrot.lane.b32.xlu0 %v5555, 64
          %v5679 = vpop.permute.xlu0 %5678
          %5680 = vrot.lane.b32.xlu0 %v5556, 64
          %v5681 = vpop.permute.xlu0 %5680
          %5682 = vrot.lane.b32.xlu0 %v5557, 64
          %v5683 = vpop.permute.xlu0 %5682
          %v5684 = vsel %vm673, %v5595, 0
          %v5686 = vsel %vm673, %v5597, 0
          %v5688 = vsel %vm673, %v5599, 0
          %v5690 = vsel %vm673, %v5601, 0
          %v5692 = vsel %vm673, %v5603, 0
          %v5694 = vsel %vm673, %v5605, 0
          %v5696 = vsel %vm673, %v5607, 0
          %v5698 = vsel %vm673, %v5609, 0
          %v5700 = vsel %vm673, %v5611, 0
          %v5702 = vsel %vm673, %v5613, 0
          %v5704 = vsel %vm673, %v5615, 0
          %v5706 = vsel %vm673, %v5617, 0
          %v5708 = vsel %vm673, %v5619, 0
          %v5710 = vsel %vm673, %v5621, 0
          %v5712 = vsel %vm673, %v5623, 0
          %v5714 = vsel %vm673, %v5625, 0
          %v5716 = vsel %vm673, %v5627, 0
          %v5718 = vsel %vm673, %v5629, 0
          %v5720 = vsel %vm673, %v5649, 0
          %v5722 = vsel %vm673, %v5651, 0
          %v5724 = vsel %vm673, %v5653, 0
          %v5726 = vsel %vm673, %v5655, 0
          %v5728 = vsel %vm673, %v5657, 0
          %v5730 = vsel %vm673, %v5659, 0
          %v5732 = vsel %vm673, %v5661, 0
          %v5734 = vsel %vm673, %v5663, 0
          %v5736 = vsel %vm673, %v5665, 0
          %v5738 = vsel %vm673, %v5667, 0
          %v5740 = vsel %vm673, %v5669, 0
          %v5742 = vsel %vm673, %v5671, 0
          %v5744 = vsel %vm673, %v5673, 0
          %v5746 = vsel %vm673, %v5675, 0
          %v5748 = vsel %vm673, %v5677, 0
          %v5750 = vsel %vm673, %v5679, 0
          %v5752 = vsel %vm673, %v5681, 0
          %v5754 = vsel %vm673, %v5683, 0
          %5756 = vmatpush.xpose.msra.mxu0 %v5750
          %5757 = vmatpush.xpose.msra.mxu0 %v5748
          %5758 = vmatpush.xpose.msra.mxu0 %v5746
          %5759 = vmatpush.xpose.msra.mxu0 %v5744
          %5760 = vmatpush.xpose.msra.mxu0 %v5742
          %5761 = vmatpush.xpose.msra.mxu0 %v5740
          %5762 = vmatpush.xpose.msra.mxu0 %v5738
          %5763 = vmatpush.xpose.msra.mxu0 %v5736
          %5764 = vmatpush.xpose.msra.mxu0 %v5734
          %5765 = vmatpush.xpose.msra.mxu0 %v5732
          %5766 = vmatpush.xpose.msra.mxu0 %v5730
          %5767 = vmatpush.xpose.msra.mxu0 %v5728
          %5768 = vmatpush.xpose.msra.mxu0 %v5726
          %5769 = vmatpush.xpose.msra.mxu0 %v5724
          %5770 = vmatpush.xpose.msra.mxu0 %v5722
          %5771 = vmatpush.xpose.msra.mxu0 %v5720
          %5772 = vmatmul.f32.gmra.mxu0 %v5684
          %v5773 = vpop.f32.mrf.mxu0
          %v5774 = vadd.f32 0.0, %v5773
          %5775 = vmatmul.f32.gmra.mxu0 %v5686
          %v5776 = vpop.f32.mrf.mxu0
          %v5777 = vadd.f32 0.0, %v5776
          %5778 = vmatmul.f32.gmra.mxu0 %v5688
          %v5779 = vpop.f32.mrf.mxu0
          %v5780 = vadd.f32 0.0, %v5779
          %5781 = vmatmul.f32.gmra.mxu0 %v5690
          %v5782 = vpop.f32.mrf.mxu0
          %v5783 = vadd.f32 0.0, %v5782
          %5784 = vmatmul.f32.gmra.mxu0 %v5692
          %v5785 = vpop.f32.mrf.mxu0
          %v5786 = vadd.f32 0.0, %v5785
          %5787 = vmatmul.f32.gmra.mxu0 %v5694
          %v5788 = vpop.f32.mrf.mxu0
          %v5789 = vadd.f32 0.0, %v5788
          %5790 = vmatmul.f32.gmra.mxu0 %v5696
          %v5791 = vpop.f32.mrf.mxu0
          %v5792 = vadd.f32 0.0, %v5791
          %5793 = vmatmul.f32.gmra.mxu0 %v5698
          %v5794 = vpop.f32.mrf.mxu0
          %v5795 = vadd.f32 0.0, %v5794
          %5796 = vmatmul.f32.gmra.mxu0 %v5700
          %v5797 = vpop.f32.mrf.mxu0
          %v5798 = vadd.f32 0.0, %v5797
          %5799 = vmatmul.f32.gmra.mxu0 %v5702
          %v5800 = vpop.f32.mrf.mxu0
          %v5801 = vadd.f32 0.0, %v5800
          %5802 = vmatmul.f32.gmra.mxu0 %v5704
          %v5803 = vpop.f32.mrf.mxu0
          %v5804 = vadd.f32 0.0, %v5803
          %5805 = vmatmul.f32.gmra.mxu0 %v5706
          %v5806 = vpop.f32.mrf.mxu0
          %v5807 = vadd.f32 0.0, %v5806
          %5808 = vmatmul.f32.gmra.mxu0 %v5708
          %v5809 = vpop.f32.mrf.mxu0
          %v5810 = vadd.f32 0.0, %v5809
          %5811 = vmatmul.f32.gmra.mxu0 %v5710
          %v5812 = vpop.f32.mrf.mxu0
          %v5813 = vadd.f32 0.0, %v5812
          %5814 = vmatmul.f32.gmra.mxu0 %v5712
          %v5815 = vpop.f32.mrf.mxu0
          %v5816 = vadd.f32 0.0, %v5815
          %5817 = vmatmul.f32.gmra.mxu0 %v5714
          %v5818 = vpop.f32.mrf.mxu0
          %v5819 = vadd.f32 0.0, %v5818
          %5820 = vmatmul.f32.gmra.mxu0 %v5716
          %v5821 = vpop.f32.mrf.mxu0
          %v5822 = vadd.f32 0.0, %v5821
          %5823 = vmatmul.f32.gmra.mxu0 %v5718
          %v5824 = vpop.f32.mrf.mxu0
          %v5825 = vadd.f32 0.0, %v5824
          %5826 = vdwg.mxu0
          %5827 = vmatpush.xpose.msra.mxu0 0.0
          %5828 = vmatpush.xpose.msra.mxu0 0.0
          %5829 = vmatpush.xpose.msra.mxu0 0.0
          %5830 = vmatpush.xpose.msra.mxu0 0.0
          %5831 = vmatpush.xpose.msra.mxu0 0.0
          %5832 = vmatpush.xpose.msra.mxu0 0.0
          %5833 = vmatpush.xpose.msra.mxu0 0.0
          %5834 = vmatpush.xpose.msra.mxu0 0.0
          %5835 = vmatpush.xpose.msra.mxu0 0.0
          %5836 = vmatpush.xpose.msra.mxu0 0.0
          %5837 = vmatpush.xpose.msra.mxu0 0.0
          %5838 = vmatpush.xpose.msra.mxu0 0.0
          %5839 = vmatpush.xpose.msra.mxu0 0.0
          %5840 = vmatpush.xpose.msra.mxu0 0.0
          %5841 = vmatpush.xpose.msra.mxu0 %v5754
          %5842 = vmatpush.xpose.msra.mxu0 %v5752
          %5843 = vmatmul.f32.gmra.mxu0 %v5684
          %v5844 = vpop.f32.mrf.mxu0
          %v5845 = vadd.f32 0.0, %v5844
          %5846 = vmatmul.f32.gmra.mxu0 %v5686
          %v5847 = vpop.f32.mrf.mxu0
          %v5848 = vadd.f32 0.0, %v5847
          %5849 = vmatmul.f32.gmra.mxu0 %v5688
          %v5850 = vpop.f32.mrf.mxu0
          %v5851 = vadd.f32 0.0, %v5850
          %5852 = vmatmul.f32.gmra.mxu0 %v5690
          %v5853 = vpop.f32.mrf.mxu0
          %v5854 = vadd.f32 0.0, %v5853
          %5855 = vmatmul.f32.gmra.mxu0 %v5692
          %v5856 = vpop.f32.mrf.mxu0
          %v5857 = vadd.f32 0.0, %v5856
          %5858 = vmatmul.f32.gmra.mxu0 %v5694
          %v5859 = vpop.f32.mrf.mxu0
          %v5860 = vadd.f32 0.0, %v5859
          %5861 = vmatmul.f32.gmra.mxu0 %v5696
          %v5862 = vpop.f32.mrf.mxu0
          %v5863 = vadd.f32 0.0, %v5862
          %5864 = vmatmul.f32.gmra.mxu0 %v5698
          %v5865 = vpop.f32.mrf.mxu0
          %v5866 = vadd.f32 0.0, %v5865
          %5867 = vmatmul.f32.gmra.mxu0 %v5700
          %v5868 = vpop.f32.mrf.mxu0
          %v5869 = vadd.f32 0.0, %v5868
          %5870 = vmatmul.f32.gmra.mxu0 %v5702
          %v5871 = vpop.f32.mrf.mxu0
          %v5872 = vadd.f32 0.0, %v5871
          %5873 = vmatmul.f32.gmra.mxu0 %v5704
          %v5874 = vpop.f32.mrf.mxu0
          %v5875 = vadd.f32 0.0, %v5874
          %5876 = vmatmul.f32.gmra.mxu0 %v5706
          %v5877 = vpop.f32.mrf.mxu0
          %v5878 = vadd.f32 0.0, %v5877
          %5879 = vmatmul.f32.gmra.mxu0 %v5708
          %v5880 = vpop.f32.mrf.mxu0
          %v5881 = vadd.f32 0.0, %v5880
          %5882 = vmatmul.f32.gmra.mxu0 %v5710
          %v5883 = vpop.f32.mrf.mxu0
          %v5884 = vadd.f32 0.0, %v5883
          %5885 = vmatmul.f32.gmra.mxu0 %v5712
          %v5886 = vpop.f32.mrf.mxu0
          %v5887 = vadd.f32 0.0, %v5886
          %5888 = vmatmul.f32.gmra.mxu0 %v5714
          %v5889 = vpop.f32.mrf.mxu0
          %v5890 = vadd.f32 0.0, %v5889
          %5891 = vmatmul.f32.gmra.mxu0 %v5716
          %v5892 = vpop.f32.mrf.mxu0
          %v5893 = vadd.f32 0.0, %v5892
          %5894 = vmatmul.f32.gmra.mxu0 %v5718
          %v5895 = vpop.f32.mrf.mxu0
          %v5896 = vadd.f32 0.0, %v5895
          %5897 = vdwg.mxu0
          %v5898 = vsel %vm673, %v5845, -inf
          %v5899 = vmax.f32 %v5774, %v5898
          %5900 = vmax.xlane.f32.xlu0 %v5899
          %v5901 = vpop.xlane.xlu0 %5900
          %v5902 = vsel %vm673, %v5848, -inf
          %v5903 = vmax.f32 %v5777, %v5902
          %5904 = vmax.xlane.f32.xlu0 %v5903
          %v5905 = vpop.xlane.xlu0 %5904
          %v5906 = vsel %vm673, %v5851, -inf
          %v5907 = vmax.f32 %v5780, %v5906
          %5908 = vmax.xlane.f32.xlu0 %v5907
          %v5909 = vpop.xlane.xlu0 %5908
          %v5910 = vsel %vm673, %v5854, -inf
          %v5911 = vmax.f32 %v5783, %v5910
          %5912 = vmax.xlane.f32.xlu0 %v5911
          %v5913 = vpop.xlane.xlu0 %5912
          %v5914 = vsel %vm673, %v5857, -inf
          %v5915 = vmax.f32 %v5786, %v5914
          %5916 = vmax.xlane.f32.xlu0 %v5915
          %v5917 = vpop.xlane.xlu0 %5916
          %v5918 = vsel %vm673, %v5860, -inf
          %v5919 = vmax.f32 %v5789, %v5918
          %5920 = vmax.xlane.f32.xlu0 %v5919
          %v5921 = vpop.xlane.xlu0 %5920
          %v5922 = vsel %vm673, %v5863, -inf
          %v5923 = vmax.f32 %v5792, %v5922
          %5924 = vmax.xlane.f32.xlu0 %v5923
          %v5925 = vpop.xlane.xlu0 %5924
          %v5926 = vsel %vm673, %v5866, -inf
          %v5927 = vmax.f32 %v5795, %v5926
          %5928 = vmax.xlane.f32.xlu0 %v5927
          %v5929 = vpop.xlane.xlu0 %5928
          %v5930 = vsel %vm673, %v5869, -inf
          %v5931 = vmax.f32 %v5798, %v5930
          %5932 = vmax.xlane.f32.xlu0 %v5931
          %v5933 = vpop.xlane.xlu0 %5932
          %v5934 = vsel %vm673, %v5872, -inf
          %v5935 = vmax.f32 %v5801, %v5934
          %5936 = vmax.xlane.f32.xlu0 %v5935
          %v5937 = vpop.xlane.xlu0 %5936
          %v5938 = vsel %vm673, %v5875, -inf
          %v5939 = vmax.f32 %v5804, %v5938
          %5940 = vmax.xlane.f32.xlu0 %v5939
          %v5941 = vpop.xlane.xlu0 %5940
          %v5942 = vsel %vm673, %v5878, -inf
          %v5943 = vmax.f32 %v5807, %v5942
          %5944 = vmax.xlane.f32.xlu0 %v5943
          %v5945 = vpop.xlane.xlu0 %5944
          %v5946 = vsel %vm673, %v5881, -inf
          %v5947 = vmax.f32 %v5810, %v5946
          %5948 = vmax.xlane.f32.xlu0 %v5947
          %v5949 = vpop.xlane.xlu0 %5948
          %v5950 = vsel %vm673, %v5884, -inf
          %v5951 = vmax.f32 %v5813, %v5950
          %5952 = vmax.xlane.f32.xlu0 %v5951
          %v5953 = vpop.xlane.xlu0 %5952
          %v5954 = vsel %vm673, %v5887, -inf
          %v5955 = vmax.f32 %v5816, %v5954
          %5956 = vmax.xlane.f32.xlu0 %v5955
          %v5957 = vpop.xlane.xlu0 %5956
          %v5958 = vsel %vm673, %v5890, -inf
          %v5959 = vmax.f32 %v5819, %v5958
          %5960 = vmax.xlane.f32.xlu0 %v5959
          %v5961 = vpop.xlane.xlu0 %5960
          %v5962 = vsel %vm673, %v5893, -inf
          %v5963 = vmax.f32 %v5822, %v5962
          %5964 = vmax.xlane.f32.xlu0 %v5963
          %v5965 = vpop.xlane.xlu0 %5964
          %v5966 = vsel %vm673, %v5896, -inf
          %v5967 = vmax.f32 %v5825, %v5966
          %5968 = vmax.xlane.f32.xlu0 %v5967
          %v5969 = vpop.xlane.xlu0 %5968
          %v5970 = vsub.f32 %v5774, %v5901
          %v5971 = vsub.f32 %v5845, %v5901
          %v5972 = vsub.f32 %v5777, %v5905
          %v5973 = vsub.f32 %v5848, %v5905
          %v5974 = vsub.f32 %v5780, %v5909
          %v5975 = vsub.f32 %v5851, %v5909
          %v5976 = vsub.f32 %v5783, %v5913
          %v5977 = vsub.f32 %v5854, %v5913
          %v5978 = vsub.f32 %v5786, %v5917
          %v5979 = vsub.f32 %v5857, %v5917
          %v5980 = vsub.f32 %v5789, %v5921
          %v5981 = vsub.f32 %v5860, %v5921
          %v5982 = vsub.f32 %v5792, %v5925
          %v5983 = vsub.f32 %v5863, %v5925
          %v5984 = vsub.f32 %v5795, %v5929
          %v5985 = vsub.f32 %v5866, %v5929
          %v5986 = vsub.f32 %v5798, %v5933
          %v5987 = vsub.f32 %v5869, %v5933
          %v5988 = vsub.f32 %v5801, %v5937
          %v5989 = vsub.f32 %v5872, %v5937
          %v5990 = vsub.f32 %v5804, %v5941
          %v5991 = vsub.f32 %v5875, %v5941
          %v5992 = vsub.f32 %v5807, %v5945
          %v5993 = vsub.f32 %v5878, %v5945
          %v5994 = vsub.f32 %v5810, %v5949
          %v5995 = vsub.f32 %v5881, %v5949
          %v5996 = vsub.f32 %v5813, %v5953
          %v5997 = vsub.f32 %v5884, %v5953
          %v5998 = vsub.f32 %v5816, %v5957
          %v5999 = vsub.f32 %v5887, %v5957
          %v6000 = vsub.f32 %v5819, %v5961
          %v6001 = vsub.f32 %v5890, %v5961
          %v6002 = vsub.f32 %v5822, %v5965
          %v6003 = vsub.f32 %v5893, %v5965
          %v6004 = vsub.f32 %v5825, %v5969
          %v6005 = vsub.f32 %v5896, %v5969
          %v6006 = vmul.f32 %v5970, 1.442695
          %v6007 = vpow.pop %v6006
          %v6008 = vmul.f32 %v5971, 1.442695
          %v6009 = vpow.pop %v6008
          %v6010 = vmul.f32 %v5972, 1.442695
          %v6011 = vpow.pop %v6010
          %v6012 = vmul.f32 %v5973, 1.442695
          %v6013 = vpow.pop %v6012
          %v6014 = vmul.f32 %v5974, 1.442695
          %v6015 = vpow.pop %v6014
          %v6016 = vmul.f32 %v5975, 1.442695
          %v6017 = vpow.pop %v6016
          %v6018 = vmul.f32 %v5976, 1.442695
          %v6019 = vpow.pop %v6018
          %v6020 = vmul.f32 %v5977, 1.442695
          %v6021 = vpow.pop %v6020
          %v6022 = vmul.f32 %v5978, 1.442695
          %v6023 = vpow.pop %v6022
          %v6024 = vmul.f32 %v5979, 1.442695
          %v6025 = vpow.pop %v6024
          %v6026 = vmul.f32 %v5980, 1.442695
          %v6027 = vpow.pop %v6026
          %v6028 = vmul.f32 %v5981, 1.442695
          %v6029 = vpow.pop %v6028
          %v6030 = vmul.f32 %v5982, 1.442695
          %v6031 = vpow.pop %v6030
          %v6032 = vmul.f32 %v5983, 1.442695
          %v6033 = vpow.pop %v6032
          %v6034 = vmul.f32 %v5984, 1.442695
          %v6035 = vpow.pop %v6034
          %v6036 = vmul.f32 %v5985, 1.442695
          %v6037 = vpow.pop %v6036
          %v6038 = vmul.f32 %v5986, 1.442695
          %v6039 = vpow.pop %v6038
          %v6040 = vmul.f32 %v5987, 1.442695
          %v6041 = vpow.pop %v6040
          %v6042 = vmul.f32 %v5988, 1.442695
          %v6043 = vpow.pop %v6042
          %v6044 = vmul.f32 %v5989, 1.442695
          %v6045 = vpow.pop %v6044
          %v6046 = vmul.f32 %v5990, 1.442695
          %v6047 = vpow.pop %v6046
          %v6048 = vmul.f32 %v5991, 1.442695
          %v6049 = vpow.pop %v6048
          %v6050 = vmul.f32 %v5992, 1.442695
          %v6051 = vpow.pop %v6050
          %v6052 = vmul.f32 %v5993, 1.442695
          %v6053 = vpow.pop %v6052
          %v6054 = vmul.f32 %v5994, 1.442695
          %v6055 = vpow.pop %v6054
          %v6056 = vmul.f32 %v5995, 1.442695
          %v6057 = vpow.pop %v6056
          %v6058 = vmul.f32 %v5996, 1.442695
          %v6059 = vpow.pop %v6058
          %v6060 = vmul.f32 %v5997, 1.442695
          %v6061 = vpow.pop %v6060
          %v6062 = vmul.f32 %v5998, 1.442695
          %v6063 = vpow.pop %v6062
          %v6064 = vmul.f32 %v5999, 1.442695
          %v6065 = vpow.pop %v6064
          %v6066 = vmul.f32 %v6000, 1.442695
          %v6067 = vpow.pop %v6066
          %v6068 = vmul.f32 %v6001, 1.442695
          %v6069 = vpow.pop %v6068
          %v6070 = vmul.f32 %v6002, 1.442695
          %v6071 = vpow.pop %v6070
          %v6072 = vmul.f32 %v6003, 1.442695
          %v6073 = vpow.pop %v6072
          %v6074 = vmul.f32 %v6004, 1.442695
          %v6075 = vpow.pop %v6074
          %v6076 = vmul.f32 %v6005, 1.442695
          %v6077 = vpow.pop %v6076
          %v6078 = vsel %vm673, %v6009, 0.0
          %v6079 = vadd.f32 %v6007, %v6078
          %6080 = vadd.xlane.f32.xlu0 %v6079
          %v6081 = vpop.xlane.xlu0 %6080
          %v6082 = vsel %vm673, %v6013, 0.0
          %v6083 = vadd.f32 %v6011, %v6082
          %6084 = vadd.xlane.f32.xlu0 %v6083
          %v6085 = vpop.xlane.xlu0 %6084
          %v6086 = vsel %vm673, %v6017, 0.0
          %v6087 = vadd.f32 %v6015, %v6086
          %6088 = vadd.xlane.f32.xlu0 %v6087
          %v6089 = vpop.xlane.xlu0 %6088
          %v6090 = vsel %vm673, %v6021, 0.0
          %v6091 = vadd.f32 %v6019, %v6090
          %6092 = vadd.xlane.f32.xlu0 %v6091
          %v6093 = vpop.xlane.xlu0 %6092
          %v6094 = vsel %vm673, %v6025, 0.0
          %v6095 = vadd.f32 %v6023, %v6094
          %6096 = vadd.xlane.f32.xlu0 %v6095
          %v6097 = vpop.xlane.xlu0 %6096
          %v6098 = vsel %vm673, %v6029, 0.0
          %v6099 = vadd.f32 %v6027, %v6098
          %6100 = vadd.xlane.f32.xlu0 %v6099
          %v6101 = vpop.xlane.xlu0 %6100
          %v6102 = vsel %vm673, %v6033, 0.0
          %v6103 = vadd.f32 %v6031, %v6102
          %6104 = vadd.xlane.f32.xlu0 %v6103
          %v6105 = vpop.xlane.xlu0 %6104
          %v6106 = vsel %vm673, %v6037, 0.0
          %v6107 = vadd.f32 %v6035, %v6106
          %6108 = vadd.xlane.f32.xlu0 %v6107
          %v6109 = vpop.xlane.xlu0 %6108
          %v6110 = vsel %vm673, %v6041, 0.0
          %v6111 = vadd.f32 %v6039, %v6110
          %6112 = vadd.xlane.f32.xlu0 %v6111
          %v6113 = vpop.xlane.xlu0 %6112
          %v6114 = vsel %vm673, %v6045, 0.0
          %v6115 = vadd.f32 %v6043, %v6114
          %6116 = vadd.xlane.f32.xlu0 %v6115
          %v6117 = vpop.xlane.xlu0 %6116
          %v6118 = vsel %vm673, %v6049, 0.0
          %v6119 = vadd.f32 %v6047, %v6118
          %6120 = vadd.xlane.f32.xlu0 %v6119
          %v6121 = vpop.xlane.xlu0 %6120
          %v6122 = vsel %vm673, %v6053, 0.0
          %v6123 = vadd.f32 %v6051, %v6122
          %6124 = vadd.xlane.f32.xlu0 %v6123
          %v6125 = vpop.xlane.xlu0 %6124
          %v6126 = vsel %vm673, %v6057, 0.0
          %v6127 = vadd.f32 %v6055, %v6126
          %6128 = vadd.xlane.f32.xlu0 %v6127
          %v6129 = vpop.xlane.xlu0 %6128
          %v6130 = vsel %vm673, %v6061, 0.0
          %v6131 = vadd.f32 %v6059, %v6130
          %6132 = vadd.xlane.f32.xlu0 %v6131
          %v6133 = vpop.xlane.xlu0 %6132
          %v6134 = vsel %vm673, %v6065, 0.0
          %v6135 = vadd.f32 %v6063, %v6134
          %6136 = vadd.xlane.f32.xlu0 %v6135
          %v6137 = vpop.xlane.xlu0 %6136
          %v6138 = vsel %vm673, %v6069, 0.0
          %v6139 = vadd.f32 %v6067, %v6138
          %6140 = vadd.xlane.f32.xlu0 %v6139
          %v6141 = vpop.xlane.xlu0 %6140
          %v6142 = vsel %vm673, %v6073, 0.0
          %v6143 = vadd.f32 %v6071, %v6142
          %6144 = vadd.xlane.f32.xlu0 %v6143
          %v6145 = vpop.xlane.xlu0 %6144
          %v6146 = vsel %vm673, %v6077, 0.0
          %v6147 = vadd.f32 %v6075, %v6146
          %6148 = vadd.xlane.f32.xlu0 %v6147
          %v6149 = vpop.xlane.xlu0 %6148
          %6168 = vrot.lane.b32.xlu0 %v5558, 64
          %v6169 = vpop.permute.xlu0 %6168
          %6170 = vrot.lane.b32.xlu0 %v5559, 64
          %v6171 = vpop.permute.xlu0 %6170
          %6172 = vrot.lane.b32.xlu0 %v5560, 64
          %v6173 = vpop.permute.xlu0 %6172
          %6174 = vrot.lane.b32.xlu0 %v5561, 64
          %v6175 = vpop.permute.xlu0 %6174
          %6176 = vrot.lane.b32.xlu0 %v5562, 64
          %v6177 = vpop.permute.xlu0 %6176
          %6178 = vrot.lane.b32.xlu0 %v5563, 64
          %v6179 = vpop.permute.xlu0 %6178
          %6180 = vrot.lane.b32.xlu0 %v5564, 64
          %v6181 = vpop.permute.xlu0 %6180
          %6182 = vrot.lane.b32.xlu0 %v5565, 64
          %v6183 = vpop.permute.xlu0 %6182
          %6184 = vrot.lane.b32.xlu0 %v5566, 64
          %v6185 = vpop.permute.xlu0 %6184
          %6186 = vrot.lane.b32.xlu0 %v5567, 64
          %v6187 = vpop.permute.xlu0 %6186
          %6188 = vrot.lane.b32.xlu0 %v5568, 64
          %v6189 = vpop.permute.xlu0 %6188
          %6190 = vrot.lane.b32.xlu0 %v5569, 64
          %v6191 = vpop.permute.xlu0 %6190
          %6192 = vrot.lane.b32.xlu0 %v5570, 64
          %v6193 = vpop.permute.xlu0 %6192
          %6194 = vrot.lane.b32.xlu0 %v5571, 64
          %v6195 = vpop.permute.xlu0 %6194
          %6196 = vrot.lane.b32.xlu0 %v5572, 64
          %v6197 = vpop.permute.xlu0 %6196
          %6198 = vrot.lane.b32.xlu0 %v5573, 64
          %v6199 = vpop.permute.xlu0 %6198
          %6200 = vrot.lane.b32.xlu0 %v5574, 64
          %v6201 = vpop.permute.xlu0 %6200
          %6202 = vrot.lane.b32.xlu0 %v5575, 64
          %v6203 = vpop.permute.xlu0 %6202
          %v6223 = vsel %vm673, %v6009, 0
          %v6226 = vsel %vm673, %v6013, 0
          %v6229 = vsel %vm673, %v6017, 0
          %v6232 = vsel %vm673, %v6021, 0
          %v6235 = vsel %vm673, %v6025, 0
          %v6238 = vsel %vm673, %v6029, 0
          %v6241 = vsel %vm673, %v6033, 0
          %v6244 = vsel %vm673, %v6037, 0
          %v6247 = vsel %vm673, %v6041, 0
          %v6250 = vsel %vm673, %v6045, 0
          %v6253 = vsel %vm673, %v6049, 0
          %v6256 = vsel %vm673, %v6053, 0
          %v6259 = vsel %vm673, %v6057, 0
          %v6262 = vsel %vm673, %v6061, 0
          %v6265 = vsel %vm673, %v6065, 0
          %v6268 = vsel %vm673, %v6069, 0
          %v6271 = vsel %vm673, %v6073, 0
          %v6274 = vsel %vm673, %v6077, 0
          %6276 = vmatpush.msra.mxu0 %v6199
          %6277 = vmatpush.msra.mxu0 %v6197
          %6278 = vmatpush.msra.mxu0 %v6195
          %6279 = vmatpush.msra.mxu0 %v6193
          %6280 = vmatpush.msra.mxu0 %v6191
          %6281 = vmatpush.msra.mxu0 %v6189
          %6282 = vmatpush.msra.mxu0 %v6187
          %6283 = vmatpush.msra.mxu0 %v6185
          %6284 = vmatpush.msra.mxu0 %v6183
          %6285 = vmatpush.msra.mxu0 %v6181
          %6286 = vmatpush.msra.mxu0 %v6179
          %6287 = vmatpush.msra.mxu0 %v6177
          %6288 = vmatpush.msra.mxu0 %v6175
          %6289 = vmatpush.msra.mxu0 %v6173
          %6290 = vmatpush.msra.mxu0 %v6171
          %6291 = vmatpush.msra.mxu0 %v6169
          %6292 = vmatmul.f32.gmra.mxu0 %v6007
          %v6293 = vpop.f32.mrf.mxu0
          %v6294 = vadd.f32 0.0, %v6293
          %6295 = vmatmul.f32.gmra.mxu0 %v6011
          %v6296 = vpop.f32.mrf.mxu0
          %v6297 = vadd.f32 0.0, %v6296
          %6298 = vmatmul.f32.gmra.mxu0 %v6015
          %v6299 = vpop.f32.mrf.mxu0
          %v6300 = vadd.f32 0.0, %v6299
          %6301 = vmatmul.f32.gmra.mxu0 %v6019
          %v6302 = vpop.f32.mrf.mxu0
          %v6303 = vadd.f32 0.0, %v6302
          %6304 = vmatmul.f32.gmra.mxu0 %v6023
          %v6305 = vpop.f32.mrf.mxu0
          %v6306 = vadd.f32 0.0, %v6305
          %6307 = vmatmul.f32.gmra.mxu0 %v6027
          %v6308 = vpop.f32.mrf.mxu0
          %v6309 = vadd.f32 0.0, %v6308
          %6310 = vmatmul.f32.gmra.mxu0 %v6031
          %v6311 = vpop.f32.mrf.mxu0
          %v6312 = vadd.f32 0.0, %v6311
          %6313 = vmatmul.f32.gmra.mxu0 %v6035
          %v6314 = vpop.f32.mrf.mxu0
          %v6315 = vadd.f32 0.0, %v6314
          %6316 = vmatmul.f32.gmra.mxu0 %v6039
          %v6317 = vpop.f32.mrf.mxu0
          %v6318 = vadd.f32 0.0, %v6317
          %6319 = vmatmul.f32.gmra.mxu0 %v6043
          %v6320 = vpop.f32.mrf.mxu0
          %v6321 = vadd.f32 0.0, %v6320
          %6322 = vmatmul.f32.gmra.mxu0 %v6047
          %v6323 = vpop.f32.mrf.mxu0
          %v6324 = vadd.f32 0.0, %v6323
          %6325 = vmatmul.f32.gmra.mxu0 %v6051
          %v6326 = vpop.f32.mrf.mxu0
          %v6327 = vadd.f32 0.0, %v6326
          %6328 = vmatmul.f32.gmra.mxu0 %v6055
          %v6329 = vpop.f32.mrf.mxu0
          %v6330 = vadd.f32 0.0, %v6329
          %6331 = vmatmul.f32.gmra.mxu0 %v6059
          %v6332 = vpop.f32.mrf.mxu0
          %v6333 = vadd.f32 0.0, %v6332
          %6334 = vmatmul.f32.gmra.mxu0 %v6063
          %v6335 = vpop.f32.mrf.mxu0
          %v6336 = vadd.f32 0.0, %v6335
          %6337 = vmatmul.f32.gmra.mxu0 %v6067
          %v6338 = vpop.f32.mrf.mxu0
          %v6339 = vadd.f32 0.0, %v6338
          %6340 = vmatmul.f32.gmra.mxu0 %v6071
          %v6341 = vpop.f32.mrf.mxu0
          %v6342 = vadd.f32 0.0, %v6341
          %6343 = vmatmul.f32.gmra.mxu0 %v6075
          %v6344 = vpop.f32.mrf.mxu0
          %v6345 = vadd.f32 0.0, %v6344
          %6346 = vdwg.mxu0
          %6347 = vmatpush.msra.mxu0 0.0
          %6348 = vmatpush.msra.mxu0 0.0
          %6349 = vmatpush.msra.mxu0 0.0
          %6350 = vmatpush.msra.mxu0 0.0
          %6351 = vmatpush.msra.mxu0 0.0
          %6352 = vmatpush.msra.mxu0 0.0
          %6353 = vmatpush.msra.mxu0 0.0
          %6354 = vmatpush.msra.mxu0 0.0
          %6355 = vmatpush.msra.mxu0 0.0
          %6356 = vmatpush.msra.mxu0 0.0
          %6357 = vmatpush.msra.mxu0 0.0
          %6358 = vmatpush.msra.mxu0 0.0
          %6359 = vmatpush.msra.mxu0 0.0
          %6360 = vmatpush.msra.mxu0 0.0
          %6361 = vmatpush.msra.mxu0 %v6203
          %6362 = vmatpush.msra.mxu0 %v6201
          %6363 = vmatmul.f32.gmra.mxu0 %v6223
          %v6364 = vpop.f32.mrf.mxu0
          %v6365 = vadd.f32 %v6294, %v6364
          %6366 = vmatmul.f32.gmra.mxu0 %v6226
          %v6367 = vpop.f32.mrf.mxu0
          %v6368 = vadd.f32 %v6297, %v6367
          %6369 = vmatmul.f32.gmra.mxu0 %v6229
          %v6370 = vpop.f32.mrf.mxu0
          %v6371 = vadd.f32 %v6300, %v6370
          %6372 = vmatmul.f32.gmra.mxu0 %v6232
          %v6373 = vpop.f32.mrf.mxu0
          %v6374 = vadd.f32 %v6303, %v6373
          %6375 = vmatmul.f32.gmra.mxu0 %v6235
          %v6376 = vpop.f32.mrf.mxu0
          %v6377 = vadd.f32 %v6306, %v6376
          %6378 = vmatmul.f32.gmra.mxu0 %v6238
          %v6379 = vpop.f32.mrf.mxu0
          %v6380 = vadd.f32 %v6309, %v6379
          %6381 = vmatmul.f32.gmra.mxu0 %v6241
          %v6382 = vpop.f32.mrf.mxu0
          %v6383 = vadd.f32 %v6312, %v6382
          %6384 = vmatmul.f32.gmra.mxu0 %v6244
          %v6385 = vpop.f32.mrf.mxu0
          %v6386 = vadd.f32 %v6315, %v6385
          %6387 = vmatmul.f32.gmra.mxu0 %v6247
          %v6388 = vpop.f32.mrf.mxu0
          %v6389 = vadd.f32 %v6318, %v6388
          %6390 = vmatmul.f32.gmra.mxu0 %v6250
          %v6391 = vpop.f32.mrf.mxu0
          %v6392 = vadd.f32 %v6321, %v6391
          %6393 = vmatmul.f32.gmra.mxu0 %v6253
          %v6394 = vpop.f32.mrf.mxu0
          %v6395 = vadd.f32 %v6324, %v6394
          %6396 = vmatmul.f32.gmra.mxu0 %v6256
          %v6397 = vpop.f32.mrf.mxu0
          %v6398 = vadd.f32 %v6327, %v6397
          %6399 = vmatmul.f32.gmra.mxu0 %v6259
          %v6400 = vpop.f32.mrf.mxu0
          %v6401 = vadd.f32 %v6330, %v6400
          %6402 = vmatmul.f32.gmra.mxu0 %v6262
          %v6403 = vpop.f32.mrf.mxu0
          %v6404 = vadd.f32 %v6333, %v6403
          %6405 = vmatmul.f32.gmra.mxu0 %v6265
          %v6406 = vpop.f32.mrf.mxu0
          %v6407 = vadd.f32 %v6336, %v6406
          %6408 = vmatmul.f32.gmra.mxu0 %v6268
          %v6409 = vpop.f32.mrf.mxu0
          %v6410 = vadd.f32 %v6339, %v6409
          %6411 = vmatmul.f32.gmra.mxu0 %v6271
          %v6412 = vpop.f32.mrf.mxu0
          %v6413 = vadd.f32 %v6342, %v6412
          %6414 = vmatmul.f32.gmra.mxu0 %v6274
          %v6415 = vpop.f32.mrf.mxu0
          %v6416 = vadd.f32 %v6345, %v6415
          %6417 = vdwg.mxu0
          %v6418 = vld [vmem:[%s3] sm:$0x1]
          %v6420 = vperm.slane %v6418, 0
          %6421 = vrot.lane.b32.xlu0 %v6420, 64
          %v6422 = vpop.permute.xlu0 %6421
          %v6424 = vmul.f32 %v6365, %v6422
          %v6425 = vmul.f32 %v6368, %v6422
          %v6426 = vmul.f32 %v6371, %v6422
          %v6427 = vmul.f32 %v6374, %v6422
          %v6428 = vmul.f32 %v6377, %v6422
          %v6429 = vmul.f32 %v6380, %v6422
          %v6430 = vmul.f32 %v6383, %v6422
          %v6431 = vmul.f32 %v6386, %v6422
          %v6432 = vmul.f32 %v6389, %v6422
          %v6433 = vmul.f32 %v6392, %v6422
          %v6434 = vmul.f32 %v6395, %v6422
          %v6435 = vmul.f32 %v6398, %v6422
          %v6436 = vmul.f32 %v6401, %v6422
          %v6437 = vmul.f32 %v6404, %v6422
          %v6438 = vmul.f32 %v6407, %v6422
          %v6439 = vmul.f32 %v6410, %v6422
          %v6440 = vmul.f32 %v6413, %v6422
          %v6441 = vmul.f32 %v6416, %v6422
          %v6442 = vsel %vm673, %v6424, 0.0
          %6443 = vadd.xlane.f32.xlu0 %v6442
          %v6444 = vpop.xlane.xlu0 %6443
          %v6445 = vsel %vm673, %v6425, 0.0
          %6446 = vadd.xlane.f32.xlu0 %v6445
          %v6447 = vpop.xlane.xlu0 %6446
          %v6448 = vsel %vm673, %v6426, 0.0
          %6449 = vadd.xlane.f32.xlu0 %v6448
          %v6450 = vpop.xlane.xlu0 %6449
          %v6451 = vsel %vm673, %v6427, 0.0
          %6452 = vadd.xlane.f32.xlu0 %v6451
          %v6453 = vpop.xlane.xlu0 %6452
          %v6454 = vsel %vm673, %v6428, 0.0
          %6455 = vadd.xlane.f32.xlu0 %v6454
          %v6456 = vpop.xlane.xlu0 %6455
          %v6457 = vsel %vm673, %v6429, 0.0
          %6458 = vadd.xlane.f32.xlu0 %v6457
          %v6459 = vpop.xlane.xlu0 %6458
          %v6460 = vsel %vm673, %v6430, 0.0
          %6461 = vadd.xlane.f32.xlu0 %v6460
          %v6462 = vpop.xlane.xlu0 %6461
          %v6463 = vsel %vm673, %v6431, 0.0
          %6464 = vadd.xlane.f32.xlu0 %v6463
          %v6465 = vpop.xlane.xlu0 %6464
          %v6466 = vsel %vm673, %v6432, 0.0
          %6467 = vadd.xlane.f32.xlu0 %v6466
          %v6468 = vpop.xlane.xlu0 %6467
          %v6469 = vsel %vm673, %v6433, 0.0
          %6470 = vadd.xlane.f32.xlu0 %v6469
          %v6471 = vpop.xlane.xlu0 %6470
          %v6472 = vsel %vm673, %v6434, 0.0
          %6473 = vadd.xlane.f32.xlu0 %v6472
          %v6474 = vpop.xlane.xlu0 %6473
          %v6475 = vsel %vm673, %v6435, 0.0
          %6476 = vadd.xlane.f32.xlu0 %v6475
          %v6477 = vpop.xlane.xlu0 %6476
          %v6478 = vsel %vm673, %v6436, 0.0
          %6479 = vadd.xlane.f32.xlu0 %v6478
          %v6480 = vpop.xlane.xlu0 %6479
          %v6481 = vsel %vm673, %v6437, 0.0
          %6482 = vadd.xlane.f32.xlu0 %v6481
          %v6483 = vpop.xlane.xlu0 %6482
          %v6484 = vsel %vm673, %v6438, 0.0
          %6485 = vadd.xlane.f32.xlu0 %v6484
          %v6486 = vpop.xlane.xlu0 %6485
          %v6487 = vsel %vm673, %v6439, 0.0
          %6488 = vadd.xlane.f32.xlu0 %v6487
          %v6489 = vpop.xlane.xlu0 %6488
          %v6490 = vsel %vm673, %v6440, 0.0
          %6491 = vadd.xlane.f32.xlu0 %v6490
          %v6492 = vpop.xlane.xlu0 %6491
          %v6493 = vsel %vm673, %v6441, 0.0
          %6494 = vadd.xlane.f32.xlu0 %v6493
          %v6495 = vpop.xlane.xlu0 %6494
          %v6496 = vrcp.pop %v6081
          %v6497 = vmul.f32 %v6081, %v6496
          %v6498 = vsub.f32 1.0, %v6497
          %v6499 = vmul.f32 %v6496, %v6498
          %v6500 = vadd.f32 %v6496, %v6499
          %vm6501 = vweird.f32 %v6081
          %vm6502 = vweird.f32 %v6496
          %vm6503 = vmor %vm6501, %vm6502
          %v6504 = vsel %vm6503, %v6496, %v6500
          %v6505 = vand.u32 2147483647, %v6081
          %vm6506 = vcmp.eq.f32.partialorder %v6505, 8.507059e+37
          %v6507 = vand.u32 %v6081, 2147483648
          %v6508 = vor.u32 1.1754944e-38, %v6507
          %v6509 = vsel %vm6506, %v6508, %v6504
          %v6510 = vmul.f32 %v6444, %v6509
          %v6511 = vrcp.pop %v6085
          %v6512 = vmul.f32 %v6085, %v6511
          %v6513 = vsub.f32 1.0, %v6512
          %v6514 = vmul.f32 %v6511, %v6513
          %v6515 = vadd.f32 %v6511, %v6514
          %vm6516 = vweird.f32 %v6085
          %vm6517 = vweird.f32 %v6511
          %vm6518 = vmor %vm6516, %vm6517
          %v6519 = vsel %vm6518, %v6511, %v6515
          %v6520 = vand.u32 2147483647, %v6085
          %vm6521 = vcmp.eq.f32.partialorder %v6520, 8.507059e+37
          %v6522 = vand.u32 %v6085, 2147483648
          %v6523 = vor.u32 1.1754944e-38, %v6522
          %v6524 = vsel %vm6521, %v6523, %v6519
          %v6525 = vmul.f32 %v6447, %v6524
          %v6526 = vrcp.pop %v6089
          %v6527 = vmul.f32 %v6089, %v6526
          %v6528 = vsub.f32 1.0, %v6527
          %v6529 = vmul.f32 %v6526, %v6528
          %v6530 = vadd.f32 %v6526, %v6529
          %vm6531 = vweird.f32 %v6089
          %vm6532 = vweird.f32 %v6526
          %vm6533 = vmor %vm6531, %vm6532
          %v6534 = vsel %vm6533, %v6526, %v6530
          %v6535 = vand.u32 2147483647, %v6089
          %vm6536 = vcmp.eq.f32.partialorder %v6535, 8.507059e+37
          %v6537 = vand.u32 %v6089, 2147483648
          %v6538 = vor.u32 1.1754944e-38, %v6537
          %v6539 = vsel %vm6536, %v6538, %v6534
          %v6540 = vmul.f32 %v6450, %v6539
          %v6541 = vrcp.pop %v6093
          %v6542 = vmul.f32 %v6093, %v6541
          %v6543 = vsub.f32 1.0, %v6542
          %v6544 = vmul.f32 %v6541, %v6543
          %v6545 = vadd.f32 %v6541, %v6544
          %vm6546 = vweird.f32 %v6093
          %vm6547 = vweird.f32 %v6541
          %vm6548 = vmor %vm6546, %vm6547
          %v6549 = vsel %vm6548, %v6541, %v6545
          %v6550 = vand.u32 2147483647, %v6093
          %vm6551 = vcmp.eq.f32.partialorder %v6550, 8.507059e+37
          %v6552 = vand.u32 %v6093, 2147483648
          %v6553 = vor.u32 1.1754944e-38, %v6552
          %v6554 = vsel %vm6551, %v6553, %v6549
          %v6555 = vmul.f32 %v6453, %v6554
          %v6556 = vrcp.pop %v6097
          %v6557 = vmul.f32 %v6097, %v6556
          %v6558 = vsub.f32 1.0, %v6557
          %v6559 = vmul.f32 %v6556, %v6558
          %v6560 = vadd.f32 %v6556, %v6559
          %vm6561 = vweird.f32 %v6097
          %vm6562 = vweird.f32 %v6556
          %vm6563 = vmor %vm6561, %vm6562
          %v6564 = vsel %vm6563, %v6556, %v6560
          %v6565 = vand.u32 2147483647, %v6097
          %vm6566 = vcmp.eq.f32.partialorder %v6565, 8.507059e+37
          %v6567 = vand.u32 %v6097, 2147483648
          %v6568 = vor.u32 1.1754944e-38, %v6567
          %v6569 = vsel %vm6566, %v6568, %v6564
          %v6570 = vmul.f32 %v6456, %v6569
          %v6571 = vrcp.pop %v6101
          %v6572 = vmul.f32 %v6101, %v6571
          %v6573 = vsub.f32 1.0, %v6572
          %v6574 = vmul.f32 %v6571, %v6573
          %v6575 = vadd.f32 %v6571, %v6574
          %vm6576 = vweird.f32 %v6101
          %vm6577 = vweird.f32 %v6571
          %vm6578 = vmor %vm6576, %vm6577
          %v6579 = vsel %vm6578, %v6571, %v6575
          %v6580 = vand.u32 2147483647, %v6101
          %vm6581 = vcmp.eq.f32.partialorder %v6580, 8.507059e+37
          %v6582 = vand.u32 %v6101, 2147483648
          %v6583 = vor.u32 1.1754944e-38, %v6582
          %v6584 = vsel %vm6581, %v6583, %v6579
          %v6585 = vmul.f32 %v6459, %v6584
          %v6586 = vrcp.pop %v6105
          %v6587 = vmul.f32 %v6105, %v6586
          %v6588 = vsub.f32 1.0, %v6587
          %v6589 = vmul.f32 %v6586, %v6588
          %v6590 = vadd.f32 %v6586, %v6589
          %vm6591 = vweird.f32 %v6105
          %vm6592 = vweird.f32 %v6586
          %vm6593 = vmor %vm6591, %vm6592
          %v6594 = vsel %vm6593, %v6586, %v6590
          %v6595 = vand.u32 2147483647, %v6105
          %vm6596 = vcmp.eq.f32.partialorder %v6595, 8.507059e+37
          %v6597 = vand.u32 %v6105, 2147483648
          %v6598 = vor.u32 1.1754944e-38, %v6597
          %v6599 = vsel %vm6596, %v6598, %v6594
          %v6600 = vmul.f32 %v6462, %v6599
          %v6601 = vrcp.pop %v6109
          %v6602 = vmul.f32 %v6109, %v6601
          %v6603 = vsub.f32 1.0, %v6602
          %v6604 = vmul.f32 %v6601, %v6603
          %v6605 = vadd.f32 %v6601, %v6604
          %vm6606 = vweird.f32 %v6109
          %vm6607 = vweird.f32 %v6601
          %vm6608 = vmor %vm6606, %vm6607
          %v6609 = vsel %vm6608, %v6601, %v6605
          %v6610 = vand.u32 2147483647, %v6109
          %vm6611 = vcmp.eq.f32.partialorder %v6610, 8.507059e+37
          %v6612 = vand.u32 %v6109, 2147483648
          %v6613 = vor.u32 1.1754944e-38, %v6612
          %v6614 = vsel %vm6611, %v6613, %v6609
          %v6615 = vmul.f32 %v6465, %v6614
          %v6616 = vrcp.pop %v6113
          %v6617 = vmul.f32 %v6113, %v6616
          %v6618 = vsub.f32 1.0, %v6617
          %v6619 = vmul.f32 %v6616, %v6618
          %v6620 = vadd.f32 %v6616, %v6619
          %vm6621 = vweird.f32 %v6113
          %vm6622 = vweird.f32 %v6616
          %vm6623 = vmor %vm6621, %vm6622
          %v6624 = vsel %vm6623, %v6616, %v6620
          %v6625 = vand.u32 2147483647, %v6113
          %vm6626 = vcmp.eq.f32.partialorder %v6625, 8.507059e+37
          %v6627 = vand.u32 %v6113, 2147483648
          %v6628 = vor.u32 1.1754944e-38, %v6627
          %v6629 = vsel %vm6626, %v6628, %v6624
          %v6630 = vmul.f32 %v6468, %v6629
          %v6631 = vrcp.pop %v6117
          %v6632 = vmul.f32 %v6117, %v6631
          %v6633 = vsub.f32 1.0, %v6632
          %v6634 = vmul.f32 %v6631, %v6633
          %v6635 = vadd.f32 %v6631, %v6634
          %vm6636 = vweird.f32 %v6117
          %vm6637 = vweird.f32 %v6631
          %vm6638 = vmor %vm6636, %vm6637
          %v6639 = vsel %vm6638, %v6631, %v6635
          %v6640 = vand.u32 2147483647, %v6117
          %vm6641 = vcmp.eq.f32.partialorder %v6640, 8.507059e+37
          %v6642 = vand.u32 %v6117, 2147483648
          %v6643 = vor.u32 1.1754944e-38, %v6642
          %v6644 = vsel %vm6641, %v6643, %v6639
          %v6645 = vmul.f32 %v6471, %v6644
          %v6646 = vrcp.pop %v6121
          %v6647 = vmul.f32 %v6121, %v6646
          %v6648 = vsub.f32 1.0, %v6647
          %v6649 = vmul.f32 %v6646, %v6648
          %v6650 = vadd.f32 %v6646, %v6649
          %vm6651 = vweird.f32 %v6121
          %vm6652 = vweird.f32 %v6646
          %vm6653 = vmor %vm6651, %vm6652
          %v6654 = vsel %vm6653, %v6646, %v6650
          %v6655 = vand.u32 2147483647, %v6121
          %vm6656 = vcmp.eq.f32.partialorder %v6655, 8.507059e+37
          %v6657 = vand.u32 %v6121, 2147483648
          %v6658 = vor.u32 1.1754944e-38, %v6657
          %v6659 = vsel %vm6656, %v6658, %v6654
          %v6660 = vmul.f32 %v6474, %v6659
          %v6661 = vrcp.pop %v6125
          %v6662 = vmul.f32 %v6125, %v6661
          %v6663 = vsub.f32 1.0, %v6662
          %v6664 = vmul.f32 %v6661, %v6663
          %v6665 = vadd.f32 %v6661, %v6664
          %vm6666 = vweird.f32 %v6125
          %vm6667 = vweird.f32 %v6661
          %vm6668 = vmor %vm6666, %vm6667
          %v6669 = vsel %vm6668, %v6661, %v6665
          %v6670 = vand.u32 2147483647, %v6125
          %vm6671 = vcmp.eq.f32.partialorder %v6670, 8.507059e+37
          %v6672 = vand.u32 %v6125, 2147483648
          %v6673 = vor.u32 1.1754944e-38, %v6672
          %v6674 = vsel %vm6671, %v6673, %v6669
          %v6675 = vmul.f32 %v6477, %v6674
          %v6676 = vrcp.pop %v6129
          %v6677 = vmul.f32 %v6129, %v6676
          %v6678 = vsub.f32 1.0, %v6677
          %v6679 = vmul.f32 %v6676, %v6678
          %v6680 = vadd.f32 %v6676, %v6679
          %vm6681 = vweird.f32 %v6129
          %vm6682 = vweird.f32 %v6676
          %vm6683 = vmor %vm6681, %vm6682
          %v6684 = vsel %vm6683, %v6676, %v6680
          %v6685 = vand.u32 2147483647, %v6129
          %vm6686 = vcmp.eq.f32.partialorder %v6685, 8.507059e+37
          %v6687 = vand.u32 %v6129, 2147483648
          %v6688 = vor.u32 1.1754944e-38, %v6687
          %v6689 = vsel %vm6686, %v6688, %v6684
          %v6690 = vmul.f32 %v6480, %v6689
          %v6691 = vrcp.pop %v6133
          %v6692 = vmul.f32 %v6133, %v6691
          %v6693 = vsub.f32 1.0, %v6692
          %v6694 = vmul.f32 %v6691, %v6693
          %v6695 = vadd.f32 %v6691, %v6694
          %vm6696 = vweird.f32 %v6133
          %vm6697 = vweird.f32 %v6691
          %vm6698 = vmor %vm6696, %vm6697
          %v6699 = vsel %vm6698, %v6691, %v6695
          %v6700 = vand.u32 2147483647, %v6133
          %vm6701 = vcmp.eq.f32.partialorder %v6700, 8.507059e+37
          %v6702 = vand.u32 %v6133, 2147483648
          %v6703 = vor.u32 1.1754944e-38, %v6702
          %v6704 = vsel %vm6701, %v6703, %v6699
          %v6705 = vmul.f32 %v6483, %v6704
          %v6706 = vrcp.pop %v6137
          %v6707 = vmul.f32 %v6137, %v6706
          %v6708 = vsub.f32 1.0, %v6707
          %v6709 = vmul.f32 %v6706, %v6708
          %v6710 = vadd.f32 %v6706, %v6709
          %vm6711 = vweird.f32 %v6137
          %vm6712 = vweird.f32 %v6706
          %vm6713 = vmor %vm6711, %vm6712
          %v6714 = vsel %vm6713, %v6706, %v6710
          %v6715 = vand.u32 2147483647, %v6137
          %vm6716 = vcmp.eq.f32.partialorder %v6715, 8.507059e+37
          %v6717 = vand.u32 %v6137, 2147483648
          %v6718 = vor.u32 1.1754944e-38, %v6717
          %v6719 = vsel %vm6716, %v6718, %v6714
          %v6720 = vmul.f32 %v6486, %v6719
          %v6721 = vrcp.pop %v6141
          %v6722 = vmul.f32 %v6141, %v6721
          %v6723 = vsub.f32 1.0, %v6722
          %v6724 = vmul.f32 %v6721, %v6723
          %v6725 = vadd.f32 %v6721, %v6724
          %vm6726 = vweird.f32 %v6141
          %vm6727 = vweird.f32 %v6721
          %vm6728 = vmor %vm6726, %vm6727
          %v6729 = vsel %vm6728, %v6721, %v6725
          %v6730 = vand.u32 2147483647, %v6141
          %vm6731 = vcmp.eq.f32.partialorder %v6730, 8.507059e+37
          %v6732 = vand.u32 %v6141, 2147483648
          %v6733 = vor.u32 1.1754944e-38, %v6732
          %v6734 = vsel %vm6731, %v6733, %v6729
          %v6735 = vmul.f32 %v6489, %v6734
          %v6736 = vrcp.pop %v6145
          %v6737 = vmul.f32 %v6145, %v6736
          %v6738 = vsub.f32 1.0, %v6737
          %v6739 = vmul.f32 %v6736, %v6738
          %v6740 = vadd.f32 %v6736, %v6739
          %vm6741 = vweird.f32 %v6145
          %vm6742 = vweird.f32 %v6736
          %vm6743 = vmor %vm6741, %vm6742
          %v6744 = vsel %vm6743, %v6736, %v6740
          %v6745 = vand.u32 2147483647, %v6145
          %vm6746 = vcmp.eq.f32.partialorder %v6745, 8.507059e+37
          %v6747 = vand.u32 %v6145, 2147483648
          %v6748 = vor.u32 1.1754944e-38, %v6747
          %v6749 = vsel %vm6746, %v6748, %v6744
          %v6750 = vmul.f32 %v6492, %v6749
          %v6751 = vrcp.pop %v6149
          %v6752 = vmul.f32 %v6149, %v6751
          %v6753 = vsub.f32 1.0, %v6752
          %v6754 = vmul.f32 %v6751, %v6753
          %v6755 = vadd.f32 %v6751, %v6754
          %vm6756 = vweird.f32 %v6149
          %vm6757 = vweird.f32 %v6751
          %vm6758 = vmor %vm6756, %vm6757
          %v6759 = vsel %vm6758, %v6751, %v6755
          %v6760 = vand.u32 2147483647, %v6149
          %vm6761 = vcmp.eq.f32.partialorder %v6760, 8.507059e+37
          %v6762 = vand.u32 %v6149, 2147483648
          %v6763 = vor.u32 1.1754944e-38, %v6762
          %v6764 = vsel %vm6761, %v6763, %v6759
          %v6765 = vmul.f32 %v6495, %v6764
          %v6766 = vadd.f32 %v5504, %v6510
          %v6767 = vadd.f32 %v5505, %v6525
          %v6768 = vadd.f32 %v5506, %v6540
          %v6769 = vadd.f32 %v5507, %v6555
          %v6770 = vadd.f32 %v5508, %v6570
          %v6771 = vadd.f32 %v5509, %v6585
          %v6772 = vadd.f32 %v5510, %v6600
          %v6773 = vadd.f32 %v5511, %v6615
          %v6774 = vadd.f32 %v5512, %v6630
          %v6775 = vadd.f32 %v5513, %v6645
          %v6776 = vadd.f32 %v5514, %v6660
          %v6777 = vadd.f32 %v5515, %v6675
          %v6778 = vadd.f32 %v5516, %v6690
          %v6779 = vadd.f32 %v5517, %v6705
          %v6780 = vadd.f32 %v5518, %v6720
          %v6781 = vadd.f32 %v5519, %v6735
          %v6782 = vadd.f32 %v5520, %v6750
          %v6783 = vadd.f32 %v5521, %v6765
          %v6784 = vld [vmem:[#allocation2] sm:$0xff]
          %v6785 = vld [vmem:[#allocation2 + $0x18] sm:$0xff]
          %v6786 = vld [vmem:[#allocation2 + $0x30] sm:$0xff]
          %v6787 = vld [vmem:[#allocation2 + $0x48] sm:$0xff]
          %v6788 = vld [vmem:[#allocation2 + $0x60] sm:$0xff]
          %v6789 = vld [vmem:[#allocation2 + $0x78] sm:$0xff]
          %v6790 = vld [vmem:[#allocation2 + $0x90] sm:$0xff]
          %v6791 = vld [vmem:[#allocation2 + $0xa8] sm:$0xff]
          %v6792 = vld [vmem:[#allocation2 + $0xc0] sm:$0xff]
          %v6793 = vld [vmem:[#allocation2 + $0xd8] sm:$0xff]
          %v6794 = vld [vmem:[#allocation2 + $0xf0] sm:$0xff]
          %v6795 = vld [vmem:[#allocation2 + $0x108] sm:$0xff]
          %v6796 = vld [vmem:[#allocation2 + $0x120] sm:$0xff]
          %v6797 = vld [vmem:[#allocation2 + $0x138] sm:$0xff]
          %v6798 = vld [vmem:[#allocation2 + $0x150] sm:$0xff]
          %v6799 = vld [vmem:[#allocation2 + $0x168] sm:$0xff]
          %v6800 = vld [vmem:[#allocation2 + $0x180] sm:$0xff]
          %v6801 = vld [vmem:[#allocation2 + $0x198] sm:$0xff]
          %v6802 = vld [vmem:[#allocation2 + $0x8] sm:$0xff]
          %v6803 = vld [vmem:[#allocation2 + $0x20] sm:$0xff]
          %v6804 = vld [vmem:[#allocation2 + $0x38] sm:$0xff]
          %v6805 = vld [vmem:[#allocation2 + $0x50] sm:$0xff]
          %v6806 = vld [vmem:[#allocation2 + $0x68] sm:$0xff]
          %v6807 = vld [vmem:[#allocation2 + $0x80] sm:$0xff]
          %v6808 = vld [vmem:[#allocation2 + $0x98] sm:$0xff]
          %v6809 = vld [vmem:[#allocation2 + $0xb0] sm:$0xff]
          %v6810 = vld [vmem:[#allocation2 + $0xc8] sm:$0xff]
          %v6811 = vld [vmem:[#allocation2 + $0xe0] sm:$0xff]
          %v6812 = vld [vmem:[#allocation2 + $0xf8] sm:$0xff]
          %v6813 = vld [vmem:[#allocation2 + $0x110] sm:$0xff]
          %v6814 = vld [vmem:[#allocation2 + $0x128] sm:$0xff]
          %v6815 = vld [vmem:[#allocation2 + $0x140] sm:$0xff]
          %v6816 = vld [vmem:[#allocation2 + $0x158] sm:$0xff]
          %v6817 = vld [vmem:[#allocation2 + $0x170] sm:$0xff]
          %v6818 = vld [vmem:[#allocation2 + $0x188] sm:$0xff]
          %v6819 = vld [vmem:[#allocation2 + $0x1a0] sm:$0xff]
          %v6820 = vld [vmem:[#allocation2 + $0x10] sm:$0xff]
          %v6821 = vld [vmem:[#allocation2 + $0x28] sm:$0xff]
          %v6822 = vld [vmem:[#allocation2 + $0x40] sm:$0xff]
          %v6823 = vld [vmem:[#allocation2 + $0x58] sm:$0xff]
          %v6824 = vld [vmem:[#allocation2 + $0x70] sm:$0xff]
          %v6825 = vld [vmem:[#allocation2 + $0x88] sm:$0xff]
          %v6826 = vld [vmem:[#allocation2 + $0xa0] sm:$0xff]
          %v6827 = vld [vmem:[#allocation2 + $0xb8] sm:$0xff]
          %v6828 = vld [vmem:[#allocation2 + $0xd0] sm:$0xff]
          %v6829 = vld [vmem:[#allocation2 + $0xe8] sm:$0xff]
          %v6830 = vld [vmem:[#allocation2 + $0x100] sm:$0xff]
          %v6831 = vld [vmem:[#allocation2 + $0x118] sm:$0xff]
          %v6832 = vld [vmem:[#allocation2 + $0x130] sm:$0xff]
          %v6833 = vld [vmem:[#allocation2 + $0x148] sm:$0xff]
          %v6834 = vld [vmem:[#allocation2 + $0x160] sm:$0xff]
          %v6835 = vld [vmem:[#allocation2 + $0x178] sm:$0xff]
          %v6836 = vld [vmem:[#allocation2 + $0x190] sm:$0xff]
          %v6837 = vld [vmem:[#allocation2 + $0x1a8] sm:$0xff]
          %6856 = vrot.lane.b32.xlu0 %v6784, 48
          %v6857 = vpop.permute.xlu0 %6856
          %6858 = vrot.lane.b32.xlu0 %v6785, 48
          %v6859 = vpop.permute.xlu0 %6858
          %6860 = vrot.lane.b32.xlu0 %v6786, 48
          %v6861 = vpop.permute.xlu0 %6860
          %6862 = vrot.lane.b32.xlu0 %v6787, 48
          %v6863 = vpop.permute.xlu0 %6862
          %6864 = vrot.lane.b32.xlu0 %v6788, 48
          %v6865 = vpop.permute.xlu0 %6864
          %6866 = vrot.lane.b32.xlu0 %v6789, 48
          %v6867 = vpop.permute.xlu0 %6866
          %6868 = vrot.lane.b32.xlu0 %v6790, 48
          %v6869 = vpop.permute.xlu0 %6868
          %6870 = vrot.lane.b32.xlu0 %v6791, 48
          %v6871 = vpop.permute.xlu0 %6870
          %6872 = vrot.lane.b32.xlu0 %v6792, 48
          %v6873 = vpop.permute.xlu0 %6872
          %6874 = vrot.lane.b32.xlu0 %v6793, 48
          %v6875 = vpop.permute.xlu0 %6874
          %6876 = vrot.lane.b32.xlu0 %v6794, 48
          %v6877 = vpop.permute.xlu0 %6876
          %6878 = vrot.lane.b32.xlu0 %v6795, 48
          %v6879 = vpop.permute.xlu0 %6878
          %6880 = vrot.lane.b32.xlu0 %v6796, 48
          %v6881 = vpop.permute.xlu0 %6880
          %6882 = vrot.lane.b32.xlu0 %v6797, 48
          %v6883 = vpop.permute.xlu0 %6882
          %6884 = vrot.lane.b32.xlu0 %v6798, 48
          %v6885 = vpop.permute.xlu0 %6884
          %6886 = vrot.lane.b32.xlu0 %v6799, 48
          %v6887 = vpop.permute.xlu0 %6886
          %6888 = vrot.lane.b32.xlu0 %v6800, 48
          %v6889 = vpop.permute.xlu0 %6888
          %6890 = vrot.lane.b32.xlu0 %v6801, 48
          %v6891 = vpop.permute.xlu0 %6890
          %6910 = vrot.lane.b32.xlu0 %v6802, 48
          %v6911 = vpop.permute.xlu0 %6910
          %6912 = vrot.lane.b32.xlu0 %v6803, 48
          %v6913 = vpop.permute.xlu0 %6912
          %6914 = vrot.lane.b32.xlu0 %v6804, 48
          %v6915 = vpop.permute.xlu0 %6914
          %6916 = vrot.lane.b32.xlu0 %v6805, 48
          %v6917 = vpop.permute.xlu0 %6916
          %6918 = vrot.lane.b32.xlu0 %v6806, 48
          %v6919 = vpop.permute.xlu0 %6918
          %6920 = vrot.lane.b32.xlu0 %v6807, 48
          %v6921 = vpop.permute.xlu0 %6920
          %6922 = vrot.lane.b32.xlu0 %v6808, 48
          %v6923 = vpop.permute.xlu0 %6922
          %6924 = vrot.lane.b32.xlu0 %v6809, 48
          %v6925 = vpop.permute.xlu0 %6924
          %6926 = vrot.lane.b32.xlu0 %v6810, 48
          %v6927 = vpop.permute.xlu0 %6926
          %6928 = vrot.lane.b32.xlu0 %v6811, 48
          %v6929 = vpop.permute.xlu0 %6928
          %6930 = vrot.lane.b32.xlu0 %v6812, 48
          %v6931 = vpop.permute.xlu0 %6930
          %6932 = vrot.lane.b32.xlu0 %v6813, 48
          %v6933 = vpop.permute.xlu0 %6932
          %6934 = vrot.lane.b32.xlu0 %v6814, 48
          %v6935 = vpop.permute.xlu0 %6934
          %6936 = vrot.lane.b32.xlu0 %v6815, 48
          %v6937 = vpop.permute.xlu0 %6936
          %6938 = vrot.lane.b32.xlu0 %v6816, 48
          %v6939 = vpop.permute.xlu0 %6938
          %6940 = vrot.lane.b32.xlu0 %v6817, 48
          %v6941 = vpop.permute.xlu0 %6940
          %6942 = vrot.lane.b32.xlu0 %v6818, 48
          %v6943 = vpop.permute.xlu0 %6942
          %6944 = vrot.lane.b32.xlu0 %v6819, 48
          %v6945 = vpop.permute.xlu0 %6944
          %v6946 = vsel %vm673, %v6857, 0
          %v6948 = vsel %vm673, %v6859, 0
          %v6950 = vsel %vm673, %v6861, 0
          %v6952 = vsel %vm673, %v6863, 0
          %v6954 = vsel %vm673, %v6865, 0
          %v6956 = vsel %vm673, %v6867, 0
          %v6958 = vsel %vm673, %v6869, 0
          %v6960 = vsel %vm673, %v6871, 0
          %v6962 = vsel %vm673, %v6873, 0
          %v6964 = vsel %vm673, %v6875, 0
          %v6966 = vsel %vm673, %v6877, 0
          %v6968 = vsel %vm673, %v6879, 0
          %v6970 = vsel %vm673, %v6881, 0
          %v6972 = vsel %vm673, %v6883, 0
          %v6974 = vsel %vm673, %v6885, 0
          %v6976 = vsel %vm673, %v6887, 0
          %v6978 = vsel %vm673, %v6889, 0
          %v6980 = vsel %vm673, %v6891, 0
          %v6982 = vsel %vm673, %v6911, 0
          %v6984 = vsel %vm673, %v6913, 0
          %v6986 = vsel %vm673, %v6915, 0
          %v6988 = vsel %vm673, %v6917, 0
          %v6990 = vsel %vm673, %v6919, 0
          %v6992 = vsel %vm673, %v6921, 0
          %v6994 = vsel %vm673, %v6923, 0
          %v6996 = vsel %vm673, %v6925, 0
          %v6998 = vsel %vm673, %v6927, 0
          %v7000 = vsel %vm673, %v6929, 0
          %v7002 = vsel %vm673, %v6931, 0
          %v7004 = vsel %vm673, %v6933, 0
          %v7006 = vsel %vm673, %v6935, 0
          %v7008 = vsel %vm673, %v6937, 0
          %v7010 = vsel %vm673, %v6939, 0
          %v7012 = vsel %vm673, %v6941, 0
          %v7014 = vsel %vm673, %v6943, 0
          %v7016 = vsel %vm673, %v6945, 0
          %7018 = vmatpush.xpose.msra.mxu0 %v7012
          %7019 = vmatpush.xpose.msra.mxu0 %v7010
          %7020 = vmatpush.xpose.msra.mxu0 %v7008
          %7021 = vmatpush.xpose.msra.mxu0 %v7006
          %7022 = vmatpush.xpose.msra.mxu0 %v7004
          %7023 = vmatpush.xpose.msra.mxu0 %v7002
          %7024 = vmatpush.xpose.msra.mxu0 %v7000
          %7025 = vmatpush.xpose.msra.mxu0 %v6998
          %7026 = vmatpush.xpose.msra.mxu0 %v6996
          %7027 = vmatpush.xpose.msra.mxu0 %v6994
          %7028 = vmatpush.xpose.msra.mxu0 %v6992
          %7029 = vmatpush.xpose.msra.mxu0 %v6990
          %7030 = vmatpush.xpose.msra.mxu0 %v6988
          %7031 = vmatpush.xpose.msra.mxu0 %v6986
          %7032 = vmatpush.xpose.msra.mxu0 %v6984
          %7033 = vmatpush.xpose.msra.mxu0 %v6982
          %7034 = vmatmul.f32.gmra.mxu0 %v6946
          %v7035 = vpop.f32.mrf.mxu0
          %v7036 = vadd.f32 0.0, %v7035
          %7037 = vmatmul.f32.gmra.mxu0 %v6948
          %v7038 = vpop.f32.mrf.mxu0
          %v7039 = vadd.f32 0.0, %v7038
          %7040 = vmatmul.f32.gmra.mxu0 %v6950
          %v7041 = vpop.f32.mrf.mxu0
          %v7042 = vadd.f32 0.0, %v7041
          %7043 = vmatmul.f32.gmra.mxu0 %v6952
          %v7044 = vpop.f32.mrf.mxu0
          %v7045 = vadd.f32 0.0, %v7044
          %7046 = vmatmul.f32.gmra.mxu0 %v6954
          %v7047 = vpop.f32.mrf.mxu0
          %v7048 = vadd.f32 0.0, %v7047
          %7049 = vmatmul.f32.gmra.mxu0 %v6956
          %v7050 = vpop.f32.mrf.mxu0
          %v7051 = vadd.f32 0.0, %v7050
          %7052 = vmatmul.f32.gmra.mxu0 %v6958
          %v7053 = vpop.f32.mrf.mxu0
          %v7054 = vadd.f32 0.0, %v7053
          %7055 = vmatmul.f32.gmra.mxu0 %v6960
          %v7056 = vpop.f32.mrf.mxu0
          %v7057 = vadd.f32 0.0, %v7056
          %7058 = vmatmul.f32.gmra.mxu0 %v6962
          %v7059 = vpop.f32.mrf.mxu0
          %v7060 = vadd.f32 0.0, %v7059
          %7061 = vmatmul.f32.gmra.mxu0 %v6964
          %v7062 = vpop.f32.mrf.mxu0
          %v7063 = vadd.f32 0.0, %v7062
          %7064 = vmatmul.f32.gmra.mxu0 %v6966
          %v7065 = vpop.f32.mrf.mxu0
          %v7066 = vadd.f32 0.0, %v7065
          %7067 = vmatmul.f32.gmra.mxu0 %v6968
          %v7068 = vpop.f32.mrf.mxu0
          %v7069 = vadd.f32 0.0, %v7068
          %7070 = vmatmul.f32.gmra.mxu0 %v6970
          %v7071 = vpop.f32.mrf.mxu0
          %v7072 = vadd.f32 0.0, %v7071
          %7073 = vmatmul.f32.gmra.mxu0 %v6972
          %v7074 = vpop.f32.mrf.mxu0
          %v7075 = vadd.f32 0.0, %v7074
          %7076 = vmatmul.f32.gmra.mxu0 %v6974
          %v7077 = vpop.f32.mrf.mxu0
          %v7078 = vadd.f32 0.0, %v7077
          %7079 = vmatmul.f32.gmra.mxu0 %v6976
          %v7080 = vpop.f32.mrf.mxu0
          %v7081 = vadd.f32 0.0, %v7080
          %7082 = vmatmul.f32.gmra.mxu0 %v6978
          %v7083 = vpop.f32.mrf.mxu0
          %v7084 = vadd.f32 0.0, %v7083
          %7085 = vmatmul.f32.gmra.mxu0 %v6980
          %v7086 = vpop.f32.mrf.mxu0
          %v7087 = vadd.f32 0.0, %v7086
          %7088 = vdwg.mxu0
          %7089 = vmatpush.xpose.msra.mxu0 0.0
          %7090 = vmatpush.xpose.msra.mxu0 0.0
          %7091 = vmatpush.xpose.msra.mxu0 0.0
          %7092 = vmatpush.xpose.msra.mxu0 0.0
          %7093 = vmatpush.xpose.msra.mxu0 0.0
          %7094 = vmatpush.xpose.msra.mxu0 0.0
          %7095 = vmatpush.xpose.msra.mxu0 0.0
          %7096 = vmatpush.xpose.msra.mxu0 0.0
          %7097 = vmatpush.xpose.msra.mxu0 0.0
          %7098 = vmatpush.xpose.msra.mxu0 0.0
          %7099 = vmatpush.xpose.msra.mxu0 0.0
          %7100 = vmatpush.xpose.msra.mxu0 0.0
          %7101 = vmatpush.xpose.msra.mxu0 0.0
          %7102 = vmatpush.xpose.msra.mxu0 0.0
          %7103 = vmatpush.xpose.msra.mxu0 %v7016
          %7104 = vmatpush.xpose.msra.mxu0 %v7014
          %7105 = vmatmul.f32.gmra.mxu0 %v6946
          %v7106 = vpop.f32.mrf.mxu0
          %v7107 = vadd.f32 0.0, %v7106
          %7108 = vmatmul.f32.gmra.mxu0 %v6948
          %v7109 = vpop.f32.mrf.mxu0
          %v7110 = vadd.f32 0.0, %v7109
          %7111 = vmatmul.f32.gmra.mxu0 %v6950
          %v7112 = vpop.f32.mrf.mxu0
          %v7113 = vadd.f32 0.0, %v7112
          %7114 = vmatmul.f32.gmra.mxu0 %v6952
          %v7115 = vpop.f32.mrf.mxu0
          %v7116 = vadd.f32 0.0, %v7115
          %7117 = vmatmul.f32.gmra.mxu0 %v6954
          %v7118 = vpop.f32.mrf.mxu0
          %v7119 = vadd.f32 0.0, %v7118
          %7120 = vmatmul.f32.gmra.mxu0 %v6956
          %v7121 = vpop.f32.mrf.mxu0
          %v7122 = vadd.f32 0.0, %v7121
          %7123 = vmatmul.f32.gmra.mxu0 %v6958
          %v7124 = vpop.f32.mrf.mxu0
          %v7125 = vadd.f32 0.0, %v7124
          %7126 = vmatmul.f32.gmra.mxu0 %v6960
          %v7127 = vpop.f32.mrf.mxu0
          %v7128 = vadd.f32 0.0, %v7127
          %7129 = vmatmul.f32.gmra.mxu0 %v6962
          %v7130 = vpop.f32.mrf.mxu0
          %v7131 = vadd.f32 0.0, %v7130
          %7132 = vmatmul.f32.gmra.mxu0 %v6964
          %v7133 = vpop.f32.mrf.mxu0
          %v7134 = vadd.f32 0.0, %v7133
          %7135 = vmatmul.f32.gmra.mxu0 %v6966
          %v7136 = vpop.f32.mrf.mxu0
          %v7137 = vadd.f32 0.0, %v7136
          %7138 = vmatmul.f32.gmra.mxu0 %v6968
          %v7139 = vpop.f32.mrf.mxu0
          %v7140 = vadd.f32 0.0, %v7139
          %7141 = vmatmul.f32.gmra.mxu0 %v6970
          %v7142 = vpop.f32.mrf.mxu0
          %v7143 = vadd.f32 0.0, %v7142
          %7144 = vmatmul.f32.gmra.mxu0 %v6972
          %v7145 = vpop.f32.mrf.mxu0
          %v7146 = vadd.f32 0.0, %v7145
          %7147 = vmatmul.f32.gmra.mxu0 %v6974
          %v7148 = vpop.f32.mrf.mxu0
          %v7149 = vadd.f32 0.0, %v7148
          %7150 = vmatmul.f32.gmra.mxu0 %v6976
          %v7151 = vpop.f32.mrf.mxu0
          %v7152 = vadd.f32 0.0, %v7151
          %7153 = vmatmul.f32.gmra.mxu0 %v6978
          %v7154 = vpop.f32.mrf.mxu0
          %v7155 = vadd.f32 0.0, %v7154
          %7156 = vmatmul.f32.gmra.mxu0 %v6980
          %v7157 = vpop.f32.mrf.mxu0
          %v7158 = vadd.f32 0.0, %v7157
          %7159 = vdwg.mxu0
          %v7160 = vsel %vm673, %v7107, -inf
          %v7161 = vmax.f32 %v7036, %v7160
          %7162 = vmax.xlane.f32.xlu0 %v7161
          %v7163 = vpop.xlane.xlu0 %7162
          %v7164 = vsel %vm673, %v7110, -inf
          %v7165 = vmax.f32 %v7039, %v7164
          %7166 = vmax.xlane.f32.xlu0 %v7165
          %v7167 = vpop.xlane.xlu0 %7166
          %v7168 = vsel %vm673, %v7113, -inf
          %v7169 = vmax.f32 %v7042, %v7168
          %7170 = vmax.xlane.f32.xlu0 %v7169
          %v7171 = vpop.xlane.xlu0 %7170
          %v7172 = vsel %vm673, %v7116, -inf
          %v7173 = vmax.f32 %v7045, %v7172
          %7174 = vmax.xlane.f32.xlu0 %v7173
          %v7175 = vpop.xlane.xlu0 %7174
          %v7176 = vsel %vm673, %v7119, -inf
          %v7177 = vmax.f32 %v7048, %v7176
          %7178 = vmax.xlane.f32.xlu0 %v7177
          %v7179 = vpop.xlane.xlu0 %7178
          %v7180 = vsel %vm673, %v7122, -inf
          %v7181 = vmax.f32 %v7051, %v7180
          %7182 = vmax.xlane.f32.xlu0 %v7181
          %v7183 = vpop.xlane.xlu0 %7182
          %v7184 = vsel %vm673, %v7125, -inf
          %v7185 = vmax.f32 %v7054, %v7184
          %7186 = vmax.xlane.f32.xlu0 %v7185
          %v7187 = vpop.xlane.xlu0 %7186
          %v7188 = vsel %vm673, %v7128, -inf
          %v7189 = vmax.f32 %v7057, %v7188
          %7190 = vmax.xlane.f32.xlu0 %v7189
          %v7191 = vpop.xlane.xlu0 %7190
          %v7192 = vsel %vm673, %v7131, -inf
          %v7193 = vmax.f32 %v7060, %v7192
          %7194 = vmax.xlane.f32.xlu0 %v7193
          %v7195 = vpop.xlane.xlu0 %7194
          %v7196 = vsel %vm673, %v7134, -inf
          %v7197 = vmax.f32 %v7063, %v7196
          %7198 = vmax.xlane.f32.xlu0 %v7197
          %v7199 = vpop.xlane.xlu0 %7198
          %v7200 = vsel %vm673, %v7137, -inf
          %v7201 = vmax.f32 %v7066, %v7200
          %7202 = vmax.xlane.f32.xlu0 %v7201
          %v7203 = vpop.xlane.xlu0 %7202
          %v7204 = vsel %vm673, %v7140, -inf
          %v7205 = vmax.f32 %v7069, %v7204
          %7206 = vmax.xlane.f32.xlu0 %v7205
          %v7207 = vpop.xlane.xlu0 %7206
          %v7208 = vsel %vm673, %v7143, -inf
          %v7209 = vmax.f32 %v7072, %v7208
          %7210 = vmax.xlane.f32.xlu0 %v7209
          %v7211 = vpop.xlane.xlu0 %7210
          %v7212 = vsel %vm673, %v7146, -inf
          %v7213 = vmax.f32 %v7075, %v7212
          %7214 = vmax.xlane.f32.xlu0 %v7213
          %v7215 = vpop.xlane.xlu0 %7214
          %v7216 = vsel %vm673, %v7149, -inf
          %v7217 = vmax.f32 %v7078, %v7216
          %7218 = vmax.xlane.f32.xlu0 %v7217
          %v7219 = vpop.xlane.xlu0 %7218
          %v7220 = vsel %vm673, %v7152, -inf
          %v7221 = vmax.f32 %v7081, %v7220
          %7222 = vmax.xlane.f32.xlu0 %v7221
          %v7223 = vpop.xlane.xlu0 %7222
          %v7224 = vsel %vm673, %v7155, -inf
          %v7225 = vmax.f32 %v7084, %v7224
          %7226 = vmax.xlane.f32.xlu0 %v7225
          %v7227 = vpop.xlane.xlu0 %7226
          %v7228 = vsel %vm673, %v7158, -inf
          %v7229 = vmax.f32 %v7087, %v7228
          %7230 = vmax.xlane.f32.xlu0 %v7229
          %v7231 = vpop.xlane.xlu0 %7230
          %v7232 = vsub.f32 %v7036, %v7163
          %v7233 = vsub.f32 %v7107, %v7163
          %v7234 = vsub.f32 %v7039, %v7167
          %v7235 = vsub.f32 %v7110, %v7167
          %v7236 = vsub.f32 %v7042, %v7171
          %v7237 = vsub.f32 %v7113, %v7171
          %v7238 = vsub.f32 %v7045, %v7175
          %v7239 = vsub.f32 %v7116, %v7175
          %v7240 = vsub.f32 %v7048, %v7179
          %v7241 = vsub.f32 %v7119, %v7179
          %v7242 = vsub.f32 %v7051, %v7183
          %v7243 = vsub.f32 %v7122, %v7183
          %v7244 = vsub.f32 %v7054, %v7187
          %v7245 = vsub.f32 %v7125, %v7187
          %v7246 = vsub.f32 %v7057, %v7191
          %v7247 = vsub.f32 %v7128, %v7191
          %v7248 = vsub.f32 %v7060, %v7195
          %v7249 = vsub.f32 %v7131, %v7195
          %v7250 = vsub.f32 %v7063, %v7199
          %v7251 = vsub.f32 %v7134, %v7199
          %v7252 = vsub.f32 %v7066, %v7203
          %v7253 = vsub.f32 %v7137, %v7203
          %v7254 = vsub.f32 %v7069, %v7207
          %v7255 = vsub.f32 %v7140, %v7207
          %v7256 = vsub.f32 %v7072, %v7211
          %v7257 = vsub.f32 %v7143, %v7211
          %v7258 = vsub.f32 %v7075, %v7215
          %v7259 = vsub.f32 %v7146, %v7215
          %v7260 = vsub.f32 %v7078, %v7219
          %v7261 = vsub.f32 %v7149, %v7219
          %v7262 = vsub.f32 %v7081, %v7223
          %v7263 = vsub.f32 %v7152, %v7223
          %v7264 = vsub.f32 %v7084, %v7227
          %v7265 = vsub.f32 %v7155, %v7227
          %v7266 = vsub.f32 %v7087, %v7231
          %v7267 = vsub.f32 %v7158, %v7231
          %v7268 = vmul.f32 %v7232, 1.442695
          %v7269 = vpow.pop %v7268
          %v7270 = vmul.f32 %v7233, 1.442695
          %v7271 = vpow.pop %v7270
          %v7272 = vmul.f32 %v7234, 1.442695
          %v7273 = vpow.pop %v7272
          %v7274 = vmul.f32 %v7235, 1.442695
          %v7275 = vpow.pop %v7274
          %v7276 = vmul.f32 %v7236, 1.442695
          %v7277 = vpow.pop %v7276
          %v7278 = vmul.f32 %v7237, 1.442695
          %v7279 = vpow.pop %v7278
          %v7280 = vmul.f32 %v7238, 1.442695
          %v7281 = vpow.pop %v7280
          %v7282 = vmul.f32 %v7239, 1.442695
          %v7283 = vpow.pop %v7282
          %v7284 = vmul.f32 %v7240, 1.442695
          %v7285 = vpow.pop %v7284
          %v7286 = vmul.f32 %v7241, 1.442695
          %v7287 = vpow.pop %v7286
          %v7288 = vmul.f32 %v7242, 1.442695
          %v7289 = vpow.pop %v7288
          %v7290 = vmul.f32 %v7243, 1.442695
          %v7291 = vpow.pop %v7290
          %v7292 = vmul.f32 %v7244, 1.442695
          %v7293 = vpow.pop %v7292
          %v7294 = vmul.f32 %v7245, 1.442695
          %v7295 = vpow.pop %v7294
          %v7296 = vmul.f32 %v7246, 1.442695
          %v7297 = vpow.pop %v7296
          %v7298 = vmul.f32 %v7247, 1.442695
          %v7299 = vpow.pop %v7298
          %v7300 = vmul.f32 %v7248, 1.442695
          %v7301 = vpow.pop %v7300
          %v7302 = vmul.f32 %v7249, 1.442695
          %v7303 = vpow.pop %v7302
          %v7304 = vmul.f32 %v7250, 1.442695
          %v7305 = vpow.pop %v7304
          %v7306 = vmul.f32 %v7251, 1.442695
          %v7307 = vpow.pop %v7306
          %v7308 = vmul.f32 %v7252, 1.442695
          %v7309 = vpow.pop %v7308
          %v7310 = vmul.f32 %v7253, 1.442695
          %v7311 = vpow.pop %v7310
          %v7312 = vmul.f32 %v7254, 1.442695
          %v7313 = vpow.pop %v7312
          %v7314 = vmul.f32 %v7255, 1.442695
          %v7315 = vpow.pop %v7314
          %v7316 = vmul.f32 %v7256, 1.442695
          %v7317 = vpow.pop %v7316
          %v7318 = vmul.f32 %v7257, 1.442695
          %v7319 = vpow.pop %v7318
          %v7320 = vmul.f32 %v7258, 1.442695
          %v7321 = vpow.pop %v7320
          %v7322 = vmul.f32 %v7259, 1.442695
          %v7323 = vpow.pop %v7322
          %v7324 = vmul.f32 %v7260, 1.442695
          %v7325 = vpow.pop %v7324
          %v7326 = vmul.f32 %v7261, 1.442695
          %v7327 = vpow.pop %v7326
          %v7328 = vmul.f32 %v7262, 1.442695
          %v7329 = vpow.pop %v7328
          %v7330 = vmul.f32 %v7263, 1.442695
          %v7331 = vpow.pop %v7330
          %v7332 = vmul.f32 %v7264, 1.442695
          %v7333 = vpow.pop %v7332
          %v7334 = vmul.f32 %v7265, 1.442695
          %v7335 = vpow.pop %v7334
          %v7336 = vmul.f32 %v7266, 1.442695
          %v7337 = vpow.pop %v7336
          %v7338 = vmul.f32 %v7267, 1.442695
          %v7339 = vpow.pop %v7338
          %v7340 = vsel %vm673, %v7271, 0.0
          %v7341 = vadd.f32 %v7269, %v7340
          %7342 = vadd.xlane.f32.xlu0 %v7341
          %v7343 = vpop.xlane.xlu0 %7342
          %v7344 = vsel %vm673, %v7275, 0.0
          %v7345 = vadd.f32 %v7273, %v7344
          %7346 = vadd.xlane.f32.xlu0 %v7345
          %v7347 = vpop.xlane.xlu0 %7346
          %v7348 = vsel %vm673, %v7279, 0.0
          %v7349 = vadd.f32 %v7277, %v7348
          %7350 = vadd.xlane.f32.xlu0 %v7349
          %v7351 = vpop.xlane.xlu0 %7350
          %v7352 = vsel %vm673, %v7283, 0.0
          %v7353 = vadd.f32 %v7281, %v7352
          %7354 = vadd.xlane.f32.xlu0 %v7353
          %v7355 = vpop.xlane.xlu0 %7354
          %v7356 = vsel %vm673, %v7287, 0.0
          %v7357 = vadd.f32 %v7285, %v7356
          %7358 = vadd.xlane.f32.xlu0 %v7357
          %v7359 = vpop.xlane.xlu0 %7358
          %v7360 = vsel %vm673, %v7291, 0.0
          %v7361 = vadd.f32 %v7289, %v7360
          %7362 = vadd.xlane.f32.xlu0 %v7361
          %v7363 = vpop.xlane.xlu0 %7362
          %v7364 = vsel %vm673, %v7295, 0.0
          %v7365 = vadd.f32 %v7293, %v7364
          %7366 = vadd.xlane.f32.xlu0 %v7365
          %v7367 = vpop.xlane.xlu0 %7366
          %v7368 = vsel %vm673, %v7299, 0.0
          %v7369 = vadd.f32 %v7297, %v7368
          %7370 = vadd.xlane.f32.xlu0 %v7369
          %v7371 = vpop.xlane.xlu0 %7370
          %v7372 = vsel %vm673, %v7303, 0.0
          %v7373 = vadd.f32 %v7301, %v7372
          %7374 = vadd.xlane.f32.xlu0 %v7373
          %v7375 = vpop.xlane.xlu0 %7374
          %v7376 = vsel %vm673, %v7307, 0.0
          %v7377 = vadd.f32 %v7305, %v7376
          %7378 = vadd.xlane.f32.xlu0 %v7377
          %v7379 = vpop.xlane.xlu0 %7378
          %v7380 = vsel %vm673, %v7311, 0.0
          %v7381 = vadd.f32 %v7309, %v7380
          %7382 = vadd.xlane.f32.xlu0 %v7381
          %v7383 = vpop.xlane.xlu0 %7382
          %v7384 = vsel %vm673, %v7315, 0.0
          %v7385 = vadd.f32 %v7313, %v7384
          %7386 = vadd.xlane.f32.xlu0 %v7385
          %v7387 = vpop.xlane.xlu0 %7386
          %v7388 = vsel %vm673, %v7319, 0.0
          %v7389 = vadd.f32 %v7317, %v7388
          %7390 = vadd.xlane.f32.xlu0 %v7389
          %v7391 = vpop.xlane.xlu0 %7390
          %v7392 = vsel %vm673, %v7323, 0.0
          %v7393 = vadd.f32 %v7321, %v7392
          %7394 = vadd.xlane.f32.xlu0 %v7393
          %v7395 = vpop.xlane.xlu0 %7394
          %v7396 = vsel %vm673, %v7327, 0.0
          %v7397 = vadd.f32 %v7325, %v7396
          %7398 = vadd.xlane.f32.xlu0 %v7397
          %v7399 = vpop.xlane.xlu0 %7398
          %v7400 = vsel %vm673, %v7331, 0.0
          %v7401 = vadd.f32 %v7329, %v7400
          %7402 = vadd.xlane.f32.xlu0 %v7401
          %v7403 = vpop.xlane.xlu0 %7402
          %v7404 = vsel %vm673, %v7335, 0.0
          %v7405 = vadd.f32 %v7333, %v7404
          %7406 = vadd.xlane.f32.xlu0 %v7405
          %v7407 = vpop.xlane.xlu0 %7406
          %v7408 = vsel %vm673, %v7339, 0.0
          %v7409 = vadd.f32 %v7337, %v7408
          %7410 = vadd.xlane.f32.xlu0 %v7409
          %v7411 = vpop.xlane.xlu0 %7410
          %7430 = vrot.lane.b32.xlu0 %v6820, 48
          %v7431 = vpop.permute.xlu0 %7430
          %7432 = vrot.lane.b32.xlu0 %v6821, 48
          %v7433 = vpop.permute.xlu0 %7432
          %7434 = vrot.lane.b32.xlu0 %v6822, 48
          %v7435 = vpop.permute.xlu0 %7434
          %7436 = vrot.lane.b32.xlu0 %v6823, 48
          %v7437 = vpop.permute.xlu0 %7436
          %7438 = vrot.lane.b32.xlu0 %v6824, 48
          %v7439 = vpop.permute.xlu0 %7438
          %7440 = vrot.lane.b32.xlu0 %v6825, 48
          %v7441 = vpop.permute.xlu0 %7440
          %7442 = vrot.lane.b32.xlu0 %v6826, 48
          %v7443 = vpop.permute.xlu0 %7442
          %7444 = vrot.lane.b32.xlu0 %v6827, 48
          %v7445 = vpop.permute.xlu0 %7444
          %7446 = vrot.lane.b32.xlu0 %v6828, 48
          %v7447 = vpop.permute.xlu0 %7446
          %7448 = vrot.lane.b32.xlu0 %v6829, 48
          %v7449 = vpop.permute.xlu0 %7448
          %7450 = vrot.lane.b32.xlu0 %v6830, 48
          %v7451 = vpop.permute.xlu0 %7450
          %7452 = vrot.lane.b32.xlu0 %v6831, 48
          %v7453 = vpop.permute.xlu0 %7452
          %7454 = vrot.lane.b32.xlu0 %v6832, 48
          %v7455 = vpop.permute.xlu0 %7454
          %7456 = vrot.lane.b32.xlu0 %v6833, 48
          %v7457 = vpop.permute.xlu0 %7456
          %7458 = vrot.lane.b32.xlu0 %v6834, 48
          %v7459 = vpop.permute.xlu0 %7458
          %7460 = vrot.lane.b32.xlu0 %v6835, 48
          %v7461 = vpop.permute.xlu0 %7460
          %7462 = vrot.lane.b32.xlu0 %v6836, 48
          %v7463 = vpop.permute.xlu0 %7462
          %7464 = vrot.lane.b32.xlu0 %v6837, 48
          %v7465 = vpop.permute.xlu0 %7464
          %v7485 = vsel %vm673, %v7271, 0
          %v7488 = vsel %vm673, %v7275, 0
          %v7491 = vsel %vm673, %v7279, 0
          %v7494 = vsel %vm673, %v7283, 0
          %v7497 = vsel %vm673, %v7287, 0
          %v7500 = vsel %vm673, %v7291, 0
          %v7503 = vsel %vm673, %v7295, 0
          %v7506 = vsel %vm673, %v7299, 0
          %v7509 = vsel %vm673, %v7303, 0
          %v7512 = vsel %vm673, %v7307, 0
          %v7515 = vsel %vm673, %v7311, 0
          %v7518 = vsel %vm673, %v7315, 0
          %v7521 = vsel %vm673, %v7319, 0
          %v7524 = vsel %vm673, %v7323, 0
          %v7527 = vsel %vm673, %v7327, 0
          %v7530 = vsel %vm673, %v7331, 0
          %v7533 = vsel %vm673, %v7335, 0
          %v7536 = vsel %vm673, %v7339, 0
          %7538 = vmatpush.msra.mxu0 %v7461
          %7539 = vmatpush.msra.mxu0 %v7459
          %7540 = vmatpush.msra.mxu0 %v7457
          %7541 = vmatpush.msra.mxu0 %v7455
          %7542 = vmatpush.msra.mxu0 %v7453
          %7543 = vmatpush.msra.mxu0 %v7451
          %7544 = vmatpush.msra.mxu0 %v7449
          %7545 = vmatpush.msra.mxu0 %v7447
          %7546 = vmatpush.msra.mxu0 %v7445
          %7547 = vmatpush.msra.mxu0 %v7443
          %7548 = vmatpush.msra.mxu0 %v7441
          %7549 = vmatpush.msra.mxu0 %v7439
          %7550 = vmatpush.msra.mxu0 %v7437
          %7551 = vmatpush.msra.mxu0 %v7435
          %7552 = vmatpush.msra.mxu0 %v7433
          %7553 = vmatpush.msra.mxu0 %v7431
          %7554 = vmatmul.f32.gmra.mxu0 %v7269
          %v7555 = vpop.f32.mrf.mxu0
          %v7556 = vadd.f32 0.0, %v7555
          %7557 = vmatmul.f32.gmra.mxu0 %v7273
          %v7558 = vpop.f32.mrf.mxu0
          %v7559 = vadd.f32 0.0, %v7558
          %7560 = vmatmul.f32.gmra.mxu0 %v7277
          %v7561 = vpop.f32.mrf.mxu0
          %v7562 = vadd.f32 0.0, %v7561
          %7563 = vmatmul.f32.gmra.mxu0 %v7281
          %v7564 = vpop.f32.mrf.mxu0
          %v7565 = vadd.f32 0.0, %v7564
          %7566 = vmatmul.f32.gmra.mxu0 %v7285
          %v7567 = vpop.f32.mrf.mxu0
          %v7568 = vadd.f32 0.0, %v7567
          %7569 = vmatmul.f32.gmra.mxu0 %v7289
          %v7570 = vpop.f32.mrf.mxu0
          %v7571 = vadd.f32 0.0, %v7570
          %7572 = vmatmul.f32.gmra.mxu0 %v7293
          %v7573 = vpop.f32.mrf.mxu0
          %v7574 = vadd.f32 0.0, %v7573
          %7575 = vmatmul.f32.gmra.mxu0 %v7297
          %v7576 = vpop.f32.mrf.mxu0
          %v7577 = vadd.f32 0.0, %v7576
          %7578 = vmatmul.f32.gmra.mxu0 %v7301
          %v7579 = vpop.f32.mrf.mxu0
          %v7580 = vadd.f32 0.0, %v7579
          %7581 = vmatmul.f32.gmra.mxu0 %v7305
          %v7582 = vpop.f32.mrf.mxu0
          %v7583 = vadd.f32 0.0, %v7582
          %7584 = vmatmul.f32.gmra.mxu0 %v7309
          %v7585 = vpop.f32.mrf.mxu0
          %v7586 = vadd.f32 0.0, %v7585
          %7587 = vmatmul.f32.gmra.mxu0 %v7313
          %v7588 = vpop.f32.mrf.mxu0
          %v7589 = vadd.f32 0.0, %v7588
          %7590 = vmatmul.f32.gmra.mxu0 %v7317
          %v7591 = vpop.f32.mrf.mxu0
          %v7592 = vadd.f32 0.0, %v7591
          %7593 = vmatmul.f32.gmra.mxu0 %v7321
          %v7594 = vpop.f32.mrf.mxu0
          %v7595 = vadd.f32 0.0, %v7594
          %7596 = vmatmul.f32.gmra.mxu0 %v7325
          %v7597 = vpop.f32.mrf.mxu0
          %v7598 = vadd.f32 0.0, %v7597
          %7599 = vmatmul.f32.gmra.mxu0 %v7329
          %v7600 = vpop.f32.mrf.mxu0
          %v7601 = vadd.f32 0.0, %v7600
          %7602 = vmatmul.f32.gmra.mxu0 %v7333
          %v7603 = vpop.f32.mrf.mxu0
          %v7604 = vadd.f32 0.0, %v7603
          %7605 = vmatmul.f32.gmra.mxu0 %v7337
          %v7606 = vpop.f32.mrf.mxu0
          %v7607 = vadd.f32 0.0, %v7606
          %7608 = vdwg.mxu0
          %7609 = vmatpush.msra.mxu0 0.0
          %7610 = vmatpush.msra.mxu0 0.0
          %7611 = vmatpush.msra.mxu0 0.0
          %7612 = vmatpush.msra.mxu0 0.0
          %7613 = vmatpush.msra.mxu0 0.0
          %7614 = vmatpush.msra.mxu0 0.0
          %7615 = vmatpush.msra.mxu0 0.0
          %7616 = vmatpush.msra.mxu0 0.0
          %7617 = vmatpush.msra.mxu0 0.0
          %7618 = vmatpush.msra.mxu0 0.0
          %7619 = vmatpush.msra.mxu0 0.0
          %7620 = vmatpush.msra.mxu0 0.0
          %7621 = vmatpush.msra.mxu0 0.0
          %7622 = vmatpush.msra.mxu0 0.0
          %7623 = vmatpush.msra.mxu0 %v7465
          %7624 = vmatpush.msra.mxu0 %v7463
          %7625 = vmatmul.f32.gmra.mxu0 %v7485
          %v7626 = vpop.f32.mrf.mxu0
          %v7627 = vadd.f32 %v7556, %v7626
          %7628 = vmatmul.f32.gmra.mxu0 %v7488
          %v7629 = vpop.f32.mrf.mxu0
          %v7630 = vadd.f32 %v7559, %v7629
          %7631 = vmatmul.f32.gmra.mxu0 %v7491
          %v7632 = vpop.f32.mrf.mxu0
          %v7633 = vadd.f32 %v7562, %v7632
          %7634 = vmatmul.f32.gmra.mxu0 %v7494
          %v7635 = vpop.f32.mrf.mxu0
          %v7636 = vadd.f32 %v7565, %v7635
          %7637 = vmatmul.f32.gmra.mxu0 %v7497
          %v7638 = vpop.f32.mrf.mxu0
          %v7639 = vadd.f32 %v7568, %v7638
          %7640 = vmatmul.f32.gmra.mxu0 %v7500
          %v7641 = vpop.f32.mrf.mxu0
          %v7642 = vadd.f32 %v7571, %v7641
          %7643 = vmatmul.f32.gmra.mxu0 %v7503
          %v7644 = vpop.f32.mrf.mxu0
          %v7645 = vadd.f32 %v7574, %v7644
          %7646 = vmatmul.f32.gmra.mxu0 %v7506
          %v7647 = vpop.f32.mrf.mxu0
          %v7648 = vadd.f32 %v7577, %v7647
          %7649 = vmatmul.f32.gmra.mxu0 %v7509
          %v7650 = vpop.f32.mrf.mxu0
          %v7651 = vadd.f32 %v7580, %v7650
          %7652 = vmatmul.f32.gmra.mxu0 %v7512
          %v7653 = vpop.f32.mrf.mxu0
          %v7654 = vadd.f32 %v7583, %v7653
          %7655 = vmatmul.f32.gmra.mxu0 %v7515
          %v7656 = vpop.f32.mrf.mxu0
          %v7657 = vadd.f32 %v7586, %v7656
          %7658 = vmatmul.f32.gmra.mxu0 %v7518
          %v7659 = vpop.f32.mrf.mxu0
          %v7660 = vadd.f32 %v7589, %v7659
          %7661 = vmatmul.f32.gmra.mxu0 %v7521
          %v7662 = vpop.f32.mrf.mxu0
          %v7663 = vadd.f32 %v7592, %v7662
          %7664 = vmatmul.f32.gmra.mxu0 %v7524
          %v7665 = vpop.f32.mrf.mxu0
          %v7666 = vadd.f32 %v7595, %v7665
          %7667 = vmatmul.f32.gmra.mxu0 %v7527
          %v7668 = vpop.f32.mrf.mxu0
          %v7669 = vadd.f32 %v7598, %v7668
          %7670 = vmatmul.f32.gmra.mxu0 %v7530
          %v7671 = vpop.f32.mrf.mxu0
          %v7672 = vadd.f32 %v7601, %v7671
          %7673 = vmatmul.f32.gmra.mxu0 %v7533
          %v7674 = vpop.f32.mrf.mxu0
          %v7675 = vadd.f32 %v7604, %v7674
          %7676 = vmatmul.f32.gmra.mxu0 %v7536
          %v7677 = vpop.f32.mrf.mxu0
          %v7678 = vadd.f32 %v7607, %v7677
          %7679 = vdwg.mxu0
          %v7680 = vld [vmem:[%s3] sm:$0x1]
          %v7682 = vperm.slane %v7680, 0
          %7683 = vrot.lane.b32.xlu0 %v7682, 48
          %v7684 = vpop.permute.xlu0 %7683
          %v7686 = vmul.f32 %v7627, %v7684
          %v7687 = vmul.f32 %v7630, %v7684
          %v7688 = vmul.f32 %v7633, %v7684
          %v7689 = vmul.f32 %v7636, %v7684
          %v7690 = vmul.f32 %v7639, %v7684
          %v7691 = vmul.f32 %v7642, %v7684
          %v7692 = vmul.f32 %v7645, %v7684
          %v7693 = vmul.f32 %v7648, %v7684
          %v7694 = vmul.f32 %v7651, %v7684
          %v7695 = vmul.f32 %v7654, %v7684
          %v7696 = vmul.f32 %v7657, %v7684
          %v7697 = vmul.f32 %v7660, %v7684
          %v7698 = vmul.f32 %v7663, %v7684
          %v7699 = vmul.f32 %v7666, %v7684
          %v7700 = vmul.f32 %v7669, %v7684
          %v7701 = vmul.f32 %v7672, %v7684
          %v7702 = vmul.f32 %v7675, %v7684
          %v7703 = vmul.f32 %v7678, %v7684
          %v7704 = vsel %vm673, %v7686, 0.0
          %7705 = vadd.xlane.f32.xlu0 %v7704
          %v7706 = vpop.xlane.xlu0 %7705
          %v7707 = vsel %vm673, %v7687, 0.0
          %7708 = vadd.xlane.f32.xlu0 %v7707
          %v7709 = vpop.xlane.xlu0 %7708
          %v7710 = vsel %vm673, %v7688, 0.0
          %7711 = vadd.xlane.f32.xlu0 %v7710
          %v7712 = vpop.xlane.xlu0 %7711
          %v7713 = vsel %vm673, %v7689, 0.0
          %7714 = vadd.xlane.f32.xlu0 %v7713
          %v7715 = vpop.xlane.xlu0 %7714
          %v7716 = vsel %vm673, %v7690, 0.0
          %7717 = vadd.xlane.f32.xlu0 %v7716
          %v7718 = vpop.xlane.xlu0 %7717
          %v7719 = vsel %vm673, %v7691, 0.0
          %7720 = vadd.xlane.f32.xlu0 %v7719
          %v7721 = vpop.xlane.xlu0 %7720
          %v7722 = vsel %vm673, %v7692, 0.0
          %7723 = vadd.xlane.f32.xlu0 %v7722
          %v7724 = vpop.xlane.xlu0 %7723
          %v7725 = vsel %vm673, %v7693, 0.0
          %7726 = vadd.xlane.f32.xlu0 %v7725
          %v7727 = vpop.xlane.xlu0 %7726
          %v7728 = vsel %vm673, %v7694, 0.0
          %7729 = vadd.xlane.f32.xlu0 %v7728
          %v7730 = vpop.xlane.xlu0 %7729
          %v7731 = vsel %vm673, %v7695, 0.0
          %7732 = vadd.xlane.f32.xlu0 %v7731
          %v7733 = vpop.xlane.xlu0 %7732
          %v7734 = vsel %vm673, %v7696, 0.0
          %7735 = vadd.xlane.f32.xlu0 %v7734
          %v7736 = vpop.xlane.xlu0 %7735
          %v7737 = vsel %vm673, %v7697, 0.0
          %7738 = vadd.xlane.f32.xlu0 %v7737
          %v7739 = vpop.xlane.xlu0 %7738
          %v7740 = vsel %vm673, %v7698, 0.0
          %7741 = vadd.xlane.f32.xlu0 %v7740
          %v7742 = vpop.xlane.xlu0 %7741
          %v7743 = vsel %vm673, %v7699, 0.0
          %7744 = vadd.xlane.f32.xlu0 %v7743
          %v7745 = vpop.xlane.xlu0 %7744
          %v7746 = vsel %vm673, %v7700, 0.0
          %7747 = vadd.xlane.f32.xlu0 %v7746
          %v7748 = vpop.xlane.xlu0 %7747
          %v7749 = vsel %vm673, %v7701, 0.0
          %7750 = vadd.xlane.f32.xlu0 %v7749
          %v7751 = vpop.xlane.xlu0 %7750
          %v7752 = vsel %vm673, %v7702, 0.0
          %7753 = vadd.xlane.f32.xlu0 %v7752
          %v7754 = vpop.xlane.xlu0 %7753
          %v7755 = vsel %vm673, %v7703, 0.0
          %7756 = vadd.xlane.f32.xlu0 %v7755
          %v7757 = vpop.xlane.xlu0 %7756
          %v7758 = vrcp.pop %v7343
          %v7759 = vmul.f32 %v7343, %v7758
          %v7760 = vsub.f32 1.0, %v7759
          %v7761 = vmul.f32 %v7758, %v7760
          %v7762 = vadd.f32 %v7758, %v7761
          %vm7763 = vweird.f32 %v7343
          %vm7764 = vweird.f32 %v7758
          %vm7765 = vmor %vm7763, %vm7764
          %v7766 = vsel %vm7765, %v7758, %v7762
          %v7767 = vand.u32 2147483647, %v7343
          %vm7768 = vcmp.eq.f32.partialorder %v7767, 8.507059e+37
          %v7769 = vand.u32 %v7343, 2147483648
          %v7770 = vor.u32 1.1754944e-38, %v7769
          %v7771 = vsel %vm7768, %v7770, %v7766
          %v7772 = vmul.f32 %v7706, %v7771
          %v7773 = vrcp.pop %v7347
          %v7774 = vmul.f32 %v7347, %v7773
          %v7775 = vsub.f32 1.0, %v7774
          %v7776 = vmul.f32 %v7773, %v7775
          %v7777 = vadd.f32 %v7773, %v7776
          %vm7778 = vweird.f32 %v7347
          %vm7779 = vweird.f32 %v7773
          %vm7780 = vmor %vm7778, %vm7779
          %v7781 = vsel %vm7780, %v7773, %v7777
          %v7782 = vand.u32 2147483647, %v7347
          %vm7783 = vcmp.eq.f32.partialorder %v7782, 8.507059e+37
          %v7784 = vand.u32 %v7347, 2147483648
          %v7785 = vor.u32 1.1754944e-38, %v7784
          %v7786 = vsel %vm7783, %v7785, %v7781
          %v7787 = vmul.f32 %v7709, %v7786
          %v7788 = vrcp.pop %v7351
          %v7789 = vmul.f32 %v7351, %v7788
          %v7790 = vsub.f32 1.0, %v7789
          %v7791 = vmul.f32 %v7788, %v7790
          %v7792 = vadd.f32 %v7788, %v7791
          %vm7793 = vweird.f32 %v7351
          %vm7794 = vweird.f32 %v7788
          %vm7795 = vmor %vm7793, %vm7794
          %v7796 = vsel %vm7795, %v7788, %v7792
          %v7797 = vand.u32 2147483647, %v7351
          %vm7798 = vcmp.eq.f32.partialorder %v7797, 8.507059e+37
          %v7799 = vand.u32 %v7351, 2147483648
          %v7800 = vor.u32 1.1754944e-38, %v7799
          %v7801 = vsel %vm7798, %v7800, %v7796
          %v7802 = vmul.f32 %v7712, %v7801
          %v7803 = vrcp.pop %v7355
          %v7804 = vmul.f32 %v7355, %v7803
          %v7805 = vsub.f32 1.0, %v7804
          %v7806 = vmul.f32 %v7803, %v7805
          %v7807 = vadd.f32 %v7803, %v7806
          %vm7808 = vweird.f32 %v7355
          %vm7809 = vweird.f32 %v7803
          %vm7810 = vmor %vm7808, %vm7809
          %v7811 = vsel %vm7810, %v7803, %v7807
          %v7812 = vand.u32 2147483647, %v7355
          %vm7813 = vcmp.eq.f32.partialorder %v7812, 8.507059e+37
          %v7814 = vand.u32 %v7355, 2147483648
          %v7815 = vor.u32 1.1754944e-38, %v7814
          %v7816 = vsel %vm7813, %v7815, %v7811
          %v7817 = vmul.f32 %v7715, %v7816
          %v7818 = vrcp.pop %v7359
          %v7819 = vmul.f32 %v7359, %v7818
          %v7820 = vsub.f32 1.0, %v7819
          %v7821 = vmul.f32 %v7818, %v7820
          %v7822 = vadd.f32 %v7818, %v7821
          %vm7823 = vweird.f32 %v7359
          %vm7824 = vweird.f32 %v7818
          %vm7825 = vmor %vm7823, %vm7824
          %v7826 = vsel %vm7825, %v7818, %v7822
          %v7827 = vand.u32 2147483647, %v7359
          %vm7828 = vcmp.eq.f32.partialorder %v7827, 8.507059e+37
          %v7829 = vand.u32 %v7359, 2147483648
          %v7830 = vor.u32 1.1754944e-38, %v7829
          %v7831 = vsel %vm7828, %v7830, %v7826
          %v7832 = vmul.f32 %v7718, %v7831
          %v7833 = vrcp.pop %v7363
          %v7834 = vmul.f32 %v7363, %v7833
          %v7835 = vsub.f32 1.0, %v7834
          %v7836 = vmul.f32 %v7833, %v7835
          %v7837 = vadd.f32 %v7833, %v7836
          %vm7838 = vweird.f32 %v7363
          %vm7839 = vweird.f32 %v7833
          %vm7840 = vmor %vm7838, %vm7839
          %v7841 = vsel %vm7840, %v7833, %v7837
          %v7842 = vand.u32 2147483647, %v7363
          %vm7843 = vcmp.eq.f32.partialorder %v7842, 8.507059e+37
          %v7844 = vand.u32 %v7363, 2147483648
          %v7845 = vor.u32 1.1754944e-38, %v7844
          %v7846 = vsel %vm7843, %v7845, %v7841
          %v7847 = vmul.f32 %v7721, %v7846
          %v7848 = vrcp.pop %v7367
          %v7849 = vmul.f32 %v7367, %v7848
          %v7850 = vsub.f32 1.0, %v7849
          %v7851 = vmul.f32 %v7848, %v7850
          %v7852 = vadd.f32 %v7848, %v7851
          %vm7853 = vweird.f32 %v7367
          %vm7854 = vweird.f32 %v7848
          %vm7855 = vmor %vm7853, %vm7854
          %v7856 = vsel %vm7855, %v7848, %v7852
          %v7857 = vand.u32 2147483647, %v7367
          %vm7858 = vcmp.eq.f32.partialorder %v7857, 8.507059e+37
          %v7859 = vand.u32 %v7367, 2147483648
          %v7860 = vor.u32 1.1754944e-38, %v7859
          %v7861 = vsel %vm7858, %v7860, %v7856
          %v7862 = vmul.f32 %v7724, %v7861
          %v7863 = vrcp.pop %v7371
          %v7864 = vmul.f32 %v7371, %v7863
          %v7865 = vsub.f32 1.0, %v7864
          %v7866 = vmul.f32 %v7863, %v7865
          %v7867 = vadd.f32 %v7863, %v7866
          %vm7868 = vweird.f32 %v7371
          %vm7869 = vweird.f32 %v7863
          %vm7870 = vmor %vm7868, %vm7869
          %v7871 = vsel %vm7870, %v7863, %v7867
          %v7872 = vand.u32 2147483647, %v7371
          %vm7873 = vcmp.eq.f32.partialorder %v7872, 8.507059e+37
          %v7874 = vand.u32 %v7371, 2147483648
          %v7875 = vor.u32 1.1754944e-38, %v7874
          %v7876 = vsel %vm7873, %v7875, %v7871
          %v7877 = vmul.f32 %v7727, %v7876
          %v7878 = vrcp.pop %v7375
          %v7879 = vmul.f32 %v7375, %v7878
          %v7880 = vsub.f32 1.0, %v7879
          %v7881 = vmul.f32 %v7878, %v7880
          %v7882 = vadd.f32 %v7878, %v7881
          %vm7883 = vweird.f32 %v7375
          %vm7884 = vweird.f32 %v7878
          %vm7885 = vmor %vm7883, %vm7884
          %v7886 = vsel %vm7885, %v7878, %v7882
          %v7887 = vand.u32 2147483647, %v7375
          %vm7888 = vcmp.eq.f32.partialorder %v7887, 8.507059e+37
          %v7889 = vand.u32 %v7375, 2147483648
          %v7890 = vor.u32 1.1754944e-38, %v7889
          %v7891 = vsel %vm7888, %v7890, %v7886
          %v7892 = vmul.f32 %v7730, %v7891
          %v7893 = vrcp.pop %v7379
          %v7894 = vmul.f32 %v7379, %v7893
          %v7895 = vsub.f32 1.0, %v7894
          %v7896 = vmul.f32 %v7893, %v7895
          %v7897 = vadd.f32 %v7893, %v7896
          %vm7898 = vweird.f32 %v7379
          %vm7899 = vweird.f32 %v7893
          %vm7900 = vmor %vm7898, %vm7899
          %v7901 = vsel %vm7900, %v7893, %v7897
          %v7902 = vand.u32 2147483647, %v7379
          %vm7903 = vcmp.eq.f32.partialorder %v7902, 8.507059e+37
          %v7904 = vand.u32 %v7379, 2147483648
          %v7905 = vor.u32 1.1754944e-38, %v7904
          %v7906 = vsel %vm7903, %v7905, %v7901
          %v7907 = vmul.f32 %v7733, %v7906
          %v7908 = vrcp.pop %v7383
          %v7909 = vmul.f32 %v7383, %v7908
          %v7910 = vsub.f32 1.0, %v7909
          %v7911 = vmul.f32 %v7908, %v7910
          %v7912 = vadd.f32 %v7908, %v7911
          %vm7913 = vweird.f32 %v7383
          %vm7914 = vweird.f32 %v7908
          %vm7915 = vmor %vm7913, %vm7914
          %v7916 = vsel %vm7915, %v7908, %v7912
          %v7917 = vand.u32 2147483647, %v7383
          %vm7918 = vcmp.eq.f32.partialorder %v7917, 8.507059e+37
          %v7919 = vand.u32 %v7383, 2147483648
          %v7920 = vor.u32 1.1754944e-38, %v7919
          %v7921 = vsel %vm7918, %v7920, %v7916
          %v7922 = vmul.f32 %v7736, %v7921
          %v7923 = vrcp.pop %v7387
          %v7924 = vmul.f32 %v7387, %v7923
          %v7925 = vsub.f32 1.0, %v7924
          %v7926 = vmul.f32 %v7923, %v7925
          %v7927 = vadd.f32 %v7923, %v7926
          %vm7928 = vweird.f32 %v7387
          %vm7929 = vweird.f32 %v7923
          %vm7930 = vmor %vm7928, %vm7929
          %v7931 = vsel %vm7930, %v7923, %v7927
          %v7932 = vand.u32 2147483647, %v7387
          %vm7933 = vcmp.eq.f32.partialorder %v7932, 8.507059e+37
          %v7934 = vand.u32 %v7387, 2147483648
          %v7935 = vor.u32 1.1754944e-38, %v7934
          %v7936 = vsel %vm7933, %v7935, %v7931
          %v7937 = vmul.f32 %v7739, %v7936
          %v7938 = vrcp.pop %v7391
          %v7939 = vmul.f32 %v7391, %v7938
          %v7940 = vsub.f32 1.0, %v7939
          %v7941 = vmul.f32 %v7938, %v7940
          %v7942 = vadd.f32 %v7938, %v7941
          %vm7943 = vweird.f32 %v7391
          %vm7944 = vweird.f32 %v7938
          %vm7945 = vmor %vm7943, %vm7944
          %v7946 = vsel %vm7945, %v7938, %v7942
          %v7947 = vand.u32 2147483647, %v7391
          %vm7948 = vcmp.eq.f32.partialorder %v7947, 8.507059e+37
          %v7949 = vand.u32 %v7391, 2147483648
          %v7950 = vor.u32 1.1754944e-38, %v7949
          %v7951 = vsel %vm7948, %v7950, %v7946
          %v7952 = vmul.f32 %v7742, %v7951
          %v7953 = vrcp.pop %v7395
          %v7954 = vmul.f32 %v7395, %v7953
          %v7955 = vsub.f32 1.0, %v7954
          %v7956 = vmul.f32 %v7953, %v7955
          %v7957 = vadd.f32 %v7953, %v7956
          %vm7958 = vweird.f32 %v7395
          %vm7959 = vweird.f32 %v7953
          %vm7960 = vmor %vm7958, %vm7959
          %v7961 = vsel %vm7960, %v7953, %v7957
          %v7962 = vand.u32 2147483647, %v7395
          %vm7963 = vcmp.eq.f32.partialorder %v7962, 8.507059e+37
          %v7964 = vand.u32 %v7395, 2147483648
          %v7965 = vor.u32 1.1754944e-38, %v7964
          %v7966 = vsel %vm7963, %v7965, %v7961
          %v7967 = vmul.f32 %v7745, %v7966
          %v7968 = vrcp.pop %v7399
          %v7969 = vmul.f32 %v7399, %v7968
          %v7970 = vsub.f32 1.0, %v7969
          %v7971 = vmul.f32 %v7968, %v7970
          %v7972 = vadd.f32 %v7968, %v7971
          %vm7973 = vweird.f32 %v7399
          %vm7974 = vweird.f32 %v7968
          %vm7975 = vmor %vm7973, %vm7974
          %v7976 = vsel %vm7975, %v7968, %v7972
          %v7977 = vand.u32 2147483647, %v7399
          %vm7978 = vcmp.eq.f32.partialorder %v7977, 8.507059e+37
          %v7979 = vand.u32 %v7399, 2147483648
          %v7980 = vor.u32 1.1754944e-38, %v7979
          %v7981 = vsel %vm7978, %v7980, %v7976
          %v7982 = vmul.f32 %v7748, %v7981
          %v7983 = vrcp.pop %v7403
          %v7984 = vmul.f32 %v7403, %v7983
          %v7985 = vsub.f32 1.0, %v7984
          %v7986 = vmul.f32 %v7983, %v7985
          %v7987 = vadd.f32 %v7983, %v7986
          %vm7988 = vweird.f32 %v7403
          %vm7989 = vweird.f32 %v7983
          %vm7990 = vmor %vm7988, %vm7989
          %v7991 = vsel %vm7990, %v7983, %v7987
          %v7992 = vand.u32 2147483647, %v7403
          %vm7993 = vcmp.eq.f32.partialorder %v7992, 8.507059e+37
          %v7994 = vand.u32 %v7403, 2147483648
          %v7995 = vor.u32 1.1754944e-38, %v7994
          %v7996 = vsel %vm7993, %v7995, %v7991
          %v7997 = vmul.f32 %v7751, %v7996
          %v7998 = vrcp.pop %v7407
          %v7999 = vmul.f32 %v7407, %v7998
          %v8000 = vsub.f32 1.0, %v7999
          %v8001 = vmul.f32 %v7998, %v8000
          %v8002 = vadd.f32 %v7998, %v8001
          %vm8003 = vweird.f32 %v7407
          %vm8004 = vweird.f32 %v7998
          %vm8005 = vmor %vm8003, %vm8004
          %v8006 = vsel %vm8005, %v7998, %v8002
          %v8007 = vand.u32 2147483647, %v7407
          %vm8008 = vcmp.eq.f32.partialorder %v8007, 8.507059e+37
          %v8009 = vand.u32 %v7407, 2147483648
          %v8010 = vor.u32 1.1754944e-38, %v8009
          %v8011 = vsel %vm8008, %v8010, %v8006
          %v8012 = vmul.f32 %v7754, %v8011
          %v8013 = vrcp.pop %v7411
          %v8014 = vmul.f32 %v7411, %v8013
          %v8015 = vsub.f32 1.0, %v8014
          %v8016 = vmul.f32 %v8013, %v8015
          %v8017 = vadd.f32 %v8013, %v8016
          %vm8018 = vweird.f32 %v7411
          %vm8019 = vweird.f32 %v8013
          %vm8020 = vmor %vm8018, %vm8019
          %v8021 = vsel %vm8020, %v8013, %v8017
          %v8022 = vand.u32 2147483647, %v7411
          %vm8023 = vcmp.eq.f32.partialorder %v8022, 8.507059e+37
          %v8024 = vand.u32 %v7411, 2147483648
          %v8025 = vor.u32 1.1754944e-38, %v8024
          %v8026 = vsel %vm8023, %v8025, %v8021
          %v8027 = vmul.f32 %v7757, %v8026
          %v8028 = vadd.f32 %v6766, %v7772
          %v8029 = vadd.f32 %v6767, %v7787
          %v8030 = vadd.f32 %v6768, %v7802
          %v8031 = vadd.f32 %v6769, %v7817
          %v8032 = vadd.f32 %v6770, %v7832
          %v8033 = vadd.f32 %v6771, %v7847
          %v8034 = vadd.f32 %v6772, %v7862
          %v8035 = vadd.f32 %v6773, %v7877
          %v8036 = vadd.f32 %v6774, %v7892
          %v8037 = vadd.f32 %v6775, %v7907
          %v8038 = vadd.f32 %v6776, %v7922
          %v8039 = vadd.f32 %v6777, %v7937
          %v8040 = vadd.f32 %v6778, %v7952
          %v8041 = vadd.f32 %v6779, %v7967
          %v8042 = vadd.f32 %v6780, %v7982
          %v8043 = vadd.f32 %v6781, %v7997
          %v8044 = vadd.f32 %v6782, %v8012
          %v8045 = vadd.f32 %v6783, %v8027
          %v8046 = vld [vmem:[#allocation2] sm:$0xff]
          %v8047 = vld [vmem:[#allocation2 + $0x18] sm:$0xff]
          %v8048 = vld [vmem:[#allocation2 + $0x30] sm:$0xff]
          %v8049 = vld [vmem:[#allocation2 + $0x48] sm:$0xff]
          %v8050 = vld [vmem:[#allocation2 + $0x60] sm:$0xff]
          %v8051 = vld [vmem:[#allocation2 + $0x78] sm:$0xff]
          %v8052 = vld [vmem:[#allocation2 + $0x90] sm:$0xff]
          %v8053 = vld [vmem:[#allocation2 + $0xa8] sm:$0xff]
          %v8054 = vld [vmem:[#allocation2 + $0xc0] sm:$0xff]
          %v8055 = vld [vmem:[#allocation2 + $0xd8] sm:$0xff]
          %v8056 = vld [vmem:[#allocation2 + $0xf0] sm:$0xff]
          %v8057 = vld [vmem:[#allocation2 + $0x108] sm:$0xff]
          %v8058 = vld [vmem:[#allocation2 + $0x120] sm:$0xff]
          %v8059 = vld [vmem:[#allocation2 + $0x138] sm:$0xff]
          %v8060 = vld [vmem:[#allocation2 + $0x150] sm:$0xff]
          %v8061 = vld [vmem:[#allocation2 + $0x168] sm:$0xff]
          %v8062 = vld [vmem:[#allocation2 + $0x180] sm:$0xff]
          %v8063 = vld [vmem:[#allocation2 + $0x198] sm:$0xff]
          %v8064 = vld [vmem:[#allocation2 + $0x8] sm:$0xff]
          %v8065 = vld [vmem:[#allocation2 + $0x20] sm:$0xff]
          %v8066 = vld [vmem:[#allocation2 + $0x38] sm:$0xff]
          %v8067 = vld [vmem:[#allocation2 + $0x50] sm:$0xff]
          %v8068 = vld [vmem:[#allocation2 + $0x68] sm:$0xff]
          %v8069 = vld [vmem:[#allocation2 + $0x80] sm:$0xff]
          %v8070 = vld [vmem:[#allocation2 + $0x98] sm:$0xff]
          %v8071 = vld [vmem:[#allocation2 + $0xb0] sm:$0xff]
          %v8072 = vld [vmem:[#allocation2 + $0xc8] sm:$0xff]
          %v8073 = vld [vmem:[#allocation2 + $0xe0] sm:$0xff]
          %v8074 = vld [vmem:[#allocation2 + $0xf8] sm:$0xff]
          %v8075 = vld [vmem:[#allocation2 + $0x110] sm:$0xff]
          %v8076 = vld [vmem:[#allocation2 + $0x128] sm:$0xff]
          %v8077 = vld [vmem:[#allocation2 + $0x140] sm:$0xff]
          %v8078 = vld [vmem:[#allocation2 + $0x158] sm:$0xff]
          %v8079 = vld [vmem:[#allocation2 + $0x170] sm:$0xff]
          %v8080 = vld [vmem:[#allocation2 + $0x188] sm:$0xff]
          %v8081 = vld [vmem:[#allocation2 + $0x1a0] sm:$0xff]
          %v8082 = vld [vmem:[#allocation2 + $0x10] sm:$0xff]
          %v8083 = vld [vmem:[#allocation2 + $0x28] sm:$0xff]
          %v8084 = vld [vmem:[#allocation2 + $0x40] sm:$0xff]
          %v8085 = vld [vmem:[#allocation2 + $0x58] sm:$0xff]
          %v8086 = vld [vmem:[#allocation2 + $0x70] sm:$0xff]
          %v8087 = vld [vmem:[#allocation2 + $0x88] sm:$0xff]
          %v8088 = vld [vmem:[#allocation2 + $0xa0] sm:$0xff]
          %v8089 = vld [vmem:[#allocation2 + $0xb8] sm:$0xff]
          %v8090 = vld [vmem:[#allocation2 + $0xd0] sm:$0xff]
          %v8091 = vld [vmem:[#allocation2 + $0xe8] sm:$0xff]
          %v8092 = vld [vmem:[#allocation2 + $0x100] sm:$0xff]
          %v8093 = vld [vmem:[#allocation2 + $0x118] sm:$0xff]
          %v8094 = vld [vmem:[#allocation2 + $0x130] sm:$0xff]
          %v8095 = vld [vmem:[#allocation2 + $0x148] sm:$0xff]
          %v8096 = vld [vmem:[#allocation2 + $0x160] sm:$0xff]
          %v8097 = vld [vmem:[#allocation2 + $0x178] sm:$0xff]
          %v8098 = vld [vmem:[#allocation2 + $0x190] sm:$0xff]
          %v8099 = vld [vmem:[#allocation2 + $0x1a8] sm:$0xff]
          %8118 = vrot.lane.b32.xlu0 %v8046, 32
          %v8119 = vpop.permute.xlu0 %8118
          %8120 = vrot.lane.b32.xlu0 %v8047, 32
          %v8121 = vpop.permute.xlu0 %8120
          %8122 = vrot.lane.b32.xlu0 %v8048, 32
          %v8123 = vpop.permute.xlu0 %8122
          %8124 = vrot.lane.b32.xlu0 %v8049, 32
          %v8125 = vpop.permute.xlu0 %8124
          %8126 = vrot.lane.b32.xlu0 %v8050, 32
          %v8127 = vpop.permute.xlu0 %8126
          %8128 = vrot.lane.b32.xlu0 %v8051, 32
          %v8129 = vpop.permute.xlu0 %8128
          %8130 = vrot.lane.b32.xlu0 %v8052, 32
          %v8131 = vpop.permute.xlu0 %8130
          %8132 = vrot.lane.b32.xlu0 %v8053, 32
          %v8133 = vpop.permute.xlu0 %8132
          %8134 = vrot.lane.b32.xlu0 %v8054, 32
          %v8135 = vpop.permute.xlu0 %8134
          %8136 = vrot.lane.b32.xlu0 %v8055, 32
          %v8137 = vpop.permute.xlu0 %8136
          %8138 = vrot.lane.b32.xlu0 %v8056, 32
          %v8139 = vpop.permute.xlu0 %8138
          %8140 = vrot.lane.b32.xlu0 %v8057, 32
          %v8141 = vpop.permute.xlu0 %8140
          %8142 = vrot.lane.b32.xlu0 %v8058, 32
          %v8143 = vpop.permute.xlu0 %8142
          %8144 = vrot.lane.b32.xlu0 %v8059, 32
          %v8145 = vpop.permute.xlu0 %8144
          %8146 = vrot.lane.b32.xlu0 %v8060, 32
          %v8147 = vpop.permute.xlu0 %8146
          %8148 = vrot.lane.b32.xlu0 %v8061, 32
          %v8149 = vpop.permute.xlu0 %8148
          %8150 = vrot.lane.b32.xlu0 %v8062, 32
          %v8151 = vpop.permute.xlu0 %8150
          %8152 = vrot.lane.b32.xlu0 %v8063, 32
          %v8153 = vpop.permute.xlu0 %8152
          %8172 = vrot.lane.b32.xlu0 %v8064, 32
          %v8173 = vpop.permute.xlu0 %8172
          %8174 = vrot.lane.b32.xlu0 %v8065, 32
          %v8175 = vpop.permute.xlu0 %8174
          %8176 = vrot.lane.b32.xlu0 %v8066, 32
          %v8177 = vpop.permute.xlu0 %8176
          %8178 = vrot.lane.b32.xlu0 %v8067, 32
          %v8179 = vpop.permute.xlu0 %8178
          %8180 = vrot.lane.b32.xlu0 %v8068, 32
          %v8181 = vpop.permute.xlu0 %8180
          %8182 = vrot.lane.b32.xlu0 %v8069, 32
          %v8183 = vpop.permute.xlu0 %8182
          %8184 = vrot.lane.b32.xlu0 %v8070, 32
          %v8185 = vpop.permute.xlu0 %8184
          %8186 = vrot.lane.b32.xlu0 %v8071, 32
          %v8187 = vpop.permute.xlu0 %8186
          %8188 = vrot.lane.b32.xlu0 %v8072, 32
          %v8189 = vpop.permute.xlu0 %8188
          %8190 = vrot.lane.b32.xlu0 %v8073, 32
          %v8191 = vpop.permute.xlu0 %8190
          %8192 = vrot.lane.b32.xlu0 %v8074, 32
          %v8193 = vpop.permute.xlu0 %8192
          %8194 = vrot.lane.b32.xlu0 %v8075, 32
          %v8195 = vpop.permute.xlu0 %8194
          %8196 = vrot.lane.b32.xlu0 %v8076, 32
          %v8197 = vpop.permute.xlu0 %8196
          %8198 = vrot.lane.b32.xlu0 %v8077, 32
          %v8199 = vpop.permute.xlu0 %8198
          %8200 = vrot.lane.b32.xlu0 %v8078, 32
          %v8201 = vpop.permute.xlu0 %8200
          %8202 = vrot.lane.b32.xlu0 %v8079, 32
          %v8203 = vpop.permute.xlu0 %8202
          %8204 = vrot.lane.b32.xlu0 %v8080, 32
          %v8205 = vpop.permute.xlu0 %8204
          %8206 = vrot.lane.b32.xlu0 %v8081, 32
          %v8207 = vpop.permute.xlu0 %8206
          %v8208 = vsel %vm673, %v8119, 0
          %v8210 = vsel %vm673, %v8121, 0
          %v8212 = vsel %vm673, %v8123, 0
          %v8214 = vsel %vm673, %v8125, 0
          %v8216 = vsel %vm673, %v8127, 0
          %v8218 = vsel %vm673, %v8129, 0
          %v8220 = vsel %vm673, %v8131, 0
          %v8222 = vsel %vm673, %v8133, 0
          %v8224 = vsel %vm673, %v8135, 0
          %v8226 = vsel %vm673, %v8137, 0
          %v8228 = vsel %vm673, %v8139, 0
          %v8230 = vsel %vm673, %v8141, 0
          %v8232 = vsel %vm673, %v8143, 0
          %v8234 = vsel %vm673, %v8145, 0
          %v8236 = vsel %vm673, %v8147, 0
          %v8238 = vsel %vm673, %v8149, 0
          %v8240 = vsel %vm673, %v8151, 0
          %v8242 = vsel %vm673, %v8153, 0
          %v8244 = vsel %vm673, %v8173, 0
          %v8246 = vsel %vm673, %v8175, 0
          %v8248 = vsel %vm673, %v8177, 0
          %v8250 = vsel %vm673, %v8179, 0
          %v8252 = vsel %vm673, %v8181, 0
          %v8254 = vsel %vm673, %v8183, 0
          %v8256 = vsel %vm673, %v8185, 0
          %v8258 = vsel %vm673, %v8187, 0
          %v8260 = vsel %vm673, %v8189, 0
          %v8262 = vsel %vm673, %v8191, 0
          %v8264 = vsel %vm673, %v8193, 0
          %v8266 = vsel %vm673, %v8195, 0
          %v8268 = vsel %vm673, %v8197, 0
          %v8270 = vsel %vm673, %v8199, 0
          %v8272 = vsel %vm673, %v8201, 0
          %v8274 = vsel %vm673, %v8203, 0
          %v8276 = vsel %vm673, %v8205, 0
          %v8278 = vsel %vm673, %v8207, 0
          %8280 = vmatpush.xpose.msra.mxu0 %v8274
          %8281 = vmatpush.xpose.msra.mxu0 %v8272
          %8282 = vmatpush.xpose.msra.mxu0 %v8270
          %8283 = vmatpush.xpose.msra.mxu0 %v8268
          %8284 = vmatpush.xpose.msra.mxu0 %v8266
          %8285 = vmatpush.xpose.msra.mxu0 %v8264
          %8286 = vmatpush.xpose.msra.mxu0 %v8262
          %8287 = vmatpush.xpose.msra.mxu0 %v8260
          %8288 = vmatpush.xpose.msra.mxu0 %v8258
          %8289 = vmatpush.xpose.msra.mxu0 %v8256
          %8290 = vmatpush.xpose.msra.mxu0 %v8254
          %8291 = vmatpush.xpose.msra.mxu0 %v8252
          %8292 = vmatpush.xpose.msra.mxu0 %v8250
          %8293 = vmatpush.xpose.msra.mxu0 %v8248
          %8294 = vmatpush.xpose.msra.mxu0 %v8246
          %8295 = vmatpush.xpose.msra.mxu0 %v8244
          %8296 = vmatmul.f32.gmra.mxu0 %v8208
          %v8297 = vpop.f32.mrf.mxu0
          %v8298 = vadd.f32 0.0, %v8297
          %8299 = vmatmul.f32.gmra.mxu0 %v8210
          %v8300 = vpop.f32.mrf.mxu0
          %v8301 = vadd.f32 0.0, %v8300
          %8302 = vmatmul.f32.gmra.mxu0 %v8212
          %v8303 = vpop.f32.mrf.mxu0
          %v8304 = vadd.f32 0.0, %v8303
          %8305 = vmatmul.f32.gmra.mxu0 %v8214
          %v8306 = vpop.f32.mrf.mxu0
          %v8307 = vadd.f32 0.0, %v8306
          %8308 = vmatmul.f32.gmra.mxu0 %v8216
          %v8309 = vpop.f32.mrf.mxu0
          %v8310 = vadd.f32 0.0, %v8309
          %8311 = vmatmul.f32.gmra.mxu0 %v8218
          %v8312 = vpop.f32.mrf.mxu0
          %v8313 = vadd.f32 0.0, %v8312
          %8314 = vmatmul.f32.gmra.mxu0 %v8220
          %v8315 = vpop.f32.mrf.mxu0
          %v8316 = vadd.f32 0.0, %v8315
          %8317 = vmatmul.f32.gmra.mxu0 %v8222
          %v8318 = vpop.f32.mrf.mxu0
          %v8319 = vadd.f32 0.0, %v8318
          %8320 = vmatmul.f32.gmra.mxu0 %v8224
          %v8321 = vpop.f32.mrf.mxu0
          %v8322 = vadd.f32 0.0, %v8321
          %8323 = vmatmul.f32.gmra.mxu0 %v8226
          %v8324 = vpop.f32.mrf.mxu0
          %v8325 = vadd.f32 0.0, %v8324
          %8326 = vmatmul.f32.gmra.mxu0 %v8228
          %v8327 = vpop.f32.mrf.mxu0
          %v8328 = vadd.f32 0.0, %v8327
          %8329 = vmatmul.f32.gmra.mxu0 %v8230
          %v8330 = vpop.f32.mrf.mxu0
          %v8331 = vadd.f32 0.0, %v8330
          %8332 = vmatmul.f32.gmra.mxu0 %v8232
          %v8333 = vpop.f32.mrf.mxu0
          %v8334 = vadd.f32 0.0, %v8333
          %8335 = vmatmul.f32.gmra.mxu0 %v8234
          %v8336 = vpop.f32.mrf.mxu0
          %v8337 = vadd.f32 0.0, %v8336
          %8338 = vmatmul.f32.gmra.mxu0 %v8236
          %v8339 = vpop.f32.mrf.mxu0
          %v8340 = vadd.f32 0.0, %v8339
          %8341 = vmatmul.f32.gmra.mxu0 %v8238
          %v8342 = vpop.f32.mrf.mxu0
          %v8343 = vadd.f32 0.0, %v8342
          %8344 = vmatmul.f32.gmra.mxu0 %v8240
          %v8345 = vpop.f32.mrf.mxu0
          %v8346 = vadd.f32 0.0, %v8345
          %8347 = vmatmul.f32.gmra.mxu0 %v8242
          %v8348 = vpop.f32.mrf.mxu0
          %v8349 = vadd.f32 0.0, %v8348
          %8350 = vdwg.mxu0
          %8351 = vmatpush.xpose.msra.mxu0 0.0
          %8352 = vmatpush.xpose.msra.mxu0 0.0
          %8353 = vmatpush.xpose.msra.mxu0 0.0
          %8354 = vmatpush.xpose.msra.mxu0 0.0
          %8355 = vmatpush.xpose.msra.mxu0 0.0
          %8356 = vmatpush.xpose.msra.mxu0 0.0
          %8357 = vmatpush.xpose.msra.mxu0 0.0
          %8358 = vmatpush.xpose.msra.mxu0 0.0
          %8359 = vmatpush.xpose.msra.mxu0 0.0
          %8360 = vmatpush.xpose.msra.mxu0 0.0
          %8361 = vmatpush.xpose.msra.mxu0 0.0
          %8362 = vmatpush.xpose.msra.mxu0 0.0
          %8363 = vmatpush.xpose.msra.mxu0 0.0
          %8364 = vmatpush.xpose.msra.mxu0 0.0
          %8365 = vmatpush.xpose.msra.mxu0 %v8278
          %8366 = vmatpush.xpose.msra.mxu0 %v8276
          %8367 = vmatmul.f32.gmra.mxu0 %v8208
          %v8368 = vpop.f32.mrf.mxu0
          %v8369 = vadd.f32 0.0, %v8368
          %8370 = vmatmul.f32.gmra.mxu0 %v8210
          %v8371 = vpop.f32.mrf.mxu0
          %v8372 = vadd.f32 0.0, %v8371
          %8373 = vmatmul.f32.gmra.mxu0 %v8212
          %v8374 = vpop.f32.mrf.mxu0
          %v8375 = vadd.f32 0.0, %v8374
          %8376 = vmatmul.f32.gmra.mxu0 %v8214
          %v8377 = vpop.f32.mrf.mxu0
          %v8378 = vadd.f32 0.0, %v8377
          %8379 = vmatmul.f32.gmra.mxu0 %v8216
          %v8380 = vpop.f32.mrf.mxu0
          %v8381 = vadd.f32 0.0, %v8380
          %8382 = vmatmul.f32.gmra.mxu0 %v8218
          %v8383 = vpop.f32.mrf.mxu0
          %v8384 = vadd.f32 0.0, %v8383
          %8385 = vmatmul.f32.gmra.mxu0 %v8220
          %v8386 = vpop.f32.mrf.mxu0
          %v8387 = vadd.f32 0.0, %v8386
          %8388 = vmatmul.f32.gmra.mxu0 %v8222
          %v8389 = vpop.f32.mrf.mxu0
          %v8390 = vadd.f32 0.0, %v8389
          %8391 = vmatmul.f32.gmra.mxu0 %v8224
          %v8392 = vpop.f32.mrf.mxu0
          %v8393 = vadd.f32 0.0, %v8392
          %8394 = vmatmul.f32.gmra.mxu0 %v8226
          %v8395 = vpop.f32.mrf.mxu0
          %v8396 = vadd.f32 0.0, %v8395
          %8397 = vmatmul.f32.gmra.mxu0 %v8228
          %v8398 = vpop.f32.mrf.mxu0
          %v8399 = vadd.f32 0.0, %v8398
          %8400 = vmatmul.f32.gmra.mxu0 %v8230
          %v8401 = vpop.f32.mrf.mxu0
          %v8402 = vadd.f32 0.0, %v8401
          %8403 = vmatmul.f32.gmra.mxu0 %v8232
          %v8404 = vpop.f32.mrf.mxu0
          %v8405 = vadd.f32 0.0, %v8404
          %8406 = vmatmul.f32.gmra.mxu0 %v8234
          %v8407 = vpop.f32.mrf.mxu0
          %v8408 = vadd.f32 0.0, %v8407
          %8409 = vmatmul.f32.gmra.mxu0 %v8236
          %v8410 = vpop.f32.mrf.mxu0
          %v8411 = vadd.f32 0.0, %v8410
          %8412 = vmatmul.f32.gmra.mxu0 %v8238
          %v8413 = vpop.f32.mrf.mxu0
          %v8414 = vadd.f32 0.0, %v8413
          %8415 = vmatmul.f32.gmra.mxu0 %v8240
          %v8416 = vpop.f32.mrf.mxu0
          %v8417 = vadd.f32 0.0, %v8416
          %8418 = vmatmul.f32.gmra.mxu0 %v8242
          %v8419 = vpop.f32.mrf.mxu0
          %v8420 = vadd.f32 0.0, %v8419
          %8421 = vdwg.mxu0
          %v8422 = vsel %vm673, %v8369, -inf
          %v8423 = vmax.f32 %v8298, %v8422
          %8424 = vmax.xlane.f32.xlu0 %v8423
          %v8425 = vpop.xlane.xlu0 %8424
          %v8426 = vsel %vm673, %v8372, -inf
          %v8427 = vmax.f32 %v8301, %v8426
          %8428 = vmax.xlane.f32.xlu0 %v8427
          %v8429 = vpop.xlane.xlu0 %8428
          %v8430 = vsel %vm673, %v8375, -inf
          %v8431 = vmax.f32 %v8304, %v8430
          %8432 = vmax.xlane.f32.xlu0 %v8431
          %v8433 = vpop.xlane.xlu0 %8432
          %v8434 = vsel %vm673, %v8378, -inf
          %v8435 = vmax.f32 %v8307, %v8434
          %8436 = vmax.xlane.f32.xlu0 %v8435
          %v8437 = vpop.xlane.xlu0 %8436
          %v8438 = vsel %vm673, %v8381, -inf
          %v8439 = vmax.f32 %v8310, %v8438
          %8440 = vmax.xlane.f32.xlu0 %v8439
          %v8441 = vpop.xlane.xlu0 %8440
          %v8442 = vsel %vm673, %v8384, -inf
          %v8443 = vmax.f32 %v8313, %v8442
          %8444 = vmax.xlane.f32.xlu0 %v8443
          %v8445 = vpop.xlane.xlu0 %8444
          %v8446 = vsel %vm673, %v8387, -inf
          %v8447 = vmax.f32 %v8316, %v8446
          %8448 = vmax.xlane.f32.xlu0 %v8447
          %v8449 = vpop.xlane.xlu0 %8448
          %v8450 = vsel %vm673, %v8390, -inf
          %v8451 = vmax.f32 %v8319, %v8450
          %8452 = vmax.xlane.f32.xlu0 %v8451
          %v8453 = vpop.xlane.xlu0 %8452
          %v8454 = vsel %vm673, %v8393, -inf
          %v8455 = vmax.f32 %v8322, %v8454
          %8456 = vmax.xlane.f32.xlu0 %v8455
          %v8457 = vpop.xlane.xlu0 %8456
          %v8458 = vsel %vm673, %v8396, -inf
          %v8459 = vmax.f32 %v8325, %v8458
          %8460 = vmax.xlane.f32.xlu0 %v8459
          %v8461 = vpop.xlane.xlu0 %8460
          %v8462 = vsel %vm673, %v8399, -inf
          %v8463 = vmax.f32 %v8328, %v8462
          %8464 = vmax.xlane.f32.xlu0 %v8463
          %v8465 = vpop.xlane.xlu0 %8464
          %v8466 = vsel %vm673, %v8402, -inf
          %v8467 = vmax.f32 %v8331, %v8466
          %8468 = vmax.xlane.f32.xlu0 %v8467
          %v8469 = vpop.xlane.xlu0 %8468
          %v8470 = vsel %vm673, %v8405, -inf
          %v8471 = vmax.f32 %v8334, %v8470
          %8472 = vmax.xlane.f32.xlu0 %v8471
          %v8473 = vpop.xlane.xlu0 %8472
          %v8474 = vsel %vm673, %v8408, -inf
          %v8475 = vmax.f32 %v8337, %v8474
          %8476 = vmax.xlane.f32.xlu0 %v8475
          %v8477 = vpop.xlane.xlu0 %8476
          %v8478 = vsel %vm673, %v8411, -inf
          %v8479 = vmax.f32 %v8340, %v8478
          %8480 = vmax.xlane.f32.xlu0 %v8479
          %v8481 = vpop.xlane.xlu0 %8480
          %v8482 = vsel %vm673, %v8414, -inf
          %v8483 = vmax.f32 %v8343, %v8482
          %8484 = vmax.xlane.f32.xlu0 %v8483
          %v8485 = vpop.xlane.xlu0 %8484
          %v8486 = vsel %vm673, %v8417, -inf
          %v8487 = vmax.f32 %v8346, %v8486
          %8488 = vmax.xlane.f32.xlu0 %v8487
          %v8489 = vpop.xlane.xlu0 %8488
          %v8490 = vsel %vm673, %v8420, -inf
          %v8491 = vmax.f32 %v8349, %v8490
          %8492 = vmax.xlane.f32.xlu0 %v8491
          %v8493 = vpop.xlane.xlu0 %8492
          %v8494 = vsub.f32 %v8298, %v8425
          %v8495 = vsub.f32 %v8369, %v8425
          %v8496 = vsub.f32 %v8301, %v8429
          %v8497 = vsub.f32 %v8372, %v8429
          %v8498 = vsub.f32 %v8304, %v8433
          %v8499 = vsub.f32 %v8375, %v8433
          %v8500 = vsub.f32 %v8307, %v8437
          %v8501 = vsub.f32 %v8378, %v8437
          %v8502 = vsub.f32 %v8310, %v8441
          %v8503 = vsub.f32 %v8381, %v8441
          %v8504 = vsub.f32 %v8313, %v8445
          %v8505 = vsub.f32 %v8384, %v8445
          %v8506 = vsub.f32 %v8316, %v8449
          %v8507 = vsub.f32 %v8387, %v8449
          %v8508 = vsub.f32 %v8319, %v8453
          %v8509 = vsub.f32 %v8390, %v8453
          %v8510 = vsub.f32 %v8322, %v8457
          %v8511 = vsub.f32 %v8393, %v8457
          %v8512 = vsub.f32 %v8325, %v8461
          %v8513 = vsub.f32 %v8396, %v8461
          %v8514 = vsub.f32 %v8328, %v8465
          %v8515 = vsub.f32 %v8399, %v8465
          %v8516 = vsub.f32 %v8331, %v8469
          %v8517 = vsub.f32 %v8402, %v8469
          %v8518 = vsub.f32 %v8334, %v8473
          %v8519 = vsub.f32 %v8405, %v8473
          %v8520 = vsub.f32 %v8337, %v8477
          %v8521 = vsub.f32 %v8408, %v8477
          %v8522 = vsub.f32 %v8340, %v8481
          %v8523 = vsub.f32 %v8411, %v8481
          %v8524 = vsub.f32 %v8343, %v8485
          %v8525 = vsub.f32 %v8414, %v8485
          %v8526 = vsub.f32 %v8346, %v8489
          %v8527 = vsub.f32 %v8417, %v8489
          %v8528 = vsub.f32 %v8349, %v8493
          %v8529 = vsub.f32 %v8420, %v8493
          %v8530 = vmul.f32 %v8494, 1.442695
          %v8531 = vpow.pop %v8530
          %v8532 = vmul.f32 %v8495, 1.442695
          %v8533 = vpow.pop %v8532
          %v8534 = vmul.f32 %v8496, 1.442695
          %v8535 = vpow.pop %v8534
          %v8536 = vmul.f32 %v8497, 1.442695
          %v8537 = vpow.pop %v8536
          %v8538 = vmul.f32 %v8498, 1.442695
          %v8539 = vpow.pop %v8538
          %v8540 = vmul.f32 %v8499, 1.442695
          %v8541 = vpow.pop %v8540
          %v8542 = vmul.f32 %v8500, 1.442695
          %v8543 = vpow.pop %v8542
          %v8544 = vmul.f32 %v8501, 1.442695
          %v8545 = vpow.pop %v8544
          %v8546 = vmul.f32 %v8502, 1.442695
          %v8547 = vpow.pop %v8546
          %v8548 = vmul.f32 %v8503, 1.442695
          %v8549 = vpow.pop %v8548
          %v8550 = vmul.f32 %v8504, 1.442695
          %v8551 = vpow.pop %v8550
          %v8552 = vmul.f32 %v8505, 1.442695
          %v8553 = vpow.pop %v8552
          %v8554 = vmul.f32 %v8506, 1.442695
          %v8555 = vpow.pop %v8554
          %v8556 = vmul.f32 %v8507, 1.442695
          %v8557 = vpow.pop %v8556
          %v8558 = vmul.f32 %v8508, 1.442695
          %v8559 = vpow.pop %v8558
          %v8560 = vmul.f32 %v8509, 1.442695
          %v8561 = vpow.pop %v8560
          %v8562 = vmul.f32 %v8510, 1.442695
          %v8563 = vpow.pop %v8562
          %v8564 = vmul.f32 %v8511, 1.442695
          %v8565 = vpow.pop %v8564
          %v8566 = vmul.f32 %v8512, 1.442695
          %v8567 = vpow.pop %v8566
          %v8568 = vmul.f32 %v8513, 1.442695
          %v8569 = vpow.pop %v8568
          %v8570 = vmul.f32 %v8514, 1.442695
          %v8571 = vpow.pop %v8570
          %v8572 = vmul.f32 %v8515, 1.442695
          %v8573 = vpow.pop %v8572
          %v8574 = vmul.f32 %v8516, 1.442695
          %v8575 = vpow.pop %v8574
          %v8576 = vmul.f32 %v8517, 1.442695
          %v8577 = vpow.pop %v8576
          %v8578 = vmul.f32 %v8518, 1.442695
          %v8579 = vpow.pop %v8578
          %v8580 = vmul.f32 %v8519, 1.442695
          %v8581 = vpow.pop %v8580
          %v8582 = vmul.f32 %v8520, 1.442695
          %v8583 = vpow.pop %v8582
          %v8584 = vmul.f32 %v8521, 1.442695
          %v8585 = vpow.pop %v8584
          %v8586 = vmul.f32 %v8522, 1.442695
          %v8587 = vpow.pop %v8586
          %v8588 = vmul.f32 %v8523, 1.442695
          %v8589 = vpow.pop %v8588
          %v8590 = vmul.f32 %v8524, 1.442695
          %v8591 = vpow.pop %v8590
          %v8592 = vmul.f32 %v8525, 1.442695
          %v8593 = vpow.pop %v8592
          %v8594 = vmul.f32 %v8526, 1.442695
          %v8595 = vpow.pop %v8594
          %v8596 = vmul.f32 %v8527, 1.442695
          %v8597 = vpow.pop %v8596
          %v8598 = vmul.f32 %v8528, 1.442695
          %v8599 = vpow.pop %v8598
          %v8600 = vmul.f32 %v8529, 1.442695
          %v8601 = vpow.pop %v8600
          %v8602 = vsel %vm673, %v8533, 0.0
          %v8603 = vadd.f32 %v8531, %v8602
          %8604 = vadd.xlane.f32.xlu0 %v8603
          %v8605 = vpop.xlane.xlu0 %8604
          %v8606 = vsel %vm673, %v8537, 0.0
          %v8607 = vadd.f32 %v8535, %v8606
          %8608 = vadd.xlane.f32.xlu0 %v8607
          %v8609 = vpop.xlane.xlu0 %8608
          %v8610 = vsel %vm673, %v8541, 0.0
          %v8611 = vadd.f32 %v8539, %v8610
          %8612 = vadd.xlane.f32.xlu0 %v8611
          %v8613 = vpop.xlane.xlu0 %8612
          %v8614 = vsel %vm673, %v8545, 0.0
          %v8615 = vadd.f32 %v8543, %v8614
          %8616 = vadd.xlane.f32.xlu0 %v8615
          %v8617 = vpop.xlane.xlu0 %8616
          %v8618 = vsel %vm673, %v8549, 0.0
          %v8619 = vadd.f32 %v8547, %v8618
          %8620 = vadd.xlane.f32.xlu0 %v8619
          %v8621 = vpop.xlane.xlu0 %8620
          %v8622 = vsel %vm673, %v8553, 0.0
          %v8623 = vadd.f32 %v8551, %v8622
          %8624 = vadd.xlane.f32.xlu0 %v8623
          %v8625 = vpop.xlane.xlu0 %8624
          %v8626 = vsel %vm673, %v8557, 0.0
          %v8627 = vadd.f32 %v8555, %v8626
          %8628 = vadd.xlane.f32.xlu0 %v8627
          %v8629 = vpop.xlane.xlu0 %8628
          %v8630 = vsel %vm673, %v8561, 0.0
          %v8631 = vadd.f32 %v8559, %v8630
          %8632 = vadd.xlane.f32.xlu0 %v8631
          %v8633 = vpop.xlane.xlu0 %8632
          %v8634 = vsel %vm673, %v8565, 0.0
          %v8635 = vadd.f32 %v8563, %v8634
          %8636 = vadd.xlane.f32.xlu0 %v8635
          %v8637 = vpop.xlane.xlu0 %8636
          %v8638 = vsel %vm673, %v8569, 0.0
          %v8639 = vadd.f32 %v8567, %v8638
          %8640 = vadd.xlane.f32.xlu0 %v8639
          %v8641 = vpop.xlane.xlu0 %8640
          %v8642 = vsel %vm673, %v8573, 0.0
          %v8643 = vadd.f32 %v8571, %v8642
          %8644 = vadd.xlane.f32.xlu0 %v8643
          %v8645 = vpop.xlane.xlu0 %8644
          %v8646 = vsel %vm673, %v8577, 0.0
          %v8647 = vadd.f32 %v8575, %v8646
          %8648 = vadd.xlane.f32.xlu0 %v8647
          %v8649 = vpop.xlane.xlu0 %8648
          %v8650 = vsel %vm673, %v8581, 0.0
          %v8651 = vadd.f32 %v8579, %v8650
          %8652 = vadd.xlane.f32.xlu0 %v8651
          %v8653 = vpop.xlane.xlu0 %8652
          %v8654 = vsel %vm673, %v8585, 0.0
          %v8655 = vadd.f32 %v8583, %v8654
          %8656 = vadd.xlane.f32.xlu0 %v8655
          %v8657 = vpop.xlane.xlu0 %8656
          %v8658 = vsel %vm673, %v8589, 0.0
          %v8659 = vadd.f32 %v8587, %v8658
          %8660 = vadd.xlane.f32.xlu0 %v8659
          %v8661 = vpop.xlane.xlu0 %8660
          %v8662 = vsel %vm673, %v8593, 0.0
          %v8663 = vadd.f32 %v8591, %v8662
          %8664 = vadd.xlane.f32.xlu0 %v8663
          %v8665 = vpop.xlane.xlu0 %8664
          %v8666 = vsel %vm673, %v8597, 0.0
          %v8667 = vadd.f32 %v8595, %v8666
          %8668 = vadd.xlane.f32.xlu0 %v8667
          %v8669 = vpop.xlane.xlu0 %8668
          %v8670 = vsel %vm673, %v8601, 0.0
          %v8671 = vadd.f32 %v8599, %v8670
          %8672 = vadd.xlane.f32.xlu0 %v8671
          %v8673 = vpop.xlane.xlu0 %8672
          %8692 = vrot.lane.b32.xlu0 %v8082, 32
          %v8693 = vpop.permute.xlu0 %8692
          %8694 = vrot.lane.b32.xlu0 %v8083, 32
          %v8695 = vpop.permute.xlu0 %8694
          %8696 = vrot.lane.b32.xlu0 %v8084, 32
          %v8697 = vpop.permute.xlu0 %8696
          %8698 = vrot.lane.b32.xlu0 %v8085, 32
          %v8699 = vpop.permute.xlu0 %8698
          %8700 = vrot.lane.b32.xlu0 %v8086, 32
          %v8701 = vpop.permute.xlu0 %8700
          %8702 = vrot.lane.b32.xlu0 %v8087, 32
          %v8703 = vpop.permute.xlu0 %8702
          %8704 = vrot.lane.b32.xlu0 %v8088, 32
          %v8705 = vpop.permute.xlu0 %8704
          %8706 = vrot.lane.b32.xlu0 %v8089, 32
          %v8707 = vpop.permute.xlu0 %8706
          %8708 = vrot.lane.b32.xlu0 %v8090, 32
          %v8709 = vpop.permute.xlu0 %8708
          %8710 = vrot.lane.b32.xlu0 %v8091, 32
          %v8711 = vpop.permute.xlu0 %8710
          %8712 = vrot.lane.b32.xlu0 %v8092, 32
          %v8713 = vpop.permute.xlu0 %8712
          %8714 = vrot.lane.b32.xlu0 %v8093, 32
          %v8715 = vpop.permute.xlu0 %8714
          %8716 = vrot.lane.b32.xlu0 %v8094, 32
          %v8717 = vpop.permute.xlu0 %8716
          %8718 = vrot.lane.b32.xlu0 %v8095, 32
          %v8719 = vpop.permute.xlu0 %8718
          %8720 = vrot.lane.b32.xlu0 %v8096, 32
          %v8721 = vpop.permute.xlu0 %8720
          %8722 = vrot.lane.b32.xlu0 %v8097, 32
          %v8723 = vpop.permute.xlu0 %8722
          %8724 = vrot.lane.b32.xlu0 %v8098, 32
          %v8725 = vpop.permute.xlu0 %8724
          %8726 = vrot.lane.b32.xlu0 %v8099, 32
          %v8727 = vpop.permute.xlu0 %8726
          %v8747 = vsel %vm673, %v8533, 0
          %v8750 = vsel %vm673, %v8537, 0
          %v8753 = vsel %vm673, %v8541, 0
          %v8756 = vsel %vm673, %v8545, 0
          %v8759 = vsel %vm673, %v8549, 0
          %v8762 = vsel %vm673, %v8553, 0
          %v8765 = vsel %vm673, %v8557, 0
          %v8768 = vsel %vm673, %v8561, 0
          %v8771 = vsel %vm673, %v8565, 0
          %v8774 = vsel %vm673, %v8569, 0
          %v8777 = vsel %vm673, %v8573, 0
          %v8780 = vsel %vm673, %v8577, 0
          %v8783 = vsel %vm673, %v8581, 0
          %v8786 = vsel %vm673, %v8585, 0
          %v8789 = vsel %vm673, %v8589, 0
          %v8792 = vsel %vm673, %v8593, 0
          %v8795 = vsel %vm673, %v8597, 0
          %v8798 = vsel %vm673, %v8601, 0
          %8800 = vmatpush.msra.mxu0 %v8723
          %8801 = vmatpush.msra.mxu0 %v8721
          %8802 = vmatpush.msra.mxu0 %v8719
          %8803 = vmatpush.msra.mxu0 %v8717
          %8804 = vmatpush.msra.mxu0 %v8715
          %8805 = vmatpush.msra.mxu0 %v8713
          %8806 = vmatpush.msra.mxu0 %v8711
          %8807 = vmatpush.msra.mxu0 %v8709
          %8808 = vmatpush.msra.mxu0 %v8707
          %8809 = vmatpush.msra.mxu0 %v8705
          %8810 = vmatpush.msra.mxu0 %v8703
          %8811 = vmatpush.msra.mxu0 %v8701
          %8812 = vmatpush.msra.mxu0 %v8699
          %8813 = vmatpush.msra.mxu0 %v8697
          %8814 = vmatpush.msra.mxu0 %v8695
          %8815 = vmatpush.msra.mxu0 %v8693
          %8816 = vmatmul.f32.gmra.mxu0 %v8531
          %v8817 = vpop.f32.mrf.mxu0
          %v8818 = vadd.f32 0.0, %v8817
          %8819 = vmatmul.f32.gmra.mxu0 %v8535
          %v8820 = vpop.f32.mrf.mxu0
          %v8821 = vadd.f32 0.0, %v8820
          %8822 = vmatmul.f32.gmra.mxu0 %v8539
          %v8823 = vpop.f32.mrf.mxu0
          %v8824 = vadd.f32 0.0, %v8823
          %8825 = vmatmul.f32.gmra.mxu0 %v8543
          %v8826 = vpop.f32.mrf.mxu0
          %v8827 = vadd.f32 0.0, %v8826
          %8828 = vmatmul.f32.gmra.mxu0 %v8547
          %v8829 = vpop.f32.mrf.mxu0
          %v8830 = vadd.f32 0.0, %v8829
          %8831 = vmatmul.f32.gmra.mxu0 %v8551
          %v8832 = vpop.f32.mrf.mxu0
          %v8833 = vadd.f32 0.0, %v8832
          %8834 = vmatmul.f32.gmra.mxu0 %v8555
          %v8835 = vpop.f32.mrf.mxu0
          %v8836 = vadd.f32 0.0, %v8835
          %8837 = vmatmul.f32.gmra.mxu0 %v8559
          %v8838 = vpop.f32.mrf.mxu0
          %v8839 = vadd.f32 0.0, %v8838
          %8840 = vmatmul.f32.gmra.mxu0 %v8563
          %v8841 = vpop.f32.mrf.mxu0
          %v8842 = vadd.f32 0.0, %v8841
          %8843 = vmatmul.f32.gmra.mxu0 %v8567
          %v8844 = vpop.f32.mrf.mxu0
          %v8845 = vadd.f32 0.0, %v8844
          %8846 = vmatmul.f32.gmra.mxu0 %v8571
          %v8847 = vpop.f32.mrf.mxu0
          %v8848 = vadd.f32 0.0, %v8847
          %8849 = vmatmul.f32.gmra.mxu0 %v8575
          %v8850 = vpop.f32.mrf.mxu0
          %v8851 = vadd.f32 0.0, %v8850
          %8852 = vmatmul.f32.gmra.mxu0 %v8579
          %v8853 = vpop.f32.mrf.mxu0
          %v8854 = vadd.f32 0.0, %v8853
          %8855 = vmatmul.f32.gmra.mxu0 %v8583
          %v8856 = vpop.f32.mrf.mxu0
          %v8857 = vadd.f32 0.0, %v8856
          %8858 = vmatmul.f32.gmra.mxu0 %v8587
          %v8859 = vpop.f32.mrf.mxu0
          %v8860 = vadd.f32 0.0, %v8859
          %8861 = vmatmul.f32.gmra.mxu0 %v8591
          %v8862 = vpop.f32.mrf.mxu0
          %v8863 = vadd.f32 0.0, %v8862
          %8864 = vmatmul.f32.gmra.mxu0 %v8595
          %v8865 = vpop.f32.mrf.mxu0
          %v8866 = vadd.f32 0.0, %v8865
          %8867 = vmatmul.f32.gmra.mxu0 %v8599
          %v8868 = vpop.f32.mrf.mxu0
          %v8869 = vadd.f32 0.0, %v8868
          %8870 = vdwg.mxu0
          %8871 = vmatpush.msra.mxu0 0.0
          %8872 = vmatpush.msra.mxu0 0.0
          %8873 = vmatpush.msra.mxu0 0.0
          %8874 = vmatpush.msra.mxu0 0.0
          %8875 = vmatpush.msra.mxu0 0.0
          %8876 = vmatpush.msra.mxu0 0.0
          %8877 = vmatpush.msra.mxu0 0.0
          %8878 = vmatpush.msra.mxu0 0.0
          %8879 = vmatpush.msra.mxu0 0.0
          %8880 = vmatpush.msra.mxu0 0.0
          %8881 = vmatpush.msra.mxu0 0.0
          %8882 = vmatpush.msra.mxu0 0.0
          %8883 = vmatpush.msra.mxu0 0.0
          %8884 = vmatpush.msra.mxu0 0.0
          %8885 = vmatpush.msra.mxu0 %v8727
          %8886 = vmatpush.msra.mxu0 %v8725
          %8887 = vmatmul.f32.gmra.mxu0 %v8747
          %v8888 = vpop.f32.mrf.mxu0
          %v8889 = vadd.f32 %v8818, %v8888
          %8890 = vmatmul.f32.gmra.mxu0 %v8750
          %v8891 = vpop.f32.mrf.mxu0
          %v8892 = vadd.f32 %v8821, %v8891
          %8893 = vmatmul.f32.gmra.mxu0 %v8753
          %v8894 = vpop.f32.mrf.mxu0
          %v8895 = vadd.f32 %v8824, %v8894
          %8896 = vmatmul.f32.gmra.mxu0 %v8756
          %v8897 = vpop.f32.mrf.mxu0
          %v8898 = vadd.f32 %v8827, %v8897
          %8899 = vmatmul.f32.gmra.mxu0 %v8759
          %v8900 = vpop.f32.mrf.mxu0
          %v8901 = vadd.f32 %v8830, %v8900
          %8902 = vmatmul.f32.gmra.mxu0 %v8762
          %v8903 = vpop.f32.mrf.mxu0
          %v8904 = vadd.f32 %v8833, %v8903
          %8905 = vmatmul.f32.gmra.mxu0 %v8765
          %v8906 = vpop.f32.mrf.mxu0
          %v8907 = vadd.f32 %v8836, %v8906
          %8908 = vmatmul.f32.gmra.mxu0 %v8768
          %v8909 = vpop.f32.mrf.mxu0
          %v8910 = vadd.f32 %v8839, %v8909
          %8911 = vmatmul.f32.gmra.mxu0 %v8771
          %v8912 = vpop.f32.mrf.mxu0
          %v8913 = vadd.f32 %v8842, %v8912
          %8914 = vmatmul.f32.gmra.mxu0 %v8774
          %v8915 = vpop.f32.mrf.mxu0
          %v8916 = vadd.f32 %v8845, %v8915
          %8917 = vmatmul.f32.gmra.mxu0 %v8777
          %v8918 = vpop.f32.mrf.mxu0
          %v8919 = vadd.f32 %v8848, %v8918
          %8920 = vmatmul.f32.gmra.mxu0 %v8780
          %v8921 = vpop.f32.mrf.mxu0
          %v8922 = vadd.f32 %v8851, %v8921
          %8923 = vmatmul.f32.gmra.mxu0 %v8783
          %v8924 = vpop.f32.mrf.mxu0
          %v8925 = vadd.f32 %v8854, %v8924
          %8926 = vmatmul.f32.gmra.mxu0 %v8786
          %v8927 = vpop.f32.mrf.mxu0
          %v8928 = vadd.f32 %v8857, %v8927
          %8929 = vmatmul.f32.gmra.mxu0 %v8789
          %v8930 = vpop.f32.mrf.mxu0
          %v8931 = vadd.f32 %v8860, %v8930
          %8932 = vmatmul.f32.gmra.mxu0 %v8792
          %v8933 = vpop.f32.mrf.mxu0
          %v8934 = vadd.f32 %v8863, %v8933
          %8935 = vmatmul.f32.gmra.mxu0 %v8795
          %v8936 = vpop.f32.mrf.mxu0
          %v8937 = vadd.f32 %v8866, %v8936
          %8938 = vmatmul.f32.gmra.mxu0 %v8798
          %v8939 = vpop.f32.mrf.mxu0
          %v8940 = vadd.f32 %v8869, %v8939
          %8941 = vdwg.mxu0
          %v8942 = vld [vmem:[%s3] sm:$0x1]
          %v8944 = vperm.slane %v8942, 0
          %8945 = vrot.lane.b32.xlu0 %v8944, 32
          %v8946 = vpop.permute.xlu0 %8945
          %v8948 = vmul.f32 %v8889, %v8946
          %v8949 = vmul.f32 %v8892, %v8946
          %v8950 = vmul.f32 %v8895, %v8946
          %v8951 = vmul.f32 %v8898, %v8946
          %v8952 = vmul.f32 %v8901, %v8946
          %v8953 = vmul.f32 %v8904, %v8946
          %v8954 = vmul.f32 %v8907, %v8946
          %v8955 = vmul.f32 %v8910, %v8946
          %v8956 = vmul.f32 %v8913, %v8946
          %v8957 = vmul.f32 %v8916, %v8946
          %v8958 = vmul.f32 %v8919, %v8946
          %v8959 = vmul.f32 %v8922, %v8946
          %v8960 = vmul.f32 %v8925, %v8946
          %v8961 = vmul.f32 %v8928, %v8946
          %v8962 = vmul.f32 %v8931, %v8946
          %v8963 = vmul.f32 %v8934, %v8946
          %v8964 = vmul.f32 %v8937, %v8946
          %v8965 = vmul.f32 %v8940, %v8946
          %v8966 = vsel %vm673, %v8948, 0.0
          %8967 = vadd.xlane.f32.xlu0 %v8966
          %v8968 = vpop.xlane.xlu0 %8967
          %v8969 = vsel %vm673, %v8949, 0.0
          %8970 = vadd.xlane.f32.xlu0 %v8969
          %v8971 = vpop.xlane.xlu0 %8970
          %v8972 = vsel %vm673, %v8950, 0.0
          %8973 = vadd.xlane.f32.xlu0 %v8972
          %v8974 = vpop.xlane.xlu0 %8973
          %v8975 = vsel %vm673, %v8951, 0.0
          %8976 = vadd.xlane.f32.xlu0 %v8975
          %v8977 = vpop.xlane.xlu0 %8976
          %v8978 = vsel %vm673, %v8952, 0.0
          %8979 = vadd.xlane.f32.xlu0 %v8978
          %v8980 = vpop.xlane.xlu0 %8979
          %v8981 = vsel %vm673, %v8953, 0.0
          %8982 = vadd.xlane.f32.xlu0 %v8981
          %v8983 = vpop.xlane.xlu0 %8982
          %v8984 = vsel %vm673, %v8954, 0.0
          %8985 = vadd.xlane.f32.xlu0 %v8984
          %v8986 = vpop.xlane.xlu0 %8985
          %v8987 = vsel %vm673, %v8955, 0.0
          %8988 = vadd.xlane.f32.xlu0 %v8987
          %v8989 = vpop.xlane.xlu0 %8988
          %v8990 = vsel %vm673, %v8956, 0.0
          %8991 = vadd.xlane.f32.xlu0 %v8990
          %v8992 = vpop.xlane.xlu0 %8991
          %v8993 = vsel %vm673, %v8957, 0.0
          %8994 = vadd.xlane.f32.xlu0 %v8993
          %v8995 = vpop.xlane.xlu0 %8994
          %v8996 = vsel %vm673, %v8958, 0.0
          %8997 = vadd.xlane.f32.xlu0 %v8996
          %v8998 = vpop.xlane.xlu0 %8997
          %v8999 = vsel %vm673, %v8959, 0.0
          %9000 = vadd.xlane.f32.xlu0 %v8999
          %v9001 = vpop.xlane.xlu0 %9000
          %v9002 = vsel %vm673, %v8960, 0.0
          %9003 = vadd.xlane.f32.xlu0 %v9002
          %v9004 = vpop.xlane.xlu0 %9003
          %v9005 = vsel %vm673, %v8961, 0.0
          %9006 = vadd.xlane.f32.xlu0 %v9005
          %v9007 = vpop.xlane.xlu0 %9006
          %v9008 = vsel %vm673, %v8962, 0.0
          %9009 = vadd.xlane.f32.xlu0 %v9008
          %v9010 = vpop.xlane.xlu0 %9009
          %v9011 = vsel %vm673, %v8963, 0.0
          %9012 = vadd.xlane.f32.xlu0 %v9011
          %v9013 = vpop.xlane.xlu0 %9012
          %v9014 = vsel %vm673, %v8964, 0.0
          %9015 = vadd.xlane.f32.xlu0 %v9014
          %v9016 = vpop.xlane.xlu0 %9015
          %v9017 = vsel %vm673, %v8965, 0.0
          %9018 = vadd.xlane.f32.xlu0 %v9017
          %v9019 = vpop.xlane.xlu0 %9018
          %v9020 = vrcp.pop %v8605
          %v9021 = vmul.f32 %v8605, %v9020
          %v9022 = vsub.f32 1.0, %v9021
          %v9023 = vmul.f32 %v9020, %v9022
          %v9024 = vadd.f32 %v9020, %v9023
          %vm9025 = vweird.f32 %v8605
          %vm9026 = vweird.f32 %v9020
          %vm9027 = vmor %vm9025, %vm9026
          %v9028 = vsel %vm9027, %v9020, %v9024
          %v9029 = vand.u32 2147483647, %v8605
          %vm9030 = vcmp.eq.f32.partialorder %v9029, 8.507059e+37
          %v9031 = vand.u32 %v8605, 2147483648
          %v9032 = vor.u32 1.1754944e-38, %v9031
          %v9033 = vsel %vm9030, %v9032, %v9028
          %v9034 = vmul.f32 %v8968, %v9033
          %v9035 = vrcp.pop %v8609
          %v9036 = vmul.f32 %v8609, %v9035
          %v9037 = vsub.f32 1.0, %v9036
          %v9038 = vmul.f32 %v9035, %v9037
          %v9039 = vadd.f32 %v9035, %v9038
          %vm9040 = vweird.f32 %v8609
          %vm9041 = vweird.f32 %v9035
          %vm9042 = vmor %vm9040, %vm9041
          %v9043 = vsel %vm9042, %v9035, %v9039
          %v9044 = vand.u32 2147483647, %v8609
          %vm9045 = vcmp.eq.f32.partialorder %v9044, 8.507059e+37
          %v9046 = vand.u32 %v8609, 2147483648
          %v9047 = vor.u32 1.1754944e-38, %v9046
          %v9048 = vsel %vm9045, %v9047, %v9043
          %v9049 = vmul.f32 %v8971, %v9048
          %v9050 = vrcp.pop %v8613
          %v9051 = vmul.f32 %v8613, %v9050
          %v9052 = vsub.f32 1.0, %v9051
          %v9053 = vmul.f32 %v9050, %v9052
          %v9054 = vadd.f32 %v9050, %v9053
          %vm9055 = vweird.f32 %v8613
          %vm9056 = vweird.f32 %v9050
          %vm9057 = vmor %vm9055, %vm9056
          %v9058 = vsel %vm9057, %v9050, %v9054
          %v9059 = vand.u32 2147483647, %v8613
          %vm9060 = vcmp.eq.f32.partialorder %v9059, 8.507059e+37
          %v9061 = vand.u32 %v8613, 2147483648
          %v9062 = vor.u32 1.1754944e-38, %v9061
          %v9063 = vsel %vm9060, %v9062, %v9058
          %v9064 = vmul.f32 %v8974, %v9063
          %v9065 = vrcp.pop %v8617
          %v9066 = vmul.f32 %v8617, %v9065
          %v9067 = vsub.f32 1.0, %v9066
          %v9068 = vmul.f32 %v9065, %v9067
          %v9069 = vadd.f32 %v9065, %v9068
          %vm9070 = vweird.f32 %v8617
          %vm9071 = vweird.f32 %v9065
          %vm9072 = vmor %vm9070, %vm9071
          %v9073 = vsel %vm9072, %v9065, %v9069
          %v9074 = vand.u32 2147483647, %v8617
          %vm9075 = vcmp.eq.f32.partialorder %v9074, 8.507059e+37
          %v9076 = vand.u32 %v8617, 2147483648
          %v9077 = vor.u32 1.1754944e-38, %v9076
          %v9078 = vsel %vm9075, %v9077, %v9073
          %v9079 = vmul.f32 %v8977, %v9078
          %v9080 = vrcp.pop %v8621
          %v9081 = vmul.f32 %v8621, %v9080
          %v9082 = vsub.f32 1.0, %v9081
          %v9083 = vmul.f32 %v9080, %v9082
          %v9084 = vadd.f32 %v9080, %v9083
          %vm9085 = vweird.f32 %v8621
          %vm9086 = vweird.f32 %v9080
          %vm9087 = vmor %vm9085, %vm9086
          %v9088 = vsel %vm9087, %v9080, %v9084
          %v9089 = vand.u32 2147483647, %v8621
          %vm9090 = vcmp.eq.f32.partialorder %v9089, 8.507059e+37
          %v9091 = vand.u32 %v8621, 2147483648
          %v9092 = vor.u32 1.1754944e-38, %v9091
          %v9093 = vsel %vm9090, %v9092, %v9088
          %v9094 = vmul.f32 %v8980, %v9093
          %v9095 = vrcp.pop %v8625
          %v9096 = vmul.f32 %v8625, %v9095
          %v9097 = vsub.f32 1.0, %v9096
          %v9098 = vmul.f32 %v9095, %v9097
          %v9099 = vadd.f32 %v9095, %v9098
          %vm9100 = vweird.f32 %v8625
          %vm9101 = vweird.f32 %v9095
          %vm9102 = vmor %vm9100, %vm9101
          %v9103 = vsel %vm9102, %v9095, %v9099
          %v9104 = vand.u32 2147483647, %v8625
          %vm9105 = vcmp.eq.f32.partialorder %v9104, 8.507059e+37
          %v9106 = vand.u32 %v8625, 2147483648
          %v9107 = vor.u32 1.1754944e-38, %v9106
          %v9108 = vsel %vm9105, %v9107, %v9103
          %v9109 = vmul.f32 %v8983, %v9108
          %v9110 = vrcp.pop %v8629
          %v9111 = vmul.f32 %v8629, %v9110
          %v9112 = vsub.f32 1.0, %v9111
          %v9113 = vmul.f32 %v9110, %v9112
          %v9114 = vadd.f32 %v9110, %v9113
          %vm9115 = vweird.f32 %v8629
          %vm9116 = vweird.f32 %v9110
          %vm9117 = vmor %vm9115, %vm9116
          %v9118 = vsel %vm9117, %v9110, %v9114
          %v9119 = vand.u32 2147483647, %v8629
          %vm9120 = vcmp.eq.f32.partialorder %v9119, 8.507059e+37
          %v9121 = vand.u32 %v8629, 2147483648
          %v9122 = vor.u32 1.1754944e-38, %v9121
          %v9123 = vsel %vm9120, %v9122, %v9118
          %v9124 = vmul.f32 %v8986, %v9123
          %v9125 = vrcp.pop %v8633
          %v9126 = vmul.f32 %v8633, %v9125
          %v9127 = vsub.f32 1.0, %v9126
          %v9128 = vmul.f32 %v9125, %v9127
          %v9129 = vadd.f32 %v9125, %v9128
          %vm9130 = vweird.f32 %v8633
          %vm9131 = vweird.f32 %v9125
          %vm9132 = vmor %vm9130, %vm9131
          %v9133 = vsel %vm9132, %v9125, %v9129
          %v9134 = vand.u32 2147483647, %v8633
          %vm9135 = vcmp.eq.f32.partialorder %v9134, 8.507059e+37
          %v9136 = vand.u32 %v8633, 2147483648
          %v9137 = vor.u32 1.1754944e-38, %v9136
          %v9138 = vsel %vm9135, %v9137, %v9133
          %v9139 = vmul.f32 %v8989, %v9138
          %v9140 = vrcp.pop %v8637
          %v9141 = vmul.f32 %v8637, %v9140
          %v9142 = vsub.f32 1.0, %v9141
          %v9143 = vmul.f32 %v9140, %v9142
          %v9144 = vadd.f32 %v9140, %v9143
          %vm9145 = vweird.f32 %v8637
          %vm9146 = vweird.f32 %v9140
          %vm9147 = vmor %vm9145, %vm9146
          %v9148 = vsel %vm9147, %v9140, %v9144
          %v9149 = vand.u32 2147483647, %v8637
          %vm9150 = vcmp.eq.f32.partialorder %v9149, 8.507059e+37
          %v9151 = vand.u32 %v8637, 2147483648
          %v9152 = vor.u32 1.1754944e-38, %v9151
          %v9153 = vsel %vm9150, %v9152, %v9148
          %v9154 = vmul.f32 %v8992, %v9153
          %v9155 = vrcp.pop %v8641
          %v9156 = vmul.f32 %v8641, %v9155
          %v9157 = vsub.f32 1.0, %v9156
          %v9158 = vmul.f32 %v9155, %v9157
          %v9159 = vadd.f32 %v9155, %v9158
          %vm9160 = vweird.f32 %v8641
          %vm9161 = vweird.f32 %v9155
          %vm9162 = vmor %vm9160, %vm9161
          %v9163 = vsel %vm9162, %v9155, %v9159
          %v9164 = vand.u32 2147483647, %v8641
          %vm9165 = vcmp.eq.f32.partialorder %v9164, 8.507059e+37
          %v9166 = vand.u32 %v8641, 2147483648
          %v9167 = vor.u32 1.1754944e-38, %v9166
          %v9168 = vsel %vm9165, %v9167, %v9163
          %v9169 = vmul.f32 %v8995, %v9168
          %v9170 = vrcp.pop %v8645
          %v9171 = vmul.f32 %v8645, %v9170
          %v9172 = vsub.f32 1.0, %v9171
          %v9173 = vmul.f32 %v9170, %v9172
          %v9174 = vadd.f32 %v9170, %v9173
          %vm9175 = vweird.f32 %v8645
          %vm9176 = vweird.f32 %v9170
          %vm9177 = vmor %vm9175, %vm9176
          %v9178 = vsel %vm9177, %v9170, %v9174
          %v9179 = vand.u32 2147483647, %v8645
          %vm9180 = vcmp.eq.f32.partialorder %v9179, 8.507059e+37
          %v9181 = vand.u32 %v8645, 2147483648
          %v9182 = vor.u32 1.1754944e-38, %v9181
          %v9183 = vsel %vm9180, %v9182, %v9178
          %v9184 = vmul.f32 %v8998, %v9183
          %v9185 = vrcp.pop %v8649
          %v9186 = vmul.f32 %v8649, %v9185
          %v9187 = vsub.f32 1.0, %v9186
          %v9188 = vmul.f32 %v9185, %v9187
          %v9189 = vadd.f32 %v9185, %v9188
          %vm9190 = vweird.f32 %v8649
          %vm9191 = vweird.f32 %v9185
          %vm9192 = vmor %vm9190, %vm9191
          %v9193 = vsel %vm9192, %v9185, %v9189
          %v9194 = vand.u32 2147483647, %v8649
          %vm9195 = vcmp.eq.f32.partialorder %v9194, 8.507059e+37
          %v9196 = vand.u32 %v8649, 2147483648
          %v9197 = vor.u32 1.1754944e-38, %v9196
          %v9198 = vsel %vm9195, %v9197, %v9193
          %v9199 = vmul.f32 %v9001, %v9198
          %v9200 = vrcp.pop %v8653
          %v9201 = vmul.f32 %v8653, %v9200
          %v9202 = vsub.f32 1.0, %v9201
          %v9203 = vmul.f32 %v9200, %v9202
          %v9204 = vadd.f32 %v9200, %v9203
          %vm9205 = vweird.f32 %v8653
          %vm9206 = vweird.f32 %v9200
          %vm9207 = vmor %vm9205, %vm9206
          %v9208 = vsel %vm9207, %v9200, %v9204
          %v9209 = vand.u32 2147483647, %v8653
          %vm9210 = vcmp.eq.f32.partialorder %v9209, 8.507059e+37
          %v9211 = vand.u32 %v8653, 2147483648
          %v9212 = vor.u32 1.1754944e-38, %v9211
          %v9213 = vsel %vm9210, %v9212, %v9208
          %v9214 = vmul.f32 %v9004, %v9213
          %v9215 = vrcp.pop %v8657
          %v9216 = vmul.f32 %v8657, %v9215
          %v9217 = vsub.f32 1.0, %v9216
          %v9218 = vmul.f32 %v9215, %v9217
          %v9219 = vadd.f32 %v9215, %v9218
          %vm9220 = vweird.f32 %v8657
          %vm9221 = vweird.f32 %v9215
          %vm9222 = vmor %vm9220, %vm9221
          %v9223 = vsel %vm9222, %v9215, %v9219
          %v9224 = vand.u32 2147483647, %v8657
          %vm9225 = vcmp.eq.f32.partialorder %v9224, 8.507059e+37
          %v9226 = vand.u32 %v8657, 2147483648
          %v9227 = vor.u32 1.1754944e-38, %v9226
          %v9228 = vsel %vm9225, %v9227, %v9223
          %v9229 = vmul.f32 %v9007, %v9228
          %v9230 = vrcp.pop %v8661
          %v9231 = vmul.f32 %v8661, %v9230
          %v9232 = vsub.f32 1.0, %v9231
          %v9233 = vmul.f32 %v9230, %v9232
          %v9234 = vadd.f32 %v9230, %v9233
          %vm9235 = vweird.f32 %v8661
          %vm9236 = vweird.f32 %v9230
          %vm9237 = vmor %vm9235, %vm9236
          %v9238 = vsel %vm9237, %v9230, %v9234
          %v9239 = vand.u32 2147483647, %v8661
          %vm9240 = vcmp.eq.f32.partialorder %v9239, 8.507059e+37
          %v9241 = vand.u32 %v8661, 2147483648
          %v9242 = vor.u32 1.1754944e-38, %v9241
          %v9243 = vsel %vm9240, %v9242, %v9238
          %v9244 = vmul.f32 %v9010, %v9243
          %v9245 = vrcp.pop %v8665
          %v9246 = vmul.f32 %v8665, %v9245
          %v9247 = vsub.f32 1.0, %v9246
          %v9248 = vmul.f32 %v9245, %v9247
          %v9249 = vadd.f32 %v9245, %v9248
          %vm9250 = vweird.f32 %v8665
          %vm9251 = vweird.f32 %v9245
          %vm9252 = vmor %vm9250, %vm9251
          %v9253 = vsel %vm9252, %v9245, %v9249
          %v9254 = vand.u32 2147483647, %v8665
          %vm9255 = vcmp.eq.f32.partialorder %v9254, 8.507059e+37
          %v9256 = vand.u32 %v8665, 2147483648
          %v9257 = vor.u32 1.1754944e-38, %v9256
          %v9258 = vsel %vm9255, %v9257, %v9253
          %v9259 = vmul.f32 %v9013, %v9258
          %v9260 = vrcp.pop %v8669
          %v9261 = vmul.f32 %v8669, %v9260
          %v9262 = vsub.f32 1.0, %v9261
          %v9263 = vmul.f32 %v9260, %v9262
          %v9264 = vadd.f32 %v9260, %v9263
          %vm9265 = vweird.f32 %v8669
          %vm9266 = vweird.f32 %v9260
          %vm9267 = vmor %vm9265, %vm9266
          %v9268 = vsel %vm9267, %v9260, %v9264
          %v9269 = vand.u32 2147483647, %v8669
          %vm9270 = vcmp.eq.f32.partialorder %v9269, 8.507059e+37
          %v9271 = vand.u32 %v8669, 2147483648
          %v9272 = vor.u32 1.1754944e-38, %v9271
          %v9273 = vsel %vm9270, %v9272, %v9268
          %v9274 = vmul.f32 %v9016, %v9273
          %v9275 = vrcp.pop %v8673
          %v9276 = vmul.f32 %v8673, %v9275
          %v9277 = vsub.f32 1.0, %v9276
          %v9278 = vmul.f32 %v9275, %v9277
          %v9279 = vadd.f32 %v9275, %v9278
          %vm9280 = vweird.f32 %v8673
          %vm9281 = vweird.f32 %v9275
          %vm9282 = vmor %vm9280, %vm9281
          %v9283 = vsel %vm9282, %v9275, %v9279
          %v9284 = vand.u32 2147483647, %v8673
          %vm9285 = vcmp.eq.f32.partialorder %v9284, 8.507059e+37
          %v9286 = vand.u32 %v8673, 2147483648
          %v9287 = vor.u32 1.1754944e-38, %v9286
          %v9288 = vsel %vm9285, %v9287, %v9283
          %v9289 = vmul.f32 %v9019, %v9288
          %v9290 = vadd.f32 %v8028, %v9034
          %v9291 = vadd.f32 %v8029, %v9049
          %v9292 = vadd.f32 %v8030, %v9064
          %v9293 = vadd.f32 %v8031, %v9079
          %v9294 = vadd.f32 %v8032, %v9094
          %v9295 = vadd.f32 %v8033, %v9109
          %v9296 = vadd.f32 %v8034, %v9124
          %v9297 = vadd.f32 %v8035, %v9139
          %v9298 = vadd.f32 %v8036, %v9154
          %v9299 = vadd.f32 %v8037, %v9169
          %v9300 = vadd.f32 %v8038, %v9184
          %v9301 = vadd.f32 %v8039, %v9199
          %v9302 = vadd.f32 %v8040, %v9214
          %v9303 = vadd.f32 %v8041, %v9229
          %v9304 = vadd.f32 %v8042, %v9244
          %v9305 = vadd.f32 %v8043, %v9259
          %v9306 = vadd.f32 %v8044, %v9274
          %v9307 = vadd.f32 %v8045, %v9289
          %v9308 = vld [vmem:[#allocation2] sm:$0xff]
          %v9309 = vld [vmem:[#allocation2 + $0x18] sm:$0xff]
          %v9310 = vld [vmem:[#allocation2 + $0x30] sm:$0xff]
          %v9311 = vld [vmem:[#allocation2 + $0x48] sm:$0xff]
          %v9312 = vld [vmem:[#allocation2 + $0x60] sm:$0xff]
          %v9313 = vld [vmem:[#allocation2 + $0x78] sm:$0xff]
          %v9314 = vld [vmem:[#allocation2 + $0x90] sm:$0xff]
          %v9315 = vld [vmem:[#allocation2 + $0xa8] sm:$0xff]
          %v9316 = vld [vmem:[#allocation2 + $0xc0] sm:$0xff]
          %v9317 = vld [vmem:[#allocation2 + $0xd8] sm:$0xff]
          %v9318 = vld [vmem:[#allocation2 + $0xf0] sm:$0xff]
          %v9319 = vld [vmem:[#allocation2 + $0x108] sm:$0xff]
          %v9320 = vld [vmem:[#allocation2 + $0x120] sm:$0xff]
          %v9321 = vld [vmem:[#allocation2 + $0x138] sm:$0xff]
          %v9322 = vld [vmem:[#allocation2 + $0x150] sm:$0xff]
          %v9323 = vld [vmem:[#allocation2 + $0x168] sm:$0xff]
          %v9324 = vld [vmem:[#allocation2 + $0x180] sm:$0xff]
          %v9325 = vld [vmem:[#allocation2 + $0x198] sm:$0xff]
          %v9326 = vld [vmem:[#allocation2 + $0x8] sm:$0xff]
          %v9327 = vld [vmem:[#allocation2 + $0x20] sm:$0xff]
          %v9328 = vld [vmem:[#allocation2 + $0x38] sm:$0xff]
          %v9329 = vld [vmem:[#allocation2 + $0x50] sm:$0xff]
          %v9330 = vld [vmem:[#allocation2 + $0x68] sm:$0xff]
          %v9331 = vld [vmem:[#allocation2 + $0x80] sm:$0xff]
          %v9332 = vld [vmem:[#allocation2 + $0x98] sm:$0xff]
          %v9333 = vld [vmem:[#allocation2 + $0xb0] sm:$0xff]
          %v9334 = vld [vmem:[#allocation2 + $0xc8] sm:$0xff]
          %v9335 = vld [vmem:[#allocation2 + $0xe0] sm:$0xff]
          %v9336 = vld [vmem:[#allocation2 + $0xf8] sm:$0xff]
          %v9337 = vld [vmem:[#allocation2 + $0x110] sm:$0xff]
          %v9338 = vld [vmem:[#allocation2 + $0x128] sm:$0xff]
          %v9339 = vld [vmem:[#allocation2 + $0x140] sm:$0xff]
          %v9340 = vld [vmem:[#allocation2 + $0x158] sm:$0xff]
          %v9341 = vld [vmem:[#allocation2 + $0x170] sm:$0xff]
          %v9342 = vld [vmem:[#allocation2 + $0x188] sm:$0xff]
          %v9343 = vld [vmem:[#allocation2 + $0x1a0] sm:$0xff]
          %v9344 = vld [vmem:[#allocation2 + $0x10] sm:$0xff]
          %v9345 = vld [vmem:[#allocation2 + $0x28] sm:$0xff]
          %v9346 = vld [vmem:[#allocation2 + $0x40] sm:$0xff]
          %v9347 = vld [vmem:[#allocation2 + $0x58] sm:$0xff]
          %v9348 = vld [vmem:[#allocation2 + $0x70] sm:$0xff]
          %v9349 = vld [vmem:[#allocation2 + $0x88] sm:$0xff]
          %v9350 = vld [vmem:[#allocation2 + $0xa0] sm:$0xff]
          %v9351 = vld [vmem:[#allocation2 + $0xb8] sm:$0xff]
          %v9352 = vld [vmem:[#allocation2 + $0xd0] sm:$0xff]
          %v9353 = vld [vmem:[#allocation2 + $0xe8] sm:$0xff]
          %v9354 = vld [vmem:[#allocation2 + $0x100] sm:$0xff]
          %v9355 = vld [vmem:[#allocation2 + $0x118] sm:$0xff]
          %v9356 = vld [vmem:[#allocation2 + $0x130] sm:$0xff]
          %v9357 = vld [vmem:[#allocation2 + $0x148] sm:$0xff]
          %v9358 = vld [vmem:[#allocation2 + $0x160] sm:$0xff]
          %v9359 = vld [vmem:[#allocation2 + $0x178] sm:$0xff]
          %v9360 = vld [vmem:[#allocation2 + $0x190] sm:$0xff]
          %v9361 = vld [vmem:[#allocation2 + $0x1a8] sm:$0xff]
          %9380 = vrot.lane.b32.xlu0 %v9308, 16
          %v9381 = vpop.permute.xlu0 %9380
          %9382 = vrot.lane.b32.xlu0 %v9309, 16
          %v9383 = vpop.permute.xlu0 %9382
          %9384 = vrot.lane.b32.xlu0 %v9310, 16
          %v9385 = vpop.permute.xlu0 %9384
          %9386 = vrot.lane.b32.xlu0 %v9311, 16
          %v9387 = vpop.permute.xlu0 %9386
          %9388 = vrot.lane.b32.xlu0 %v9312, 16
          %v9389 = vpop.permute.xlu0 %9388
          %9390 = vrot.lane.b32.xlu0 %v9313, 16
          %v9391 = vpop.permute.xlu0 %9390
          %9392 = vrot.lane.b32.xlu0 %v9314, 16
          %v9393 = vpop.permute.xlu0 %9392
          %9394 = vrot.lane.b32.xlu0 %v9315, 16
          %v9395 = vpop.permute.xlu0 %9394
          %9396 = vrot.lane.b32.xlu0 %v9316, 16
          %v9397 = vpop.permute.xlu0 %9396
          %9398 = vrot.lane.b32.xlu0 %v9317, 16
          %v9399 = vpop.permute.xlu0 %9398
          %9400 = vrot.lane.b32.xlu0 %v9318, 16
          %v9401 = vpop.permute.xlu0 %9400
          %9402 = vrot.lane.b32.xlu0 %v9319, 16
          %v9403 = vpop.permute.xlu0 %9402
          %9404 = vrot.lane.b32.xlu0 %v9320, 16
          %v9405 = vpop.permute.xlu0 %9404
          %9406 = vrot.lane.b32.xlu0 %v9321, 16
          %v9407 = vpop.permute.xlu0 %9406
          %9408 = vrot.lane.b32.xlu0 %v9322, 16
          %v9409 = vpop.permute.xlu0 %9408
          %9410 = vrot.lane.b32.xlu0 %v9323, 16
          %v9411 = vpop.permute.xlu0 %9410
          %9412 = vrot.lane.b32.xlu0 %v9324, 16
          %v9413 = vpop.permute.xlu0 %9412
          %9414 = vrot.lane.b32.xlu0 %v9325, 16
          %v9415 = vpop.permute.xlu0 %9414
          %9434 = vrot.lane.b32.xlu0 %v9326, 16
          %v9435 = vpop.permute.xlu0 %9434
          %9436 = vrot.lane.b32.xlu0 %v9327, 16
          %v9437 = vpop.permute.xlu0 %9436
          %9438 = vrot.lane.b32.xlu0 %v9328, 16
          %v9439 = vpop.permute.xlu0 %9438
          %9440 = vrot.lane.b32.xlu0 %v9329, 16
          %v9441 = vpop.permute.xlu0 %9440
          %9442 = vrot.lane.b32.xlu0 %v9330, 16
          %v9443 = vpop.permute.xlu0 %9442
          %9444 = vrot.lane.b32.xlu0 %v9331, 16
          %v9445 = vpop.permute.xlu0 %9444
          %9446 = vrot.lane.b32.xlu0 %v9332, 16
          %v9447 = vpop.permute.xlu0 %9446
          %9448 = vrot.lane.b32.xlu0 %v9333, 16
          %v9449 = vpop.permute.xlu0 %9448
          %9450 = vrot.lane.b32.xlu0 %v9334, 16
          %v9451 = vpop.permute.xlu0 %9450
          %9452 = vrot.lane.b32.xlu0 %v9335, 16
          %v9453 = vpop.permute.xlu0 %9452
          %9454 = vrot.lane.b32.xlu0 %v9336, 16
          %v9455 = vpop.permute.xlu0 %9454
          %9456 = vrot.lane.b32.xlu0 %v9337, 16
          %v9457 = vpop.permute.xlu0 %9456
          %9458 = vrot.lane.b32.xlu0 %v9338, 16
          %v9459 = vpop.permute.xlu0 %9458
          %9460 = vrot.lane.b32.xlu0 %v9339, 16
          %v9461 = vpop.permute.xlu0 %9460
          %9462 = vrot.lane.b32.xlu0 %v9340, 16
          %v9463 = vpop.permute.xlu0 %9462
          %9464 = vrot.lane.b32.xlu0 %v9341, 16
          %v9465 = vpop.permute.xlu0 %9464
          %9466 = vrot.lane.b32.xlu0 %v9342, 16
          %v9467 = vpop.permute.xlu0 %9466
          %9468 = vrot.lane.b32.xlu0 %v9343, 16
          %v9469 = vpop.permute.xlu0 %9468
          %v9470 = vsel %vm673, %v9381, 0
          %v9472 = vsel %vm673, %v9383, 0
          %v9474 = vsel %vm673, %v9385, 0
          %v9476 = vsel %vm673, %v9387, 0
          %v9478 = vsel %vm673, %v9389, 0
          %v9480 = vsel %vm673, %v9391, 0
          %v9482 = vsel %vm673, %v9393, 0
          %v9484 = vsel %vm673, %v9395, 0
          %v9486 = vsel %vm673, %v9397, 0
          %v9488 = vsel %vm673, %v9399, 0
          %v9490 = vsel %vm673, %v9401, 0
          %v9492 = vsel %vm673, %v9403, 0
          %v9494 = vsel %vm673, %v9405, 0
          %v9496 = vsel %vm673, %v9407, 0
          %v9498 = vsel %vm673, %v9409, 0
          %v9500 = vsel %vm673, %v9411, 0
          %v9502 = vsel %vm673, %v9413, 0
          %v9504 = vsel %vm673, %v9415, 0
          %v9506 = vsel %vm673, %v9435, 0
          %v9508 = vsel %vm673, %v9437, 0
          %v9510 = vsel %vm673, %v9439, 0
          %v9512 = vsel %vm673, %v9441, 0
          %v9514 = vsel %vm673, %v9443, 0
          %v9516 = vsel %vm673, %v9445, 0
          %v9518 = vsel %vm673, %v9447, 0
          %v9520 = vsel %vm673, %v9449, 0
          %v9522 = vsel %vm673, %v9451, 0
          %v9524 = vsel %vm673, %v9453, 0
          %v9526 = vsel %vm673, %v9455, 0
          %v9528 = vsel %vm673, %v9457, 0
          %v9530 = vsel %vm673, %v9459, 0
          %v9532 = vsel %vm673, %v9461, 0
          %v9534 = vsel %vm673, %v9463, 0
          %v9536 = vsel %vm673, %v9465, 0
          %v9538 = vsel %vm673, %v9467, 0
          %v9540 = vsel %vm673, %v9469, 0
          %9542 = vmatpush.xpose.msra.mxu0 %v9536
          %9543 = vmatpush.xpose.msra.mxu0 %v9534
          %9544 = vmatpush.xpose.msra.mxu0 %v9532
          %9545 = vmatpush.xpose.msra.mxu0 %v9530
          %9546 = vmatpush.xpose.msra.mxu0 %v9528
          %9547 = vmatpush.xpose.msra.mxu0 %v9526
          %9548 = vmatpush.xpose.msra.mxu0 %v9524
          %9549 = vmatpush.xpose.msra.mxu0 %v9522
          %9550 = vmatpush.xpose.msra.mxu0 %v9520
          %9551 = vmatpush.xpose.msra.mxu0 %v9518
          %9552 = vmatpush.xpose.msra.mxu0 %v9516
          %9553 = vmatpush.xpose.msra.mxu0 %v9514
          %9554 = vmatpush.xpose.msra.mxu0 %v9512
          %9555 = vmatpush.xpose.msra.mxu0 %v9510
          %9556 = vmatpush.xpose.msra.mxu0 %v9508
          %9557 = vmatpush.xpose.msra.mxu0 %v9506
          %9558 = vmatmul.f32.gmra.mxu0 %v9470
          %v9559 = vpop.f32.mrf.mxu0
          %v9560 = vadd.f32 0.0, %v9559
          %9561 = vmatmul.f32.gmra.mxu0 %v9472
          %v9562 = vpop.f32.mrf.mxu0
          %v9563 = vadd.f32 0.0, %v9562
          %9564 = vmatmul.f32.gmra.mxu0 %v9474
          %v9565 = vpop.f32.mrf.mxu0
          %v9566 = vadd.f32 0.0, %v9565
          %9567 = vmatmul.f32.gmra.mxu0 %v9476
          %v9568 = vpop.f32.mrf.mxu0
          %v9569 = vadd.f32 0.0, %v9568
          %9570 = vmatmul.f32.gmra.mxu0 %v9478
          %v9571 = vpop.f32.mrf.mxu0
          %v9572 = vadd.f32 0.0, %v9571
          %9573 = vmatmul.f32.gmra.mxu0 %v9480
          %v9574 = vpop.f32.mrf.mxu0
          %v9575 = vadd.f32 0.0, %v9574
          %9576 = vmatmul.f32.gmra.mxu0 %v9482
          %v9577 = vpop.f32.mrf.mxu0
          %v9578 = vadd.f32 0.0, %v9577
          %9579 = vmatmul.f32.gmra.mxu0 %v9484
          %v9580 = vpop.f32.mrf.mxu0
          %v9581 = vadd.f32 0.0, %v9580
          %9582 = vmatmul.f32.gmra.mxu0 %v9486
          %v9583 = vpop.f32.mrf.mxu0
          %v9584 = vadd.f32 0.0, %v9583
          %9585 = vmatmul.f32.gmra.mxu0 %v9488
          %v9586 = vpop.f32.mrf.mxu0
          %v9587 = vadd.f32 0.0, %v9586
          %9588 = vmatmul.f32.gmra.mxu0 %v9490
          %v9589 = vpop.f32.mrf.mxu0
          %v9590 = vadd.f32 0.0, %v9589
          %9591 = vmatmul.f32.gmra.mxu0 %v9492
          %v9592 = vpop.f32.mrf.mxu0
          %v9593 = vadd.f32 0.0, %v9592
          %9594 = vmatmul.f32.gmra.mxu0 %v9494
          %v9595 = vpop.f32.mrf.mxu0
          %v9596 = vadd.f32 0.0, %v9595
          %9597 = vmatmul.f32.gmra.mxu0 %v9496
          %v9598 = vpop.f32.mrf.mxu0
          %v9599 = vadd.f32 0.0, %v9598
          %9600 = vmatmul.f32.gmra.mxu0 %v9498
          %v9601 = vpop.f32.mrf.mxu0
          %v9602 = vadd.f32 0.0, %v9601
          %9603 = vmatmul.f32.gmra.mxu0 %v9500
          %v9604 = vpop.f32.mrf.mxu0
          %v9605 = vadd.f32 0.0, %v9604
          %9606 = vmatmul.f32.gmra.mxu0 %v9502
          %v9607 = vpop.f32.mrf.mxu0
          %v9608 = vadd.f32 0.0, %v9607
          %9609 = vmatmul.f32.gmra.mxu0 %v9504
          %v9610 = vpop.f32.mrf.mxu0
          %v9611 = vadd.f32 0.0, %v9610
          %9612 = vdwg.mxu0
          %9613 = vmatpush.xpose.msra.mxu0 0.0
          %9614 = vmatpush.xpose.msra.mxu0 0.0
          %9615 = vmatpush.xpose.msra.mxu0 0.0
          %9616 = vmatpush.xpose.msra.mxu0 0.0
          %9617 = vmatpush.xpose.msra.mxu0 0.0
          %9618 = vmatpush.xpose.msra.mxu0 0.0
          %9619 = vmatpush.xpose.msra.mxu0 0.0
          %9620 = vmatpush.xpose.msra.mxu0 0.0
          %9621 = vmatpush.xpose.msra.mxu0 0.0
          %9622 = vmatpush.xpose.msra.mxu0 0.0
          %9623 = vmatpush.xpose.msra.mxu0 0.0
          %9624 = vmatpush.xpose.msra.mxu0 0.0
          %9625 = vmatpush.xpose.msra.mxu0 0.0
          %9626 = vmatpush.xpose.msra.mxu0 0.0
          %9627 = vmatpush.xpose.msra.mxu0 %v9540
          %9628 = vmatpush.xpose.msra.mxu0 %v9538
          %9629 = vmatmul.f32.gmra.mxu0 %v9470
          %v9630 = vpop.f32.mrf.mxu0
          %v9631 = vadd.f32 0.0, %v9630
          %9632 = vmatmul.f32.gmra.mxu0 %v9472
          %v9633 = vpop.f32.mrf.mxu0
          %v9634 = vadd.f32 0.0, %v9633
          %9635 = vmatmul.f32.gmra.mxu0 %v9474
          %v9636 = vpop.f32.mrf.mxu0
          %v9637 = vadd.f32 0.0, %v9636
          %9638 = vmatmul.f32.gmra.mxu0 %v9476
          %v9639 = vpop.f32.mrf.mxu0
          %v9640 = vadd.f32 0.0, %v9639
          %9641 = vmatmul.f32.gmra.mxu0 %v9478
          %v9642 = vpop.f32.mrf.mxu0
          %v9643 = vadd.f32 0.0, %v9642
          %9644 = vmatmul.f32.gmra.mxu0 %v9480
          %v9645 = vpop.f32.mrf.mxu0
          %v9646 = vadd.f32 0.0, %v9645
          %9647 = vmatmul.f32.gmra.mxu0 %v9482
          %v9648 = vpop.f32.mrf.mxu0
          %v9649 = vadd.f32 0.0, %v9648
          %9650 = vmatmul.f32.gmra.mxu0 %v9484
          %v9651 = vpop.f32.mrf.mxu0
          %v9652 = vadd.f32 0.0, %v9651
          %9653 = vmatmul.f32.gmra.mxu0 %v9486
          %v9654 = vpop.f32.mrf.mxu0
          %v9655 = vadd.f32 0.0, %v9654
          %9656 = vmatmul.f32.gmra.mxu0 %v9488
          %v9657 = vpop.f32.mrf.mxu0
          %v9658 = vadd.f32 0.0, %v9657
          %9659 = vmatmul.f32.gmra.mxu0 %v9490
          %v9660 = vpop.f32.mrf.mxu0
          %v9661 = vadd.f32 0.0, %v9660
          %9662 = vmatmul.f32.gmra.mxu0 %v9492
          %v9663 = vpop.f32.mrf.mxu0
          %v9664 = vadd.f32 0.0, %v9663
          %9665 = vmatmul.f32.gmra.mxu0 %v9494
          %v9666 = vpop.f32.mrf.mxu0
          %v9667 = vadd.f32 0.0, %v9666
          %9668 = vmatmul.f32.gmra.mxu0 %v9496
          %v9669 = vpop.f32.mrf.mxu0
          %v9670 = vadd.f32 0.0, %v9669
          %9671 = vmatmul.f32.gmra.mxu0 %v9498
          %v9672 = vpop.f32.mrf.mxu0
          %v9673 = vadd.f32 0.0, %v9672
          %9674 = vmatmul.f32.gmra.mxu0 %v9500
          %v9675 = vpop.f32.mrf.mxu0
          %v9676 = vadd.f32 0.0, %v9675
          %9677 = vmatmul.f32.gmra.mxu0 %v9502
          %v9678 = vpop.f32.mrf.mxu0
          %v9679 = vadd.f32 0.0, %v9678
          %9680 = vmatmul.f32.gmra.mxu0 %v9504
          %v9681 = vpop.f32.mrf.mxu0
          %v9682 = vadd.f32 0.0, %v9681
          %9683 = vdwg.mxu0
          %v9684 = vsel %vm673, %v9631, -inf
          %v9685 = vmax.f32 %v9560, %v9684
          %9686 = vmax.xlane.f32.xlu0 %v9685
          %v9687 = vpop.xlane.xlu0 %9686
          %v9688 = vsel %vm673, %v9634, -inf
          %v9689 = vmax.f32 %v9563, %v9688
          %9690 = vmax.xlane.f32.xlu0 %v9689
          %v9691 = vpop.xlane.xlu0 %9690
          %v9692 = vsel %vm673, %v9637, -inf
          %v9693 = vmax.f32 %v9566, %v9692
          %9694 = vmax.xlane.f32.xlu0 %v9693
          %v9695 = vpop.xlane.xlu0 %9694
          %v9696 = vsel %vm673, %v9640, -inf
          %v9697 = vmax.f32 %v9569, %v9696
          %9698 = vmax.xlane.f32.xlu0 %v9697
          %v9699 = vpop.xlane.xlu0 %9698
          %v9700 = vsel %vm673, %v9643, -inf
          %v9701 = vmax.f32 %v9572, %v9700
          %9702 = vmax.xlane.f32.xlu0 %v9701
          %v9703 = vpop.xlane.xlu0 %9702
          %v9704 = vsel %vm673, %v9646, -inf
          %v9705 = vmax.f32 %v9575, %v9704
          %9706 = vmax.xlane.f32.xlu0 %v9705
          %v9707 = vpop.xlane.xlu0 %9706
          %v9708 = vsel %vm673, %v9649, -inf
          %v9709 = vmax.f32 %v9578, %v9708
          %9710 = vmax.xlane.f32.xlu0 %v9709
          %v9711 = vpop.xlane.xlu0 %9710
          %v9712 = vsel %vm673, %v9652, -inf
          %v9713 = vmax.f32 %v9581, %v9712
          %9714 = vmax.xlane.f32.xlu0 %v9713
          %v9715 = vpop.xlane.xlu0 %9714
          %v9716 = vsel %vm673, %v9655, -inf
          %v9717 = vmax.f32 %v9584, %v9716
          %9718 = vmax.xlane.f32.xlu0 %v9717
          %v9719 = vpop.xlane.xlu0 %9718
          %v9720 = vsel %vm673, %v9658, -inf
          %v9721 = vmax.f32 %v9587, %v9720
          %9722 = vmax.xlane.f32.xlu0 %v9721
          %v9723 = vpop.xlane.xlu0 %9722
          %v9724 = vsel %vm673, %v9661, -inf
          %v9725 = vmax.f32 %v9590, %v9724
          %9726 = vmax.xlane.f32.xlu0 %v9725
          %v9727 = vpop.xlane.xlu0 %9726
          %v9728 = vsel %vm673, %v9664, -inf
          %v9729 = vmax.f32 %v9593, %v9728
          %9730 = vmax.xlane.f32.xlu0 %v9729
          %v9731 = vpop.xlane.xlu0 %9730
          %v9732 = vsel %vm673, %v9667, -inf
          %v9733 = vmax.f32 %v9596, %v9732
          %9734 = vmax.xlane.f32.xlu0 %v9733
          %v9735 = vpop.xlane.xlu0 %9734
          %v9736 = vsel %vm673, %v9670, -inf
          %v9737 = vmax.f32 %v9599, %v9736
          %9738 = vmax.xlane.f32.xlu0 %v9737
          %v9739 = vpop.xlane.xlu0 %9738
          %v9740 = vsel %vm673, %v9673, -inf
          %v9741 = vmax.f32 %v9602, %v9740
          %9742 = vmax.xlane.f32.xlu0 %v9741
          %v9743 = vpop.xlane.xlu0 %9742
          %v9744 = vsel %vm673, %v9676, -inf
          %v9745 = vmax.f32 %v9605, %v9744
          %9746 = vmax.xlane.f32.xlu0 %v9745
          %v9747 = vpop.xlane.xlu0 %9746
          %v9748 = vsel %vm673, %v9679, -inf
          %v9749 = vmax.f32 %v9608, %v9748
          %9750 = vmax.xlane.f32.xlu0 %v9749
          %v9751 = vpop.xlane.xlu0 %9750
          %v9752 = vsel %vm673, %v9682, -inf
          %v9753 = vmax.f32 %v9611, %v9752
          %9754 = vmax.xlane.f32.xlu0 %v9753
          %v9755 = vpop.xlane.xlu0 %9754
          %v9756 = vsub.f32 %v9560, %v9687
          %v9757 = vsub.f32 %v9631, %v9687
          %v9758 = vsub.f32 %v9563, %v9691
          %v9759 = vsub.f32 %v9634, %v9691
          %v9760 = vsub.f32 %v9566, %v9695
          %v9761 = vsub.f32 %v9637, %v9695
          %v9762 = vsub.f32 %v9569, %v9699
          %v9763 = vsub.f32 %v9640, %v9699
          %v9764 = vsub.f32 %v9572, %v9703
          %v9765 = vsub.f32 %v9643, %v9703
          %v9766 = vsub.f32 %v9575, %v9707
          %v9767 = vsub.f32 %v9646, %v9707
          %v9768 = vsub.f32 %v9578, %v9711
          %v9769 = vsub.f32 %v9649, %v9711
          %v9770 = vsub.f32 %v9581, %v9715
          %v9771 = vsub.f32 %v9652, %v9715
          %v9772 = vsub.f32 %v9584, %v9719
          %v9773 = vsub.f32 %v9655, %v9719
          %v9774 = vsub.f32 %v9587, %v9723
          %v9775 = vsub.f32 %v9658, %v9723
          %v9776 = vsub.f32 %v9590, %v9727
          %v9777 = vsub.f32 %v9661, %v9727
          %v9778 = vsub.f32 %v9593, %v9731
          %v9779 = vsub.f32 %v9664, %v9731
          %v9780 = vsub.f32 %v9596, %v9735
          %v9781 = vsub.f32 %v9667, %v9735
          %v9782 = vsub.f32 %v9599, %v9739
          %v9783 = vsub.f32 %v9670, %v9739
          %v9784 = vsub.f32 %v9602, %v9743
          %v9785 = vsub.f32 %v9673, %v9743
          %v9786 = vsub.f32 %v9605, %v9747
          %v9787 = vsub.f32 %v9676, %v9747
          %v9788 = vsub.f32 %v9608, %v9751
          %v9789 = vsub.f32 %v9679, %v9751
          %v9790 = vsub.f32 %v9611, %v9755
          %v9791 = vsub.f32 %v9682, %v9755
          %v9792 = vmul.f32 %v9756, 1.442695
          %v9793 = vpow.pop %v9792
          %v9794 = vmul.f32 %v9757, 1.442695
          %v9795 = vpow.pop %v9794
          %v9796 = vmul.f32 %v9758, 1.442695
          %v9797 = vpow.pop %v9796
          %v9798 = vmul.f32 %v9759, 1.442695
          %v9799 = vpow.pop %v9798
          %v9800 = vmul.f32 %v9760, 1.442695
          %v9801 = vpow.pop %v9800
          %v9802 = vmul.f32 %v9761, 1.442695
          %v9803 = vpow.pop %v9802
          %v9804 = vmul.f32 %v9762, 1.442695
          %v9805 = vpow.pop %v9804
          %v9806 = vmul.f32 %v9763, 1.442695
          %v9807 = vpow.pop %v9806
          %v9808 = vmul.f32 %v9764, 1.442695
          %v9809 = vpow.pop %v9808
          %v9810 = vmul.f32 %v9765, 1.442695
          %v9811 = vpow.pop %v9810
          %v9812 = vmul.f32 %v9766, 1.442695
          %v9813 = vpow.pop %v9812
          %v9814 = vmul.f32 %v9767, 1.442695
          %v9815 = vpow.pop %v9814
          %v9816 = vmul.f32 %v9768, 1.442695
          %v9817 = vpow.pop %v9816
          %v9818 = vmul.f32 %v9769, 1.442695
          %v9819 = vpow.pop %v9818
          %v9820 = vmul.f32 %v9770, 1.442695
          %v9821 = vpow.pop %v9820
          %v9822 = vmul.f32 %v9771, 1.442695
          %v9823 = vpow.pop %v9822
          %v9824 = vmul.f32 %v9772, 1.442695
          %v9825 = vpow.pop %v9824
          %v9826 = vmul.f32 %v9773, 1.442695
          %v9827 = vpow.pop %v9826
          %v9828 = vmul.f32 %v9774, 1.442695
          %v9829 = vpow.pop %v9828
          %v9830 = vmul.f32 %v9775, 1.442695
          %v9831 = vpow.pop %v9830
          %v9832 = vmul.f32 %v9776, 1.442695
          %v9833 = vpow.pop %v9832
          %v9834 = vmul.f32 %v9777, 1.442695
          %v9835 = vpow.pop %v9834
          %v9836 = vmul.f32 %v9778, 1.442695
          %v9837 = vpow.pop %v9836
          %v9838 = vmul.f32 %v9779, 1.442695
          %v9839 = vpow.pop %v9838
          %v9840 = vmul.f32 %v9780, 1.442695
          %v9841 = vpow.pop %v9840
          %v9842 = vmul.f32 %v9781, 1.442695
          %v9843 = vpow.pop %v9842
          %v9844 = vmul.f32 %v9782, 1.442695
          %v9845 = vpow.pop %v9844
          %v9846 = vmul.f32 %v9783, 1.442695
          %v9847 = vpow.pop %v9846
          %v9848 = vmul.f32 %v9784, 1.442695
          %v9849 = vpow.pop %v9848
          %v9850 = vmul.f32 %v9785, 1.442695
          %v9851 = vpow.pop %v9850
          %v9852 = vmul.f32 %v9786, 1.442695
          %v9853 = vpow.pop %v9852
          %v9854 = vmul.f32 %v9787, 1.442695
          %v9855 = vpow.pop %v9854
          %v9856 = vmul.f32 %v9788, 1.442695
          %v9857 = vpow.pop %v9856
          %v9858 = vmul.f32 %v9789, 1.442695
          %v9859 = vpow.pop %v9858
          %v9860 = vmul.f32 %v9790, 1.442695
          %v9861 = vpow.pop %v9860
          %v9862 = vmul.f32 %v9791, 1.442695
          %v9863 = vpow.pop %v9862
          %v9864 = vsel %vm673, %v9795, 0.0
          %v9865 = vadd.f32 %v9793, %v9864
          %9866 = vadd.xlane.f32.xlu0 %v9865
          %v9867 = vpop.xlane.xlu0 %9866
          %v9868 = vsel %vm673, %v9799, 0.0
          %v9869 = vadd.f32 %v9797, %v9868
          %9870 = vadd.xlane.f32.xlu0 %v9869
          %v9871 = vpop.xlane.xlu0 %9870
          %v9872 = vsel %vm673, %v9803, 0.0
          %v9873 = vadd.f32 %v9801, %v9872
          %9874 = vadd.xlane.f32.xlu0 %v9873
          %v9875 = vpop.xlane.xlu0 %9874
          %v9876 = vsel %vm673, %v9807, 0.0
          %v9877 = vadd.f32 %v9805, %v9876
          %9878 = vadd.xlane.f32.xlu0 %v9877
          %v9879 = vpop.xlane.xlu0 %9878
          %v9880 = vsel %vm673, %v9811, 0.0
          %v9881 = vadd.f32 %v9809, %v9880
          %9882 = vadd.xlane.f32.xlu0 %v9881
          %v9883 = vpop.xlane.xlu0 %9882
          %v9884 = vsel %vm673, %v9815, 0.0
          %v9885 = vadd.f32 %v9813, %v9884
          %9886 = vadd.xlane.f32.xlu0 %v9885
          %v9887 = vpop.xlane.xlu0 %9886
          %v9888 = vsel %vm673, %v9819, 0.0
          %v9889 = vadd.f32 %v9817, %v9888
          %9890 = vadd.xlane.f32.xlu0 %v9889
          %v9891 = vpop.xlane.xlu0 %9890
          %v9892 = vsel %vm673, %v9823, 0.0
          %v9893 = vadd.f32 %v9821, %v9892
          %9894 = vadd.xlane.f32.xlu0 %v9893
          %v9895 = vpop.xlane.xlu0 %9894
          %v9896 = vsel %vm673, %v9827, 0.0
          %v9897 = vadd.f32 %v9825, %v9896
          %9898 = vadd.xlane.f32.xlu0 %v9897
          %v9899 = vpop.xlane.xlu0 %9898
          %v9900 = vsel %vm673, %v9831, 0.0
          %v9901 = vadd.f32 %v9829, %v9900
          %9902 = vadd.xlane.f32.xlu0 %v9901
          %v9903 = vpop.xlane.xlu0 %9902
          %v9904 = vsel %vm673, %v9835, 0.0
          %v9905 = vadd.f32 %v9833, %v9904
          %9906 = vadd.xlane.f32.xlu0 %v9905
          %v9907 = vpop.xlane.xlu0 %9906
          %v9908 = vsel %vm673, %v9839, 0.0
          %v9909 = vadd.f32 %v9837, %v9908
          %9910 = vadd.xlane.f32.xlu0 %v9909
          %v9911 = vpop.xlane.xlu0 %9910
          %v9912 = vsel %vm673, %v9843, 0.0
          %v9913 = vadd.f32 %v9841, %v9912
          %9914 = vadd.xlane.f32.xlu0 %v9913
          %v9915 = vpop.xlane.xlu0 %9914
          %v9916 = vsel %vm673, %v9847, 0.0
          %v9917 = vadd.f32 %v9845, %v9916
          %9918 = vadd.xlane.f32.xlu0 %v9917
          %v9919 = vpop.xlane.xlu0 %9918
          %v9920 = vsel %vm673, %v9851, 0.0
          %v9921 = vadd.f32 %v9849, %v9920
          %9922 = vadd.xlane.f32.xlu0 %v9921
          %v9923 = vpop.xlane.xlu0 %9922
          %v9924 = vsel %vm673, %v9855, 0.0
          %v9925 = vadd.f32 %v9853, %v9924
          %9926 = vadd.xlane.f32.xlu0 %v9925
          %v9927 = vpop.xlane.xlu0 %9926
          %v9928 = vsel %vm673, %v9859, 0.0
          %v9929 = vadd.f32 %v9857, %v9928
          %9930 = vadd.xlane.f32.xlu0 %v9929
          %v9931 = vpop.xlane.xlu0 %9930
          %v9932 = vsel %vm673, %v9863, 0.0
          %v9933 = vadd.f32 %v9861, %v9932
          %9934 = vadd.xlane.f32.xlu0 %v9933
          %v9935 = vpop.xlane.xlu0 %9934
          %9954 = vrot.lane.b32.xlu0 %v9344, 16
          %v9955 = vpop.permute.xlu0 %9954
          %9956 = vrot.lane.b32.xlu0 %v9345, 16
          %v9957 = vpop.permute.xlu0 %9956
          %9958 = vrot.lane.b32.xlu0 %v9346, 16
          %v9959 = vpop.permute.xlu0 %9958
          %9960 = vrot.lane.b32.xlu0 %v9347, 16
          %v9961 = vpop.permute.xlu0 %9960
          %9962 = vrot.lane.b32.xlu0 %v9348, 16
          %v9963 = vpop.permute.xlu0 %9962
          %9964 = vrot.lane.b32.xlu0 %v9349, 16
          %v9965 = vpop.permute.xlu0 %9964
          %9966 = vrot.lane.b32.xlu0 %v9350, 16
          %v9967 = vpop.permute.xlu0 %9966
          %9968 = vrot.lane.b32.xlu0 %v9351, 16
          %v9969 = vpop.permute.xlu0 %9968
          %9970 = vrot.lane.b32.xlu0 %v9352, 16
          %v9971 = vpop.permute.xlu0 %9970
          %9972 = vrot.lane.b32.xlu0 %v9353, 16
          %v9973 = vpop.permute.xlu0 %9972
          %9974 = vrot.lane.b32.xlu0 %v9354, 16
          %v9975 = vpop.permute.xlu0 %9974
          %9976 = vrot.lane.b32.xlu0 %v9355, 16
          %v9977 = vpop.permute.xlu0 %9976
          %9978 = vrot.lane.b32.xlu0 %v9356, 16
          %v9979 = vpop.permute.xlu0 %9978
          %9980 = vrot.lane.b32.xlu0 %v9357, 16
          %v9981 = vpop.permute.xlu0 %9980
          %9982 = vrot.lane.b32.xlu0 %v9358, 16
          %v9983 = vpop.permute.xlu0 %9982
          %9984 = vrot.lane.b32.xlu0 %v9359, 16
          %v9985 = vpop.permute.xlu0 %9984
          %9986 = vrot.lane.b32.xlu0 %v9360, 16
          %v9987 = vpop.permute.xlu0 %9986
          %9988 = vrot.lane.b32.xlu0 %v9361, 16
          %v9989 = vpop.permute.xlu0 %9988
          %v10009 = vsel %vm673, %v9795, 0
          %v10012 = vsel %vm673, %v9799, 0
          %v10015 = vsel %vm673, %v9803, 0
          %v10018 = vsel %vm673, %v9807, 0
          %v10021 = vsel %vm673, %v9811, 0
          %v10024 = vsel %vm673, %v9815, 0
          %v10027 = vsel %vm673, %v9819, 0
          %v10030 = vsel %vm673, %v9823, 0
          %v10033 = vsel %vm673, %v9827, 0
          %v10036 = vsel %vm673, %v9831, 0
          %v10039 = vsel %vm673, %v9835, 0
          %v10042 = vsel %vm673, %v9839, 0
          %v10045 = vsel %vm673, %v9843, 0
          %v10048 = vsel %vm673, %v9847, 0
          %v10051 = vsel %vm673, %v9851, 0
          %v10054 = vsel %vm673, %v9855, 0
          %v10057 = vsel %vm673, %v9859, 0
          %v10060 = vsel %vm673, %v9863, 0
          %10062 = vmatpush.msra.mxu0 %v9985
          %10063 = vmatpush.msra.mxu0 %v9983
          %10064 = vmatpush.msra.mxu0 %v9981
          %10065 = vmatpush.msra.mxu0 %v9979
          %10066 = vmatpush.msra.mxu0 %v9977
          %10067 = vmatpush.msra.mxu0 %v9975
          %10068 = vmatpush.msra.mxu0 %v9973
          %10069 = vmatpush.msra.mxu0 %v9971
          %10070 = vmatpush.msra.mxu0 %v9969
          %10071 = vmatpush.msra.mxu0 %v9967
          %10072 = vmatpush.msra.mxu0 %v9965
          %10073 = vmatpush.msra.mxu0 %v9963
          %10074 = vmatpush.msra.mxu0 %v9961
          %10075 = vmatpush.msra.mxu0 %v9959
          %10076 = vmatpush.msra.mxu0 %v9957
          %10077 = vmatpush.msra.mxu0 %v9955
          %10078 = vmatmul.f32.gmra.mxu0 %v9793
          %v10079 = vpop.f32.mrf.mxu0
          %v10080 = vadd.f32 0.0, %v10079
          %10081 = vmatmul.f32.gmra.mxu0 %v9797
          %v10082 = vpop.f32.mrf.mxu0
          %v10083 = vadd.f32 0.0, %v10082
          %10084 = vmatmul.f32.gmra.mxu0 %v9801
          %v10085 = vpop.f32.mrf.mxu0
          %v10086 = vadd.f32 0.0, %v10085
          %10087 = vmatmul.f32.gmra.mxu0 %v9805
          %v10088 = vpop.f32.mrf.mxu0
          %v10089 = vadd.f32 0.0, %v10088
          %10090 = vmatmul.f32.gmra.mxu0 %v9809
          %v10091 = vpop.f32.mrf.mxu0
          %v10092 = vadd.f32 0.0, %v10091
          %10093 = vmatmul.f32.gmra.mxu0 %v9813
          %v10094 = vpop.f32.mrf.mxu0
          %v10095 = vadd.f32 0.0, %v10094
          %10096 = vmatmul.f32.gmra.mxu0 %v9817
          %v10097 = vpop.f32.mrf.mxu0
          %v10098 = vadd.f32 0.0, %v10097
          %10099 = vmatmul.f32.gmra.mxu0 %v9821
          %v10100 = vpop.f32.mrf.mxu0
          %v10101 = vadd.f32 0.0, %v10100
          %10102 = vmatmul.f32.gmra.mxu0 %v9825
          %v10103 = vpop.f32.mrf.mxu0
          %v10104 = vadd.f32 0.0, %v10103
          %10105 = vmatmul.f32.gmra.mxu0 %v9829
          %v10106 = vpop.f32.mrf.mxu0
          %v10107 = vadd.f32 0.0, %v10106
          %10108 = vmatmul.f32.gmra.mxu0 %v9833
          %v10109 = vpop.f32.mrf.mxu0
          %v10110 = vadd.f32 0.0, %v10109
          %10111 = vmatmul.f32.gmra.mxu0 %v9837
          %v10112 = vpop.f32.mrf.mxu0
          %v10113 = vadd.f32 0.0, %v10112
          %10114 = vmatmul.f32.gmra.mxu0 %v9841
          %v10115 = vpop.f32.mrf.mxu0
          %v10116 = vadd.f32 0.0, %v10115
          %10117 = vmatmul.f32.gmra.mxu0 %v9845
          %v10118 = vpop.f32.mrf.mxu0
          %v10119 = vadd.f32 0.0, %v10118
          %10120 = vmatmul.f32.gmra.mxu0 %v9849
          %v10121 = vpop.f32.mrf.mxu0
          %v10122 = vadd.f32 0.0, %v10121
          %10123 = vmatmul.f32.gmra.mxu0 %v9853
          %v10124 = vpop.f32.mrf.mxu0
          %v10125 = vadd.f32 0.0, %v10124
          %10126 = vmatmul.f32.gmra.mxu0 %v9857
          %v10127 = vpop.f32.mrf.mxu0
          %v10128 = vadd.f32 0.0, %v10127
          %10129 = vmatmul.f32.gmra.mxu0 %v9861
          %v10130 = vpop.f32.mrf.mxu0
          %v10131 = vadd.f32 0.0, %v10130
          %10132 = vdwg.mxu0
          %10133 = vmatpush.msra.mxu0 0.0
          %10134 = vmatpush.msra.mxu0 0.0
          %10135 = vmatpush.msra.mxu0 0.0
          %10136 = vmatpush.msra.mxu0 0.0
          %10137 = vmatpush.msra.mxu0 0.0
          %10138 = vmatpush.msra.mxu0 0.0
          %10139 = vmatpush.msra.mxu0 0.0
          %10140 = vmatpush.msra.mxu0 0.0
          %10141 = vmatpush.msra.mxu0 0.0
          %10142 = vmatpush.msra.mxu0 0.0
          %10143 = vmatpush.msra.mxu0 0.0
          %10144 = vmatpush.msra.mxu0 0.0
          %10145 = vmatpush.msra.mxu0 0.0
          %10146 = vmatpush.msra.mxu0 0.0
          %10147 = vmatpush.msra.mxu0 %v9989
          %10148 = vmatpush.msra.mxu0 %v9987
          %10149 = vmatmul.f32.gmra.mxu0 %v10009
          %v10150 = vpop.f32.mrf.mxu0
          %v10151 = vadd.f32 %v10080, %v10150
          %10152 = vmatmul.f32.gmra.mxu0 %v10012
          %v10153 = vpop.f32.mrf.mxu0
          %v10154 = vadd.f32 %v10083, %v10153
          %10155 = vmatmul.f32.gmra.mxu0 %v10015
          %v10156 = vpop.f32.mrf.mxu0
          %v10157 = vadd.f32 %v10086, %v10156
          %10158 = vmatmul.f32.gmra.mxu0 %v10018
          %v10159 = vpop.f32.mrf.mxu0
          %v10160 = vadd.f32 %v10089, %v10159
          %10161 = vmatmul.f32.gmra.mxu0 %v10021
          %v10162 = vpop.f32.mrf.mxu0
          %v10163 = vadd.f32 %v10092, %v10162
          %10164 = vmatmul.f32.gmra.mxu0 %v10024
          %v10165 = vpop.f32.mrf.mxu0
          %v10166 = vadd.f32 %v10095, %v10165
          %10167 = vmatmul.f32.gmra.mxu0 %v10027
          %v10168 = vpop.f32.mrf.mxu0
          %v10169 = vadd.f32 %v10098, %v10168
          %10170 = vmatmul.f32.gmra.mxu0 %v10030
          %v10171 = vpop.f32.mrf.mxu0
          %v10172 = vadd.f32 %v10101, %v10171
          %10173 = vmatmul.f32.gmra.mxu0 %v10033
          %v10174 = vpop.f32.mrf.mxu0
          %v10175 = vadd.f32 %v10104, %v10174
          %10176 = vmatmul.f32.gmra.mxu0 %v10036
          %v10177 = vpop.f32.mrf.mxu0
          %v10178 = vadd.f32 %v10107, %v10177
          %10179 = vmatmul.f32.gmra.mxu0 %v10039
          %v10180 = vpop.f32.mrf.mxu0
          %v10181 = vadd.f32 %v10110, %v10180
          %10182 = vmatmul.f32.gmra.mxu0 %v10042
          %v10183 = vpop.f32.mrf.mxu0
          %v10184 = vadd.f32 %v10113, %v10183
          %10185 = vmatmul.f32.gmra.mxu0 %v10045
          %v10186 = vpop.f32.mrf.mxu0
          %v10187 = vadd.f32 %v10116, %v10186
          %10188 = vmatmul.f32.gmra.mxu0 %v10048
          %v10189 = vpop.f32.mrf.mxu0
          %v10190 = vadd.f32 %v10119, %v10189
          %10191 = vmatmul.f32.gmra.mxu0 %v10051
          %v10192 = vpop.f32.mrf.mxu0
          %v10193 = vadd.f32 %v10122, %v10192
          %10194 = vmatmul.f32.gmra.mxu0 %v10054
          %v10195 = vpop.f32.mrf.mxu0
          %v10196 = vadd.f32 %v10125, %v10195
          %10197 = vmatmul.f32.gmra.mxu0 %v10057
          %v10198 = vpop.f32.mrf.mxu0
          %v10199 = vadd.f32 %v10128, %v10198
          %10200 = vmatmul.f32.gmra.mxu0 %v10060
          %v10201 = vpop.f32.mrf.mxu0
          %v10202 = vadd.f32 %v10131, %v10201
          %10203 = vdwg.mxu0
          %v10204 = vld [vmem:[%s3] sm:$0x1]
          %v10206 = vperm.slane %v10204, 0
          %10207 = vrot.lane.b32.xlu0 %v10206, 16
          %v10208 = vpop.permute.xlu0 %10207
          %v10210 = vmul.f32 %v10151, %v10208
          %v10211 = vmul.f32 %v10154, %v10208
          %v10212 = vmul.f32 %v10157, %v10208
          %v10213 = vmul.f32 %v10160, %v10208
          %v10214 = vmul.f32 %v10163, %v10208
          %v10215 = vmul.f32 %v10166, %v10208
          %v10216 = vmul.f32 %v10169, %v10208
          %v10217 = vmul.f32 %v10172, %v10208
          %v10218 = vmul.f32 %v10175, %v10208
          %v10219 = vmul.f32 %v10178, %v10208
          %v10220 = vmul.f32 %v10181, %v10208
          %v10221 = vmul.f32 %v10184, %v10208
          %v10222 = vmul.f32 %v10187, %v10208
          %v10223 = vmul.f32 %v10190, %v10208
          %v10224 = vmul.f32 %v10193, %v10208
          %v10225 = vmul.f32 %v10196, %v10208
          %v10226 = vmul.f32 %v10199, %v10208
          %v10227 = vmul.f32 %v10202, %v10208
          %v10228 = vsel %vm673, %v10210, 0.0
          %10229 = vadd.xlane.f32.xlu0 %v10228
          %v10230 = vpop.xlane.xlu0 %10229
          %v10231 = vsel %vm673, %v10211, 0.0
          %10232 = vadd.xlane.f32.xlu0 %v10231
          %v10233 = vpop.xlane.xlu0 %10232
          %v10234 = vsel %vm673, %v10212, 0.0
          %10235 = vadd.xlane.f32.xlu0 %v10234
          %v10236 = vpop.xlane.xlu0 %10235
          %v10237 = vsel %vm673, %v10213, 0.0
          %10238 = vadd.xlane.f32.xlu0 %v10237
          %v10239 = vpop.xlane.xlu0 %10238
          %v10240 = vsel %vm673, %v10214, 0.0
          %10241 = vadd.xlane.f32.xlu0 %v10240
          %v10242 = vpop.xlane.xlu0 %10241
          %v10243 = vsel %vm673, %v10215, 0.0
          %10244 = vadd.xlane.f32.xlu0 %v10243
          %v10245 = vpop.xlane.xlu0 %10244
          %v10246 = vsel %vm673, %v10216, 0.0
          %10247 = vadd.xlane.f32.xlu0 %v10246
          %v10248 = vpop.xlane.xlu0 %10247
          %v10249 = vsel %vm673, %v10217, 0.0
          %10250 = vadd.xlane.f32.xlu0 %v10249
          %v10251 = vpop.xlane.xlu0 %10250
          %v10252 = vsel %vm673, %v10218, 0.0
          %10253 = vadd.xlane.f32.xlu0 %v10252
          %v10254 = vpop.xlane.xlu0 %10253
          %v10255 = vsel %vm673, %v10219, 0.0
          %10256 = vadd.xlane.f32.xlu0 %v10255
          %v10257 = vpop.xlane.xlu0 %10256
          %v10258 = vsel %vm673, %v10220, 0.0
          %10259 = vadd.xlane.f32.xlu0 %v10258
          %v10260 = vpop.xlane.xlu0 %10259
          %v10261 = vsel %vm673, %v10221, 0.0
          %10262 = vadd.xlane.f32.xlu0 %v10261
          %v10263 = vpop.xlane.xlu0 %10262
          %v10264 = vsel %vm673, %v10222, 0.0
          %10265 = vadd.xlane.f32.xlu0 %v10264
          %v10266 = vpop.xlane.xlu0 %10265
          %v10267 = vsel %vm673, %v10223, 0.0
          %10268 = vadd.xlane.f32.xlu0 %v10267
          %v10269 = vpop.xlane.xlu0 %10268
          %v10270 = vsel %vm673, %v10224, 0.0
          %10271 = vadd.xlane.f32.xlu0 %v10270
          %v10272 = vpop.xlane.xlu0 %10271
          %v10273 = vsel %vm673, %v10225, 0.0
          %10274 = vadd.xlane.f32.xlu0 %v10273
          %v10275 = vpop.xlane.xlu0 %10274
          %v10276 = vsel %vm673, %v10226, 0.0
          %10277 = vadd.xlane.f32.xlu0 %v10276
          %v10278 = vpop.xlane.xlu0 %10277
          %v10279 = vsel %vm673, %v10227, 0.0
          %10280 = vadd.xlane.f32.xlu0 %v10279
          %v10281 = vpop.xlane.xlu0 %10280
          %v10282 = vrcp.pop %v9867
          %v10283 = vmul.f32 %v9867, %v10282
          %v10284 = vsub.f32 1.0, %v10283
          %v10285 = vmul.f32 %v10282, %v10284
          %v10286 = vadd.f32 %v10282, %v10285
          %vm10287 = vweird.f32 %v9867
          %vm10288 = vweird.f32 %v10282
          %vm10289 = vmor %vm10287, %vm10288
          %v10290 = vsel %vm10289, %v10282, %v10286
          %v10291 = vand.u32 2147483647, %v9867
          %vm10292 = vcmp.eq.f32.partialorder %v10291, 8.507059e+37
          %v10293 = vand.u32 %v9867, 2147483648
          %v10294 = vor.u32 1.1754944e-38, %v10293
          %v10295 = vsel %vm10292, %v10294, %v10290
          %v10296 = vmul.f32 %v10230, %v10295
          %v10297 = vrcp.pop %v9871
          %v10298 = vmul.f32 %v9871, %v10297
          %v10299 = vsub.f32 1.0, %v10298
          %v10300 = vmul.f32 %v10297, %v10299
          %v10301 = vadd.f32 %v10297, %v10300
          %vm10302 = vweird.f32 %v9871
          %vm10303 = vweird.f32 %v10297
          %vm10304 = vmor %vm10302, %vm10303
          %v10305 = vsel %vm10304, %v10297, %v10301
          %v10306 = vand.u32 2147483647, %v9871
          %vm10307 = vcmp.eq.f32.partialorder %v10306, 8.507059e+37
          %v10308 = vand.u32 %v9871, 2147483648
          %v10309 = vor.u32 1.1754944e-38, %v10308
          %v10310 = vsel %vm10307, %v10309, %v10305
          %v10311 = vmul.f32 %v10233, %v10310
          %v10312 = vrcp.pop %v9875
          %v10313 = vmul.f32 %v9875, %v10312
          %v10314 = vsub.f32 1.0, %v10313
          %v10315 = vmul.f32 %v10312, %v10314
          %v10316 = vadd.f32 %v10312, %v10315
          %vm10317 = vweird.f32 %v9875
          %vm10318 = vweird.f32 %v10312
          %vm10319 = vmor %vm10317, %vm10318
          %v10320 = vsel %vm10319, %v10312, %v10316
          %v10321 = vand.u32 2147483647, %v9875
          %vm10322 = vcmp.eq.f32.partialorder %v10321, 8.507059e+37
          %v10323 = vand.u32 %v9875, 2147483648
          %v10324 = vor.u32 1.1754944e-38, %v10323
          %v10325 = vsel %vm10322, %v10324, %v10320
          %v10326 = vmul.f32 %v10236, %v10325
          %v10327 = vrcp.pop %v9879
          %v10328 = vmul.f32 %v9879, %v10327
          %v10329 = vsub.f32 1.0, %v10328
          %v10330 = vmul.f32 %v10327, %v10329
          %v10331 = vadd.f32 %v10327, %v10330
          %vm10332 = vweird.f32 %v9879
          %vm10333 = vweird.f32 %v10327
          %vm10334 = vmor %vm10332, %vm10333
          %v10335 = vsel %vm10334, %v10327, %v10331
          %v10336 = vand.u32 2147483647, %v9879
          %vm10337 = vcmp.eq.f32.partialorder %v10336, 8.507059e+37
          %v10338 = vand.u32 %v9879, 2147483648
          %v10339 = vor.u32 1.1754944e-38, %v10338
          %v10340 = vsel %vm10337, %v10339, %v10335
          %v10341 = vmul.f32 %v10239, %v10340
          %v10342 = vrcp.pop %v9883
          %v10343 = vmul.f32 %v9883, %v10342
          %v10344 = vsub.f32 1.0, %v10343
          %v10345 = vmul.f32 %v10342, %v10344
          %v10346 = vadd.f32 %v10342, %v10345
          %vm10347 = vweird.f32 %v9883
          %vm10348 = vweird.f32 %v10342
          %vm10349 = vmor %vm10347, %vm10348
          %v10350 = vsel %vm10349, %v10342, %v10346
          %v10351 = vand.u32 2147483647, %v9883
          %vm10352 = vcmp.eq.f32.partialorder %v10351, 8.507059e+37
          %v10353 = vand.u32 %v9883, 2147483648
          %v10354 = vor.u32 1.1754944e-38, %v10353
          %v10355 = vsel %vm10352, %v10354, %v10350
          %v10356 = vmul.f32 %v10242, %v10355
          %v10357 = vrcp.pop %v9887
          %v10358 = vmul.f32 %v9887, %v10357
          %v10359 = vsub.f32 1.0, %v10358
          %v10360 = vmul.f32 %v10357, %v10359
          %v10361 = vadd.f32 %v10357, %v10360
          %vm10362 = vweird.f32 %v9887
          %vm10363 = vweird.f32 %v10357
          %vm10364 = vmor %vm10362, %vm10363
          %v10365 = vsel %vm10364, %v10357, %v10361
          %v10366 = vand.u32 2147483647, %v9887
          %vm10367 = vcmp.eq.f32.partialorder %v10366, 8.507059e+37
          %v10368 = vand.u32 %v9887, 2147483648
          %v10369 = vor.u32 1.1754944e-38, %v10368
          %v10370 = vsel %vm10367, %v10369, %v10365
          %v10371 = vmul.f32 %v10245, %v10370
          %v10372 = vrcp.pop %v9891
          %v10373 = vmul.f32 %v9891, %v10372
          %v10374 = vsub.f32 1.0, %v10373
          %v10375 = vmul.f32 %v10372, %v10374
          %v10376 = vadd.f32 %v10372, %v10375
          %vm10377 = vweird.f32 %v9891
          %vm10378 = vweird.f32 %v10372
          %vm10379 = vmor %vm10377, %vm10378
          %v10380 = vsel %vm10379, %v10372, %v10376
          %v10381 = vand.u32 2147483647, %v9891
          %vm10382 = vcmp.eq.f32.partialorder %v10381, 8.507059e+37
          %v10383 = vand.u32 %v9891, 2147483648
          %v10384 = vor.u32 1.1754944e-38, %v10383
          %v10385 = vsel %vm10382, %v10384, %v10380
          %v10386 = vmul.f32 %v10248, %v10385
          %v10387 = vrcp.pop %v9895
          %v10388 = vmul.f32 %v9895, %v10387
          %v10389 = vsub.f32 1.0, %v10388
          %v10390 = vmul.f32 %v10387, %v10389
          %v10391 = vadd.f32 %v10387, %v10390
          %vm10392 = vweird.f32 %v9895
          %vm10393 = vweird.f32 %v10387
          %vm10394 = vmor %vm10392, %vm10393
          %v10395 = vsel %vm10394, %v10387, %v10391
          %v10396 = vand.u32 2147483647, %v9895
          %vm10397 = vcmp.eq.f32.partialorder %v10396, 8.507059e+37
          %v10398 = vand.u32 %v9895, 2147483648
          %v10399 = vor.u32 1.1754944e-38, %v10398
          %v10400 = vsel %vm10397, %v10399, %v10395
          %v10401 = vmul.f32 %v10251, %v10400
          %v10402 = vrcp.pop %v9899
          %v10403 = vmul.f32 %v9899, %v10402
          %v10404 = vsub.f32 1.0, %v10403
          %v10405 = vmul.f32 %v10402, %v10404
          %v10406 = vadd.f32 %v10402, %v10405
          %vm10407 = vweird.f32 %v9899
          %vm10408 = vweird.f32 %v10402
          %vm10409 = vmor %vm10407, %vm10408
          %v10410 = vsel %vm10409, %v10402, %v10406
          %v10411 = vand.u32 2147483647, %v9899
          %vm10412 = vcmp.eq.f32.partialorder %v10411, 8.507059e+37
          %v10413 = vand.u32 %v9899, 2147483648
          %v10414 = vor.u32 1.1754944e-38, %v10413
          %v10415 = vsel %vm10412, %v10414, %v10410
          %v10416 = vmul.f32 %v10254, %v10415
          %v10417 = vrcp.pop %v9903
          %v10418 = vmul.f32 %v9903, %v10417
          %v10419 = vsub.f32 1.0, %v10418
          %v10420 = vmul.f32 %v10417, %v10419
          %v10421 = vadd.f32 %v10417, %v10420
          %vm10422 = vweird.f32 %v9903
          %vm10423 = vweird.f32 %v10417
          %vm10424 = vmor %vm10422, %vm10423
          %v10425 = vsel %vm10424, %v10417, %v10421
          %v10426 = vand.u32 2147483647, %v9903
          %vm10427 = vcmp.eq.f32.partialorder %v10426, 8.507059e+37
          %v10428 = vand.u32 %v9903, 2147483648
          %v10429 = vor.u32 1.1754944e-38, %v10428
          %v10430 = vsel %vm10427, %v10429, %v10425
          %v10431 = vmul.f32 %v10257, %v10430
          %v10432 = vrcp.pop %v9907
          %v10433 = vmul.f32 %v9907, %v10432
          %v10434 = vsub.f32 1.0, %v10433
          %v10435 = vmul.f32 %v10432, %v10434
          %v10436 = vadd.f32 %v10432, %v10435
          %vm10437 = vweird.f32 %v9907
          %vm10438 = vweird.f32 %v10432
          %vm10439 = vmor %vm10437, %vm10438
          %v10440 = vsel %vm10439, %v10432, %v10436
          %v10441 = vand.u32 2147483647, %v9907
          %vm10442 = vcmp.eq.f32.partialorder %v10441, 8.507059e+37
          %v10443 = vand.u32 %v9907, 2147483648
          %v10444 = vor.u32 1.1754944e-38, %v10443
          %v10445 = vsel %vm10442, %v10444, %v10440
          %v10446 = vmul.f32 %v10260, %v10445
          %v10447 = vrcp.pop %v9911
          %v10448 = vmul.f32 %v9911, %v10447
          %v10449 = vsub.f32 1.0, %v10448
          %v10450 = vmul.f32 %v10447, %v10449
          %v10451 = vadd.f32 %v10447, %v10450
          %vm10452 = vweird.f32 %v9911
          %vm10453 = vweird.f32 %v10447
          %vm10454 = vmor %vm10452, %vm10453
          %v10455 = vsel %vm10454, %v10447, %v10451
          %v10456 = vand.u32 2147483647, %v9911
          %vm10457 = vcmp.eq.f32.partialorder %v10456, 8.507059e+37
          %v10458 = vand.u32 %v9911, 2147483648
          %v10459 = vor.u32 1.1754944e-38, %v10458
          %v10460 = vsel %vm10457, %v10459, %v10455
          %v10461 = vmul.f32 %v10263, %v10460
          %v10462 = vrcp.pop %v9915
          %v10463 = vmul.f32 %v9915, %v10462
          %v10464 = vsub.f32 1.0, %v10463
          %v10465 = vmul.f32 %v10462, %v10464
          %v10466 = vadd.f32 %v10462, %v10465
          %vm10467 = vweird.f32 %v9915
          %vm10468 = vweird.f32 %v10462
          %vm10469 = vmor %vm10467, %vm10468
          %v10470 = vsel %vm10469, %v10462, %v10466
          %v10471 = vand.u32 2147483647, %v9915
          %vm10472 = vcmp.eq.f32.partialorder %v10471, 8.507059e+37
          %v10473 = vand.u32 %v9915, 2147483648
          %v10474 = vor.u32 1.1754944e-38, %v10473
          %v10475 = vsel %vm10472, %v10474, %v10470
          %v10476 = vmul.f32 %v10266, %v10475
          %v10477 = vrcp.pop %v9919
          %v10478 = vmul.f32 %v9919, %v10477
          %v10479 = vsub.f32 1.0, %v10478
          %v10480 = vmul.f32 %v10477, %v10479
          %v10481 = vadd.f32 %v10477, %v10480
          %vm10482 = vweird.f32 %v9919
          %vm10483 = vweird.f32 %v10477
          %vm10484 = vmor %vm10482, %vm10483
          %v10485 = vsel %vm10484, %v10477, %v10481
          %v10486 = vand.u32 2147483647, %v9919
          %vm10487 = vcmp.eq.f32.partialorder %v10486, 8.507059e+37
          %v10488 = vand.u32 %v9919, 2147483648
          %v10489 = vor.u32 1.1754944e-38, %v10488
          %v10490 = vsel %vm10487, %v10489, %v10485
          %v10491 = vmul.f32 %v10269, %v10490
          %v10492 = vrcp.pop %v9923
          %v10493 = vmul.f32 %v9923, %v10492
          %v10494 = vsub.f32 1.0, %v10493
          %v10495 = vmul.f32 %v10492, %v10494
          %v10496 = vadd.f32 %v10492, %v10495
          %vm10497 = vweird.f32 %v9923
          %vm10498 = vweird.f32 %v10492
          %vm10499 = vmor %vm10497, %vm10498
          %v10500 = vsel %vm10499, %v10492, %v10496
          %v10501 = vand.u32 2147483647, %v9923
          %vm10502 = vcmp.eq.f32.partialorder %v10501, 8.507059e+37
          %v10503 = vand.u32 %v9923, 2147483648
          %v10504 = vor.u32 1.1754944e-38, %v10503
          %v10505 = vsel %vm10502, %v10504, %v10500
          %v10506 = vmul.f32 %v10272, %v10505
          %v10507 = vrcp.pop %v9927
          %v10508 = vmul.f32 %v9927, %v10507
          %v10509 = vsub.f32 1.0, %v10508
          %v10510 = vmul.f32 %v10507, %v10509
          %v10511 = vadd.f32 %v10507, %v10510
          %vm10512 = vweird.f32 %v9927
          %vm10513 = vweird.f32 %v10507
          %vm10514 = vmor %vm10512, %vm10513
          %v10515 = vsel %vm10514, %v10507, %v10511
          %v10516 = vand.u32 2147483647, %v9927
          %vm10517 = vcmp.eq.f32.partialorder %v10516, 8.507059e+37
          %v10518 = vand.u32 %v9927, 2147483648
          %v10519 = vor.u32 1.1754944e-38, %v10518
          %v10520 = vsel %vm10517, %v10519, %v10515
          %v10521 = vmul.f32 %v10275, %v10520
          %v10522 = vrcp.pop %v9931
          %v10523 = vmul.f32 %v9931, %v10522
          %v10524 = vsub.f32 1.0, %v10523
          %v10525 = vmul.f32 %v10522, %v10524
          %v10526 = vadd.f32 %v10522, %v10525
          %vm10527 = vweird.f32 %v9931
          %vm10528 = vweird.f32 %v10522
          %vm10529 = vmor %vm10527, %vm10528
          %v10530 = vsel %vm10529, %v10522, %v10526
          %v10531 = vand.u32 2147483647, %v9931
          %vm10532 = vcmp.eq.f32.partialorder %v10531, 8.507059e+37
          %v10533 = vand.u32 %v9931, 2147483648
          %v10534 = vor.u32 1.1754944e-38, %v10533
          %v10535 = vsel %vm10532, %v10534, %v10530
          %v10536 = vmul.f32 %v10278, %v10535
          %v10537 = vrcp.pop %v9935
          %v10538 = vmul.f32 %v9935, %v10537
          %v10539 = vsub.f32 1.0, %v10538
          %v10540 = vmul.f32 %v10537, %v10539
          %v10541 = vadd.f32 %v10537, %v10540
          %vm10542 = vweird.f32 %v9935
          %vm10543 = vweird.f32 %v10537
          %vm10544 = vmor %vm10542, %vm10543
          %v10545 = vsel %vm10544, %v10537, %v10541
          %v10546 = vand.u32 2147483647, %v9935
          %vm10547 = vcmp.eq.f32.partialorder %v10546, 8.507059e+37
          %v10548 = vand.u32 %v9935, 2147483648
          %v10549 = vor.u32 1.1754944e-38, %v10548
          %v10550 = vsel %vm10547, %v10549, %v10545
          %v10551 = vmul.f32 %v10281, %v10550
          %v10552 = vadd.f32 %v9290, %v10296
          %v10553 = vadd.f32 %v9291, %v10311
          %v10554 = vadd.f32 %v9292, %v10326
          %v10555 = vadd.f32 %v9293, %v10341
          %v10556 = vadd.f32 %v9294, %v10356
          %v10557 = vadd.f32 %v9295, %v10371
          %v10558 = vadd.f32 %v9296, %v10386
          %v10559 = vadd.f32 %v9297, %v10401
          %v10560 = vadd.f32 %v9298, %v10416
          %v10561 = vadd.f32 %v9299, %v10431
          %v10562 = vadd.f32 %v9300, %v10446
          %v10563 = vadd.f32 %v9301, %v10461
          %v10564 = vadd.f32 %v9302, %v10476
          %v10565 = vadd.f32 %v9303, %v10491
          %v10566 = vadd.f32 %v9304, %v10506
          %v10567 = vadd.f32 %v9305, %v10521
          %v10568 = vadd.f32 %v9306, %v10536
          %v10569 = vadd.f32 %v9307, %v10551
          %v10570 = vstv %s267
          %v10571 = vadd.f32 %v10552, %v10570
          %v10572 = vadd.f32 %v10553, %v10570
          %v10573 = vadd.f32 %v10554, %v10570
          %v10574 = vadd.f32 %v10555, %v10570
          %v10575 = vadd.f32 %v10556, %v10570
          %v10576 = vadd.f32 %v10557, %v10570
          %v10577 = vadd.f32 %v10558, %v10570
          %v10578 = vadd.f32 %v10559, %v10570
          %v10579 = vadd.f32 %v10560, %v10570
          %v10580 = vadd.f32 %v10561, %v10570
          %v10581 = vadd.f32 %v10562, %v10570
          %v10582 = vadd.f32 %v10563, %v10570
          %v10583 = vadd.f32 %v10564, %v10570
          %v10584 = vadd.f32 %v10565, %v10570
          %v10585 = vadd.f32 %v10566, %v10570
          %v10586 = vadd.f32 %v10567, %v10570
          %v10587 = vadd.f32 %v10568, %v10570
          %v10588 = vadd.f32 %v10569, %v10570
          %v10589 = vxor.u32 %v10571, 2147483648
          %v10590 = vxor.u32 %v10572, 2147483648
          %v10591 = vxor.u32 %v10573, 2147483648
          %v10592 = vxor.u32 %v10574, 2147483648
          %v10593 = vxor.u32 %v10575, 2147483648
          %v10594 = vxor.u32 %v10576, 2147483648
          %v10595 = vxor.u32 %v10577, 2147483648
          %v10596 = vxor.u32 %v10578, 2147483648
          %v10597 = vxor.u32 %v10579, 2147483648
          %v10598 = vxor.u32 %v10580, 2147483648
          %v10599 = vxor.u32 %v10581, 2147483648
          %v10600 = vxor.u32 %v10582, 2147483648
          %v10601 = vxor.u32 %v10583, 2147483648
          %v10602 = vxor.u32 %v10584, 2147483648
          %v10603 = vxor.u32 %v10585, 2147483648
          %v10604 = vxor.u32 %v10586, 2147483648
          %v10605 = vxor.u32 %v10587, 2147483648
          %v10606 = vxor.u32 %v10588, 2147483648
          %v10607 = vmul.f32 %v10589, 1.442695
          %v10608 = vpow.pop %v10607
          %v10609 = vmul.f32 %v10590, 1.442695
          %v10610 = vpow.pop %v10609
          %v10611 = vmul.f32 %v10591, 1.442695
          %v10612 = vpow.pop %v10611
          %v10613 = vmul.f32 %v10592, 1.442695
          %v10614 = vpow.pop %v10613
          %v10615 = vmul.f32 %v10593, 1.442695
          %v10616 = vpow.pop %v10615
          %v10617 = vmul.f32 %v10594, 1.442695
          %v10618 = vpow.pop %v10617
          %v10619 = vmul.f32 %v10595, 1.442695
          %v10620 = vpow.pop %v10619
          %v10621 = vmul.f32 %v10596, 1.442695
          %v10622 = vpow.pop %v10621
          %v10623 = vmul.f32 %v10597, 1.442695
          %v10624 = vpow.pop %v10623
          %v10625 = vmul.f32 %v10598, 1.442695
          %v10626 = vpow.pop %v10625
          %v10627 = vmul.f32 %v10599, 1.442695
          %v10628 = vpow.pop %v10627
          %v10629 = vmul.f32 %v10600, 1.442695
          %v10630 = vpow.pop %v10629
          %v10631 = vmul.f32 %v10601, 1.442695
          %v10632 = vpow.pop %v10631
          %v10633 = vmul.f32 %v10602, 1.442695
          %v10634 = vpow.pop %v10633
          %v10635 = vmul.f32 %v10603, 1.442695
          %v10636 = vpow.pop %v10635
          %v10637 = vmul.f32 %v10604, 1.442695
          %v10638 = vpow.pop %v10637
          %v10639 = vmul.f32 %v10605, 1.442695
          %v10640 = vpow.pop %v10639
          %v10641 = vmul.f32 %v10606, 1.442695
          %v10642 = vpow.pop %v10641
          %v10643 = vadd.f32 %v10608, 1.0
          %v10644 = vadd.f32 %v10610, 1.0
          %v10645 = vadd.f32 %v10612, 1.0
          %v10646 = vadd.f32 %v10614, 1.0
          %v10647 = vadd.f32 %v10616, 1.0
          %v10648 = vadd.f32 %v10618, 1.0
          %v10649 = vadd.f32 %v10620, 1.0
          %v10650 = vadd.f32 %v10622, 1.0
          %v10651 = vadd.f32 %v10624, 1.0
          %v10652 = vadd.f32 %v10626, 1.0
          %v10653 = vadd.f32 %v10628, 1.0
          %v10654 = vadd.f32 %v10630, 1.0
          %v10655 = vadd.f32 %v10632, 1.0
          %v10656 = vadd.f32 %v10634, 1.0
          %v10657 = vadd.f32 %v10636, 1.0
          %v10658 = vadd.f32 %v10638, 1.0
          %v10659 = vadd.f32 %v10640, 1.0
          %v10660 = vadd.f32 %v10642, 1.0
          %v10661 = vrcp.pop %v10643
          %v10662 = vmul.f32 %v10643, %v10661
          %v10663 = vsub.f32 1.0, %v10662
          %v10664 = vmul.f32 %v10661, %v10663
          %v10665 = vadd.f32 %v10661, %v10664
          %vm10666 = vweird.f32 %v10643
          %vm10667 = vweird.f32 %v10661
          %vm10668 = vmor %vm10666, %vm10667
          %v10669 = vsel %vm10668, %v10661, %v10665
          %v10670 = vand.u32 2147483647, %v10643
          %vm10671 = vcmp.eq.f32.partialorder %v10670, 8.507059e+37
          %v10672 = vand.u32 %v10643, 2147483648
          %v10673 = vor.u32 1.1754944e-38, %v10672
          %v10674 = vsel %vm10671, %v10673, %v10669
          %v10675 = vmul.f32 1.0, %v10674
          %v10676 = vrcp.pop %v10644
          %v10677 = vmul.f32 %v10644, %v10676
          %v10678 = vsub.f32 1.0, %v10677
          %v10679 = vmul.f32 %v10676, %v10678
          %v10680 = vadd.f32 %v10676, %v10679
          %vm10681 = vweird.f32 %v10644
          %vm10682 = vweird.f32 %v10676
          %vm10683 = vmor %vm10681, %vm10682
          %v10684 = vsel %vm10683, %v10676, %v10680
          %v10685 = vand.u32 2147483647, %v10644
          %vm10686 = vcmp.eq.f32.partialorder %v10685, 8.507059e+37
          %v10687 = vand.u32 %v10644, 2147483648
          %v10688 = vor.u32 1.1754944e-38, %v10687
          %v10689 = vsel %vm10686, %v10688, %v10684
          %v10690 = vmul.f32 1.0, %v10689
          %v10691 = vrcp.pop %v10645
          %v10692 = vmul.f32 %v10645, %v10691
          %v10693 = vsub.f32 1.0, %v10692
          %v10694 = vmul.f32 %v10691, %v10693
          %v10695 = vadd.f32 %v10691, %v10694
          %vm10696 = vweird.f32 %v10645
          %vm10697 = vweird.f32 %v10691
          %vm10698 = vmor %vm10696, %vm10697
          %v10699 = vsel %vm10698, %v10691, %v10695
          %v10700 = vand.u32 2147483647, %v10645
          %vm10701 = vcmp.eq.f32.partialorder %v10700, 8.507059e+37
          %v10702 = vand.u32 %v10645, 2147483648
          %v10703 = vor.u32 1.1754944e-38, %v10702
          %v10704 = vsel %vm10701, %v10703, %v10699
          %v10705 = vmul.f32 1.0, %v10704
          %v10706 = vrcp.pop %v10646
          %v10707 = vmul.f32 %v10646, %v10706
          %v10708 = vsub.f32 1.0, %v10707
          %v10709 = vmul.f32 %v10706, %v10708
          %v10710 = vadd.f32 %v10706, %v10709
          %vm10711 = vweird.f32 %v10646
          %vm10712 = vweird.f32 %v10706
          %vm10713 = vmor %vm10711, %vm10712
          %v10714 = vsel %vm10713, %v10706, %v10710
          %v10715 = vand.u32 2147483647, %v10646
          %vm10716 = vcmp.eq.f32.partialorder %v10715, 8.507059e+37
          %v10717 = vand.u32 %v10646, 2147483648
          %v10718 = vor.u32 1.1754944e-38, %v10717
          %v10719 = vsel %vm10716, %v10718, %v10714
          %v10720 = vmul.f32 1.0, %v10719
          %v10721 = vrcp.pop %v10647
          %v10722 = vmul.f32 %v10647, %v10721
          %v10723 = vsub.f32 1.0, %v10722
          %v10724 = vmul.f32 %v10721, %v10723
          %v10725 = vadd.f32 %v10721, %v10724
          %vm10726 = vweird.f32 %v10647
          %vm10727 = vweird.f32 %v10721
          %vm10728 = vmor %vm10726, %vm10727
          %v10729 = vsel %vm10728, %v10721, %v10725
          %v10730 = vand.u32 2147483647, %v10647
          %vm10731 = vcmp.eq.f32.partialorder %v10730, 8.507059e+37
          %v10732 = vand.u32 %v10647, 2147483648
          %v10733 = vor.u32 1.1754944e-38, %v10732
          %v10734 = vsel %vm10731, %v10733, %v10729
          %v10735 = vmul.f32 1.0, %v10734
          %v10736 = vrcp.pop %v10648
          %v10737 = vmul.f32 %v10648, %v10736
          %v10738 = vsub.f32 1.0, %v10737
          %v10739 = vmul.f32 %v10736, %v10738
          %v10740 = vadd.f32 %v10736, %v10739
          %vm10741 = vweird.f32 %v10648
          %vm10742 = vweird.f32 %v10736
          %vm10743 = vmor %vm10741, %vm10742
          %v10744 = vsel %vm10743, %v10736, %v10740
          %v10745 = vand.u32 2147483647, %v10648
          %vm10746 = vcmp.eq.f32.partialorder %v10745, 8.507059e+37
          %v10747 = vand.u32 %v10648, 2147483648
          %v10748 = vor.u32 1.1754944e-38, %v10747
          %v10749 = vsel %vm10746, %v10748, %v10744
          %v10750 = vmul.f32 1.0, %v10749
          %v10751 = vrcp.pop %v10649
          %v10752 = vmul.f32 %v10649, %v10751
          %v10753 = vsub.f32 1.0, %v10752
          %v10754 = vmul.f32 %v10751, %v10753
          %v10755 = vadd.f32 %v10751, %v10754
          %vm10756 = vweird.f32 %v10649
          %vm10757 = vweird.f32 %v10751
          %vm10758 = vmor %vm10756, %vm10757
          %v10759 = vsel %vm10758, %v10751, %v10755
          %v10760 = vand.u32 2147483647, %v10649
          %vm10761 = vcmp.eq.f32.partialorder %v10760, 8.507059e+37
          %v10762 = vand.u32 %v10649, 2147483648
          %v10763 = vor.u32 1.1754944e-38, %v10762
          %v10764 = vsel %vm10761, %v10763, %v10759
          %v10765 = vmul.f32 1.0, %v10764
          %v10766 = vrcp.pop %v10650
          %v10767 = vmul.f32 %v10650, %v10766
          %v10768 = vsub.f32 1.0, %v10767
          %v10769 = vmul.f32 %v10766, %v10768
          %v10770 = vadd.f32 %v10766, %v10769
          %vm10771 = vweird.f32 %v10650
          %vm10772 = vweird.f32 %v10766
          %vm10773 = vmor %vm10771, %vm10772
          %v10774 = vsel %vm10773, %v10766, %v10770
          %v10775 = vand.u32 2147483647, %v10650
          %vm10776 = vcmp.eq.f32.partialorder %v10775, 8.507059e+37
          %v10777 = vand.u32 %v10650, 2147483648
          %v10778 = vor.u32 1.1754944e-38, %v10777
          %v10779 = vsel %vm10776, %v10778, %v10774
          %v10780 = vmul.f32 1.0, %v10779
          %v10781 = vrcp.pop %v10651
          %v10782 = vmul.f32 %v10651, %v10781
          %v10783 = vsub.f32 1.0, %v10782
          %v10784 = vmul.f32 %v10781, %v10783
          %v10785 = vadd.f32 %v10781, %v10784
          %vm10786 = vweird.f32 %v10651
          %vm10787 = vweird.f32 %v10781
          %vm10788 = vmor %vm10786, %vm10787
          %v10789 = vsel %vm10788, %v10781, %v10785
          %v10790 = vand.u32 2147483647, %v10651
          %vm10791 = vcmp.eq.f32.partialorder %v10790, 8.507059e+37
          %v10792 = vand.u32 %v10651, 2147483648
          %v10793 = vor.u32 1.1754944e-38, %v10792
          %v10794 = vsel %vm10791, %v10793, %v10789
          %v10795 = vmul.f32 1.0, %v10794
          %v10796 = vrcp.pop %v10652
          %v10797 = vmul.f32 %v10652, %v10796
          %v10798 = vsub.f32 1.0, %v10797
          %v10799 = vmul.f32 %v10796, %v10798
          %v10800 = vadd.f32 %v10796, %v10799
          %vm10801 = vweird.f32 %v10652
          %vm10802 = vweird.f32 %v10796
          %vm10803 = vmor %vm10801, %vm10802
          %v10804 = vsel %vm10803, %v10796, %v10800
          %v10805 = vand.u32 2147483647, %v10652
          %vm10806 = vcmp.eq.f32.partialorder %v10805, 8.507059e+37
          %v10807 = vand.u32 %v10652, 2147483648
          %v10808 = vor.u32 1.1754944e-38, %v10807
          %v10809 = vsel %vm10806, %v10808, %v10804
          %v10810 = vmul.f32 1.0, %v10809
          %v10811 = vrcp.pop %v10653
          %v10812 = vmul.f32 %v10653, %v10811
          %v10813 = vsub.f32 1.0, %v10812
          %v10814 = vmul.f32 %v10811, %v10813
          %v10815 = vadd.f32 %v10811, %v10814
          %vm10816 = vweird.f32 %v10653
          %vm10817 = vweird.f32 %v10811
          %vm10818 = vmor %vm10816, %vm10817
          %v10819 = vsel %vm10818, %v10811, %v10815
          %v10820 = vand.u32 2147483647, %v10653
          %vm10821 = vcmp.eq.f32.partialorder %v10820, 8.507059e+37
          %v10822 = vand.u32 %v10653, 2147483648
          %v10823 = vor.u32 1.1754944e-38, %v10822
          %v10824 = vsel %vm10821, %v10823, %v10819
          %v10825 = vmul.f32 1.0, %v10824
          %v10826 = vrcp.pop %v10654
          %v10827 = vmul.f32 %v10654, %v10826
          %v10828 = vsub.f32 1.0, %v10827
          %v10829 = vmul.f32 %v10826, %v10828
          %v10830 = vadd.f32 %v10826, %v10829
          %vm10831 = vweird.f32 %v10654
          %vm10832 = vweird.f32 %v10826
          %vm10833 = vmor %vm10831, %vm10832
          %v10834 = vsel %vm10833, %v10826, %v10830
          %v10835 = vand.u32 2147483647, %v10654
          %vm10836 = vcmp.eq.f32.partialorder %v10835, 8.507059e+37
          %v10837 = vand.u32 %v10654, 2147483648
          %v10838 = vor.u32 1.1754944e-38, %v10837
          %v10839 = vsel %vm10836, %v10838, %v10834
          %v10840 = vmul.f32 1.0, %v10839
          %v10841 = vrcp.pop %v10655
          %v10842 = vmul.f32 %v10655, %v10841
          %v10843 = vsub.f32 1.0, %v10842
          %v10844 = vmul.f32 %v10841, %v10843
          %v10845 = vadd.f32 %v10841, %v10844
          %vm10846 = vweird.f32 %v10655
          %vm10847 = vweird.f32 %v10841
          %vm10848 = vmor %vm10846, %vm10847
          %v10849 = vsel %vm10848, %v10841, %v10845
          %v10850 = vand.u32 2147483647, %v10655
          %vm10851 = vcmp.eq.f32.partialorder %v10850, 8.507059e+37
          %v10852 = vand.u32 %v10655, 2147483648
          %v10853 = vor.u32 1.1754944e-38, %v10852
          %v10854 = vsel %vm10851, %v10853, %v10849
          %v10855 = vmul.f32 1.0, %v10854
          %v10856 = vrcp.pop %v10656
          %v10857 = vmul.f32 %v10656, %v10856
          %v10858 = vsub.f32 1.0, %v10857
          %v10859 = vmul.f32 %v10856, %v10858
          %v10860 = vadd.f32 %v10856, %v10859
          %vm10861 = vweird.f32 %v10656
          %vm10862 = vweird.f32 %v10856
          %vm10863 = vmor %vm10861, %vm10862
          %v10864 = vsel %vm10863, %v10856, %v10860
          %v10865 = vand.u32 2147483647, %v10656
          %vm10866 = vcmp.eq.f32.partialorder %v10865, 8.507059e+37
          %v10867 = vand.u32 %v10656, 2147483648
          %v10868 = vor.u32 1.1754944e-38, %v10867
          %v10869 = vsel %vm10866, %v10868, %v10864
          %v10870 = vmul.f32 1.0, %v10869
          %v10871 = vrcp.pop %v10657
          %v10872 = vmul.f32 %v10657, %v10871
          %v10873 = vsub.f32 1.0, %v10872
          %v10874 = vmul.f32 %v10871, %v10873
          %v10875 = vadd.f32 %v10871, %v10874
          %vm10876 = vweird.f32 %v10657
          %vm10877 = vweird.f32 %v10871
          %vm10878 = vmor %vm10876, %vm10877
          %v10879 = vsel %vm10878, %v10871, %v10875
          %v10880 = vand.u32 2147483647, %v10657
          %vm10881 = vcmp.eq.f32.partialorder %v10880, 8.507059e+37
          %v10882 = vand.u32 %v10657, 2147483648
          %v10883 = vor.u32 1.1754944e-38, %v10882
          %v10884 = vsel %vm10881, %v10883, %v10879
          %v10885 = vmul.f32 1.0, %v10884
          %v10886 = vrcp.pop %v10658
          %v10887 = vmul.f32 %v10658, %v10886
          %v10888 = vsub.f32 1.0, %v10887
          %v10889 = vmul.f32 %v10886, %v10888
          %v10890 = vadd.f32 %v10886, %v10889
          %vm10891 = vweird.f32 %v10658
          %vm10892 = vweird.f32 %v10886
          %vm10893 = vmor %vm10891, %vm10892
          %v10894 = vsel %vm10893, %v10886, %v10890
          %v10895 = vand.u32 2147483647, %v10658
          %vm10896 = vcmp.eq.f32.partialorder %v10895, 8.507059e+37
          %v10897 = vand.u32 %v10658, 2147483648
          %v10898 = vor.u32 1.1754944e-38, %v10897
          %v10899 = vsel %vm10896, %v10898, %v10894
          %v10900 = vmul.f32 1.0, %v10899
          %v10901 = vrcp.pop %v10659
          %v10902 = vmul.f32 %v10659, %v10901
          %v10903 = vsub.f32 1.0, %v10902
          %v10904 = vmul.f32 %v10901, %v10903
          %v10905 = vadd.f32 %v10901, %v10904
          %vm10906 = vweird.f32 %v10659
          %vm10907 = vweird.f32 %v10901
          %vm10908 = vmor %vm10906, %vm10907
          %v10909 = vsel %vm10908, %v10901, %v10905
          %v10910 = vand.u32 2147483647, %v10659
          %vm10911 = vcmp.eq.f32.partialorder %v10910, 8.507059e+37
          %v10912 = vand.u32 %v10659, 2147483648
          %v10913 = vor.u32 1.1754944e-38, %v10912
          %v10914 = vsel %vm10911, %v10913, %v10909
          %v10915 = vmul.f32 1.0, %v10914
          %v10916 = vrcp.pop %v10660
          %v10917 = vmul.f32 %v10660, %v10916
          %v10918 = vsub.f32 1.0, %v10917
          %v10919 = vmul.f32 %v10916, %v10918
          %v10920 = vadd.f32 %v10916, %v10919
          %vm10921 = vweird.f32 %v10660
          %vm10922 = vweird.f32 %v10916
          %vm10923 = vmor %vm10921, %vm10922
          %v10924 = vsel %vm10923, %v10916, %v10920
          %v10925 = vand.u32 2147483647, %v10660
          %vm10926 = vcmp.eq.f32.partialorder %v10925, 8.507059e+37
          %v10927 = vand.u32 %v10660, 2147483648
          %v10928 = vor.u32 1.1754944e-38, %v10927
          %v10929 = vsel %vm10926, %v10928, %v10924
          %v10930 = vmul.f32 1.0, %v10929
          %v10931 = vld [vmem:[%s4] sm:$0xff]
          %v10932 = vld [vmem:[%s4 + $0x8] sm:$0xff]
          %v10933 = vld [vmem:[%s4 + $0x10] sm:$0xff]
          %v10934 = vld [vmem:[%s4 + $0x18] sm:$0xff]
          %v10935 = vld [vmem:[%s4 + $0x20] sm:$0xff]
          %v10936 = vld [vmem:[%s4 + $0x28] sm:$0xff]
          %v10937 = vld [vmem:[%s4 + $0x30] sm:$0xff]
          %v10938 = vld [vmem:[%s4 + $0x38] sm:$0xff]
          %v10939 = vld [vmem:[%s4 + $0x40] sm:$0xff]
          %v10940 = vld [vmem:[%s4 + $0x48] sm:$0xff]
          %v10941 = vld [vmem:[%s4 + $0x50] sm:$0xff]
          %v10942 = vld [vmem:[%s4 + $0x58] sm:$0xff]
          %v10943 = vld [vmem:[%s4 + $0x60] sm:$0xff]
          %v10944 = vld [vmem:[%s4 + $0x68] sm:$0xff]
          %v10945 = vld [vmem:[%s4 + $0x70] sm:$0xff]
          %v10946 = vld [vmem:[%s4 + $0x78] sm:$0xff]
          %v10947 = vld [vmem:[%s4 + $0x80] sm:$0xff]
          %v10948 = vld [vmem:[%s4 + $0x88] sm:$0xff]
          %v10949 = vmul.f32 %v10675, %v10931
          %v10950 = vmul.f32 %v10690, %v10932
          %v10951 = vmul.f32 %v10705, %v10933
          %v10952 = vmul.f32 %v10720, %v10934
          %v10953 = vmul.f32 %v10735, %v10935
          %v10954 = vmul.f32 %v10750, %v10936
          %v10955 = vmul.f32 %v10765, %v10937
          %v10956 = vmul.f32 %v10780, %v10938
          %v10957 = vmul.f32 %v10795, %v10939
          %v10958 = vmul.f32 %v10810, %v10940
          %v10959 = vmul.f32 %v10825, %v10941
          %v10960 = vmul.f32 %v10840, %v10942
          %v10961 = vmul.f32 %v10855, %v10943
          %v10962 = vmul.f32 %v10870, %v10944
          %v10963 = vmul.f32 %v10885, %v10945
          %v10964 = vmul.f32 %v10900, %v10946
          %v10965 = vmul.f32 %v10915, %v10947
          %v10966 = vmul.f32 %v10930, %v10948
          %vm10967 = vcmask 7168
          %v10968 = vsel %vm10967, %v10949, 0.0
          %v10969 = vsel %vm10967, %v10950, 0.0
          %v10970 = vadd.f32 %v10968, %v10969
          %v10971 = vsel %vm10967, %v10951, 0.0
          %v10972 = vadd.f32 %v10970, %v10971
          %v10973 = vsel %vm10967, %v10952, 0.0
          %v10974 = vadd.f32 %v10972, %v10973
          %v10975 = vsel %vm10967, %v10953, 0.0
          %v10976 = vadd.f32 %v10974, %v10975
          %v10977 = vsel %vm10967, %v10954, 0.0
          %v10978 = vadd.f32 %v10976, %v10977
          %v10979 = vsel %vm10967, %v10955, 0.0
          %v10980 = vadd.f32 %v10978, %v10979
          %v10981 = vsel %vm10967, %v10956, 0.0
          %v10982 = vadd.f32 %v10980, %v10981
          %v10983 = vsel %vm10967, %v10957, 0.0
          %v10984 = vadd.f32 %v10982, %v10983
          %v10985 = vsel %vm10967, %v10958, 0.0
          %v10986 = vadd.f32 %v10984, %v10985
          %v10987 = vsel %vm10967, %v10959, 0.0
          %v10988 = vadd.f32 %v10986, %v10987
          %v10989 = vsel %vm10967, %v10960, 0.0
          %v10990 = vadd.f32 %v10988, %v10989
          %v10991 = vsel %vm10967, %v10961, 0.0
          %v10992 = vadd.f32 %v10990, %v10991
          %v10993 = vsel %vm10967, %v10962, 0.0
          %v10994 = vadd.f32 %v10992, %v10993
          %v10995 = vsel %vm10967, %v10963, 0.0
          %v10996 = vadd.f32 %v10994, %v10995
          %v10997 = vsel %vm10967, %v10964, 0.0
          %v10998 = vadd.f32 %v10996, %v10997
          %v10999 = vsel %vm10967, %v10965, 0.0
          %v11000 = vadd.f32 %v10998, %v10999
          %v11001 = vsel %vm10967, %v10966, 0.0
          %v11002 = vadd.f32 %v11000, %v11001
          %11003 = vadd.xlane.f32.xlu0 %v11002
          %v11004 = vpop.xlane.xlu0 %11003
          %v11005 = vrot.slane %v11004, 4
          %v11006 = vadd.f32 %v11004, %v11005
          %v11007 = vrot.slane %v11006, 2
          %v11008 = vadd.f32 %v11006, %v11007
          %v11009 = vrot.slane %v11008, 1
          %v11010 = vadd.f32 %v11008, %v11009
          %s11011 = vtos %v11010
          %s11012 = sadd.f32 %s11011, %s268
          %s11013 = sxor.u32 %s11012, 2147483648
          %v11014 = vstv %s11013
          %v11015 = vmul.f32 %v11014, 1.442695
          %v11016 = vpow.pop %v11015
          %s11017 = vtos %v11016
          %s11018 = sadd.f32 %s11017, 1.0
          %v11019 = vstv %s11018
          %v11020 = vrcp.pop %v11019
          %v11021 = vmul.f32 %v11019, %v11020
          %v11022 = vsub.f32 1.0, %v11021
          %v11023 = vmul.f32 %v11020, %v11022
          %v11024 = vadd.f32 %v11020, %v11023
          %vm11025 = vweird.f32 %v11019
          %vm11026 = vweird.f32 %v11020
          %vm11027 = vmor %vm11025, %vm11026
          %v11028 = vsel %vm11027, %v11020, %v11024
          %v11029 = vand.u32 2147483647, %v11019
          %vm11030 = vcmp.eq.f32.partialorder %v11029, 8.507059e+37
          %v11031 = vand.u32 %v11019, 2147483648
          %v11032 = vor.u32 1.1754944e-38, %v11031
          %v11033 = vsel %vm11030, %v11032, %v11028
          %s11034 = vtos %v11033
          %v11035 = vlaneseq
          %v11036 = vand.u32 %v11035, 127
          %v11037 = vstv %s270
          %vm11038 = vcmp.eq.s32.totalorder %v11036, %v11037
          %v11039 = vstv %s11034
          %v11040 = vsel %vm11038, %v11039, %v275
        $region53: #{attention_classifier.1} parent=43 // loop_footer
          %s274 = sadd.s32 1, %s270
        $region54: #{attention_classifier.1} parent=43 // loop_footer_branch
          %269 = sbr.rel target = $region50
        $region55: #{attention_classifier.1} parent=43 // loop_exit
          _
        %vm11041 = vcmask 57344
        %11042 = vst.msk [vmem:[%s266] sm:$0x1] %vm11041, %v275
        %p11043 = scmp.lt.s32.totalorder %s18, 1
        %s11044 = scalar_select %p11043, %s18, 1
        %s11045 = scalar_lea.vmem %s6, %s11044
        // Predicated region
        $region56: #{attention_classifier.1} parent=43 // pred_check
          %p11046 = pneg %p167
        $region57: #{attention_classifier.1} parent=43 // pred_check_branch
          %11048 = sbr.rel (%p11046) target = $region59
        $region58: #{attention_classifier.1} parent=43 // pred_region
          _
        $region59: #{attention_classifier.1} parent=43 // pred_fallthru
          _
      $region44: #{attention_classifier.1} parent=5 // pred_fallthru
        _
      %p11049 = scmp.le.s32.totalorder 2, %s13
      // Predicated region
      $region60: #{attention_classifier.1} parent=5 // pred_check
        %p11050 = pneg %p11049
      $region61: #{attention_classifier.1} parent=5 // pred_check_branch
        %11052 = sbr.rel (%p11050) target = $region63
      $region62: #{attention_classifier.1} parent=5 // pred_region
        %s11053 = ssub.s32 %s13, 2
        // Predicated region
        $region64: #{attention_classifier.1} parent=62 // pred_check
          %p11054 = pneg %p173
        $region65: #{attention_classifier.1} parent=62 // pred_check_branch
          %11056 = sbr.rel (%p11054) target = $region67
        $region66: #{attention_classifier.1} parent=62 // pred_region
          %p11057 = scmp.lt.s32.totalorder %s19, 1
          %s11058 = scalar_select %p11057, %s19, 1
          %s11059 = scalar_lea.vmem %s6, %s11058
        $region67: #{attention_classifier.1} parent=62 // pred_fallthru
          _
      $region63: #{attention_classifier.1} parent=5 // pred_fallthru
        _
    $region6: #{attention_classifier.1} parent=1 // loop_footer
      %s17 = sadd.s32 1, %s13
    $region7: #{attention_classifier.1} parent=1 // loop_footer_branch
      %12 = sbr.rel target = $region3
    $region8: #{attention_classifier.1} parent=1 // loop_exit
      _
    %11060 = vsyncpa [#allocation4], 1
    %s11061 = scalar_lea.sflag [#allocation4], 1
    %11062 = vsyncpa %s11061, 1

</llo_original>
